<compile_context>
chip_gen: v7x
topology: tpu7x:2x2x1
jax: 0.10.0
libtpu: 0.0.40
codegen_flags: <defaults>
</compile_context>

<pallas_src>
import jax
import jax.numpy as jnp
from jax.experimental import pallas as pl
from jax.experimental.pallas import tpu as pltpu

HIDDEN = 512
MAX_TB = 1024        # batch-tile cap; always a multiple of 256


def _generator_kernel(x1_ref, z_ref, small_ref, w2_ref, w3_ref, w4_ref, b5_ref,
                      o_ref):
    # Transposed ("features x batch") formulation: activations are (512, half),
    # the batch lives on the lane axis, so loads and the output store are
    # lane-dense and no in-kernel transpose is needed.
    w1c0 = small_ref[:, 0:1]      # (H,1) layer-1 weights for x1
    w1c1 = small_ref[:, 1:2]      # (H,1) layer-1 weights for z
    b1 = small_ref[:, 2:3]
    b2 = small_ref[:, 3:4]
    b3 = small_ref[:, 4:5]
    b4 = small_ref[:, 5:6]
    w5c = small_ref[:, 6:7]       # (H,1) output weights, f32
    b5 = b5_ref[0]                # scalar output bias from SMEM

    tb = o_ref.shape[1]
    half = tb // 2                # TB is a multiple of 256 -> half % 128 == 0
    lane_slices = (slice(0, half), slice(half, tb))

    # Layer 1 (K=2): VPU outer-product broadcast, two independent half-tiles so
    # later VPU epilogues can hide under the other half's MXU matmul.
    chunks = []
    for sl in lane_slices:
        h = w1c0 * x1_ref[:, sl] + w1c1 * z_ref[:, sl] + b1     # (H, half) f32
        chunks.append(jnp.maximum(h, 0.0))

    # Layers 2-4: bf16 operands into the MXU (W^T @ h), f32 accumulate,
    # f32 bias + ReLU on the VPU.  The two half-tiles give the scheduler
    # independent chains to interleave MXU work with the VPU epilogue.
    for w_ref, b in ((w2_ref, b2), (w3_ref, b3), (w4_ref, b4)):
        w = w_ref[...]
        chunks = [
            jnp.maximum(
                jnp.dot(w, h.astype(jnp.bfloat16),
                        preferred_element_type=jnp.float32) + b, 0.0)
            for h in chunks
        ]

    # Layer 5 (512 -> 1): f32 multiply (VPU) + sublane reduce (XLU); keeps the
    # output layer un-quantized and the (1, TB) store lane-dense.
    for sl, h in zip(lane_slices, chunks):
        row = jnp.sum(h * w5c, axis=0, keepdims=True) + b5      # (1, half)
        o_ref[:, sl] = row.astype(o_ref.dtype)


def _round_up(n, m):
    return ((n + m - 1) // m) * m


def _choose_tile(batch):
    if batch <= 256:
        return 256
    # Prefer >=2 tiles so v7x's second TensorCore gets work; TB stays a
    # multiple of 256 so the half-tile lane split is 128-aligned.
    return min(MAX_TB, _round_up(pl.cdiv(batch, 2), 256))


def prepare_params(params):
    """One-time parameter preprocessing (hoisted out of the per-call path)."""
    (w1, b1), (w2, b2), (w3, b3), (w4, b4), (w5, b5) = params
    f32, bf16 = jnp.float32, jnp.bfloat16
    small = jnp.zeros((HIDDEN, 8), f32)
    small = small.at[:, 0].set(w1[0, :].astype(f32))
    small = small.at[:, 1].set(w1[1, :].astype(f32))
    small = small.at[:, 2].set(b1.astype(f32))
    small = small.at[:, 3].set(b2.astype(f32))
    small = small.at[:, 4].set(b3.astype(f32))
    small = small.at[:, 5].set(b4.astype(f32))
    small = small.at[:, 6].set(w5[:, 0].astype(f32))
    w2t = w2.T.astype(bf16)       # W^T for the transposed formulation
    w3t = w3.T.astype(bf16)
    w4t = w4.T.astype(bf16)
    b5s = jnp.reshape(b5, (1,)).astype(f32)
    return small, w2t, w3t, w4t, b5s


def generator_forward(x1, z, prepared):
    """x1: (B,1), z: (B,1) -> (B,1) f32. Same math as the PyTorch Generator."""
    small, w2t, w3t, w4t, b5s = prepared

    B = x1.shape[0]
    TB = _choose_tile(B)
    n_tiles = pl.cdiv(B, TB)
    B_pad = n_tiles * TB

    f32 = jnp.float32
    x1r = jnp.pad(x1.astype(f32).reshape(1, B), ((0, 0), (0, B_pad - B)))
    zr = jnp.pad(z.astype(f32).reshape(1, B), ((0, 0), (0, B_pad - B)))

    def batch_map(i):      # blocks that move with the batch tile
        return (0, i)

    def const_map(i):      # weights: same block every step -> VMEM resident
        return (0, 0)

    in_specs = [
        pl.BlockSpec((1, TB), batch_map),                    # x1 (1, B_pad)
        pl.BlockSpec((1, TB), batch_map),                    # z
        pl.BlockSpec((HIDDEN, 8), const_map),                # packed small f32
        pl.BlockSpec((HIDDEN, HIDDEN), const_map),           # w2^T bf16
        pl.BlockSpec((HIDDEN, HIDDEN), const_map),           # w3^T bf16
        pl.BlockSpec((HIDDEN, HIDDEN), const_map),           # w4^T bf16
        pl.BlockSpec(memory_space=pltpu.MemorySpace.SMEM),   # b5 scalar
    ]

    flops = B_pad * (4 * HIDDEN + 6 * HIDDEN * HIDDEN + 3 * HIDDEN)
    bytes_accessed = (2 * B_pad * 4                    # x1, z
                      + HIDDEN * 8 * 4                 # packed small params
                      + 3 * HIDDEN * HIDDEN * 2        # w2..w4 bf16
                      + 4                              # b5
                      + B_pad * 4)                     # output row

    out = pl.pallas_call(
        _generator_kernel,
        out_shape=jax.ShapeDtypeStruct((1, B_pad), jnp.float32),
        grid=(n_tiles,),
        in_specs=in_specs,
        out_specs=pl.BlockSpec((1, TB), batch_map),
        compiler_params=pltpu.CompilerParams(
            dimension_semantics=("parallel",),
            vmem_limit_bytes=32 * 1024 * 1024),
        cost_estimate=pl.CostEstimate(flops=flops, transcendentals=0,
                                      bytes_accessed=bytes_accessed),
    )(x1r, zr, small, w2t, w3t, w4t, b5s)

    return out[0, :B].reshape(B, 1)


def init_params(key):
    """Deterministic init mimicking nn.Linear default (uniform +-1/sqrt(fan_in))."""
    dims = [(2, HIDDEN), (HIDDEN, HIDDEN), (HIDDEN, HIDDEN), (HIDDEN, HIDDEN),
            (HIDDEN, 1)]
    params = []
    for (fan_in, fan_out) in dims:
        key, kw, kb = jax.random.split(key, 3)
        bound = 1.0 / jnp.sqrt(jnp.float32(fan_in))
        w = jax.random.uniform(kw, (fan_in, fan_out), jnp.float32, -bound, bound)
        b = jax.random.uniform(kb, (fan_out,), jnp.float32, -bound, bound)
        params.append((w, b))
    return params


def reference_forward(x1, z, params, *, bf16_matmuls):
    """Pure-JAX reference. bf16_matmuls=True mirrors the kernel's numerics
    (bf16 hidden matmuls with f32 accumulation, f32 first/last layers)."""
    (w1, b1), (w2, b2), (w3, b3), (w4, b4), (w5, b5) = params
    x = jnp.concatenate([x1, z], axis=1).astype(jnp.float32)
    h = jnp.maximum(x @ w1 + b1, 0.0)
    for (w, b) in ((w2, b2), (w3, b3), (w4, b4)):
        if bf16_matmuls:
            h = jnp.dot(h.astype(jnp.bfloat16), w.astype(jnp.bfloat16),
                        preferred_element_type=jnp.float32)
        else:
            h = jnp.dot(h, w, precision=jax.lax.Precision.HIGHEST)
        h = jnp.maximum(h + b, 0.0)
    return h @ w5 + b5        # output layer stays f32 in both modes


if __name__ == "__main__":
    key = jax.random.PRNGKey(0)
    kp, kx, kz = jax.random.split(key, 3)

    params = init_params(kp)
    prepared = prepare_params(params)

    B = 300  # non-multiple of the batch tile: exercises padding + a 2-tile grid
    x1 = jax.random.normal(kx, (B, 1), jnp.float32)
    z = jax.random.normal(kz, (B, 1), jnp.float32)

    fwd = jax.jit(generator_forward)
    out = jax.block_until_ready(fwd(x1, z, prepared))

    ref_bf16 = reference_forward(x1, z, params, bf16_matmuls=True)
    ref_f32 = reference_forward(x1, z, params, bf16_matmuls=False)

    assert out.shape == (B, 1)
    # Check against a reference with matching (bf16-in, f32-acc) hidden layers.
    assert jnp.allclose(out, ref_bf16, atol=5e-3, rtol=5e-3), (
        float(jnp.max(jnp.abs(out - ref_bf16))))
    # Loose check against the full-f32 PyTorch-equivalent math.
    assert float(jnp.max(jnp.abs(out - ref_f32))) < 5e-2

    print("KERNEL_OK")
</pallas_src>

<mosaic_0001>
module attributes {stable_mosaic.version = 11 : i64} {
  func.func @_generator_kernel(%arg0: i32, %arg1: memref<1x256xf32, #tpu.memory_space<vmem>>, %arg2: memref<1x256xf32, #tpu.memory_space<vmem>>, %arg3: memref<512x8xf32, #tpu.memory_space<vmem>>, %arg4: memref<512x512xbf16, #tpu.memory_space<vmem>>, %arg5: memref<512x512xbf16, #tpu.memory_space<vmem>>, %arg6: memref<512x512xbf16, #tpu.memory_space<vmem>>, %arg7: memref<1xf32, #tpu.memory_space<smem>>, %arg8: memref<1x256xf32, #tpu.memory_space<vmem>>) attributes {dimension_semantics = [#tpu.dimension_semantics<parallel>], iteration_bounds = array<i64: 2>, scalar_prefetch = 0 : i64, scratch_operands = 0 : i64, tpu.core_type = #tpu.core_type<tc>, window_params = [{transform_indices = @transform_0, window_bounds = array<i64: 1, 256>}, {transform_indices = @transform_1, window_bounds = array<i64: 1, 256>}, {pipeline_mode = #tpu.pipeline_mode<synchronous>, transform_indices = @transform_2, window_bounds = array<i64: 512, 8>}, {pipeline_mode = #tpu.pipeline_mode<synchronous>, transform_indices = @transform_3, window_bounds = array<i64: 512, 512>}, {pipeline_mode = #tpu.pipeline_mode<synchronous>, transform_indices = @transform_4, window_bounds = array<i64: 512, 512>}, {pipeline_mode = #tpu.pipeline_mode<synchronous>, transform_indices = @transform_5, window_bounds = array<i64: 512, 512>}, {transform_indices = @transform_6, window_bounds = array<i64: 1>}, {transform_indices = @transform_7, window_bounds = array<i64: 1, 256>}]} {
    %c0 = arith.constant 0 : index
    %c0_0 = arith.constant 0 : index
    %0 = vector.load %arg3[%c0, %c0_0] : memref<512x8xf32, #tpu.memory_space<vmem>>, vector<512x1xf32>
    %c0_1 = arith.constant 0 : index
    %c1 = arith.constant 1 : index
    %1 = vector.load %arg3[%c0_1, %c1] : memref<512x8xf32, #tpu.memory_space<vmem>>, vector<512x1xf32>
    %c0_2 = arith.constant 0 : index
    %c2 = arith.constant 2 : index
    %2 = vector.load %arg3[%c0_2, %c2] : memref<512x8xf32, #tpu.memory_space<vmem>>, vector<512x1xf32>
    %c0_3 = arith.constant 0 : index
    %c3 = arith.constant 3 : index
    %3 = vector.load %arg3[%c0_3, %c3] : memref<512x8xf32, #tpu.memory_space<vmem>>, vector<512x1xf32>
    %c0_4 = arith.constant 0 : index
    %c4 = arith.constant 4 : index
    %4 = vector.load %arg3[%c0_4, %c4] : memref<512x8xf32, #tpu.memory_space<vmem>>, vector<512x1xf32>
    %c0_5 = arith.constant 0 : index
    %c5 = arith.constant 5 : index
    %5 = vector.load %arg3[%c0_5, %c5] : memref<512x8xf32, #tpu.memory_space<vmem>>, vector<512x1xf32>
    %c0_6 = arith.constant 0 : index
    %c6 = arith.constant 6 : index
    %6 = vector.load %arg3[%c0_6, %c6] : memref<512x8xf32, #tpu.memory_space<vmem>>, vector<512x1xf32>
    %c0_7 = arith.constant 0 : index
    %7 = memref.load %arg7[%c0_7] : memref<1xf32, #tpu.memory_space<smem>>
    %c0_8 = arith.constant 0 : index
    %c0_9 = arith.constant 0 : index
    %8 = vector.load %arg1[%c0_8, %c0_9] : memref<1x256xf32, #tpu.memory_space<vmem>>, vector<1x128xf32>
    %9 = vector.broadcast %0 : vector<512x1xf32> to vector<512x128xf32>
    %10 = vector.broadcast %8 : vector<1x128xf32> to vector<512x128xf32>
    %11 = arith.mulf %9, %10 : vector<512x128xf32>
    %c0_10 = arith.constant 0 : index
    %c0_11 = arith.constant 0 : index
    %12 = vector.load %arg2[%c0_10, %c0_11] : memref<1x256xf32, #tpu.memory_space<vmem>>, vector<1x128xf32>
    %13 = vector.broadcast %1 : vector<512x1xf32> to vector<512x128xf32>
    %14 = vector.broadcast %12 : vector<1x128xf32> to vector<512x128xf32>
    %15 = arith.mulf %13, %14 : vector<512x128xf32>
    %16 = arith.addf %11, %15 : vector<512x128xf32>
    %17 = vector.broadcast %2 : vector<512x1xf32> to vector<512x128xf32>
    %18 = arith.addf %16, %17 : vector<512x128xf32>
    %cst = arith.constant 0.000000e+00 : f32
    %19 = vector.broadcast %cst : f32 to vector<512x128xf32>
    %20 = arith.maximumf %18, %19 : vector<512x128xf32>
    %c0_12 = arith.constant 0 : index
    %c128 = arith.constant 128 : index
    %21 = vector.load %arg1[%c0_12, %c128] : memref<1x256xf32, #tpu.memory_space<vmem>>, vector<1x128xf32>
    %22 = vector.broadcast %0 : vector<512x1xf32> to vector<512x128xf32>
    %23 = vector.broadcast %21 : vector<1x128xf32> to vector<512x128xf32>
    %24 = arith.mulf %22, %23 : vector<512x128xf32>
    %c0_13 = arith.constant 0 : index
    %c128_14 = arith.constant 128 : index
    %25 = vector.load %arg2[%c0_13, %c128_14] : memref<1x256xf32, #tpu.memory_space<vmem>>, vector<1x128xf32>
    %26 = vector.broadcast %1 : vector<512x1xf32> to vector<512x128xf32>
    %27 = vector.broadcast %25 : vector<1x128xf32> to vector<512x128xf32>
    %28 = arith.mulf %26, %27 : vector<512x128xf32>
    %29 = arith.addf %24, %28 : vector<512x128xf32>
    %30 = vector.broadcast %2 : vector<512x1xf32> to vector<512x128xf32>
    %31 = arith.addf %29, %30 : vector<512x128xf32>
    %cst_15 = arith.constant 0.000000e+00 : f32
    %32 = vector.broadcast %cst_15 : f32 to vector<512x128xf32>
    %33 = arith.maximumf %31, %32 : vector<512x128xf32>
    %c0_16 = arith.constant 0 : index
    %c0_17 = arith.constant 0 : index
    %34 = vector.load %arg4[%c0_16, %c0_17] : memref<512x512xbf16, #tpu.memory_space<vmem>>, vector<512x512xbf16>
    %35 = arith.truncf %20 : vector<512x128xf32> to vector<512x128xbf16>
    %cst_18 = arith.constant dense<0.000000e+00> : vector<512x128xf32>
    %36 = tpu.matmul %34, %35, %cst_18 {dimension_numbers = #tpu.dot_dimension_numbers<[1], [0], [0], [1], [0, 0, 1, 1], [], []>} : vector<512x512xbf16>, vector<512x128xbf16>, vector<512x128xf32> -> vector<512x128xf32>
    %37 = vector.broadcast %3 : vector<512x1xf32> to vector<512x128xf32>
    %38 = arith.addf %36, %37 : vector<512x128xf32>
    %cst_19 = arith.constant 0.000000e+00 : f32
    %39 = vector.broadcast %cst_19 : f32 to vector<512x128xf32>
    %40 = arith.maximumf %38, %39 : vector<512x128xf32>
    %41 = arith.truncf %33 : vector<512x128xf32> to vector<512x128xbf16>
    %cst_20 = arith.constant dense<0.000000e+00> : vector<512x128xf32>
    %42 = tpu.matmul %34, %41, %cst_20 {dimension_numbers = #tpu.dot_dimension_numbers<[1], [0], [0], [1], [0, 0, 1, 1], [], []>} : vector<512x512xbf16>, vector<512x128xbf16>, vector<512x128xf32> -> vector<512x128xf32>
    %43 = vector.broadcast %3 : vector<512x1xf32> to vector<512x128xf32>
    %44 = arith.addf %42, %43 : vector<512x128xf32>
    %cst_21 = arith.constant 0.000000e+00 : f32
    %45 = vector.broadcast %cst_21 : f32 to vector<512x128xf32>
    %46 = arith.maximumf %44, %45 : vector<512x128xf32>
    %c0_22 = arith.constant 0 : index
    %c0_23 = arith.constant 0 : index
    %47 = vector.load %arg5[%c0_22, %c0_23] : memref<512x512xbf16, #tpu.memory_space<vmem>>, vector<512x512xbf16>
    %48 = arith.truncf %40 : vector<512x128xf32> to vector<512x128xbf16>
    %cst_24 = arith.constant dense<0.000000e+00> : vector<512x128xf32>
    %49 = tpu.matmul %47, %48, %cst_24 {dimension_numbers = #tpu.dot_dimension_numbers<[1], [0], [0], [1], [0, 0, 1, 1], [], []>} : vector<512x512xbf16>, vector<512x128xbf16>, vector<512x128xf32> -> vector<512x128xf32>
    %50 = vector.broadcast %4 : vector<512x1xf32> to vector<512x128xf32>
    %51 = arith.addf %49, %50 : vector<512x128xf32>
    %cst_25 = arith.constant 0.000000e+00 : f32
    %52 = vector.broadcast %cst_25 : f32 to vector<512x128xf32>
    %53 = arith.maximumf %51, %52 : vector<512x128xf32>
    %54 = arith.truncf %46 : vector<512x128xf32> to vector<512x128xbf16>
    %cst_26 = arith.constant dense<0.000000e+00> : vector<512x128xf32>
    %55 = tpu.matmul %47, %54, %cst_26 {dimension_numbers = #tpu.dot_dimension_numbers<[1], [0], [0], [1], [0, 0, 1, 1], [], []>} : vector<512x512xbf16>, vector<512x128xbf16>, vector<512x128xf32> -> vector<512x128xf32>
    %56 = vector.broadcast %4 : vector<512x1xf32> to vector<512x128xf32>
    %57 = arith.addf %55, %56 : vector<512x128xf32>
    %cst_27 = arith.constant 0.000000e+00 : f32
    %58 = vector.broadcast %cst_27 : f32 to vector<512x128xf32>
    %59 = arith.maximumf %57, %58 : vector<512x128xf32>
    %c0_28 = arith.constant 0 : index
    %c0_29 = arith.constant 0 : index
    %60 = vector.load %arg6[%c0_28, %c0_29] : memref<512x512xbf16, #tpu.memory_space<vmem>>, vector<512x512xbf16>
    %61 = arith.truncf %53 : vector<512x128xf32> to vector<512x128xbf16>
    %cst_30 = arith.constant dense<0.000000e+00> : vector<512x128xf32>
    %62 = tpu.matmul %60, %61, %cst_30 {dimension_numbers = #tpu.dot_dimension_numbers<[1], [0], [0], [1], [0, 0, 1, 1], [], []>} : vector<512x512xbf16>, vector<512x128xbf16>, vector<512x128xf32> -> vector<512x128xf32>
    %63 = vector.broadcast %5 : vector<512x1xf32> to vector<512x128xf32>
    %64 = arith.addf %62, %63 : vector<512x128xf32>
    %cst_31 = arith.constant 0.000000e+00 : f32
    %65 = vector.broadcast %cst_31 : f32 to vector<512x128xf32>
    %66 = arith.maximumf %64, %65 : vector<512x128xf32>
    %67 = arith.truncf %59 : vector<512x128xf32> to vector<512x128xbf16>
    %cst_32 = arith.constant dense<0.000000e+00> : vector<512x128xf32>
    %68 = tpu.matmul %60, %67, %cst_32 {dimension_numbers = #tpu.dot_dimension_numbers<[1], [0], [0], [1], [0, 0, 1, 1], [], []>} : vector<512x512xbf16>, vector<512x128xbf16>, vector<512x128xf32> -> vector<512x128xf32>
    %69 = vector.broadcast %5 : vector<512x1xf32> to vector<512x128xf32>
    %70 = arith.addf %68, %69 : vector<512x128xf32>
    %cst_33 = arith.constant 0.000000e+00 : f32
    %71 = vector.broadcast %cst_33 : f32 to vector<512x128xf32>
    %72 = arith.maximumf %70, %71 : vector<512x128xf32>
    %73 = vector.broadcast %6 : vector<512x1xf32> to vector<512x128xf32>
    %74 = arith.mulf %66, %73 : vector<512x128xf32>
    %cst_34 = arith.constant dense<0.000000e+00> : vector<128xf32>
    %75 = vector.multi_reduction <add>, %74, %cst_34 [0] : vector<512x128xf32> to vector<128xf32>
    %76 = vector.shape_cast %75 : vector<128xf32> to vector<1x128xf32>
    %77 = vector.broadcast %7 : f32 to vector<1x128xf32>
    %78 = arith.addf %76, %77 : vector<1x128xf32>
    %c0_35 = arith.constant 0 : index
    %c0_36 = arith.constant 0 : index
    %79 = vector.load %arg8[%c0_35, %c0_36] : memref<1x256xf32, #tpu.memory_space<vmem>>, vector<1x128xf32>
    tpu.vector_store %arg8[%c0_35, %c0_36], %78 {strides = array<i32>} : memref<1x256xf32, #tpu.memory_space<vmem>>, vector<1x128xf32>,
    %80 = vector.broadcast %6 : vector<512x1xf32> to vector<512x128xf32>
    %81 = arith.mulf %72, %80 : vector<512x128xf32>
    %cst_37 = arith.constant dense<0.000000e+00> : vector<128xf32>
    %82 = vector.multi_reduction <add>, %81, %cst_37 [0] : vector<512x128xf32> to vector<128xf32>
    %83 = vector.shape_cast %82 : vector<128xf32> to vector<1x128xf32>
    %84 = vector.broadcast %7 : f32 to vector<1x128xf32>
    %85 = arith.addf %83, %84 : vector<1x128xf32>
    %c0_38 = arith.constant 0 : index
    %c128_39 = arith.constant 128 : index
    %86 = vector.load %arg8[%c0_38, %c128_39] : memref<1x256xf32, #tpu.memory_space<vmem>>, vector<1x128xf32>
    tpu.vector_store %arg8[%c0_38, %c128_39], %85 {strides = array<i32>} : memref<1x256xf32, #tpu.memory_space<vmem>>, vector<1x128xf32>,
    return
  }
  func.func @transform_0(%arg0: i32) -> (i32, i32) {
    %c0_i32 = arith.constant 0 : i32
    %c0_i32_0 = arith.constant 0 : i32
    return %c0_i32, %arg0 : i32, i32
  }
  func.func @transform_1(%arg0: i32) -> (i32, i32) {
    %c0_i32 = arith.constant 0 : i32
    %c0_i32_0 = arith.constant 0 : i32
    return %c0_i32, %arg0 : i32, i32
  }
  func.func @transform_2(%arg0: i32) -> (i32, i32) {
    %c0_i32 = arith.constant 0 : i32
    %c0_i32_0 = arith.constant 0 : i32
    %c0_i32_1 = arith.constant 0 : i32
    return %c0_i32, %c0_i32_0 : i32, i32
  }
  func.func @transform_3(%arg0: i32) -> (i32, i32) {
    %c0_i32 = arith.constant 0 : i32
    %c0_i32_0 = arith.constant 0 : i32
    %c0_i32_1 = arith.constant 0 : i32
    return %c0_i32, %c0_i32_0 : i32, i32
  }
  func.func @transform_4(%arg0: i32) -> (i32, i32) {
    %c0_i32 = arith.constant 0 : i32
    %c0_i32_0 = arith.constant 0 : i32
    %c0_i32_1 = arith.constant 0 : i32
    return %c0_i32, %c0_i32_0 : i32, i32
  }
  func.func @transform_5(%arg0: i32) -> (i32, i32) {
    %c0_i32 = arith.constant 0 : i32
    %c0_i32_0 = arith.constant 0 : i32
    %c0_i32_1 = arith.constant 0 : i32
    return %c0_i32, %c0_i32_0 : i32, i32
  }
  func.func @transform_6(%arg0: i32) -> i32 {
    %c0_i32 = arith.constant 0 : i32
    %c0_i32_0 = arith.constant 0 : i32
    return %c0_i32 : i32
  }
  func.func @transform_7(%arg0: i32) -> (i32, i32) {
    %c0_i32 = arith.constant 0 : i32
    %c0_i32_0 = arith.constant 0 : i32
    return %c0_i32, %arg0 : i32, i32
  }
}

</mosaic_0001>

<llo_original>
// kernel: generator_forward.1
$region0: #{generator_forward.1}
  #allocation0 [shape = 'u32[]', space=smem, size = 0x4, offset = 0x4, fixed_abs, tag = 'smem constant byte address 0x4 - core index']
  #allocation1 [shape = 'u32[144,128]{1,0:T(1,128)}', space=vmem, size = 0x12000, scoped, tag = 'internal scratch']
  #allocation2 [shape = 'f32[1]{0:T(128)S(6)}', space=smem, size = 0x200, scoped, tag = 'scoped memory for generator_forward.1']
  %s0 = inlined_call_operand.vmem [shape: f32[1,512], index: 0, kind: input, shape index: {}]
  %s1 = inlined_call_operand.vmem [shape: f32[1,512], index: 1, kind: input, shape index: {}]
  %s2 = inlined_call_operand.vmem [shape: f32[512,8], index: 2, kind: input, shape index: {}]
  %s3 = inlined_call_operand.hbm [shape: bf16[512,512], index: 3, kind: input, shape index: {}]
  %s4 = inlined_call_operand.hbm [shape: bf16[512,512], index: 4, kind: input, shape index: {}]
  %s5 = inlined_call_operand.hbm [shape: bf16[512,512], index: 5, kind: input, shape index: {}]
  %s6 = inlined_call_operand.<no memory space> [shape: f32[1], index: 6, kind: input, shape index: {}]
  %s7 = inlined_call_operand.vmem [shape: f32[1,512], index: 7, kind: output, shape index: {}]
  %s8 = sld [smem:[#allocation0]]
  $region73: #{generator_forward.1} parent=0
    _
  %s10 = ssub.s32 1, %s8
  %s11 = scalar_select 0, %s10, %s8
  %12 = sst [smem:[#allocation2]] %s6
  $region1: #{generator_forward.1} parent=0
    #allocation3 [shape = 'u8[524288]{0}', space=vmem, size = 0x80000, scoped, tag = 'input window, operand 3, single buffered']
    #allocation4 [shape = 's32[2]{0}', space=sflag, size = 0x8, scoped, tag = 'scoped memory for generator_forward.1']
    #allocation5 [shape = 'u8[524288]{0}', space=vmem, size = 0x80000, scoped, tag = 'input window, operand 4, single buffered']
    #allocation6 [shape = 's32[1]{0}', space=sflag, size = 0x4, scoped, tag = 'scoped memory for generator_forward.1']
    #allocation7 [shape = 'u8[524288]{0}', space=vmem, size = 0x80000, scoped, tag = 'input window, operand 5, single buffered']
    %13 = vsyncpa [#allocation4], 0
    %14 = vsyncpa [#allocation6], 0
    loop: start=0, step=1, limit=4
    $region2: #{generator_forward.1} parent=1 // loop_pre_header
      _
    $region3: #{generator_forward.1} parent=1 // loop_header
      %s16 = sphi 0, %s20
      %p17 = scmp.ge.s32.totalorder %s16, 4
      %s26 = sphi 0, %s28
      %s29 = sphi 0, %s26
      %s30 = sphi 0, %s29
      %s46 = sphi 0, %s30
      %s52 = sphi 0, %s54
      %s55 = sphi 0, %s52
      %s56 = sphi 0, %s55
      %s72 = sphi 0, %s56
      %s76 = sphi 0, %s76
      %s78 = sphi 0, %s76
      %s79 = sphi 0, %s78
      %s93 = sphi 0, %s79
      %s97 = sphi 0, %s97
      %s99 = sphi 0, %s97
      %s100 = sphi 0, %s99
      %s114 = sphi 0, %s100
      %s118 = sphi 0, %s118
      %s120 = sphi 0, %s118
      %s121 = sphi 0, %s120
      %s135 = sphi 0, %s121
      %s139 = sphi 0, %s139
      %s141 = sphi 0, %s139
      %s142 = sphi 0, %s141
      %s156 = sphi 0, %s142
      %s160 = sphi 0, %s160
      %s162 = sphi 0, %s160
      %s163 = sphi 0, %s162
      %s177 = sphi 0, %s163
      %s183 = sphi 0, %s185
      %s186 = sphi 0, %s183
      %s187 = sphi 0, %s186
      %s203 = sphi 0, %s187
    $region4: #{generator_forward.1} parent=1 // loop_header_branch
      %19 = sbr.rel (%p17) target = $region8
    $region5: #{generator_forward.1} parent=1 // loop_body
      %s21 = ssub.s32 %s16, 1
      %s22 = ssub.s32 %s16, 2
      %s23 = sadd.s32 %s16, 1
      %s24 = ssub.s32 %s16, %s23
      %p25 = scmp.eq.s32.totalorder %s24, 0
      %s27 = sadd.s32 %s26, 1
      %s28 = scalar_select %p25, %s26, %s27
      %p31 = pneg %p25
      %p32 = scmp.eq.s32.totalorder %s16, 1
      %p33 = por %p31, %p32
      %p34 = scmp.ne.s32.totalorder %s26, %s29
      %p35 = scmp.eq.s32.totalorder %s16, 0
      %p36 = por %p34, %p35
      %p37 = scmp.ne.s32.totalorder %s26, %s29
      %p38 = scmp.eq.s32.totalorder %s21, 1
      %p39 = por %p37, %p38
      %p40 = scmp.ne.s32.totalorder %s29, %s30
      %p41 = scmp.eq.s32.totalorder %s21, 0
      %p42 = por %p40, %p41
      %p43 = scmp.ne.s32.totalorder %s29, %s30
      %p44 = scmp.eq.s32.totalorder %s22, 1
      %p45 = por %p43, %p44
      %p47 = scmp.ne.s32.totalorder %s30, %s46
      %p48 = scmp.eq.s32.totalorder %s22, 0
      %p49 = por %p47, %p48
      %s50 = ssub.s32 %s16, %s23
      %p51 = scmp.eq.s32.totalorder %s50, 0
      %s53 = sadd.s32 %s52, 1
      %s54 = scalar_select %p51, %s52, %s53
      %p57 = pneg %p51
      %p58 = scmp.eq.s32.totalorder %s16, 1
      %p59 = por %p57, %p58
      %p60 = scmp.ne.s32.totalorder %s52, %s55
      %p61 = scmp.eq.s32.totalorder %s16, 0
      %p62 = por %p60, %p61
      %p63 = scmp.ne.s32.totalorder %s52, %s55
      %p64 = scmp.eq.s32.totalorder %s21, 1
      %p65 = por %p63, %p64
      %p66 = scmp.ne.s32.totalorder %s55, %s56
      %p67 = scmp.eq.s32.totalorder %s21, 0
      %p68 = por %p66, %p67
      %p69 = scmp.ne.s32.totalorder %s55, %s56
      %p70 = scmp.eq.s32.totalorder %s22, 1
      %p71 = por %p69, %p70
      %p73 = scmp.ne.s32.totalorder %s56, %s72
      %p74 = scmp.eq.s32.totalorder %s22, 0
      %p75 = por %p73, %p74
      %s77 = sadd.s32 %s76, 1
      %p80 = scmp.eq.s32.totalorder %s16, 1
      %p81 = scmp.ne.s32.totalorder %s76, %s78
      %p82 = scmp.eq.s32.totalorder %s16, 0
      %p83 = por %p81, %p82
      %p84 = scmp.ne.s32.totalorder %s76, %s78
      %p85 = scmp.eq.s32.totalorder %s21, 1
      %p86 = por %p84, %p85
      %p87 = scmp.ne.s32.totalorder %s78, %s79
      %p88 = scmp.eq.s32.totalorder %s21, 0
      %p89 = por %p87, %p88
      %p90 = scmp.ne.s32.totalorder %s78, %s79
      %p91 = scmp.eq.s32.totalorder %s22, 1
      %p92 = por %p90, %p91
      %p94 = scmp.ne.s32.totalorder %s79, %s93
      %p95 = scmp.eq.s32.totalorder %s22, 0
      %p96 = por %p94, %p95
      %s98 = sadd.s32 %s97, 1
      %p101 = scmp.eq.s32.totalorder %s16, 1
      %p102 = scmp.ne.s32.totalorder %s97, %s99
      %p103 = scmp.eq.s32.totalorder %s16, 0
      %p104 = por %p102, %p103
      %p105 = scmp.ne.s32.totalorder %s97, %s99
      %p106 = scmp.eq.s32.totalorder %s21, 1
      %p107 = por %p105, %p106
      %p108 = scmp.ne.s32.totalorder %s99, %s100
      %p109 = scmp.eq.s32.totalorder %s21, 0
      %p110 = por %p108, %p109
      %p111 = scmp.ne.s32.totalorder %s99, %s100
      %p112 = scmp.eq.s32.totalorder %s22, 1
      %p113 = por %p111, %p112
      %p115 = scmp.ne.s32.totalorder %s100, %s114
      %p116 = scmp.eq.s32.totalorder %s22, 0
      %p117 = por %p115, %p116
      %s119 = sadd.s32 %s118, 1
      %p122 = scmp.eq.s32.totalorder %s16, 1
      %p123 = scmp.ne.s32.totalorder %s118, %s120
      %p124 = scmp.eq.s32.totalorder %s16, 0
      %p125 = por %p123, %p124
      %p126 = scmp.ne.s32.totalorder %s118, %s120
      %p127 = scmp.eq.s32.totalorder %s21, 1
      %p128 = por %p126, %p127
      %p129 = scmp.ne.s32.totalorder %s120, %s121
      %p130 = scmp.eq.s32.totalorder %s21, 0
      %p131 = por %p129, %p130
      %p132 = scmp.ne.s32.totalorder %s120, %s121
      %p133 = scmp.eq.s32.totalorder %s22, 1
      %p134 = por %p132, %p133
      %p136 = scmp.ne.s32.totalorder %s121, %s135
      %p137 = scmp.eq.s32.totalorder %s22, 0
      %p138 = por %p136, %p137
      %s140 = sadd.s32 %s139, 1
      %p143 = scmp.eq.s32.totalorder %s16, 1
      %p144 = scmp.ne.s32.totalorder %s139, %s141
      %p145 = scmp.eq.s32.totalorder %s16, 0
      %p146 = por %p144, %p145
      %p147 = scmp.ne.s32.totalorder %s139, %s141
      %p148 = scmp.eq.s32.totalorder %s21, 1
      %p149 = por %p147, %p148
      %p150 = scmp.ne.s32.totalorder %s141, %s142
      %p151 = scmp.eq.s32.totalorder %s21, 0
      %p152 = por %p150, %p151
      %p153 = scmp.ne.s32.totalorder %s141, %s142
      %p154 = scmp.eq.s32.totalorder %s22, 1
      %p155 = por %p153, %p154
      %p157 = scmp.ne.s32.totalorder %s142, %s156
      %p158 = scmp.eq.s32.totalorder %s22, 0
      %p159 = por %p157, %p158
      %s161 = sadd.s32 %s160, 1
      %p164 = scmp.eq.s32.totalorder %s16, 1
      %p165 = scmp.ne.s32.totalorder %s160, %s162
      %p166 = scmp.eq.s32.totalorder %s16, 0
      %p167 = por %p165, %p166
      %p168 = scmp.ne.s32.totalorder %s160, %s162
      %p169 = scmp.eq.s32.totalorder %s21, 1
      %p170 = por %p168, %p169
      %p171 = scmp.ne.s32.totalorder %s162, %s163
      %p172 = scmp.eq.s32.totalorder %s21, 0
      %p173 = por %p171, %p172
      %p174 = scmp.ne.s32.totalorder %s162, %s163
      %p175 = scmp.eq.s32.totalorder %s22, 1
      %p176 = por %p174, %p175
      %p178 = scmp.ne.s32.totalorder %s163, %s177
      %p179 = scmp.eq.s32.totalorder %s22, 0
      %p180 = por %p178, %p179
      %s181 = ssub.s32 %s16, %s23
      %p182 = scmp.eq.s32.totalorder %s181, 0
      %s184 = sadd.s32 %s183, 1
      %s185 = scalar_select %p182, %s183, %s184
      %p188 = pneg %p182
      %p189 = scmp.eq.s32.totalorder %s16, 1
      %p190 = por %p188, %p189
      %p191 = scmp.ne.s32.totalorder %s183, %s186
      %p192 = scmp.eq.s32.totalorder %s16, 0
      %p193 = por %p191, %p192
      %p194 = scmp.ne.s32.totalorder %s183, %s186
      %p195 = scmp.eq.s32.totalorder %s21, 1
      %p196 = por %p194, %p195
      %p197 = scmp.ne.s32.totalorder %s186, %s187
      %p198 = scmp.eq.s32.totalorder %s21, 0
      %p199 = por %p197, %p198
      %p200 = scmp.ne.s32.totalorder %s186, %s187
      %p201 = scmp.eq.s32.totalorder %s22, 1
      %p202 = por %p200, %p201
      %p204 = scmp.ne.s32.totalorder %s187, %s203
      %p205 = scmp.eq.s32.totalorder %s22, 0
      %p206 = por %p204, %p205
      %p207 = scmp.le.s32.totalorder 1, %s16
      %p208 = scmp.lt.s32.totalorder %s16, 3
      %p209 = pnand %p207, %p208
      %p210 = pneg %p209
      // Predicated region
      $region9: #{generator_forward.1} parent=5 // pred_check
        _
      $region10: #{generator_forward.1} parent=5 // pred_check_branch
        %212 = sbr.rel (%p209) target = $region12
      $region11: #{generator_forward.1} parent=5 // pred_region
        %s213 = ssub.s32 %s16, 1
        // Predicated region
        $region13: #{generator_forward.1} parent=11 // pred_check
          %p214 = pneg %p89
        $region14: #{generator_forward.1} parent=11 // pred_check_branch
          %216 = sbr.rel (%p214) target = $region16
        $region15: #{generator_forward.1} parent=11 // pred_region
          _
        $region16: #{generator_forward.1} parent=11 // pred_fallthru
          _
        // Predicated region
        $region17: #{generator_forward.1} parent=11 // pred_check
          %p217 = pneg %p110
        $region18: #{generator_forward.1} parent=11 // pred_check_branch
          %219 = sbr.rel (%p217) target = $region20
        $region19: #{generator_forward.1} parent=11 // pred_region
          %s221 = ssub.s32 16384, 16384
          %222 = vsyncadd [#allocation4], %s221
          %s223 = sshll.u32 [#allocation3], 4
          %s224 = int_to_ptr.vmem [resolvable:$true] %s223
          %229 = dma.hbm_to_vmem [thread:$0]  %s3, 16384, %s224, [#allocation4], 256, 256, 16
        $region20: #{generator_forward.1} parent=11 // pred_fallthru
          _
        // Predicated region
        $region21: #{generator_forward.1} parent=11 // pred_check
          %p230 = pneg %p131
        $region22: #{generator_forward.1} parent=11 // pred_check_branch
          %232 = sbr.rel (%p230) target = $region24
        $region23: #{generator_forward.1} parent=11 // pred_region
          %s234 = ssub.s32 16384, 16384
          %235 = vsyncadd [#allocation6], %s234
          %s236 = sshll.u32 [#allocation5], 4
          %s237 = int_to_ptr.vmem [resolvable:$true] %s236
          %242 = dma.hbm_to_vmem [thread:$0]  %s4, 16384, %s237, [#allocation6], 256, 256, 16
        $region24: #{generator_forward.1} parent=11 // pred_fallthru
          _
        // Predicated region
        $region25: #{generator_forward.1} parent=11 // pred_check
          %p243 = pneg %p152
        $region26: #{generator_forward.1} parent=11 // pred_check_branch
          %245 = sbr.rel (%p243) target = $region28
        $region27: #{generator_forward.1} parent=11 // pred_region
          %s247 = ssub.s32 16384, 16384
          %248 = vsyncadd [#allocation6], %s247
          %s249 = sshll.u32 [#allocation7], 4
          %s250 = int_to_ptr.vmem [resolvable:$true] %s249
          %255 = dma.hbm_to_vmem [thread:$0]  %s5, 16384, %s250, [#allocation6], 256, 256, 16
        $region28: #{generator_forward.1} parent=11 // pred_fallthru
          _
        // Predicated region
        $region29: #{generator_forward.1} parent=11 // pred_check
          %p256 = pneg %p173
        $region30: #{generator_forward.1} parent=11 // pred_check_branch
          %258 = sbr.rel (%p256) target = $region32
        $region31: #{generator_forward.1} parent=11 // pred_region
          _
        $region32: #{generator_forward.1} parent=11 // pred_fallthru
          _
      $region12: #{generator_forward.1} parent=5 // pred_fallthru
        _
      %p259 = scmp.lt.s32.totalorder %s16, 2
      // Predicated region
      $region33: #{generator_forward.1} parent=5 // pred_check
        %p260 = pneg %p259
      $region34: #{generator_forward.1} parent=5 // pred_check_branch
        %262 = sbr.rel (%p260) target = $region36
      $region35: #{generator_forward.1} parent=5 // pred_region
        // Predicated region
        $region37: #{generator_forward.1} parent=35 // pred_check
          %p263 = pneg %p36
        $region38: #{generator_forward.1} parent=35 // pred_check_branch
          %265 = sbr.rel (%p263) target = $region40
        $region39: #{generator_forward.1} parent=35 // pred_region
          %s266 = smul.u32 2, %s16
          %p267 = scmp.lt.s32.totalorder %s266, 3
          %s268 = scalar_select %p267, %s266, 3
          %s269 = scalar_lea.vmem %s0, %s268
          %s270 = smul.u32 2, %s16
        $region40: #{generator_forward.1} parent=35 // pred_fallthru
          _
        // Predicated region
        $region41: #{generator_forward.1} parent=35 // pred_check
          %p271 = pneg %p62
        $region42: #{generator_forward.1} parent=35 // pred_check_branch
          %273 = sbr.rel (%p271) target = $region44
        $region43: #{generator_forward.1} parent=35 // pred_region
          %s274 = smul.u32 2, %s16
          %p275 = scmp.lt.s32.totalorder %s274, 3
          %s276 = scalar_select %p275, %s274, 3
          %s277 = scalar_lea.vmem %s1, %s276
          %s278 = smul.u32 2, %s16
        $region44: #{generator_forward.1} parent=35 // pred_fallthru
          _
      $region36: #{generator_forward.1} parent=5 // pred_fallthru
        _
      %p279 = scmp.le.s32.totalorder 1, %s16
      %p280 = scmp.lt.s32.totalorder %s16, 3
      %p281 = pnand %p279, %p280
      %p282 = pneg %p281
      // Predicated region
      $region45: #{generator_forward.1} parent=5 // pred_check
        _
      $region46: #{generator_forward.1} parent=5 // pred_check_branch
        %284 = sbr.rel (%p281) target = $region48
      $region47: #{generator_forward.1} parent=5 // pred_region
        %s285 = ssub.s32 %s16, 1
        // Predicated region
        $region49: #{generator_forward.1} parent=47 // pred_check
          %p286 = pneg %p110
        $region50: #{generator_forward.1} parent=47 // pred_check_branch
          %288 = sbr.rel (%p286) target = $region52
        $region51: #{generator_forward.1} parent=47 // pred_region
          %289 = dma.done [#allocation4], 16384
        $region52: #{generator_forward.1} parent=47 // pred_fallthru
          _
        // Predicated region
        $region53: #{generator_forward.1} parent=47 // pred_check
          %p290 = pneg %p131
        $region54: #{generator_forward.1} parent=47 // pred_check_branch
          %292 = sbr.rel (%p290) target = $region56
        $region55: #{generator_forward.1} parent=47 // pred_region
          %293 = dma.done [#allocation6], 16384
        $region56: #{generator_forward.1} parent=47 // pred_fallthru
          _
        // Predicated region
        $region57: #{generator_forward.1} parent=47 // pred_check
          %p294 = pneg %p152
        $region58: #{generator_forward.1} parent=47 // pred_check_branch
          %296 = sbr.rel (%p294) target = $region60
        $region59: #{generator_forward.1} parent=47 // pred_region
          %297 = dma.done [#allocation6], 16384
        $region60: #{generator_forward.1} parent=47 // pred_fallthru
          _
        %s298 = smul.u32 2, %s21
        %p299 = scmp.lt.s32.totalorder %s298, 3
        %s300 = scalar_select %p299, %s298, 3
        %s301 = scalar_lea.vmem %s0, %s300
        %p302 = pneg %p42
        %p303 = pneg %p39
        %s304 = smul.u32 2, %s21
        %p305 = scmp.lt.s32.totalorder %s304, 3
        %s306 = scalar_select %p305, %s304, 3
        %s307 = scalar_lea.vmem %s1, %s306
        %p308 = pneg %p68
        %p309 = pneg %p65
        %p310 = pneg %p89
        %p311 = pneg %p86
        %p312 = pneg %p110
        %p313 = pneg %p107
        %p314 = pneg %p131
        %p315 = pneg %p128
        %p316 = pneg %p152
        %p317 = pneg %p149
        %p318 = pneg %p173
        %p319 = pneg %p170
        %p320 = pneg %p199
        %p321 = pneg %p196
        %s322 = smul.u32 2, %s21
        %p323 = scmp.lt.s32.totalorder %s322, 3
        %s324 = scalar_select %p323, %s322, 3
        %s325 = scalar_lea.vmem %s7, %s324
        %s326 = smul.u32 2, %s21
        %p327 = scmp.lt.s32.totalorder %s326, 3
        %s328 = scalar_select %p327, %s326, 3
        %s329 = scalar_lea.vmem %s0, %s328
        %s330 = smul.u32 2, %s21
        %s331 = smul.u32 2, %s21
        %p332 = scmp.lt.s32.totalorder %s331, 3
        %s333 = scalar_select %p332, %s331, 3
        %s334 = scalar_lea.vmem %s1, %s333
        %s335 = smul.u32 2, %s21
        %s336 = smul.u32 2, %s21
        %p337 = scmp.lt.s32.totalorder %s336, 3
        %s338 = scalar_select %p337, %s336, 3
        %s339 = scalar_lea.vmem %s7, %s338
        %s340 = smul.u32 2, %s21
        %v342 = vld [vmem:[%s2] sm:$0xff]
        %v343 = vld [vmem:[%s2 + $0x8] sm:$0xff]
        %v344 = vld [vmem:[%s2 + $0x10] sm:$0xff]
        %v345 = vld [vmem:[%s2 + $0x18] sm:$0xff]
        %v346 = vld [vmem:[%s2 + $0x20] sm:$0xff]
        %v347 = vld [vmem:[%s2 + $0x28] sm:$0xff]
        %v348 = vld [vmem:[%s2 + $0x30] sm:$0xff]
        %v349 = vld [vmem:[%s2 + $0x38] sm:$0xff]
        %v350 = vld [vmem:[%s2 + $0x40] sm:$0xff]
        %v351 = vld [vmem:[%s2 + $0x48] sm:$0xff]
        %v352 = vld [vmem:[%s2 + $0x50] sm:$0xff]
        %v353 = vld [vmem:[%s2 + $0x58] sm:$0xff]
        %v354 = vld [vmem:[%s2 + $0x60] sm:$0xff]
        %v355 = vld [vmem:[%s2 + $0x68] sm:$0xff]
        %v356 = vld [vmem:[%s2 + $0x70] sm:$0xff]
        %v357 = vld [vmem:[%s2 + $0x78] sm:$0xff]
        %v358 = vld [vmem:[%s2 + $0x80] sm:$0xff]
        %v359 = vld [vmem:[%s2 + $0x88] sm:$0xff]
        %v360 = vld [vmem:[%s2 + $0x90] sm:$0xff]
        %v361 = vld [vmem:[%s2 + $0x98] sm:$0xff]
        %v362 = vld [vmem:[%s2 + $0xa0] sm:$0xff]
        %v363 = vld [vmem:[%s2 + $0xa8] sm:$0xff]
        %v364 = vld [vmem:[%s2 + $0xb0] sm:$0xff]
        %v365 = vld [vmem:[%s2 + $0xb8] sm:$0xff]
        %v366 = vld [vmem:[%s2 + $0xc0] sm:$0xff]
        %v367 = vld [vmem:[%s2 + $0xc8] sm:$0xff]
        %v368 = vld [vmem:[%s2 + $0xd0] sm:$0xff]
        %v369 = vld [vmem:[%s2 + $0xd8] sm:$0xff]
        %v370 = vld [vmem:[%s2 + $0xe0] sm:$0xff]
        %v371 = vld [vmem:[%s2 + $0xe8] sm:$0xff]
        %v372 = vld [vmem:[%s2 + $0xf0] sm:$0xff]
        %v373 = vld [vmem:[%s2 + $0xf8] sm:$0xff]
        %v374 = vld [vmem:[%s2 + $0x100] sm:$0xff]
        %v375 = vld [vmem:[%s2 + $0x108] sm:$0xff]
        %v376 = vld [vmem:[%s2 + $0x110] sm:$0xff]
        %v377 = vld [vmem:[%s2 + $0x118] sm:$0xff]
        %v378 = vld [vmem:[%s2 + $0x120] sm:$0xff]
        %v379 = vld [vmem:[%s2 + $0x128] sm:$0xff]
        %v380 = vld [vmem:[%s2 + $0x130] sm:$0xff]
        %v381 = vld [vmem:[%s2 + $0x138] sm:$0xff]
        %v382 = vld [vmem:[%s2 + $0x140] sm:$0xff]
        %v383 = vld [vmem:[%s2 + $0x148] sm:$0xff]
        %v384 = vld [vmem:[%s2 + $0x150] sm:$0xff]
        %v385 = vld [vmem:[%s2 + $0x158] sm:$0xff]
        %v386 = vld [vmem:[%s2 + $0x160] sm:$0xff]
        %v387 = vld [vmem:[%s2 + $0x168] sm:$0xff]
        %v388 = vld [vmem:[%s2 + $0x170] sm:$0xff]
        %v389 = vld [vmem:[%s2 + $0x178] sm:$0xff]
        %v390 = vld [vmem:[%s2 + $0x180] sm:$0xff]
        %v391 = vld [vmem:[%s2 + $0x188] sm:$0xff]
        %v392 = vld [vmem:[%s2 + $0x190] sm:$0xff]
        %v393 = vld [vmem:[%s2 + $0x198] sm:$0xff]
        %v394 = vld [vmem:[%s2 + $0x1a0] sm:$0xff]
        %v395 = vld [vmem:[%s2 + $0x1a8] sm:$0xff]
        %v396 = vld [vmem:[%s2 + $0x1b0] sm:$0xff]
        %v397 = vld [vmem:[%s2 + $0x1b8] sm:$0xff]
        %v398 = vld [vmem:[%s2 + $0x1c0] sm:$0xff]
        %v399 = vld [vmem:[%s2 + $0x1c8] sm:$0xff]
        %v400 = vld [vmem:[%s2 + $0x1d0] sm:$0xff]
        %v401 = vld [vmem:[%s2 + $0x1d8] sm:$0xff]
        %v402 = vld [vmem:[%s2 + $0x1e0] sm:$0xff]
        %v403 = vld [vmem:[%s2 + $0x1e8] sm:$0xff]
        %v404 = vld [vmem:[%s2 + $0x1f0] sm:$0xff]
        %v405 = vld [vmem:[%s2 + $0x1f8] sm:$0xff]
        %s406 = sld [smem:[#allocation2]]
        %v407 = vld [vmem:[%s329] sm:$0x1]
        %409 = vset.pattern.permute.xlu0 0
        %410 = vperm.xlu0 %409, %v342
        %v411 = vpop.permute.xlu0 %410
        %414 = vset.pattern.permute.xlu0 0
        %415 = vperm.xlu0 %414, %v343
        %v416 = vpop.permute.xlu0 %415
        %419 = vset.pattern.permute.xlu0 0
        %420 = vperm.xlu0 %419, %v344
        %v421 = vpop.permute.xlu0 %420
        %424 = vset.pattern.permute.xlu0 0
        %425 = vperm.xlu0 %424, %v345
        %v426 = vpop.permute.xlu0 %425
        %429 = vset.pattern.permute.xlu0 0
        %430 = vperm.xlu0 %429, %v346
        %v431 = vpop.permute.xlu0 %430
        %434 = vset.pattern.permute.xlu0 0
        %435 = vperm.xlu0 %434, %v347
        %v436 = vpop.permute.xlu0 %435
        %439 = vset.pattern.permute.xlu0 0
        %440 = vperm.xlu0 %439, %v348
        %v441 = vpop.permute.xlu0 %440
        %444 = vset.pattern.permute.xlu0 0
        %445 = vperm.xlu0 %444, %v349
        %v446 = vpop.permute.xlu0 %445
        %449 = vset.pattern.permute.xlu0 0
        %450 = vperm.xlu0 %449, %v350
        %v451 = vpop.permute.xlu0 %450
        %454 = vset.pattern.permute.xlu0 0
        %455 = vperm.xlu0 %454, %v351
        %v456 = vpop.permute.xlu0 %455
        %459 = vset.pattern.permute.xlu0 0
        %460 = vperm.xlu0 %459, %v352
        %v461 = vpop.permute.xlu0 %460
        %464 = vset.pattern.permute.xlu0 0
        %465 = vperm.xlu0 %464, %v353
        %v466 = vpop.permute.xlu0 %465
        %469 = vset.pattern.permute.xlu0 0
        %470 = vperm.xlu0 %469, %v354
        %v471 = vpop.permute.xlu0 %470
        %474 = vset.pattern.permute.xlu0 0
        %475 = vperm.xlu0 %474, %v355
        %v476 = vpop.permute.xlu0 %475
        %479 = vset.pattern.permute.xlu0 0
        %480 = vperm.xlu0 %479, %v356
        %v481 = vpop.permute.xlu0 %480
        %484 = vset.pattern.permute.xlu0 0
        %485 = vperm.xlu0 %484, %v357
        %v486 = vpop.permute.xlu0 %485
        %489 = vset.pattern.permute.xlu0 0
        %490 = vperm.xlu0 %489, %v358
        %v491 = vpop.permute.xlu0 %490
        %494 = vset.pattern.permute.xlu0 0
        %495 = vperm.xlu0 %494, %v359
        %v496 = vpop.permute.xlu0 %495
        %499 = vset.pattern.permute.xlu0 0
        %500 = vperm.xlu0 %499, %v360
        %v501 = vpop.permute.xlu0 %500
        %504 = vset.pattern.permute.xlu0 0
        %505 = vperm.xlu0 %504, %v361
        %v506 = vpop.permute.xlu0 %505
        %509 = vset.pattern.permute.xlu0 0
        %510 = vperm.xlu0 %509, %v362
        %v511 = vpop.permute.xlu0 %510
        %514 = vset.pattern.permute.xlu0 0
        %515 = vperm.xlu0 %514, %v363
        %v516 = vpop.permute.xlu0 %515
        %519 = vset.pattern.permute.xlu0 0
        %520 = vperm.xlu0 %519, %v364
        %v521 = vpop.permute.xlu0 %520
        %524 = vset.pattern.permute.xlu0 0
        %525 = vperm.xlu0 %524, %v365
        %v526 = vpop.permute.xlu0 %525
        %529 = vset.pattern.permute.xlu0 0
        %530 = vperm.xlu0 %529, %v366
        %v531 = vpop.permute.xlu0 %530
        %534 = vset.pattern.permute.xlu0 0
        %535 = vperm.xlu0 %534, %v367
        %v536 = vpop.permute.xlu0 %535
        %539 = vset.pattern.permute.xlu0 0
        %540 = vperm.xlu0 %539, %v368
        %v541 = vpop.permute.xlu0 %540
        %544 = vset.pattern.permute.xlu0 0
        %545 = vperm.xlu0 %544, %v369
        %v546 = vpop.permute.xlu0 %545
        %549 = vset.pattern.permute.xlu0 0
        %550 = vperm.xlu0 %549, %v370
        %v551 = vpop.permute.xlu0 %550
        %554 = vset.pattern.permute.xlu0 0
        %555 = vperm.xlu0 %554, %v371
        %v556 = vpop.permute.xlu0 %555
        %559 = vset.pattern.permute.xlu0 0
        %560 = vperm.xlu0 %559, %v372
        %v561 = vpop.permute.xlu0 %560
        %564 = vset.pattern.permute.xlu0 0
        %565 = vperm.xlu0 %564, %v373
        %v566 = vpop.permute.xlu0 %565
        %569 = vset.pattern.permute.xlu0 0
        %570 = vperm.xlu0 %569, %v374
        %v571 = vpop.permute.xlu0 %570
        %574 = vset.pattern.permute.xlu0 0
        %575 = vperm.xlu0 %574, %v375
        %v576 = vpop.permute.xlu0 %575
        %579 = vset.pattern.permute.xlu0 0
        %580 = vperm.xlu0 %579, %v376
        %v581 = vpop.permute.xlu0 %580
        %584 = vset.pattern.permute.xlu0 0
        %585 = vperm.xlu0 %584, %v377
        %v586 = vpop.permute.xlu0 %585
        %589 = vset.pattern.permute.xlu0 0
        %590 = vperm.xlu0 %589, %v378
        %v591 = vpop.permute.xlu0 %590
        %594 = vset.pattern.permute.xlu0 0
        %595 = vperm.xlu0 %594, %v379
        %v596 = vpop.permute.xlu0 %595
        %599 = vset.pattern.permute.xlu0 0
        %600 = vperm.xlu0 %599, %v380
        %v601 = vpop.permute.xlu0 %600
        %604 = vset.pattern.permute.xlu0 0
        %605 = vperm.xlu0 %604, %v381
        %v606 = vpop.permute.xlu0 %605
        %609 = vset.pattern.permute.xlu0 0
        %610 = vperm.xlu0 %609, %v382
        %v611 = vpop.permute.xlu0 %610
        %614 = vset.pattern.permute.xlu0 0
        %615 = vperm.xlu0 %614, %v383
        %v616 = vpop.permute.xlu0 %615
        %619 = vset.pattern.permute.xlu0 0
        %620 = vperm.xlu0 %619, %v384
        %v621 = vpop.permute.xlu0 %620
        %624 = vset.pattern.permute.xlu0 0
        %625 = vperm.xlu0 %624, %v385
        %v626 = vpop.permute.xlu0 %625
        %629 = vset.pattern.permute.xlu0 0
        %630 = vperm.xlu0 %629, %v386
        %v631 = vpop.permute.xlu0 %630
        %634 = vset.pattern.permute.xlu0 0
        %635 = vperm.xlu0 %634, %v387
        %v636 = vpop.permute.xlu0 %635
        %639 = vset.pattern.permute.xlu0 0
        %640 = vperm.xlu0 %639, %v388
        %v641 = vpop.permute.xlu0 %640
        %644 = vset.pattern.permute.xlu0 0
        %645 = vperm.xlu0 %644, %v389
        %v646 = vpop.permute.xlu0 %645
        %649 = vset.pattern.permute.xlu0 0
        %650 = vperm.xlu0 %649, %v390
        %v651 = vpop.permute.xlu0 %650
        %654 = vset.pattern.permute.xlu0 0
        %655 = vperm.xlu0 %654, %v391
        %v656 = vpop.permute.xlu0 %655
        %659 = vset.pattern.permute.xlu0 0
        %660 = vperm.xlu0 %659, %v392
        %v661 = vpop.permute.xlu0 %660
        %664 = vset.pattern.permute.xlu0 0
        %665 = vperm.xlu0 %664, %v393
        %v666 = vpop.permute.xlu0 %665
        %669 = vset.pattern.permute.xlu0 0
        %670 = vperm.xlu0 %669, %v394
        %v671 = vpop.permute.xlu0 %670
        %674 = vset.pattern.permute.xlu0 0
        %675 = vperm.xlu0 %674, %v395
        %v676 = vpop.permute.xlu0 %675
        %679 = vset.pattern.permute.xlu0 0
        %680 = vperm.xlu0 %679, %v396
        %v681 = vpop.permute.xlu0 %680
        %684 = vset.pattern.permute.xlu0 0
        %685 = vperm.xlu0 %684, %v397
        %v686 = vpop.permute.xlu0 %685
        %689 = vset.pattern.permute.xlu0 0
        %690 = vperm.xlu0 %689, %v398
        %v691 = vpop.permute.xlu0 %690
        %694 = vset.pattern.permute.xlu0 0
        %695 = vperm.xlu0 %694, %v399
        %v696 = vpop.permute.xlu0 %695
        %699 = vset.pattern.permute.xlu0 0
        %700 = vperm.xlu0 %699, %v400
        %v701 = vpop.permute.xlu0 %700
        %704 = vset.pattern.permute.xlu0 0
        %705 = vperm.xlu0 %704, %v401
        %v706 = vpop.permute.xlu0 %705
        %709 = vset.pattern.permute.xlu0 0
        %710 = vperm.xlu0 %709, %v402
        %v711 = vpop.permute.xlu0 %710
        %714 = vset.pattern.permute.xlu0 0
        %715 = vperm.xlu0 %714, %v403
        %v716 = vpop.permute.xlu0 %715
        %719 = vset.pattern.permute.xlu0 0
        %720 = vperm.xlu0 %719, %v404
        %v721 = vpop.permute.xlu0 %720
        %724 = vset.pattern.permute.xlu0 0
        %725 = vperm.xlu0 %724, %v405
        %v726 = vpop.permute.xlu0 %725
        %v729 = vlaneseq
        %v730 = vshrl.u32 %v729, 7
        %v731 = vsub.s32 0, %v730
        %v732 = vrot.slane %v407, %v731
        %v734 = vmul.f32 %v411, %v732
        %v735 = vmul.f32 %v416, %v732
        %v736 = vmul.f32 %v421, %v732
        %v737 = vmul.f32 %v426, %v732
        %v738 = vmul.f32 %v431, %v732
        %v739 = vmul.f32 %v436, %v732
        %v740 = vmul.f32 %v441, %v732
        %v741 = vmul.f32 %v446, %v732
        %v742 = vmul.f32 %v451, %v732
        %v743 = vmul.f32 %v456, %v732
        %v744 = vmul.f32 %v461, %v732
        %v745 = vmul.f32 %v466, %v732
        %v746 = vmul.f32 %v471, %v732
        %v747 = vmul.f32 %v476, %v732
        %v748 = vmul.f32 %v481, %v732
        %v749 = vmul.f32 %v486, %v732
        %v750 = vmul.f32 %v491, %v732
        %v751 = vmul.f32 %v496, %v732
        %v752 = vmul.f32 %v501, %v732
        %v753 = vmul.f32 %v506, %v732
        %v754 = vmul.f32 %v511, %v732
        %v755 = vmul.f32 %v516, %v732
        %v756 = vmul.f32 %v521, %v732
        %v757 = vmul.f32 %v526, %v732
        %v758 = vmul.f32 %v531, %v732
        %v759 = vmul.f32 %v536, %v732
        %v760 = vmul.f32 %v541, %v732
        %v761 = vmul.f32 %v546, %v732
        %v762 = vmul.f32 %v551, %v732
        %v763 = vmul.f32 %v556, %v732
        %v764 = vmul.f32 %v561, %v732
        %v765 = vmul.f32 %v566, %v732
        %v766 = vmul.f32 %v571, %v732
        %v767 = vmul.f32 %v576, %v732
        %v768 = vmul.f32 %v581, %v732
        %v769 = vmul.f32 %v586, %v732
        %v770 = vmul.f32 %v591, %v732
        %v771 = vmul.f32 %v596, %v732
        %v772 = vmul.f32 %v601, %v732
        %v773 = vmul.f32 %v606, %v732
        %v774 = vmul.f32 %v611, %v732
        %v775 = vmul.f32 %v616, %v732
        %v776 = vmul.f32 %v621, %v732
        %v777 = vmul.f32 %v626, %v732
        %v778 = vmul.f32 %v631, %v732
        %v779 = vmul.f32 %v636, %v732
        %v780 = vmul.f32 %v641, %v732
        %v781 = vmul.f32 %v646, %v732
        %v782 = vmul.f32 %v651, %v732
        %v783 = vmul.f32 %v656, %v732
        %v784 = vmul.f32 %v661, %v732
        %v785 = vmul.f32 %v666, %v732
        %v786 = vmul.f32 %v671, %v732
        %v787 = vmul.f32 %v676, %v732
        %v788 = vmul.f32 %v681, %v732
        %v789 = vmul.f32 %v686, %v732
        %v790 = vmul.f32 %v691, %v732
        %v791 = vmul.f32 %v696, %v732
        %v792 = vmul.f32 %v701, %v732
        %v793 = vmul.f32 %v706, %v732
        %v794 = vmul.f32 %v711, %v732
        %v795 = vmul.f32 %v716, %v732
        %v796 = vmul.f32 %v721, %v732
        %v797 = vmul.f32 %v726, %v732
        %v798 = vld [vmem:[%s334] sm:$0x1]
        %799 = vset.pattern.permute.xlu0 1
        %800 = vperm.xlu0 %799, %v342
        %v801 = vpop.permute.xlu0 %800
        %803 = vset.pattern.permute.xlu0 1
        %804 = vperm.xlu0 %803, %v343
        %v805 = vpop.permute.xlu0 %804
        %807 = vset.pattern.permute.xlu0 1
        %808 = vperm.xlu0 %807, %v344
        %v809 = vpop.permute.xlu0 %808
        %811 = vset.pattern.permute.xlu0 1
        %812 = vperm.xlu0 %811, %v345
        %v813 = vpop.permute.xlu0 %812
        %815 = vset.pattern.permute.xlu0 1
        %816 = vperm.xlu0 %815, %v346
        %v817 = vpop.permute.xlu0 %816
        %819 = vset.pattern.permute.xlu0 1
        %820 = vperm.xlu0 %819, %v347
        %v821 = vpop.permute.xlu0 %820
        %823 = vset.pattern.permute.xlu0 1
        %824 = vperm.xlu0 %823, %v348
        %v825 = vpop.permute.xlu0 %824
        %827 = vset.pattern.permute.xlu0 1
        %828 = vperm.xlu0 %827, %v349
        %v829 = vpop.permute.xlu0 %828
        %831 = vset.pattern.permute.xlu0 1
        %832 = vperm.xlu0 %831, %v350
        %v833 = vpop.permute.xlu0 %832
        %835 = vset.pattern.permute.xlu0 1
        %836 = vperm.xlu0 %835, %v351
        %v837 = vpop.permute.xlu0 %836
        %839 = vset.pattern.permute.xlu0 1
        %840 = vperm.xlu0 %839, %v352
        %v841 = vpop.permute.xlu0 %840
        %843 = vset.pattern.permute.xlu0 1
        %844 = vperm.xlu0 %843, %v353
        %v845 = vpop.permute.xlu0 %844
        %847 = vset.pattern.permute.xlu0 1
        %848 = vperm.xlu0 %847, %v354
        %v849 = vpop.permute.xlu0 %848
        %851 = vset.pattern.permute.xlu0 1
        %852 = vperm.xlu0 %851, %v355
        %v853 = vpop.permute.xlu0 %852
        %855 = vset.pattern.permute.xlu0 1
        %856 = vperm.xlu0 %855, %v356
        %v857 = vpop.permute.xlu0 %856
        %859 = vset.pattern.permute.xlu0 1
        %860 = vperm.xlu0 %859, %v357
        %v861 = vpop.permute.xlu0 %860
        %863 = vset.pattern.permute.xlu0 1
        %864 = vperm.xlu0 %863, %v358
        %v865 = vpop.permute.xlu0 %864
        %867 = vset.pattern.permute.xlu0 1
        %868 = vperm.xlu0 %867, %v359
        %v869 = vpop.permute.xlu0 %868
        %871 = vset.pattern.permute.xlu0 1
        %872 = vperm.xlu0 %871, %v360
        %v873 = vpop.permute.xlu0 %872
        %875 = vset.pattern.permute.xlu0 1
        %876 = vperm.xlu0 %875, %v361
        %v877 = vpop.permute.xlu0 %876
        %879 = vset.pattern.permute.xlu0 1
        %880 = vperm.xlu0 %879, %v362
        %v881 = vpop.permute.xlu0 %880
        %883 = vset.pattern.permute.xlu0 1
        %884 = vperm.xlu0 %883, %v363
        %v885 = vpop.permute.xlu0 %884
        %887 = vset.pattern.permute.xlu0 1
        %888 = vperm.xlu0 %887, %v364
        %v889 = vpop.permute.xlu0 %888
        %891 = vset.pattern.permute.xlu0 1
        %892 = vperm.xlu0 %891, %v365
        %v893 = vpop.permute.xlu0 %892
        %895 = vset.pattern.permute.xlu0 1
        %896 = vperm.xlu0 %895, %v366
        %v897 = vpop.permute.xlu0 %896
        %899 = vset.pattern.permute.xlu0 1
        %900 = vperm.xlu0 %899, %v367
        %v901 = vpop.permute.xlu0 %900
        %903 = vset.pattern.permute.xlu0 1
        %904 = vperm.xlu0 %903, %v368
        %v905 = vpop.permute.xlu0 %904
        %907 = vset.pattern.permute.xlu0 1
        %908 = vperm.xlu0 %907, %v369
        %v909 = vpop.permute.xlu0 %908
        %911 = vset.pattern.permute.xlu0 1
        %912 = vperm.xlu0 %911, %v370
        %v913 = vpop.permute.xlu0 %912
        %915 = vset.pattern.permute.xlu0 1
        %916 = vperm.xlu0 %915, %v371
        %v917 = vpop.permute.xlu0 %916
        %919 = vset.pattern.permute.xlu0 1
        %920 = vperm.xlu0 %919, %v372
        %v921 = vpop.permute.xlu0 %920
        %923 = vset.pattern.permute.xlu0 1
        %924 = vperm.xlu0 %923, %v373
        %v925 = vpop.permute.xlu0 %924
        %927 = vset.pattern.permute.xlu0 1
        %928 = vperm.xlu0 %927, %v374
        %v929 = vpop.permute.xlu0 %928
        %931 = vset.pattern.permute.xlu0 1
        %932 = vperm.xlu0 %931, %v375
        %v933 = vpop.permute.xlu0 %932
        %935 = vset.pattern.permute.xlu0 1
        %936 = vperm.xlu0 %935, %v376
        %v937 = vpop.permute.xlu0 %936
        %939 = vset.pattern.permute.xlu0 1
        %940 = vperm.xlu0 %939, %v377
        %v941 = vpop.permute.xlu0 %940
        %943 = vset.pattern.permute.xlu0 1
        %944 = vperm.xlu0 %943, %v378
        %v945 = vpop.permute.xlu0 %944
        %947 = vset.pattern.permute.xlu0 1
        %948 = vperm.xlu0 %947, %v379
        %v949 = vpop.permute.xlu0 %948
        %951 = vset.pattern.permute.xlu0 1
        %952 = vperm.xlu0 %951, %v380
        %v953 = vpop.permute.xlu0 %952
        %955 = vset.pattern.permute.xlu0 1
        %956 = vperm.xlu0 %955, %v381
        %v957 = vpop.permute.xlu0 %956
        %959 = vset.pattern.permute.xlu0 1
        %960 = vperm.xlu0 %959, %v382
        %v961 = vpop.permute.xlu0 %960
        %963 = vset.pattern.permute.xlu0 1
        %964 = vperm.xlu0 %963, %v383
        %v965 = vpop.permute.xlu0 %964
        %967 = vset.pattern.permute.xlu0 1
        %968 = vperm.xlu0 %967, %v384
        %v969 = vpop.permute.xlu0 %968
        %971 = vset.pattern.permute.xlu0 1
        %972 = vperm.xlu0 %971, %v385
        %v973 = vpop.permute.xlu0 %972
        %975 = vset.pattern.permute.xlu0 1
        %976 = vperm.xlu0 %975, %v386
        %v977 = vpop.permute.xlu0 %976
        %979 = vset.pattern.permute.xlu0 1
        %980 = vperm.xlu0 %979, %v387
        %v981 = vpop.permute.xlu0 %980
        %983 = vset.pattern.permute.xlu0 1
        %984 = vperm.xlu0 %983, %v388
        %v985 = vpop.permute.xlu0 %984
        %987 = vset.pattern.permute.xlu0 1
        %988 = vperm.xlu0 %987, %v389
        %v989 = vpop.permute.xlu0 %988
        %991 = vset.pattern.permute.xlu0 1
        %992 = vperm.xlu0 %991, %v390
        %v993 = vpop.permute.xlu0 %992
        %995 = vset.pattern.permute.xlu0 1
        %996 = vperm.xlu0 %995, %v391
        %v997 = vpop.permute.xlu0 %996
        %999 = vset.pattern.permute.xlu0 1
        %1000 = vperm.xlu0 %999, %v392
        %v1001 = vpop.permute.xlu0 %1000
        %1003 = vset.pattern.permute.xlu0 1
        %1004 = vperm.xlu0 %1003, %v393
        %v1005 = vpop.permute.xlu0 %1004
        %1007 = vset.pattern.permute.xlu0 1
        %1008 = vperm.xlu0 %1007, %v394
        %v1009 = vpop.permute.xlu0 %1008
        %1011 = vset.pattern.permute.xlu0 1
        %1012 = vperm.xlu0 %1011, %v395
        %v1013 = vpop.permute.xlu0 %1012
        %1015 = vset.pattern.permute.xlu0 1
        %1016 = vperm.xlu0 %1015, %v396
        %v1017 = vpop.permute.xlu0 %1016
        %1019 = vset.pattern.permute.xlu0 1
        %1020 = vperm.xlu0 %1019, %v397
        %v1021 = vpop.permute.xlu0 %1020
        %1023 = vset.pattern.permute.xlu0 1
        %1024 = vperm.xlu0 %1023, %v398
        %v1025 = vpop.permute.xlu0 %1024
        %1027 = vset.pattern.permute.xlu0 1
        %1028 = vperm.xlu0 %1027, %v399
        %v1029 = vpop.permute.xlu0 %1028
        %1031 = vset.pattern.permute.xlu0 1
        %1032 = vperm.xlu0 %1031, %v400
        %v1033 = vpop.permute.xlu0 %1032
        %1035 = vset.pattern.permute.xlu0 1
        %1036 = vperm.xlu0 %1035, %v401
        %v1037 = vpop.permute.xlu0 %1036
        %1039 = vset.pattern.permute.xlu0 1
        %1040 = vperm.xlu0 %1039, %v402
        %v1041 = vpop.permute.xlu0 %1040
        %1043 = vset.pattern.permute.xlu0 1
        %1044 = vperm.xlu0 %1043, %v403
        %v1045 = vpop.permute.xlu0 %1044
        %1047 = vset.pattern.permute.xlu0 1
        %1048 = vperm.xlu0 %1047, %v404
        %v1049 = vpop.permute.xlu0 %1048
        %1051 = vset.pattern.permute.xlu0 1
        %1052 = vperm.xlu0 %1051, %v405
        %v1053 = vpop.permute.xlu0 %1052
        %v1056 = vlaneseq
        %v1057 = vshrl.u32 %v1056, 7
        %v1058 = vsub.s32 0, %v1057
        %v1059 = vrot.slane %v798, %v1058
        %v1061 = vmul.f32 %v801, %v1059
        %v1062 = vmul.f32 %v805, %v1059
        %v1063 = vmul.f32 %v809, %v1059
        %v1064 = vmul.f32 %v813, %v1059
        %v1065 = vmul.f32 %v817, %v1059
        %v1066 = vmul.f32 %v821, %v1059
        %v1067 = vmul.f32 %v825, %v1059
        %v1068 = vmul.f32 %v829, %v1059
        %v1069 = vmul.f32 %v833, %v1059
        %v1070 = vmul.f32 %v837, %v1059
        %v1071 = vmul.f32 %v841, %v1059
        %v1072 = vmul.f32 %v845, %v1059
        %v1073 = vmul.f32 %v849, %v1059
        %v1074 = vmul.f32 %v853, %v1059
        %v1075 = vmul.f32 %v857, %v1059
        %v1076 = vmul.f32 %v861, %v1059
        %v1077 = vmul.f32 %v865, %v1059
        %v1078 = vmul.f32 %v869, %v1059
        %v1079 = vmul.f32 %v873, %v1059
        %v1080 = vmul.f32 %v877, %v1059
        %v1081 = vmul.f32 %v881, %v1059
        %v1082 = vmul.f32 %v885, %v1059
        %v1083 = vmul.f32 %v889, %v1059
        %v1084 = vmul.f32 %v893, %v1059
        %v1085 = vmul.f32 %v897, %v1059
        %v1086 = vmul.f32 %v901, %v1059
        %v1087 = vmul.f32 %v905, %v1059
        %v1088 = vmul.f32 %v909, %v1059
        %v1089 = vmul.f32 %v913, %v1059
        %v1090 = vmul.f32 %v917, %v1059
        %v1091 = vmul.f32 %v921, %v1059
        %v1092 = vmul.f32 %v925, %v1059
        %v1093 = vmul.f32 %v929, %v1059
        %v1094 = vmul.f32 %v933, %v1059
        %v1095 = vmul.f32 %v937, %v1059
        %v1096 = vmul.f32 %v941, %v1059
        %v1097 = vmul.f32 %v945, %v1059
        %v1098 = vmul.f32 %v949, %v1059
        %v1099 = vmul.f32 %v953, %v1059
        %v1100 = vmul.f32 %v957, %v1059
        %v1101 = vmul.f32 %v961, %v1059
        %v1102 = vmul.f32 %v965, %v1059
        %v1103 = vmul.f32 %v969, %v1059
        %v1104 = vmul.f32 %v973, %v1059
        %v1105 = vmul.f32 %v977, %v1059
        %v1106 = vmul.f32 %v981, %v1059
        %v1107 = vmul.f32 %v985, %v1059
        %v1108 = vmul.f32 %v989, %v1059
        %v1109 = vmul.f32 %v993, %v1059
        %v1110 = vmul.f32 %v997, %v1059
        %v1111 = vmul.f32 %v1001, %v1059
        %v1112 = vmul.f32 %v1005, %v1059
        %v1113 = vmul.f32 %v1009, %v1059
        %v1114 = vmul.f32 %v1013, %v1059
        %v1115 = vmul.f32 %v1017, %v1059
        %v1116 = vmul.f32 %v1021, %v1059
        %v1117 = vmul.f32 %v1025, %v1059
        %v1118 = vmul.f32 %v1029, %v1059
        %v1119 = vmul.f32 %v1033, %v1059
        %v1120 = vmul.f32 %v1037, %v1059
        %v1121 = vmul.f32 %v1041, %v1059
        %v1122 = vmul.f32 %v1045, %v1059
        %v1123 = vmul.f32 %v1049, %v1059
        %v1124 = vmul.f32 %v1053, %v1059
        %v1125 = vadd.f32 %v734, %v1061
        %v1126 = vadd.f32 %v735, %v1062
        %v1127 = vadd.f32 %v736, %v1063
        %v1128 = vadd.f32 %v737, %v1064
        %v1129 = vadd.f32 %v738, %v1065
        %v1130 = vadd.f32 %v739, %v1066
        %v1131 = vadd.f32 %v740, %v1067
        %v1132 = vadd.f32 %v741, %v1068
        %v1133 = vadd.f32 %v742, %v1069
        %v1134 = vadd.f32 %v743, %v1070
        %v1135 = vadd.f32 %v744, %v1071
        %v1136 = vadd.f32 %v745, %v1072
        %v1137 = vadd.f32 %v746, %v1073
        %v1138 = vadd.f32 %v747, %v1074
        %v1139 = vadd.f32 %v748, %v1075
        %v1140 = vadd.f32 %v749, %v1076
        %v1141 = vadd.f32 %v750, %v1077
        %v1142 = vadd.f32 %v751, %v1078
        %v1143 = vadd.f32 %v752, %v1079
        %v1144 = vadd.f32 %v753, %v1080
        %v1145 = vadd.f32 %v754, %v1081
        %v1146 = vadd.f32 %v755, %v1082
        %v1147 = vadd.f32 %v756, %v1083
        %v1148 = vadd.f32 %v757, %v1084
        %v1149 = vadd.f32 %v758, %v1085
        %v1150 = vadd.f32 %v759, %v1086
        %v1151 = vadd.f32 %v760, %v1087
        %v1152 = vadd.f32 %v761, %v1088
        %v1153 = vadd.f32 %v762, %v1089
        %v1154 = vadd.f32 %v763, %v1090
        %v1155 = vadd.f32 %v764, %v1091
        %v1156 = vadd.f32 %v765, %v1092
        %v1157 = vadd.f32 %v766, %v1093
        %v1158 = vadd.f32 %v767, %v1094
        %v1159 = vadd.f32 %v768, %v1095
        %v1160 = vadd.f32 %v769, %v1096
        %v1161 = vadd.f32 %v770, %v1097
        %v1162 = vadd.f32 %v771, %v1098
        %v1163 = vadd.f32 %v772, %v1099
        %v1164 = vadd.f32 %v773, %v1100
        %v1165 = vadd.f32 %v774, %v1101
        %v1166 = vadd.f32 %v775, %v1102
        %v1167 = vadd.f32 %v776, %v1103
        %v1168 = vadd.f32 %v777, %v1104
        %v1169 = vadd.f32 %v778, %v1105
        %v1170 = vadd.f32 %v779, %v1106
        %v1171 = vadd.f32 %v780, %v1107
        %v1172 = vadd.f32 %v781, %v1108
        %v1173 = vadd.f32 %v782, %v1109
        %v1174 = vadd.f32 %v783, %v1110
        %v1175 = vadd.f32 %v784, %v1111
        %v1176 = vadd.f32 %v785, %v1112
        %v1177 = vadd.f32 %v786, %v1113
        %v1178 = vadd.f32 %v787, %v1114
        %v1179 = vadd.f32 %v788, %v1115
        %v1180 = vadd.f32 %v789, %v1116
        %v1181 = vadd.f32 %v790, %v1117
        %v1182 = vadd.f32 %v791, %v1118
        %v1183 = vadd.f32 %v792, %v1119
        %v1184 = vadd.f32 %v793, %v1120
        %v1185 = vadd.f32 %v794, %v1121
        %v1186 = vadd.f32 %v795, %v1122
        %v1187 = vadd.f32 %v796, %v1123
        %v1188 = vadd.f32 %v797, %v1124
        %1189 = vset.pattern.permute.xlu0 2
        %1190 = vperm.xlu0 %1189, %v342
        %v1191 = vpop.permute.xlu0 %1190
        %1193 = vset.pattern.permute.xlu0 2
        %1194 = vperm.xlu0 %1193, %v343
        %v1195 = vpop.permute.xlu0 %1194
        %1197 = vset.pattern.permute.xlu0 2
        %1198 = vperm.xlu0 %1197, %v344
        %v1199 = vpop.permute.xlu0 %1198
        %1201 = vset.pattern.permute.xlu0 2
        %1202 = vperm.xlu0 %1201, %v345
        %v1203 = vpop.permute.xlu0 %1202
        %1205 = vset.pattern.permute.xlu0 2
        %1206 = vperm.xlu0 %1205, %v346
        %v1207 = vpop.permute.xlu0 %1206
        %1209 = vset.pattern.permute.xlu0 2
        %1210 = vperm.xlu0 %1209, %v347
        %v1211 = vpop.permute.xlu0 %1210
        %1213 = vset.pattern.permute.xlu0 2
        %1214 = vperm.xlu0 %1213, %v348
        %v1215 = vpop.permute.xlu0 %1214
        %1217 = vset.pattern.permute.xlu0 2
        %1218 = vperm.xlu0 %1217, %v349
        %v1219 = vpop.permute.xlu0 %1218
        %1221 = vset.pattern.permute.xlu0 2
        %1222 = vperm.xlu0 %1221, %v350
        %v1223 = vpop.permute.xlu0 %1222
        %1225 = vset.pattern.permute.xlu0 2
        %1226 = vperm.xlu0 %1225, %v351
        %v1227 = vpop.permute.xlu0 %1226
        %1229 = vset.pattern.permute.xlu0 2
        %1230 = vperm.xlu0 %1229, %v352
        %v1231 = vpop.permute.xlu0 %1230
        %1233 = vset.pattern.permute.xlu0 2
        %1234 = vperm.xlu0 %1233, %v353
        %v1235 = vpop.permute.xlu0 %1234
        %1237 = vset.pattern.permute.xlu0 2
        %1238 = vperm.xlu0 %1237, %v354
        %v1239 = vpop.permute.xlu0 %1238
        %1241 = vset.pattern.permute.xlu0 2
        %1242 = vperm.xlu0 %1241, %v355
        %v1243 = vpop.permute.xlu0 %1242
        %1245 = vset.pattern.permute.xlu0 2
        %1246 = vperm.xlu0 %1245, %v356
        %v1247 = vpop.permute.xlu0 %1246
        %1249 = vset.pattern.permute.xlu0 2
        %1250 = vperm.xlu0 %1249, %v357
        %v1251 = vpop.permute.xlu0 %1250
        %1253 = vset.pattern.permute.xlu0 2
        %1254 = vperm.xlu0 %1253, %v358
        %v1255 = vpop.permute.xlu0 %1254
        %1257 = vset.pattern.permute.xlu0 2
        %1258 = vperm.xlu0 %1257, %v359
        %v1259 = vpop.permute.xlu0 %1258
        %1261 = vset.pattern.permute.xlu0 2
        %1262 = vperm.xlu0 %1261, %v360
        %v1263 = vpop.permute.xlu0 %1262
        %1265 = vset.pattern.permute.xlu0 2
        %1266 = vperm.xlu0 %1265, %v361
        %v1267 = vpop.permute.xlu0 %1266
        %1269 = vset.pattern.permute.xlu0 2
        %1270 = vperm.xlu0 %1269, %v362
        %v1271 = vpop.permute.xlu0 %1270
        %1273 = vset.pattern.permute.xlu0 2
        %1274 = vperm.xlu0 %1273, %v363
        %v1275 = vpop.permute.xlu0 %1274
        %1277 = vset.pattern.permute.xlu0 2
        %1278 = vperm.xlu0 %1277, %v364
        %v1279 = vpop.permute.xlu0 %1278
        %1281 = vset.pattern.permute.xlu0 2
        %1282 = vperm.xlu0 %1281, %v365
        %v1283 = vpop.permute.xlu0 %1282
        %1285 = vset.pattern.permute.xlu0 2
        %1286 = vperm.xlu0 %1285, %v366
        %v1287 = vpop.permute.xlu0 %1286
        %1289 = vset.pattern.permute.xlu0 2
        %1290 = vperm.xlu0 %1289, %v367
        %v1291 = vpop.permute.xlu0 %1290
        %1293 = vset.pattern.permute.xlu0 2
        %1294 = vperm.xlu0 %1293, %v368
        %v1295 = vpop.permute.xlu0 %1294
        %1297 = vset.pattern.permute.xlu0 2
        %1298 = vperm.xlu0 %1297, %v369
        %v1299 = vpop.permute.xlu0 %1298
        %1301 = vset.pattern.permute.xlu0 2
        %1302 = vperm.xlu0 %1301, %v370
        %v1303 = vpop.permute.xlu0 %1302
        %1305 = vset.pattern.permute.xlu0 2
        %1306 = vperm.xlu0 %1305, %v371
        %v1307 = vpop.permute.xlu0 %1306
        %1309 = vset.pattern.permute.xlu0 2
        %1310 = vperm.xlu0 %1309, %v372
        %v1311 = vpop.permute.xlu0 %1310
        %1313 = vset.pattern.permute.xlu0 2
        %1314 = vperm.xlu0 %1313, %v373
        %v1315 = vpop.permute.xlu0 %1314
        %1317 = vset.pattern.permute.xlu0 2
        %1318 = vperm.xlu0 %1317, %v374
        %v1319 = vpop.permute.xlu0 %1318
        %1321 = vset.pattern.permute.xlu0 2
        %1322 = vperm.xlu0 %1321, %v375
        %v1323 = vpop.permute.xlu0 %1322
        %1325 = vset.pattern.permute.xlu0 2
        %1326 = vperm.xlu0 %1325, %v376
        %v1327 = vpop.permute.xlu0 %1326
        %1329 = vset.pattern.permute.xlu0 2
        %1330 = vperm.xlu0 %1329, %v377
        %v1331 = vpop.permute.xlu0 %1330
        %1333 = vset.pattern.permute.xlu0 2
        %1334 = vperm.xlu0 %1333, %v378
        %v1335 = vpop.permute.xlu0 %1334
        %1337 = vset.pattern.permute.xlu0 2
        %1338 = vperm.xlu0 %1337, %v379
        %v1339 = vpop.permute.xlu0 %1338
        %1341 = vset.pattern.permute.xlu0 2
        %1342 = vperm.xlu0 %1341, %v380
        %v1343 = vpop.permute.xlu0 %1342
        %1345 = vset.pattern.permute.xlu0 2
        %1346 = vperm.xlu0 %1345, %v381
        %v1347 = vpop.permute.xlu0 %1346
        %1349 = vset.pattern.permute.xlu0 2
        %1350 = vperm.xlu0 %1349, %v382
        %v1351 = vpop.permute.xlu0 %1350
        %1353 = vset.pattern.permute.xlu0 2
        %1354 = vperm.xlu0 %1353, %v383
        %v1355 = vpop.permute.xlu0 %1354
        %1357 = vset.pattern.permute.xlu0 2
        %1358 = vperm.xlu0 %1357, %v384
        %v1359 = vpop.permute.xlu0 %1358
        %1361 = vset.pattern.permute.xlu0 2
        %1362 = vperm.xlu0 %1361, %v385
        %v1363 = vpop.permute.xlu0 %1362
        %1365 = vset.pattern.permute.xlu0 2
        %1366 = vperm.xlu0 %1365, %v386
        %v1367 = vpop.permute.xlu0 %1366
        %1369 = vset.pattern.permute.xlu0 2
        %1370 = vperm.xlu0 %1369, %v387
        %v1371 = vpop.permute.xlu0 %1370
        %1373 = vset.pattern.permute.xlu0 2
        %1374 = vperm.xlu0 %1373, %v388
        %v1375 = vpop.permute.xlu0 %1374
        %1377 = vset.pattern.permute.xlu0 2
        %1378 = vperm.xlu0 %1377, %v389
        %v1379 = vpop.permute.xlu0 %1378
        %1381 = vset.pattern.permute.xlu0 2
        %1382 = vperm.xlu0 %1381, %v390
        %v1383 = vpop.permute.xlu0 %1382
        %1385 = vset.pattern.permute.xlu0 2
        %1386 = vperm.xlu0 %1385, %v391
        %v1387 = vpop.permute.xlu0 %1386
        %1389 = vset.pattern.permute.xlu0 2
        %1390 = vperm.xlu0 %1389, %v392
        %v1391 = vpop.permute.xlu0 %1390
        %1393 = vset.pattern.permute.xlu0 2
        %1394 = vperm.xlu0 %1393, %v393
        %v1395 = vpop.permute.xlu0 %1394
        %1397 = vset.pattern.permute.xlu0 2
        %1398 = vperm.xlu0 %1397, %v394
        %v1399 = vpop.permute.xlu0 %1398
        %1401 = vset.pattern.permute.xlu0 2
        %1402 = vperm.xlu0 %1401, %v395
        %v1403 = vpop.permute.xlu0 %1402
        %1405 = vset.pattern.permute.xlu0 2
        %1406 = vperm.xlu0 %1405, %v396
        %v1407 = vpop.permute.xlu0 %1406
        %1409 = vset.pattern.permute.xlu0 2
        %1410 = vperm.xlu0 %1409, %v397
        %v1411 = vpop.permute.xlu0 %1410
        %1413 = vset.pattern.permute.xlu0 2
        %1414 = vperm.xlu0 %1413, %v398
        %v1415 = vpop.permute.xlu0 %1414
        %1417 = vset.pattern.permute.xlu0 2
        %1418 = vperm.xlu0 %1417, %v399
        %v1419 = vpop.permute.xlu0 %1418
        %1421 = vset.pattern.permute.xlu0 2
        %1422 = vperm.xlu0 %1421, %v400
        %v1423 = vpop.permute.xlu0 %1422
        %1425 = vset.pattern.permute.xlu0 2
        %1426 = vperm.xlu0 %1425, %v401
        %v1427 = vpop.permute.xlu0 %1426
        %1429 = vset.pattern.permute.xlu0 2
        %1430 = vperm.xlu0 %1429, %v402
        %v1431 = vpop.permute.xlu0 %1430
        %1433 = vset.pattern.permute.xlu0 2
        %1434 = vperm.xlu0 %1433, %v403
        %v1435 = vpop.permute.xlu0 %1434
        %1437 = vset.pattern.permute.xlu0 2
        %1438 = vperm.xlu0 %1437, %v404
        %v1439 = vpop.permute.xlu0 %1438
        %1441 = vset.pattern.permute.xlu0 2
        %1442 = vperm.xlu0 %1441, %v405
        %v1443 = vpop.permute.xlu0 %1442
        %v1445 = vadd.f32 %v1125, %v1191
        %v1446 = vadd.f32 %v1126, %v1195
        %v1447 = vadd.f32 %v1127, %v1199
        %v1448 = vadd.f32 %v1128, %v1203
        %v1449 = vadd.f32 %v1129, %v1207
        %v1450 = vadd.f32 %v1130, %v1211
        %v1451 = vadd.f32 %v1131, %v1215
        %v1452 = vadd.f32 %v1132, %v1219
        %v1453 = vadd.f32 %v1133, %v1223
        %v1454 = vadd.f32 %v1134, %v1227
        %v1455 = vadd.f32 %v1135, %v1231
        %v1456 = vadd.f32 %v1136, %v1235
        %v1457 = vadd.f32 %v1137, %v1239
        %v1458 = vadd.f32 %v1138, %v1243
        %v1459 = vadd.f32 %v1139, %v1247
        %v1460 = vadd.f32 %v1140, %v1251
        %v1461 = vadd.f32 %v1141, %v1255
        %v1462 = vadd.f32 %v1142, %v1259
        %v1463 = vadd.f32 %v1143, %v1263
        %v1464 = vadd.f32 %v1144, %v1267
        %v1465 = vadd.f32 %v1145, %v1271
        %v1466 = vadd.f32 %v1146, %v1275
        %v1467 = vadd.f32 %v1147, %v1279
        %v1468 = vadd.f32 %v1148, %v1283
        %v1469 = vadd.f32 %v1149, %v1287
        %v1470 = vadd.f32 %v1150, %v1291
        %v1471 = vadd.f32 %v1151, %v1295
        %v1472 = vadd.f32 %v1152, %v1299
        %v1473 = vadd.f32 %v1153, %v1303
        %v1474 = vadd.f32 %v1154, %v1307
        %v1475 = vadd.f32 %v1155, %v1311
        %v1476 = vadd.f32 %v1156, %v1315
        %v1477 = vadd.f32 %v1157, %v1319
        %v1478 = vadd.f32 %v1158, %v1323
        %v1479 = vadd.f32 %v1159, %v1327
        %v1480 = vadd.f32 %v1160, %v1331
        %v1481 = vadd.f32 %v1161, %v1335
        %v1482 = vadd.f32 %v1162, %v1339
        %v1483 = vadd.f32 %v1163, %v1343
        %v1484 = vadd.f32 %v1164, %v1347
        %v1485 = vadd.f32 %v1165, %v1351
        %v1486 = vadd.f32 %v1166, %v1355
        %v1487 = vadd.f32 %v1167, %v1359
        %v1488 = vadd.f32 %v1168, %v1363
        %v1489 = vadd.f32 %v1169, %v1367
        %v1490 = vadd.f32 %v1170, %v1371
        %v1491 = vadd.f32 %v1171, %v1375
        %v1492 = vadd.f32 %v1172, %v1379
        %v1493 = vadd.f32 %v1173, %v1383
        %v1494 = vadd.f32 %v1174, %v1387
        %v1495 = vadd.f32 %v1175, %v1391
        %v1496 = vadd.f32 %v1176, %v1395
        %v1497 = vadd.f32 %v1177, %v1399
        %v1498 = vadd.f32 %v1178, %v1403
        %v1499 = vadd.f32 %v1179, %v1407
        %v1500 = vadd.f32 %v1180, %v1411
        %v1501 = vadd.f32 %v1181, %v1415
        %v1502 = vadd.f32 %v1182, %v1419
        %v1503 = vadd.f32 %v1183, %v1423
        %v1504 = vadd.f32 %v1184, %v1427
        %v1505 = vadd.f32 %v1185, %v1431
        %v1506 = vadd.f32 %v1186, %v1435
        %v1507 = vadd.f32 %v1187, %v1439
        %v1508 = vadd.f32 %v1188, %v1443
        %v1509 = vmax.f32 %v1445, 0.0
        %v1510 = vmax.f32 %v1446, 0.0
        %v1511 = vmax.f32 %v1447, 0.0
        %v1512 = vmax.f32 %v1448, 0.0
        %v1513 = vmax.f32 %v1449, 0.0
        %v1514 = vmax.f32 %v1450, 0.0
        %v1515 = vmax.f32 %v1451, 0.0
        %v1516 = vmax.f32 %v1452, 0.0
        %v1517 = vmax.f32 %v1453, 0.0
        %v1518 = vmax.f32 %v1454, 0.0
        %v1519 = vmax.f32 %v1455, 0.0
        %v1520 = vmax.f32 %v1456, 0.0
        %v1521 = vmax.f32 %v1457, 0.0
        %v1522 = vmax.f32 %v1458, 0.0
        %v1523 = vmax.f32 %v1459, 0.0
        %v1524 = vmax.f32 %v1460, 0.0
        %v1525 = vmax.f32 %v1461, 0.0
        %v1526 = vmax.f32 %v1462, 0.0
        %v1527 = vmax.f32 %v1463, 0.0
        %v1528 = vmax.f32 %v1464, 0.0
        %v1529 = vmax.f32 %v1465, 0.0
        %v1530 = vmax.f32 %v1466, 0.0
        %v1531 = vmax.f32 %v1467, 0.0
        %v1532 = vmax.f32 %v1468, 0.0
        %v1533 = vmax.f32 %v1469, 0.0
        %v1534 = vmax.f32 %v1470, 0.0
        %v1535 = vmax.f32 %v1471, 0.0
        %v1536 = vmax.f32 %v1472, 0.0
        %v1537 = vmax.f32 %v1473, 0.0
        %v1538 = vmax.f32 %v1474, 0.0
        %v1539 = vmax.f32 %v1475, 0.0
        %v1540 = vmax.f32 %v1476, 0.0
        %v1541 = vmax.f32 %v1477, 0.0
        %v1542 = vmax.f32 %v1478, 0.0
        %v1543 = vmax.f32 %v1479, 0.0
        %v1544 = vmax.f32 %v1480, 0.0
        %v1545 = vmax.f32 %v1481, 0.0
        %v1546 = vmax.f32 %v1482, 0.0
        %v1547 = vmax.f32 %v1483, 0.0
        %v1548 = vmax.f32 %v1484, 0.0
        %v1549 = vmax.f32 %v1485, 0.0
        %v1550 = vmax.f32 %v1486, 0.0
        %v1551 = vmax.f32 %v1487, 0.0
        %v1552 = vmax.f32 %v1488, 0.0
        %v1553 = vmax.f32 %v1489, 0.0
        %v1554 = vmax.f32 %v1490, 0.0
        %v1555 = vmax.f32 %v1491, 0.0
        %v1556 = vmax.f32 %v1492, 0.0
        %v1557 = vmax.f32 %v1493, 0.0
        %v1558 = vmax.f32 %v1494, 0.0
        %v1559 = vmax.f32 %v1495, 0.0
        %v1560 = vmax.f32 %v1496, 0.0
        %v1561 = vmax.f32 %v1497, 0.0
        %v1562 = vmax.f32 %v1498, 0.0
        %v1563 = vmax.f32 %v1499, 0.0
        %v1564 = vmax.f32 %v1500, 0.0
        %v1565 = vmax.f32 %v1501, 0.0
        %v1566 = vmax.f32 %v1502, 0.0
        %v1567 = vmax.f32 %v1503, 0.0
        %v1568 = vmax.f32 %v1504, 0.0
        %v1569 = vmax.f32 %v1505, 0.0
        %v1570 = vmax.f32 %v1506, 0.0
        %v1571 = vmax.f32 %v1507, 0.0
        %v1572 = vmax.f32 %v1508, 0.0
        %v1573 = vld [vmem:[%s329 + $0x1] sm:$0x1]
        %v1575 = vlaneseq
        %v1576 = vshrl.u32 %v1575, 7
        %v1577 = vsub.s32 0, %v1576
        %v1578 = vrot.slane %v1573, %v1577
        %v1580 = vmul.f32 %v411, %v1578
        %v1581 = vmul.f32 %v416, %v1578
        %v1582 = vmul.f32 %v421, %v1578
        %v1583 = vmul.f32 %v426, %v1578
        %v1584 = vmul.f32 %v431, %v1578
        %v1585 = vmul.f32 %v436, %v1578
        %v1586 = vmul.f32 %v441, %v1578
        %v1587 = vmul.f32 %v446, %v1578
        %v1588 = vmul.f32 %v451, %v1578
        %v1589 = vmul.f32 %v456, %v1578
        %v1590 = vmul.f32 %v461, %v1578
        %v1591 = vmul.f32 %v466, %v1578
        %v1592 = vmul.f32 %v471, %v1578
        %v1593 = vmul.f32 %v476, %v1578
        %v1594 = vmul.f32 %v481, %v1578
        %v1595 = vmul.f32 %v486, %v1578
        %v1596 = vmul.f32 %v491, %v1578
        %v1597 = vmul.f32 %v496, %v1578
        %v1598 = vmul.f32 %v501, %v1578
        %v1599 = vmul.f32 %v506, %v1578
        %v1600 = vmul.f32 %v511, %v1578
        %v1601 = vmul.f32 %v516, %v1578
        %v1602 = vmul.f32 %v521, %v1578
        %v1603 = vmul.f32 %v526, %v1578
        %v1604 = vmul.f32 %v531, %v1578
        %v1605 = vmul.f32 %v536, %v1578
        %v1606 = vmul.f32 %v541, %v1578
        %v1607 = vmul.f32 %v546, %v1578
        %v1608 = vmul.f32 %v551, %v1578
        %v1609 = vmul.f32 %v556, %v1578
        %v1610 = vmul.f32 %v561, %v1578
        %v1611 = vmul.f32 %v566, %v1578
        %v1612 = vmul.f32 %v571, %v1578
        %v1613 = vmul.f32 %v576, %v1578
        %v1614 = vmul.f32 %v581, %v1578
        %v1615 = vmul.f32 %v586, %v1578
        %v1616 = vmul.f32 %v591, %v1578
        %v1617 = vmul.f32 %v596, %v1578
        %v1618 = vmul.f32 %v601, %v1578
        %v1619 = vmul.f32 %v606, %v1578
        %v1620 = vmul.f32 %v611, %v1578
        %v1621 = vmul.f32 %v616, %v1578
        %v1622 = vmul.f32 %v621, %v1578
        %v1623 = vmul.f32 %v626, %v1578
        %v1624 = vmul.f32 %v631, %v1578
        %v1625 = vmul.f32 %v636, %v1578
        %v1626 = vmul.f32 %v641, %v1578
        %v1627 = vmul.f32 %v646, %v1578
        %v1628 = vmul.f32 %v651, %v1578
        %v1629 = vmul.f32 %v656, %v1578
        %v1630 = vmul.f32 %v661, %v1578
        %v1631 = vmul.f32 %v666, %v1578
        %v1632 = vmul.f32 %v671, %v1578
        %v1633 = vmul.f32 %v676, %v1578
        %v1634 = vmul.f32 %v681, %v1578
        %v1635 = vmul.f32 %v686, %v1578
        %v1636 = vmul.f32 %v691, %v1578
        %v1637 = vmul.f32 %v696, %v1578
        %v1638 = vmul.f32 %v701, %v1578
        %v1639 = vmul.f32 %v706, %v1578
        %v1640 = vmul.f32 %v711, %v1578
        %v1641 = vmul.f32 %v716, %v1578
        %v1642 = vmul.f32 %v721, %v1578
        %v1643 = vmul.f32 %v726, %v1578
        %v1644 = vld [vmem:[%s334 + $0x1] sm:$0x1]
        %v1646 = vlaneseq
        %v1647 = vshrl.u32 %v1646, 7
        %v1648 = vsub.s32 0, %v1647
        %v1649 = vrot.slane %v1644, %v1648
        %v1651 = vmul.f32 %v801, %v1649
        %v1652 = vmul.f32 %v805, %v1649
        %v1653 = vmul.f32 %v809, %v1649
        %v1654 = vmul.f32 %v813, %v1649
        %v1655 = vmul.f32 %v817, %v1649
        %v1656 = vmul.f32 %v821, %v1649
        %v1657 = vmul.f32 %v825, %v1649
        %v1658 = vmul.f32 %v829, %v1649
        %v1659 = vmul.f32 %v833, %v1649
        %v1660 = vmul.f32 %v837, %v1649
        %v1661 = vmul.f32 %v841, %v1649
        %v1662 = vmul.f32 %v845, %v1649
        %v1663 = vmul.f32 %v849, %v1649
        %v1664 = vmul.f32 %v853, %v1649
        %v1665 = vmul.f32 %v857, %v1649
        %v1666 = vmul.f32 %v861, %v1649
        %v1667 = vmul.f32 %v865, %v1649
        %v1668 = vmul.f32 %v869, %v1649
        %v1669 = vmul.f32 %v873, %v1649
        %v1670 = vmul.f32 %v877, %v1649
        %v1671 = vmul.f32 %v881, %v1649
        %v1672 = vmul.f32 %v885, %v1649
        %v1673 = vmul.f32 %v889, %v1649
        %v1674 = vmul.f32 %v893, %v1649
        %v1675 = vmul.f32 %v897, %v1649
        %v1676 = vmul.f32 %v901, %v1649
        %v1677 = vmul.f32 %v905, %v1649
        %v1678 = vmul.f32 %v909, %v1649
        %v1679 = vmul.f32 %v913, %v1649
        %v1680 = vmul.f32 %v917, %v1649
        %v1681 = vmul.f32 %v921, %v1649
        %v1682 = vmul.f32 %v925, %v1649
        %v1683 = vmul.f32 %v929, %v1649
        %v1684 = vmul.f32 %v933, %v1649
        %v1685 = vmul.f32 %v937, %v1649
        %v1686 = vmul.f32 %v941, %v1649
        %v1687 = vmul.f32 %v945, %v1649
        %v1688 = vmul.f32 %v949, %v1649
        %v1689 = vmul.f32 %v953, %v1649
        %v1690 = vmul.f32 %v957, %v1649
        %v1691 = vmul.f32 %v961, %v1649
        %v1692 = vmul.f32 %v965, %v1649
        %v1693 = vmul.f32 %v969, %v1649
        %v1694 = vmul.f32 %v973, %v1649
        %v1695 = vmul.f32 %v977, %v1649
        %v1696 = vmul.f32 %v981, %v1649
        %v1697 = vmul.f32 %v985, %v1649
        %v1698 = vmul.f32 %v989, %v1649
        %v1699 = vmul.f32 %v993, %v1649
        %v1700 = vmul.f32 %v997, %v1649
        %v1701 = vmul.f32 %v1001, %v1649
        %v1702 = vmul.f32 %v1005, %v1649
        %v1703 = vmul.f32 %v1009, %v1649
        %v1704 = vmul.f32 %v1013, %v1649
        %v1705 = vmul.f32 %v1017, %v1649
        %v1706 = vmul.f32 %v1021, %v1649
        %v1707 = vmul.f32 %v1025, %v1649
        %v1708 = vmul.f32 %v1029, %v1649
        %v1709 = vmul.f32 %v1033, %v1649
        %v1710 = vmul.f32 %v1037, %v1649
        %v1711 = vmul.f32 %v1041, %v1649
        %v1712 = vmul.f32 %v1045, %v1649
        %v1713 = vmul.f32 %v1049, %v1649
        %v1714 = vmul.f32 %v1053, %v1649
        %v1715 = vadd.f32 %v1580, %v1651
        %v1716 = vadd.f32 %v1581, %v1652
        %v1717 = vadd.f32 %v1582, %v1653
        %v1718 = vadd.f32 %v1583, %v1654
        %v1719 = vadd.f32 %v1584, %v1655
        %v1720 = vadd.f32 %v1585, %v1656
        %v1721 = vadd.f32 %v1586, %v1657
        %v1722 = vadd.f32 %v1587, %v1658
        %v1723 = vadd.f32 %v1588, %v1659
        %v1724 = vadd.f32 %v1589, %v1660
        %v1725 = vadd.f32 %v1590, %v1661
        %v1726 = vadd.f32 %v1591, %v1662
        %v1727 = vadd.f32 %v1592, %v1663
        %v1728 = vadd.f32 %v1593, %v1664
        %v1729 = vadd.f32 %v1594, %v1665
        %v1730 = vadd.f32 %v1595, %v1666
        %v1731 = vadd.f32 %v1596, %v1667
        %v1732 = vadd.f32 %v1597, %v1668
        %v1733 = vadd.f32 %v1598, %v1669
        %v1734 = vadd.f32 %v1599, %v1670
        %v1735 = vadd.f32 %v1600, %v1671
        %v1736 = vadd.f32 %v1601, %v1672
        %v1737 = vadd.f32 %v1602, %v1673
        %v1738 = vadd.f32 %v1603, %v1674
        %v1739 = vadd.f32 %v1604, %v1675
        %v1740 = vadd.f32 %v1605, %v1676
        %v1741 = vadd.f32 %v1606, %v1677
        %v1742 = vadd.f32 %v1607, %v1678
        %v1743 = vadd.f32 %v1608, %v1679
        %v1744 = vadd.f32 %v1609, %v1680
        %v1745 = vadd.f32 %v1610, %v1681
        %v1746 = vadd.f32 %v1611, %v1682
        %v1747 = vadd.f32 %v1612, %v1683
        %v1748 = vadd.f32 %v1613, %v1684
        %v1749 = vadd.f32 %v1614, %v1685
        %v1750 = vadd.f32 %v1615, %v1686
        %v1751 = vadd.f32 %v1616, %v1687
        %v1752 = vadd.f32 %v1617, %v1688
        %v1753 = vadd.f32 %v1618, %v1689
        %v1754 = vadd.f32 %v1619, %v1690
        %v1755 = vadd.f32 %v1620, %v1691
        %v1756 = vadd.f32 %v1621, %v1692
        %v1757 = vadd.f32 %v1622, %v1693
        %v1758 = vadd.f32 %v1623, %v1694
        %v1759 = vadd.f32 %v1624, %v1695
        %v1760 = vadd.f32 %v1625, %v1696
        %v1761 = vadd.f32 %v1626, %v1697
        %v1762 = vadd.f32 %v1627, %v1698
        %v1763 = vadd.f32 %v1628, %v1699
        %v1764 = vadd.f32 %v1629, %v1700
        %v1765 = vadd.f32 %v1630, %v1701
        %v1766 = vadd.f32 %v1631, %v1702
        %v1767 = vadd.f32 %v1632, %v1703
        %v1768 = vadd.f32 %v1633, %v1704
        %v1769 = vadd.f32 %v1634, %v1705
        %v1770 = vadd.f32 %v1635, %v1706
        %v1771 = vadd.f32 %v1636, %v1707
        %v1772 = vadd.f32 %v1637, %v1708
        %v1773 = vadd.f32 %v1638, %v1709
        %v1774 = vadd.f32 %v1639, %v1710
        %v1775 = vadd.f32 %v1640, %v1711
        %v1776 = vadd.f32 %v1641, %v1712
        %v1777 = vadd.f32 %v1642, %v1713
        %v1778 = vadd.f32 %v1643, %v1714
        %v1779 = vadd.f32 %v1715, %v1191
        %v1780 = vadd.f32 %v1716, %v1195
        %v1781 = vadd.f32 %v1717, %v1199
        %v1782 = vadd.f32 %v1718, %v1203
        %v1783 = vadd.f32 %v1719, %v1207
        %v1784 = vadd.f32 %v1720, %v1211
        %v1785 = vadd.f32 %v1721, %v1215
        %v1786 = vadd.f32 %v1722, %v1219
        %v1787 = vadd.f32 %v1723, %v1223
        %v1788 = vadd.f32 %v1724, %v1227
        %v1789 = vadd.f32 %v1725, %v1231
        %v1790 = vadd.f32 %v1726, %v1235
        %v1791 = vadd.f32 %v1727, %v1239
        %v1792 = vadd.f32 %v1728, %v1243
        %v1793 = vadd.f32 %v1729, %v1247
        %v1794 = vadd.f32 %v1730, %v1251
        %v1795 = vadd.f32 %v1731, %v1255
        %v1796 = vadd.f32 %v1732, %v1259
        %v1797 = vadd.f32 %v1733, %v1263
        %v1798 = vadd.f32 %v1734, %v1267
        %v1799 = vadd.f32 %v1735, %v1271
        %v1800 = vadd.f32 %v1736, %v1275
        %v1801 = vadd.f32 %v1737, %v1279
        %v1802 = vadd.f32 %v1738, %v1283
        %v1803 = vadd.f32 %v1739, %v1287
        %v1804 = vadd.f32 %v1740, %v1291
        %v1805 = vadd.f32 %v1741, %v1295
        %v1806 = vadd.f32 %v1742, %v1299
        %v1807 = vadd.f32 %v1743, %v1303
        %v1808 = vadd.f32 %v1744, %v1307
        %v1809 = vadd.f32 %v1745, %v1311
        %v1810 = vadd.f32 %v1746, %v1315
        %v1811 = vadd.f32 %v1747, %v1319
        %v1812 = vadd.f32 %v1748, %v1323
        %v1813 = vadd.f32 %v1749, %v1327
        %v1814 = vadd.f32 %v1750, %v1331
        %v1815 = vadd.f32 %v1751, %v1335
        %v1816 = vadd.f32 %v1752, %v1339
        %v1817 = vadd.f32 %v1753, %v1343
        %v1818 = vadd.f32 %v1754, %v1347
        %v1819 = vadd.f32 %v1755, %v1351
        %v1820 = vadd.f32 %v1756, %v1355
        %v1821 = vadd.f32 %v1757, %v1359
        %v1822 = vadd.f32 %v1758, %v1363
        %v1823 = vadd.f32 %v1759, %v1367
        %v1824 = vadd.f32 %v1760, %v1371
        %v1825 = vadd.f32 %v1761, %v1375
        %v1826 = vadd.f32 %v1762, %v1379
        %v1827 = vadd.f32 %v1763, %v1383
        %v1828 = vadd.f32 %v1764, %v1387
        %v1829 = vadd.f32 %v1765, %v1391
        %v1830 = vadd.f32 %v1766, %v1395
        %v1831 = vadd.f32 %v1767, %v1399
        %v1832 = vadd.f32 %v1768, %v1403
        %v1833 = vadd.f32 %v1769, %v1407
        %v1834 = vadd.f32 %v1770, %v1411
        %v1835 = vadd.f32 %v1771, %v1415
        %v1836 = vadd.f32 %v1772, %v1419
        %v1837 = vadd.f32 %v1773, %v1423
        %v1838 = vadd.f32 %v1774, %v1427
        %v1839 = vadd.f32 %v1775, %v1431
        %v1840 = vadd.f32 %v1776, %v1435
        %v1841 = vadd.f32 %v1777, %v1439
        %v1842 = vadd.f32 %v1778, %v1443
        %v1843 = vmax.f32 %v1779, 0.0
        %v1844 = vmax.f32 %v1780, 0.0
        %v1845 = vmax.f32 %v1781, 0.0
        %v1846 = vmax.f32 %v1782, 0.0
        %v1847 = vmax.f32 %v1783, 0.0
        %v1848 = vmax.f32 %v1784, 0.0
        %v1849 = vmax.f32 %v1785, 0.0
        %v1850 = vmax.f32 %v1786, 0.0
        %v1851 = vmax.f32 %v1787, 0.0
        %v1852 = vmax.f32 %v1788, 0.0
        %v1853 = vmax.f32 %v1789, 0.0
        %v1854 = vmax.f32 %v1790, 0.0
        %v1855 = vmax.f32 %v1791, 0.0
        %v1856 = vmax.f32 %v1792, 0.0
        %v1857 = vmax.f32 %v1793, 0.0
        %v1858 = vmax.f32 %v1794, 0.0
        %v1859 = vmax.f32 %v1795, 0.0
        %v1860 = vmax.f32 %v1796, 0.0
        %v1861 = vmax.f32 %v1797, 0.0
        %v1862 = vmax.f32 %v1798, 0.0
        %v1863 = vmax.f32 %v1799, 0.0
        %v1864 = vmax.f32 %v1800, 0.0
        %v1865 = vmax.f32 %v1801, 0.0
        %v1866 = vmax.f32 %v1802, 0.0
        %v1867 = vmax.f32 %v1803, 0.0
        %v1868 = vmax.f32 %v1804, 0.0
        %v1869 = vmax.f32 %v1805, 0.0
        %v1870 = vmax.f32 %v1806, 0.0
        %v1871 = vmax.f32 %v1807, 0.0
        %v1872 = vmax.f32 %v1808, 0.0
        %v1873 = vmax.f32 %v1809, 0.0
        %v1874 = vmax.f32 %v1810, 0.0
        %v1875 = vmax.f32 %v1811, 0.0
        %v1876 = vmax.f32 %v1812, 0.0
        %v1877 = vmax.f32 %v1813, 0.0
        %v1878 = vmax.f32 %v1814, 0.0
        %v1879 = vmax.f32 %v1815, 0.0
        %v1880 = vmax.f32 %v1816, 0.0
        %v1881 = vmax.f32 %v1817, 0.0
        %v1882 = vmax.f32 %v1818, 0.0
        %v1883 = vmax.f32 %v1819, 0.0
        %v1884 = vmax.f32 %v1820, 0.0
        %v1885 = vmax.f32 %v1821, 0.0
        %v1886 = vmax.f32 %v1822, 0.0
        %v1887 = vmax.f32 %v1823, 0.0
        %v1888 = vmax.f32 %v1824, 0.0
        %v1889 = vmax.f32 %v1825, 0.0
        %v1890 = vmax.f32 %v1826, 0.0
        %v1891 = vmax.f32 %v1827, 0.0
        %v1892 = vmax.f32 %v1828, 0.0
        %v1893 = vmax.f32 %v1829, 0.0
        %v1894 = vmax.f32 %v1830, 0.0
        %v1895 = vmax.f32 %v1831, 0.0
        %v1896 = vmax.f32 %v1832, 0.0
        %v1897 = vmax.f32 %v1833, 0.0
        %v1898 = vmax.f32 %v1834, 0.0
        %v1899 = vmax.f32 %v1835, 0.0
        %v1900 = vmax.f32 %v1836, 0.0
        %v1901 = vmax.f32 %v1837, 0.0
        %v1902 = vmax.f32 %v1838, 0.0
        %v1903 = vmax.f32 %v1839, 0.0
        %v1904 = vmax.f32 %v1840, 0.0
        %v1905 = vmax.f32 %v1841, 0.0
        %v1906 = vmax.f32 %v1842, 0.0
        %v1907 = vld [vmem:[#allocation3] sm:$0xff]
        %v1908 = vld [vmem:[#allocation3 + $0x8] sm:$0xff]
        %v1909 = vld [vmem:[#allocation3 + $0x10] sm:$0xff]
        %v1910 = vld [vmem:[#allocation3 + $0x18] sm:$0xff]
        %v1911 = vld [vmem:[#allocation3 + $0x20] sm:$0xff]
        %v1912 = vld [vmem:[#allocation3 + $0x28] sm:$0xff]
        %v1913 = vld [vmem:[#allocation3 + $0x30] sm:$0xff]
        %v1914 = vld [vmem:[#allocation3 + $0x38] sm:$0xff]
        %v1915 = vld [vmem:[#allocation3 + $0x40] sm:$0xff]
        %v1916 = vld [vmem:[#allocation3 + $0x48] sm:$0xff]
        %v1917 = vld [vmem:[#allocation3 + $0x50] sm:$0xff]
        %v1918 = vld [vmem:[#allocation3 + $0x58] sm:$0xff]
        %v1919 = vld [vmem:[#allocation3 + $0x60] sm:$0xff]
        %v1920 = vld [vmem:[#allocation3 + $0x68] sm:$0xff]
        %v1921 = vld [vmem:[#allocation3 + $0x70] sm:$0xff]
        %v1922 = vld [vmem:[#allocation3 + $0x78] sm:$0xff]
        %v1923 = vld [vmem:[#allocation3 + $0x80] sm:$0xff]
        %v1924 = vld [vmem:[#allocation3 + $0x88] sm:$0xff]
        %v1925 = vld [vmem:[#allocation3 + $0x90] sm:$0xff]
        %v1926 = vld [vmem:[#allocation3 + $0x98] sm:$0xff]
        %v1927 = vld [vmem:[#allocation3 + $0xa0] sm:$0xff]
        %v1928 = vld [vmem:[#allocation3 + $0xa8] sm:$0xff]
        %v1929 = vld [vmem:[#allocation3 + $0xb0] sm:$0xff]
        %v1930 = vld [vmem:[#allocation3 + $0xb8] sm:$0xff]
        %v1931 = vld [vmem:[#allocation3 + $0xc0] sm:$0xff]
        %v1932 = vld [vmem:[#allocation3 + $0xc8] sm:$0xff]
        %v1933 = vld [vmem:[#allocation3 + $0xd0] sm:$0xff]
        %v1934 = vld [vmem:[#allocation3 + $0xd8] sm:$0xff]
        %v1935 = vld [vmem:[#allocation3 + $0xe0] sm:$0xff]
        %v1936 = vld [vmem:[#allocation3 + $0xe8] sm:$0xff]
        %v1937 = vld [vmem:[#allocation3 + $0xf0] sm:$0xff]
        %v1938 = vld [vmem:[#allocation3 + $0xf8] sm:$0xff]
        %v1939 = vld [vmem:[#allocation3 + $0x100] sm:$0xff]
        %v1940 = vld [vmem:[#allocation3 + $0x108] sm:$0xff]
        %v1941 = vld [vmem:[#allocation3 + $0x110] sm:$0xff]
        %v1942 = vld [vmem:[#allocation3 + $0x118] sm:$0xff]
        %v1943 = vld [vmem:[#allocation3 + $0x120] sm:$0xff]
        %v1944 = vld [vmem:[#allocation3 + $0x128] sm:$0xff]
        %v1945 = vld [vmem:[#allocation3 + $0x130] sm:$0xff]
        %v1946 = vld [vmem:[#allocation3 + $0x138] sm:$0xff]
        %v1947 = vld [vmem:[#allocation3 + $0x140] sm:$0xff]
        %v1948 = vld [vmem:[#allocation3 + $0x148] sm:$0xff]
        %v1949 = vld [vmem:[#allocation3 + $0x150] sm:$0xff]
        %v1950 = vld [vmem:[#allocation3 + $0x158] sm:$0xff]
        %v1951 = vld [vmem:[#allocation3 + $0x160] sm:$0xff]
        %v1952 = vld [vmem:[#allocation3 + $0x168] sm:$0xff]
        %v1953 = vld [vmem:[#allocation3 + $0x170] sm:$0xff]
        %v1954 = vld [vmem:[#allocation3 + $0x178] sm:$0xff]
        %v1955 = vld [vmem:[#allocation3 + $0x180] sm:$0xff]
        %v1956 = vld [vmem:[#allocation3 + $0x188] sm:$0xff]
        %v1957 = vld [vmem:[#allocation3 + $0x190] sm:$0xff]
        %v1958 = vld [vmem:[#allocation3 + $0x198] sm:$0xff]
        %v1959 = vld [vmem:[#allocation3 + $0x1a0] sm:$0xff]
        %v1960 = vld [vmem:[#allocation3 + $0x1a8] sm:$0xff]
        %v1961 = vld [vmem:[#allocation3 + $0x1b0] sm:$0xff]
        %v1962 = vld [vmem:[#allocation3 + $0x1b8] sm:$0xff]
        %v1963 = vld [vmem:[#allocation3 + $0x1c0] sm:$0xff]
        %v1964 = vld [vmem:[#allocation3 + $0x1c8] sm:$0xff]
        %v1965 = vld [vmem:[#allocation3 + $0x1d0] sm:$0xff]
        %v1966 = vld [vmem:[#allocation3 + $0x1d8] sm:$0xff]
        %v1967 = vld [vmem:[#allocation3 + $0x1e0] sm:$0xff]
        %v1968 = vld [vmem:[#allocation3 + $0x1e8] sm:$0xff]
        %v1969 = vld [vmem:[#allocation3 + $0x1f0] sm:$0xff]
        %v1970 = vld [vmem:[#allocation3 + $0x1f8] sm:$0xff]
        %v1971 = vld [vmem:[#allocation3 + $0x200] sm:$0xff]
        %v1972 = vld [vmem:[#allocation3 + $0x208] sm:$0xff]
        %v1973 = vld [vmem:[#allocation3 + $0x210] sm:$0xff]
        %v1974 = vld [vmem:[#allocation3 + $0x218] sm:$0xff]
        %v1975 = vld [vmem:[#allocation3 + $0x220] sm:$0xff]
        %v1976 = vld [vmem:[#allocation3 + $0x228] sm:$0xff]
        %v1977 = vld [vmem:[#allocation3 + $0x230] sm:$0xff]
        %v1978 = vld [vmem:[#allocation3 + $0x238] sm:$0xff]
        %v1979 = vld [vmem:[#allocation3 + $0x240] sm:$0xff]
        %v1980 = vld [vmem:[#allocation3 + $0x248] sm:$0xff]
        %v1981 = vld [vmem:[#allocation3 + $0x250] sm:$0xff]
        %v1982 = vld [vmem:[#allocation3 + $0x258] sm:$0xff]
        %v1983 = vld [vmem:[#allocation3 + $0x260] sm:$0xff]
        %v1984 = vld [vmem:[#allocation3 + $0x268] sm:$0xff]
        %v1985 = vld [vmem:[#allocation3 + $0x270] sm:$0xff]
        %v1986 = vld [vmem:[#allocation3 + $0x278] sm:$0xff]
        %v1987 = vld [vmem:[#allocation3 + $0x280] sm:$0xff]
        %v1988 = vld [vmem:[#allocation3 + $0x288] sm:$0xff]
        %v1989 = vld [vmem:[#allocation3 + $0x290] sm:$0xff]
        %v1990 = vld [vmem:[#allocation3 + $0x298] sm:$0xff]
        %v1991 = vld [vmem:[#allocation3 + $0x2a0] sm:$0xff]
        %v1992 = vld [vmem:[#allocation3 + $0x2a8] sm:$0xff]
        %v1993 = vld [vmem:[#allocation3 + $0x2b0] sm:$0xff]
        %v1994 = vld [vmem:[#allocation3 + $0x2b8] sm:$0xff]
        %v1995 = vld [vmem:[#allocation3 + $0x2c0] sm:$0xff]
        %v1996 = vld [vmem:[#allocation3 + $0x2c8] sm:$0xff]
        %v1997 = vld [vmem:[#allocation3 + $0x2d0] sm:$0xff]
        %v1998 = vld [vmem:[#allocation3 + $0x2d8] sm:$0xff]
        %v1999 = vld [vmem:[#allocation3 + $0x2e0] sm:$0xff]
        %v2000 = vld [vmem:[#allocation3 + $0x2e8] sm:$0xff]
        %v2001 = vld [vmem:[#allocation3 + $0x2f0] sm:$0xff]
        %v2002 = vld [vmem:[#allocation3 + $0x2f8] sm:$0xff]
        %v2003 = vld [vmem:[#allocation3 + $0x300] sm:$0xff]
        %v2004 = vld [vmem:[#allocation3 + $0x308] sm:$0xff]
        %v2005 = vld [vmem:[#allocation3 + $0x310] sm:$0xff]
        %v2006 = vld [vmem:[#allocation3 + $0x318] sm:$0xff]
        %v2007 = vld [vmem:[#allocation3 + $0x320] sm:$0xff]
        %v2008 = vld [vmem:[#allocation3 + $0x328] sm:$0xff]
        %v2009 = vld [vmem:[#allocation3 + $0x330] sm:$0xff]
        %v2010 = vld [vmem:[#allocation3 + $0x338] sm:$0xff]
        %v2011 = vld [vmem:[#allocation3 + $0x340] sm:$0xff]
        %v2012 = vld [vmem:[#allocation3 + $0x348] sm:$0xff]
        %v2013 = vld [vmem:[#allocation3 + $0x350] sm:$0xff]
        %v2014 = vld [vmem:[#allocation3 + $0x358] sm:$0xff]
        %v2015 = vld [vmem:[#allocation3 + $0x360] sm:$0xff]
        %v2016 = vld [vmem:[#allocation3 + $0x368] sm:$0xff]
        %v2017 = vld [vmem:[#allocation3 + $0x370] sm:$0xff]
        %v2018 = vld [vmem:[#allocation3 + $0x378] sm:$0xff]
        %v2019 = vld [vmem:[#allocation3 + $0x380] sm:$0xff]
        %v2020 = vld [vmem:[#allocation3 + $0x388] sm:$0xff]
        %v2021 = vld [vmem:[#allocation3 + $0x390] sm:$0xff]
        %v2022 = vld [vmem:[#allocation3 + $0x398] sm:$0xff]
        %v2023 = vld [vmem:[#allocation3 + $0x3a0] sm:$0xff]
        %v2024 = vld [vmem:[#allocation3 + $0x3a8] sm:$0xff]
        %v2025 = vld [vmem:[#allocation3 + $0x3b0] sm:$0xff]
        %v2026 = vld [vmem:[#allocation3 + $0x3b8] sm:$0xff]
        %v2027 = vld [vmem:[#allocation3 + $0x3c0] sm:$0xff]
        %v2028 = vld [vmem:[#allocation3 + $0x3c8] sm:$0xff]
        %v2029 = vld [vmem:[#allocation3 + $0x3d0] sm:$0xff]
        %v2030 = vld [vmem:[#allocation3 + $0x3d8] sm:$0xff]
        %v2031 = vld [vmem:[#allocation3 + $0x3e0] sm:$0xff]
        %v2032 = vld [vmem:[#allocation3 + $0x3e8] sm:$0xff]
        %v2033 = vld [vmem:[#allocation3 + $0x3f0] sm:$0xff]
        %v2034 = vld [vmem:[#allocation3 + $0x3f8] sm:$0xff]
        %v2035 = vpack.c.bf16 %v1510, %v1509
        %v2036 = vpack.c.bf16 %v1512, %v1511
        %v2037 = vpack.c.bf16 %v1514, %v1513
        %v2038 = vpack.c.bf16 %v1516, %v1515
        %v2039 = vpack.c.bf16 %v1518, %v1517
        %v2040 = vpack.c.bf16 %v1520, %v1519
        %v2041 = vpack.c.bf16 %v1522, %v1521
        %v2042 = vpack.c.bf16 %v1524, %v1523
        %v2043 = vpack.c.bf16 %v1526, %v1525
        %v2044 = vpack.c.bf16 %v1528, %v1527
        %v2045 = vpack.c.bf16 %v1530, %v1529
        %v2046 = vpack.c.bf16 %v1532, %v1531
        %v2047 = vpack.c.bf16 %v1534, %v1533
        %v2048 = vpack.c.bf16 %v1536, %v1535
        %v2049 = vpack.c.bf16 %v1538, %v1537
        %v2050 = vpack.c.bf16 %v1540, %v1539
        %v2051 = vpack.c.bf16 %v1542, %v1541
        %v2052 = vpack.c.bf16 %v1544, %v1543
        %v2053 = vpack.c.bf16 %v1546, %v1545
        %v2054 = vpack.c.bf16 %v1548, %v1547
        %v2055 = vpack.c.bf16 %v1550, %v1549
        %v2056 = vpack.c.bf16 %v1552, %v1551
        %v2057 = vpack.c.bf16 %v1554, %v1553
        %v2058 = vpack.c.bf16 %v1556, %v1555
        %v2059 = vpack.c.bf16 %v1558, %v1557
        %v2060 = vpack.c.bf16 %v1560, %v1559
        %v2061 = vpack.c.bf16 %v1562, %v1561
        %v2062 = vpack.c.bf16 %v1564, %v1563
        %v2063 = vpack.c.bf16 %v1566, %v1565
        %v2064 = vpack.c.bf16 %v1568, %v1567
        %v2065 = vpack.c.bf16 %v1570, %v1569
        %v2066 = vpack.c.bf16 %v1572, %v1571
        %2067 = vset.pattern.permute.xlu0 3
        %2068 = vperm.xlu0 %2067, %v342
        %v2069 = vpop.permute.xlu0 %2068
        %2071 = vset.pattern.permute.xlu0 3
        %2072 = vperm.xlu0 %2071, %v343
        %v2073 = vpop.permute.xlu0 %2072
        %2075 = vset.pattern.permute.xlu0 3
        %2076 = vperm.xlu0 %2075, %v344
        %v2077 = vpop.permute.xlu0 %2076
        %2079 = vset.pattern.permute.xlu0 3
        %2080 = vperm.xlu0 %2079, %v345
        %v2081 = vpop.permute.xlu0 %2080
        %2083 = vset.pattern.permute.xlu0 3
        %2084 = vperm.xlu0 %2083, %v346
        %v2085 = vpop.permute.xlu0 %2084
        %2087 = vset.pattern.permute.xlu0 3
        %2088 = vperm.xlu0 %2087, %v347
        %v2089 = vpop.permute.xlu0 %2088
        %2091 = vset.pattern.permute.xlu0 3
        %2092 = vperm.xlu0 %2091, %v348
        %v2093 = vpop.permute.xlu0 %2092
        %2095 = vset.pattern.permute.xlu0 3
        %2096 = vperm.xlu0 %2095, %v349
        %v2097 = vpop.permute.xlu0 %2096
        %2099 = vset.pattern.permute.xlu0 3
        %2100 = vperm.xlu0 %2099, %v350
        %v2101 = vpop.permute.xlu0 %2100
        %2103 = vset.pattern.permute.xlu0 3
        %2104 = vperm.xlu0 %2103, %v351
        %v2105 = vpop.permute.xlu0 %2104
        %2107 = vset.pattern.permute.xlu0 3
        %2108 = vperm.xlu0 %2107, %v352
        %v2109 = vpop.permute.xlu0 %2108
        %2111 = vset.pattern.permute.xlu0 3
        %2112 = vperm.xlu0 %2111, %v353
        %v2113 = vpop.permute.xlu0 %2112
        %2115 = vset.pattern.permute.xlu0 3
        %2116 = vperm.xlu0 %2115, %v354
        %v2117 = vpop.permute.xlu0 %2116
        %2119 = vset.pattern.permute.xlu0 3
        %2120 = vperm.xlu0 %2119, %v355
        %v2121 = vpop.permute.xlu0 %2120
        %2123 = vset.pattern.permute.xlu0 3
        %2124 = vperm.xlu0 %2123, %v356
        %v2125 = vpop.permute.xlu0 %2124
        %2127 = vset.pattern.permute.xlu0 3
        %2128 = vperm.xlu0 %2127, %v357
        %v2129 = vpop.permute.xlu0 %2128
        %2131 = vset.pattern.permute.xlu0 3
        %2132 = vperm.xlu0 %2131, %v358
        %v2133 = vpop.permute.xlu0 %2132
        %2135 = vset.pattern.permute.xlu0 3
        %2136 = vperm.xlu0 %2135, %v359
        %v2137 = vpop.permute.xlu0 %2136
        %2139 = vset.pattern.permute.xlu0 3
        %2140 = vperm.xlu0 %2139, %v360
        %v2141 = vpop.permute.xlu0 %2140
        %2143 = vset.pattern.permute.xlu0 3
        %2144 = vperm.xlu0 %2143, %v361
        %v2145 = vpop.permute.xlu0 %2144
        %2147 = vset.pattern.permute.xlu0 3
        %2148 = vperm.xlu0 %2147, %v362
        %v2149 = vpop.permute.xlu0 %2148
        %2151 = vset.pattern.permute.xlu0 3
        %2152 = vperm.xlu0 %2151, %v363
        %v2153 = vpop.permute.xlu0 %2152
        %2155 = vset.pattern.permute.xlu0 3
        %2156 = vperm.xlu0 %2155, %v364
        %v2157 = vpop.permute.xlu0 %2156
        %2159 = vset.pattern.permute.xlu0 3
        %2160 = vperm.xlu0 %2159, %v365
        %v2161 = vpop.permute.xlu0 %2160
        %2163 = vset.pattern.permute.xlu0 3
        %2164 = vperm.xlu0 %2163, %v366
        %v2165 = vpop.permute.xlu0 %2164
        %2167 = vset.pattern.permute.xlu0 3
        %2168 = vperm.xlu0 %2167, %v367
        %v2169 = vpop.permute.xlu0 %2168
        %2171 = vset.pattern.permute.xlu0 3
        %2172 = vperm.xlu0 %2171, %v368
        %v2173 = vpop.permute.xlu0 %2172
        %2175 = vset.pattern.permute.xlu0 3
        %2176 = vperm.xlu0 %2175, %v369
        %v2177 = vpop.permute.xlu0 %2176
        %2179 = vset.pattern.permute.xlu0 3
        %2180 = vperm.xlu0 %2179, %v370
        %v2181 = vpop.permute.xlu0 %2180
        %2183 = vset.pattern.permute.xlu0 3
        %2184 = vperm.xlu0 %2183, %v371
        %v2185 = vpop.permute.xlu0 %2184
        %2187 = vset.pattern.permute.xlu0 3
        %2188 = vperm.xlu0 %2187, %v372
        %v2189 = vpop.permute.xlu0 %2188
        %2191 = vset.pattern.permute.xlu0 3
        %2192 = vperm.xlu0 %2191, %v373
        %v2193 = vpop.permute.xlu0 %2192
        %2195 = vset.pattern.permute.xlu0 3
        %2196 = vperm.xlu0 %2195, %v374
        %v2197 = vpop.permute.xlu0 %2196
        %2199 = vset.pattern.permute.xlu0 3
        %2200 = vperm.xlu0 %2199, %v375
        %v2201 = vpop.permute.xlu0 %2200
        %2203 = vset.pattern.permute.xlu0 3
        %2204 = vperm.xlu0 %2203, %v376
        %v2205 = vpop.permute.xlu0 %2204
        %2207 = vset.pattern.permute.xlu0 3
        %2208 = vperm.xlu0 %2207, %v377
        %v2209 = vpop.permute.xlu0 %2208
        %2211 = vset.pattern.permute.xlu0 3
        %2212 = vperm.xlu0 %2211, %v378
        %v2213 = vpop.permute.xlu0 %2212
        %2215 = vset.pattern.permute.xlu0 3
        %2216 = vperm.xlu0 %2215, %v379
        %v2217 = vpop.permute.xlu0 %2216
        %2219 = vset.pattern.permute.xlu0 3
        %2220 = vperm.xlu0 %2219, %v380
        %v2221 = vpop.permute.xlu0 %2220
        %2223 = vset.pattern.permute.xlu0 3
        %2224 = vperm.xlu0 %2223, %v381
        %v2225 = vpop.permute.xlu0 %2224
        %2227 = vset.pattern.permute.xlu0 3
        %2228 = vperm.xlu0 %2227, %v382
        %v2229 = vpop.permute.xlu0 %2228
        %2231 = vset.pattern.permute.xlu0 3
        %2232 = vperm.xlu0 %2231, %v383
        %v2233 = vpop.permute.xlu0 %2232
        %2235 = vset.pattern.permute.xlu0 3
        %2236 = vperm.xlu0 %2235, %v384
        %v2237 = vpop.permute.xlu0 %2236
        %2239 = vset.pattern.permute.xlu0 3
        %2240 = vperm.xlu0 %2239, %v385
        %v2241 = vpop.permute.xlu0 %2240
        %2243 = vset.pattern.permute.xlu0 3
        %2244 = vperm.xlu0 %2243, %v386
        %v2245 = vpop.permute.xlu0 %2244
        %2247 = vset.pattern.permute.xlu0 3
        %2248 = vperm.xlu0 %2247, %v387
        %v2249 = vpop.permute.xlu0 %2248
        %2251 = vset.pattern.permute.xlu0 3
        %2252 = vperm.xlu0 %2251, %v388
        %v2253 = vpop.permute.xlu0 %2252
        %2255 = vset.pattern.permute.xlu0 3
        %2256 = vperm.xlu0 %2255, %v389
        %v2257 = vpop.permute.xlu0 %2256
        %2259 = vset.pattern.permute.xlu0 3
        %2260 = vperm.xlu0 %2259, %v390
        %v2261 = vpop.permute.xlu0 %2260
        %2263 = vset.pattern.permute.xlu0 3
        %2264 = vperm.xlu0 %2263, %v391
        %v2265 = vpop.permute.xlu0 %2264
        %2267 = vset.pattern.permute.xlu0 3
        %2268 = vperm.xlu0 %2267, %v392
        %v2269 = vpop.permute.xlu0 %2268
        %2271 = vset.pattern.permute.xlu0 3
        %2272 = vperm.xlu0 %2271, %v393
        %v2273 = vpop.permute.xlu0 %2272
        %2275 = vset.pattern.permute.xlu0 3
        %2276 = vperm.xlu0 %2275, %v394
        %v2277 = vpop.permute.xlu0 %2276
        %2279 = vset.pattern.permute.xlu0 3
        %2280 = vperm.xlu0 %2279, %v395
        %v2281 = vpop.permute.xlu0 %2280
        %2283 = vset.pattern.permute.xlu0 3
        %2284 = vperm.xlu0 %2283, %v396
        %v2285 = vpop.permute.xlu0 %2284
        %2287 = vset.pattern.permute.xlu0 3
        %2288 = vperm.xlu0 %2287, %v397
        %v2289 = vpop.permute.xlu0 %2288
        %2291 = vset.pattern.permute.xlu0 3
        %2292 = vperm.xlu0 %2291, %v398
        %v2293 = vpop.permute.xlu0 %2292
        %2295 = vset.pattern.permute.xlu0 3
        %2296 = vperm.xlu0 %2295, %v399
        %v2297 = vpop.permute.xlu0 %2296
        %2299 = vset.pattern.permute.xlu0 3
        %2300 = vperm.xlu0 %2299, %v400
        %v2301 = vpop.permute.xlu0 %2300
        %2303 = vset.pattern.permute.xlu0 3
        %2304 = vperm.xlu0 %2303, %v401
        %v2305 = vpop.permute.xlu0 %2304
        %2307 = vset.pattern.permute.xlu0 3
        %2308 = vperm.xlu0 %2307, %v402
        %v2309 = vpop.permute.xlu0 %2308
        %2311 = vset.pattern.permute.xlu0 3
        %2312 = vperm.xlu0 %2311, %v403
        %v2313 = vpop.permute.xlu0 %2312
        %2315 = vset.pattern.permute.xlu0 3
        %2316 = vperm.xlu0 %2315, %v404
        %v2317 = vpop.permute.xlu0 %2316
        %2319 = vset.pattern.permute.xlu0 3
        %2320 = vperm.xlu0 %2319, %v405
        %v2321 = vpop.permute.xlu0 %2320
        %v2451 = vunpack.c.l.b16 %v1907
        %v2452 = vunpack.c.h.b16 %v1907
        %v2453 = vunpack.c.l.b16 %v1908
        %v2454 = vunpack.c.h.b16 %v1908
        %v2455 = vunpack.c.l.b16 %v1909
        %v2456 = vunpack.c.h.b16 %v1909
        %v2457 = vunpack.c.l.b16 %v1910
        %v2458 = vunpack.c.h.b16 %v1910
        %v2459 = vunpack.c.l.b16 %v1911
        %v2460 = vunpack.c.h.b16 %v1911
        %v2461 = vunpack.c.l.b16 %v1912
        %v2462 = vunpack.c.h.b16 %v1912
        %v2463 = vunpack.c.l.b16 %v1913
        %v2464 = vunpack.c.h.b16 %v1913
        %v2465 = vunpack.c.l.b16 %v1914
        %v2466 = vunpack.c.h.b16 %v1914
        %v2467 = vunpack.c.l.b16 %v1915
        %v2468 = vunpack.c.h.b16 %v1915
        %v2469 = vunpack.c.l.b16 %v1916
        %v2470 = vunpack.c.h.b16 %v1916
        %v2471 = vunpack.c.l.b16 %v1917
        %v2472 = vunpack.c.h.b16 %v1917
        %v2473 = vunpack.c.l.b16 %v1918
        %v2474 = vunpack.c.h.b16 %v1918
        %v2475 = vunpack.c.l.b16 %v1919
        %v2476 = vunpack.c.h.b16 %v1919
        %v2477 = vunpack.c.l.b16 %v1920
        %v2478 = vunpack.c.h.b16 %v1920
        %v2479 = vunpack.c.l.b16 %v1921
        %v2480 = vunpack.c.h.b16 %v1921
        %v2481 = vunpack.c.l.b16 %v1922
        %v2482 = vunpack.c.h.b16 %v1922
        %v2483 = vunpack.c.l.b16 %v1923
        %v2484 = vunpack.c.h.b16 %v1923
        %v2485 = vunpack.c.l.b16 %v1924
        %v2486 = vunpack.c.h.b16 %v1924
        %v2487 = vunpack.c.l.b16 %v1925
        %v2488 = vunpack.c.h.b16 %v1925
        %v2489 = vunpack.c.l.b16 %v1926
        %v2490 = vunpack.c.h.b16 %v1926
        %v2491 = vunpack.c.l.b16 %v1927
        %v2492 = vunpack.c.h.b16 %v1927
        %v2493 = vunpack.c.l.b16 %v1928
        %v2494 = vunpack.c.h.b16 %v1928
        %v2495 = vunpack.c.l.b16 %v1929
        %v2496 = vunpack.c.h.b16 %v1929
        %v2497 = vunpack.c.l.b16 %v1930
        %v2498 = vunpack.c.h.b16 %v1930
        %v2499 = vunpack.c.l.b16 %v1931
        %v2500 = vunpack.c.h.b16 %v1931
        %v2501 = vunpack.c.l.b16 %v1932
        %v2502 = vunpack.c.h.b16 %v1932
        %v2503 = vunpack.c.l.b16 %v1933
        %v2504 = vunpack.c.h.b16 %v1933
        %v2505 = vunpack.c.l.b16 %v1934
        %v2506 = vunpack.c.h.b16 %v1934
        %v2507 = vunpack.c.l.b16 %v1935
        %v2508 = vunpack.c.h.b16 %v1935
        %v2509 = vunpack.c.l.b16 %v1936
        %v2510 = vunpack.c.h.b16 %v1936
        %v2511 = vunpack.c.l.b16 %v1937
        %v2512 = vunpack.c.h.b16 %v1937
        %v2513 = vunpack.c.l.b16 %v1938
        %v2514 = vunpack.c.h.b16 %v1938
        %v2515 = vunpack.c.l.b16 %v1939
        %v2516 = vunpack.c.h.b16 %v1939
        %v2517 = vunpack.c.l.b16 %v1940
        %v2518 = vunpack.c.h.b16 %v1940
        %v2519 = vunpack.c.l.b16 %v1941
        %v2520 = vunpack.c.h.b16 %v1941
        %v2521 = vunpack.c.l.b16 %v1942
        %v2522 = vunpack.c.h.b16 %v1942
        %v2523 = vunpack.c.l.b16 %v1943
        %v2524 = vunpack.c.h.b16 %v1943
        %v2525 = vunpack.c.l.b16 %v1944
        %v2526 = vunpack.c.h.b16 %v1944
        %v2527 = vunpack.c.l.b16 %v1945
        %v2528 = vunpack.c.h.b16 %v1945
        %v2529 = vunpack.c.l.b16 %v1946
        %v2530 = vunpack.c.h.b16 %v1946
        %v2531 = vunpack.c.l.b16 %v1947
        %v2532 = vunpack.c.h.b16 %v1947
        %v2533 = vunpack.c.l.b16 %v1948
        %v2534 = vunpack.c.h.b16 %v1948
        %v2535 = vunpack.c.l.b16 %v1949
        %v2536 = vunpack.c.h.b16 %v1949
        %v2537 = vunpack.c.l.b16 %v1950
        %v2538 = vunpack.c.h.b16 %v1950
        %v2539 = vunpack.c.l.b16 %v1951
        %v2540 = vunpack.c.h.b16 %v1951
        %v2541 = vunpack.c.l.b16 %v1952
        %v2542 = vunpack.c.h.b16 %v1952
        %v2543 = vunpack.c.l.b16 %v1953
        %v2544 = vunpack.c.h.b16 %v1953
        %v2545 = vunpack.c.l.b16 %v1954
        %v2546 = vunpack.c.h.b16 %v1954
        %v2547 = vunpack.c.l.b16 %v1955
        %v2548 = vunpack.c.h.b16 %v1955
        %v2549 = vunpack.c.l.b16 %v1956
        %v2550 = vunpack.c.h.b16 %v1956
        %v2551 = vunpack.c.l.b16 %v1957
        %v2552 = vunpack.c.h.b16 %v1957
        %v2553 = vunpack.c.l.b16 %v1958
        %v2554 = vunpack.c.h.b16 %v1958
        %v2555 = vunpack.c.l.b16 %v1959
        %v2556 = vunpack.c.h.b16 %v1959
        %v2557 = vunpack.c.l.b16 %v1960
        %v2558 = vunpack.c.h.b16 %v1960
        %v2559 = vunpack.c.l.b16 %v1961
        %v2560 = vunpack.c.h.b16 %v1961
        %v2561 = vunpack.c.l.b16 %v1962
        %v2562 = vunpack.c.h.b16 %v1962
        %v2563 = vunpack.c.l.b16 %v1963
        %v2564 = vunpack.c.h.b16 %v1963
        %v2565 = vunpack.c.l.b16 %v1964
        %v2566 = vunpack.c.h.b16 %v1964
        %v2567 = vunpack.c.l.b16 %v1965
        %v2568 = vunpack.c.h.b16 %v1965
        %v2569 = vunpack.c.l.b16 %v1966
        %v2570 = vunpack.c.h.b16 %v1966
        %v2571 = vunpack.c.l.b16 %v1967
        %v2572 = vunpack.c.h.b16 %v1967
        %v2573 = vunpack.c.l.b16 %v1968
        %v2574 = vunpack.c.h.b16 %v1968
        %v2575 = vunpack.c.l.b16 %v1969
        %v2576 = vunpack.c.h.b16 %v1969
        %v2577 = vunpack.c.l.b16 %v1970
        %v2578 = vunpack.c.h.b16 %v1970
        %v2579 = vunpack.c.l.b16 %v1971
        %v2580 = vunpack.c.h.b16 %v1971
        %v2581 = vunpack.c.l.b16 %v1972
        %v2582 = vunpack.c.h.b16 %v1972
        %v2583 = vunpack.c.l.b16 %v1973
        %v2584 = vunpack.c.h.b16 %v1973
        %v2585 = vunpack.c.l.b16 %v1974
        %v2586 = vunpack.c.h.b16 %v1974
        %v2587 = vunpack.c.l.b16 %v1975
        %v2588 = vunpack.c.h.b16 %v1975
        %v2589 = vunpack.c.l.b16 %v1976
        %v2590 = vunpack.c.h.b16 %v1976
        %v2591 = vunpack.c.l.b16 %v1977
        %v2592 = vunpack.c.h.b16 %v1977
        %v2593 = vunpack.c.l.b16 %v1978
        %v2594 = vunpack.c.h.b16 %v1978
        %v2595 = vunpack.c.l.b16 %v1979
        %v2596 = vunpack.c.h.b16 %v1979
        %v2597 = vunpack.c.l.b16 %v1980
        %v2598 = vunpack.c.h.b16 %v1980
        %v2599 = vunpack.c.l.b16 %v1981
        %v2600 = vunpack.c.h.b16 %v1981
        %v2601 = vunpack.c.l.b16 %v1982
        %v2602 = vunpack.c.h.b16 %v1982
        %v2603 = vunpack.c.l.b16 %v1983
        %v2604 = vunpack.c.h.b16 %v1983
        %v2605 = vunpack.c.l.b16 %v1984
        %v2606 = vunpack.c.h.b16 %v1984
        %v2607 = vunpack.c.l.b16 %v1985
        %v2608 = vunpack.c.h.b16 %v1985
        %v2609 = vunpack.c.l.b16 %v1986
        %v2610 = vunpack.c.h.b16 %v1986
        %v2611 = vunpack.c.l.b16 %v1987
        %v2612 = vunpack.c.h.b16 %v1987
        %v2613 = vunpack.c.l.b16 %v1988
        %v2614 = vunpack.c.h.b16 %v1988
        %v2615 = vunpack.c.l.b16 %v1989
        %v2616 = vunpack.c.h.b16 %v1989
        %v2617 = vunpack.c.l.b16 %v1990
        %v2618 = vunpack.c.h.b16 %v1990
        %v2619 = vunpack.c.l.b16 %v1991
        %v2620 = vunpack.c.h.b16 %v1991
        %v2621 = vunpack.c.l.b16 %v1992
        %v2622 = vunpack.c.h.b16 %v1992
        %v2623 = vunpack.c.l.b16 %v1993
        %v2624 = vunpack.c.h.b16 %v1993
        %v2625 = vunpack.c.l.b16 %v1994
        %v2626 = vunpack.c.h.b16 %v1994
        %v2627 = vunpack.c.l.b16 %v1995
        %v2628 = vunpack.c.h.b16 %v1995
        %v2629 = vunpack.c.l.b16 %v1996
        %v2630 = vunpack.c.h.b16 %v1996
        %v2631 = vunpack.c.l.b16 %v1997
        %v2632 = vunpack.c.h.b16 %v1997
        %v2633 = vunpack.c.l.b16 %v1998
        %v2634 = vunpack.c.h.b16 %v1998
        %v2635 = vunpack.c.l.b16 %v1999
        %v2636 = vunpack.c.h.b16 %v1999
        %v2637 = vunpack.c.l.b16 %v2000
        %v2638 = vunpack.c.h.b16 %v2000
        %v2639 = vunpack.c.l.b16 %v2001
        %v2640 = vunpack.c.h.b16 %v2001
        %v2641 = vunpack.c.l.b16 %v2002
        %v2642 = vunpack.c.h.b16 %v2002
        %v2643 = vunpack.c.l.b16 %v2003
        %v2644 = vunpack.c.h.b16 %v2003
        %v2645 = vunpack.c.l.b16 %v2004
        %v2646 = vunpack.c.h.b16 %v2004
        %v2647 = vunpack.c.l.b16 %v2005
        %v2648 = vunpack.c.h.b16 %v2005
        %v2649 = vunpack.c.l.b16 %v2006
        %v2650 = vunpack.c.h.b16 %v2006
        %v2651 = vunpack.c.l.b16 %v2007
        %v2652 = vunpack.c.h.b16 %v2007
        %v2653 = vunpack.c.l.b16 %v2008
        %v2654 = vunpack.c.h.b16 %v2008
        %v2655 = vunpack.c.l.b16 %v2009
        %v2656 = vunpack.c.h.b16 %v2009
        %v2657 = vunpack.c.l.b16 %v2010
        %v2658 = vunpack.c.h.b16 %v2010
        %v2659 = vunpack.c.l.b16 %v2011
        %v2660 = vunpack.c.h.b16 %v2011
        %v2661 = vunpack.c.l.b16 %v2012
        %v2662 = vunpack.c.h.b16 %v2012
        %v2663 = vunpack.c.l.b16 %v2013
        %v2664 = vunpack.c.h.b16 %v2013
        %v2665 = vunpack.c.l.b16 %v2014
        %v2666 = vunpack.c.h.b16 %v2014
        %v2667 = vunpack.c.l.b16 %v2015
        %v2668 = vunpack.c.h.b16 %v2015
        %v2669 = vunpack.c.l.b16 %v2016
        %v2670 = vunpack.c.h.b16 %v2016
        %v2671 = vunpack.c.l.b16 %v2017
        %v2672 = vunpack.c.h.b16 %v2017
        %v2673 = vunpack.c.l.b16 %v2018
        %v2674 = vunpack.c.h.b16 %v2018
        %v2675 = vunpack.c.l.b16 %v2019
        %v2676 = vunpack.c.h.b16 %v2019
        %v2677 = vunpack.c.l.b16 %v2020
        %v2678 = vunpack.c.h.b16 %v2020
        %v2679 = vunpack.c.l.b16 %v2021
        %v2680 = vunpack.c.h.b16 %v2021
        %v2681 = vunpack.c.l.b16 %v2022
        %v2682 = vunpack.c.h.b16 %v2022
        %v2683 = vunpack.c.l.b16 %v2023
        %v2684 = vunpack.c.h.b16 %v2023
        %v2685 = vunpack.c.l.b16 %v2024
        %v2686 = vunpack.c.h.b16 %v2024
        %v2687 = vunpack.c.l.b16 %v2025
        %v2688 = vunpack.c.h.b16 %v2025
        %v2689 = vunpack.c.l.b16 %v2026
        %v2690 = vunpack.c.h.b16 %v2026
        %v2691 = vunpack.c.l.b16 %v2027
        %v2692 = vunpack.c.h.b16 %v2027
        %v2693 = vunpack.c.l.b16 %v2028
        %v2694 = vunpack.c.h.b16 %v2028
        %v2695 = vunpack.c.l.b16 %v2029
        %v2696 = vunpack.c.h.b16 %v2029
        %v2697 = vunpack.c.l.b16 %v2030
        %v2698 = vunpack.c.h.b16 %v2030
        %v2699 = vunpack.c.l.b16 %v2031
        %v2700 = vunpack.c.h.b16 %v2031
        %v2701 = vunpack.c.l.b16 %v2032
        %v2702 = vunpack.c.h.b16 %v2032
        %v2703 = vunpack.c.l.b16 %v2033
        %v2704 = vunpack.c.h.b16 %v2033
        %v2705 = vunpack.c.l.b16 %v2034
        %v2706 = vunpack.c.h.b16 %v2034
        %v2707 = vpack.c.b16 %v2455, %v2451
        %v2708 = vpack.c.b16 %v2456, %v2452
        %v2709 = vpack.c.b16 %v2457, %v2453
        %v2710 = vpack.c.b16 %v2458, %v2454
        %v2711 = vpack.c.b16 %v2463, %v2459
        %v2712 = vpack.c.b16 %v2464, %v2460
        %v2713 = vpack.c.b16 %v2465, %v2461
        %v2714 = vpack.c.b16 %v2466, %v2462
        %v2715 = vpack.c.b16 %v2471, %v2467
        %v2716 = vpack.c.b16 %v2472, %v2468
        %v2717 = vpack.c.b16 %v2473, %v2469
        %v2718 = vpack.c.b16 %v2474, %v2470
        %v2719 = vpack.c.b16 %v2479, %v2475
        %v2720 = vpack.c.b16 %v2480, %v2476
        %v2721 = vpack.c.b16 %v2481, %v2477
        %v2722 = vpack.c.b16 %v2482, %v2478
        %v2723 = vpack.c.b16 %v2487, %v2483
        %v2724 = vpack.c.b16 %v2488, %v2484
        %v2725 = vpack.c.b16 %v2489, %v2485
        %v2726 = vpack.c.b16 %v2490, %v2486
        %v2727 = vpack.c.b16 %v2495, %v2491
        %v2728 = vpack.c.b16 %v2496, %v2492
        %v2729 = vpack.c.b16 %v2497, %v2493
        %v2730 = vpack.c.b16 %v2498, %v2494
        %v2731 = vpack.c.b16 %v2503, %v2499
        %v2732 = vpack.c.b16 %v2504, %v2500
        %v2733 = vpack.c.b16 %v2505, %v2501
        %v2734 = vpack.c.b16 %v2506, %v2502
        %v2735 = vpack.c.b16 %v2511, %v2507
        %v2736 = vpack.c.b16 %v2512, %v2508
        %v2737 = vpack.c.b16 %v2513, %v2509
        %v2738 = vpack.c.b16 %v2514, %v2510
        %v2739 = vpack.c.b16 %v2519, %v2515
        %v2740 = vpack.c.b16 %v2520, %v2516
        %v2741 = vpack.c.b16 %v2521, %v2517
        %v2742 = vpack.c.b16 %v2522, %v2518
        %v2743 = vpack.c.b16 %v2527, %v2523
        %v2744 = vpack.c.b16 %v2528, %v2524
        %v2745 = vpack.c.b16 %v2529, %v2525
        %v2746 = vpack.c.b16 %v2530, %v2526
        %v2747 = vpack.c.b16 %v2535, %v2531
        %v2748 = vpack.c.b16 %v2536, %v2532
        %v2749 = vpack.c.b16 %v2537, %v2533
        %v2750 = vpack.c.b16 %v2538, %v2534
        %v2751 = vpack.c.b16 %v2543, %v2539
        %v2752 = vpack.c.b16 %v2544, %v2540
        %v2753 = vpack.c.b16 %v2545, %v2541
        %v2754 = vpack.c.b16 %v2546, %v2542
        %v2755 = vpack.c.b16 %v2551, %v2547
        %v2756 = vpack.c.b16 %v2552, %v2548
        %v2757 = vpack.c.b16 %v2553, %v2549
        %v2758 = vpack.c.b16 %v2554, %v2550
        %v2759 = vpack.c.b16 %v2559, %v2555
        %v2760 = vpack.c.b16 %v2560, %v2556
        %v2761 = vpack.c.b16 %v2561, %v2557
        %v2762 = vpack.c.b16 %v2562, %v2558
        %v2763 = vpack.c.b16 %v2567, %v2563
        %v2764 = vpack.c.b16 %v2568, %v2564
        %v2765 = vpack.c.b16 %v2569, %v2565
        %v2766 = vpack.c.b16 %v2570, %v2566
        %v2767 = vpack.c.b16 %v2575, %v2571
        %v2768 = vpack.c.b16 %v2576, %v2572
        %v2769 = vpack.c.b16 %v2577, %v2573
        %v2770 = vpack.c.b16 %v2578, %v2574
        %v2771 = vpack.c.b16 %v2583, %v2579
        %v2772 = vpack.c.b16 %v2584, %v2580
        %v2773 = vpack.c.b16 %v2585, %v2581
        %v2774 = vpack.c.b16 %v2586, %v2582
        %v2775 = vpack.c.b16 %v2591, %v2587
        %v2776 = vpack.c.b16 %v2592, %v2588
        %v2777 = vpack.c.b16 %v2593, %v2589
        %v2778 = vpack.c.b16 %v2594, %v2590
        %v2779 = vpack.c.b16 %v2599, %v2595
        %v2780 = vpack.c.b16 %v2600, %v2596
        %v2781 = vpack.c.b16 %v2601, %v2597
        %v2782 = vpack.c.b16 %v2602, %v2598
        %v2783 = vpack.c.b16 %v2607, %v2603
        %v2784 = vpack.c.b16 %v2608, %v2604
        %v2785 = vpack.c.b16 %v2609, %v2605
        %v2786 = vpack.c.b16 %v2610, %v2606
        %v2787 = vpack.c.b16 %v2615, %v2611
        %v2788 = vpack.c.b16 %v2616, %v2612
        %v2789 = vpack.c.b16 %v2617, %v2613
        %v2790 = vpack.c.b16 %v2618, %v2614
        %v2791 = vpack.c.b16 %v2623, %v2619
        %v2792 = vpack.c.b16 %v2624, %v2620
        %v2793 = vpack.c.b16 %v2625, %v2621
        %v2794 = vpack.c.b16 %v2626, %v2622
        %v2795 = vpack.c.b16 %v2631, %v2627
        %v2796 = vpack.c.b16 %v2632, %v2628
        %v2797 = vpack.c.b16 %v2633, %v2629
        %v2798 = vpack.c.b16 %v2634, %v2630
        %v2799 = vpack.c.b16 %v2639, %v2635
        %v2800 = vpack.c.b16 %v2640, %v2636
        %v2801 = vpack.c.b16 %v2641, %v2637
        %v2802 = vpack.c.b16 %v2642, %v2638
        %v2803 = vpack.c.b16 %v2647, %v2643
        %v2804 = vpack.c.b16 %v2648, %v2644
        %v2805 = vpack.c.b16 %v2649, %v2645
        %v2806 = vpack.c.b16 %v2650, %v2646
        %v2807 = vpack.c.b16 %v2655, %v2651
        %v2808 = vpack.c.b16 %v2656, %v2652
        %v2809 = vpack.c.b16 %v2657, %v2653
        %v2810 = vpack.c.b16 %v2658, %v2654
        %v2811 = vpack.c.b16 %v2663, %v2659
        %v2812 = vpack.c.b16 %v2664, %v2660
        %v2813 = vpack.c.b16 %v2665, %v2661
        %v2814 = vpack.c.b16 %v2666, %v2662
        %v2815 = vpack.c.b16 %v2671, %v2667
        %v2816 = vpack.c.b16 %v2672, %v2668
        %v2817 = vpack.c.b16 %v2673, %v2669
        %v2818 = vpack.c.b16 %v2674, %v2670
        %v2819 = vpack.c.b16 %v2679, %v2675
        %v2820 = vpack.c.b16 %v2680, %v2676
        %v2821 = vpack.c.b16 %v2681, %v2677
        %v2822 = vpack.c.b16 %v2682, %v2678
        %v2823 = vpack.c.b16 %v2687, %v2683
        %v2824 = vpack.c.b16 %v2688, %v2684
        %v2825 = vpack.c.b16 %v2689, %v2685
        %v2826 = vpack.c.b16 %v2690, %v2686
        %v2827 = vpack.c.b16 %v2695, %v2691
        %v2828 = vpack.c.b16 %v2696, %v2692
        %v2829 = vpack.c.b16 %v2697, %v2693
        %v2830 = vpack.c.b16 %v2698, %v2694
        %v2831 = vpack.c.b16 %v2703, %v2699
        %v2832 = vpack.c.b16 %v2704, %v2700
        %v2833 = vpack.c.b16 %v2705, %v2701
        %v2834 = vpack.c.b16 %v2706, %v2702
        %2963 = vmatprep.subr.bf16.mxu0 0
        %2964 = vmatpush1.bf16.msra.mxu0 %v2035
        %2965 = vmatprep.subr.bf16.mxu0 0
        %2966 = vmatpush1.bf16.msra.mxu0 %v2036
        %2967 = vmatprep.subr.bf16.mxu0 0
        %2968 = vmatpush1.bf16.msra.mxu0 %v2037
        %2969 = vmatprep.subr.bf16.mxu0 0
        %2970 = vmatpush1.bf16.msra.mxu0 %v2038
        %2971 = vmatprep.subr.bf16.mxu0 0
        %2972 = vmatpush1.bf16.msra.mxu0 %v2039
        %2973 = vmatprep.subr.bf16.mxu0 0
        %2974 = vmatpush1.bf16.msra.mxu0 %v2040
        %2975 = vmatprep.subr.bf16.mxu0 0
        %2976 = vmatpush1.bf16.msra.mxu0 %v2041
        %2977 = vmatprep.subr.bf16.mxu0 0
        %2978 = vmatpush1.bf16.msra.mxu0 %v2042
        %2979 = vmatprep.subr.bf16.mxu0 0
        %2980 = vmatpush1.bf16.msra.mxu0 %v2043
        %2981 = vmatprep.subr.bf16.mxu0 0
        %2982 = vmatpush1.bf16.msra.mxu0 %v2044
        %2983 = vmatprep.subr.bf16.mxu0 0
        %2984 = vmatpush1.bf16.msra.mxu0 %v2045
        %2985 = vmatprep.subr.bf16.mxu0 0
        %2986 = vmatpush1.bf16.msra.mxu0 %v2046
        %2987 = vmatprep.subr.bf16.mxu0 0
        %2988 = vmatpush1.bf16.msra.mxu0 %v2047
        %2989 = vmatprep.subr.bf16.mxu0 0
        %2990 = vmatpush1.bf16.msra.mxu0 %v2048
        %2991 = vmatprep.subr.bf16.mxu0 0
        %2992 = vmatpush1.bf16.msra.mxu0 %v2049
        %2993 = vmatprep.subr.bf16.mxu0 0
        %2994 = vmatpush1.bf16.msra.mxu0 %v2050
        %2995 = vmatprep.mubr.bf16.mxu0 %v2708
        %2996 = vmatmul.mubr.bf16.gmra.mrb[0].mxu0 %v2707
        %v2997 = vpop.f32.mrb[0].mxu0
        %v2998 = vadd.f32 %v2069, %v2997
        %v2999 = vpop.f32.mrb[0].mxu0
        %v3000 = vpop.f32.mrb[0].mxu0
        %v3001 = vadd.f32 %v2073, %v3000
        %v3002 = vpop.f32.mrb[0].mxu0
        %3003 = vmatprep.mubr.bf16.mxu0 %v2712
        %3004 = vmatmul.mubr.bf16.gmra.mrb[0].mxu0 %v2711
        %v3005 = vpop.f32.mrb[0].mxu0
        %v3006 = vadd.f32 %v2077, %v3005
        %v3007 = vpop.f32.mrb[0].mxu0
        %v3008 = vpop.f32.mrb[0].mxu0
        %v3009 = vadd.f32 %v2081, %v3008
        %v3010 = vpop.f32.mrb[0].mxu0
        %3011 = vmatprep.mubr.bf16.mxu0 %v2716
        %3012 = vmatmul.mubr.bf16.gmra.mrb[0].mxu0 %v2715
        %v3013 = vpop.f32.mrb[0].mxu0
        %v3014 = vadd.f32 %v2085, %v3013
        %v3015 = vpop.f32.mrb[0].mxu0
        %v3016 = vpop.f32.mrb[0].mxu0
        %v3017 = vadd.f32 %v2089, %v3016
        %v3018 = vpop.f32.mrb[0].mxu0
        %3019 = vmatprep.mubr.bf16.mxu0 %v2720
        %3020 = vmatmul.mubr.bf16.gmra.mrb[0].mxu0 %v2719
        %v3021 = vpop.f32.mrb[0].mxu0
        %v3022 = vadd.f32 %v2093, %v3021
        %v3023 = vpop.f32.mrb[0].mxu0
        %v3024 = vpop.f32.mrb[0].mxu0
        %v3025 = vadd.f32 %v2097, %v3024
        %v3026 = vpop.f32.mrb[0].mxu0
        %3027 = vmatprep.mubr.bf16.mxu0 %v2724
        %3028 = vmatmul.mubr.bf16.gmra.mrb[0].mxu0 %v2723
        %v3029 = vpop.f32.mrb[0].mxu0
        %v3030 = vadd.f32 %v2101, %v3029
        %v3031 = vpop.f32.mrb[0].mxu0
        %v3032 = vpop.f32.mrb[0].mxu0
        %v3033 = vadd.f32 %v2105, %v3032
        %v3034 = vpop.f32.mrb[0].mxu0
        %3035 = vmatprep.mubr.bf16.mxu0 %v2728
        %3036 = vmatmul.mubr.bf16.gmra.mrb[0].mxu0 %v2727
        %v3037 = vpop.f32.mrb[0].mxu0
        %v3038 = vadd.f32 %v2109, %v3037
        %v3039 = vpop.f32.mrb[0].mxu0
        %v3040 = vpop.f32.mrb[0].mxu0
        %v3041 = vadd.f32 %v2113, %v3040
        %v3042 = vpop.f32.mrb[0].mxu0
        %3043 = vmatprep.mubr.bf16.mxu0 %v2732
        %3044 = vmatmul.mubr.bf16.gmra.mrb[0].mxu0 %v2731
        %v3045 = vpop.f32.mrb[0].mxu0
        %v3046 = vadd.f32 %v2117, %v3045
        %v3047 = vpop.f32.mrb[0].mxu0
        %v3048 = vpop.f32.mrb[0].mxu0
        %v3049 = vadd.f32 %v2121, %v3048
        %v3050 = vpop.f32.mrb[0].mxu0
        %3051 = vmatprep.mubr.bf16.mxu0 %v2736
        %3052 = vmatmul.mubr.bf16.gmra.mrb[0].mxu0 %v2735
        %v3053 = vpop.f32.mrb[0].mxu0
        %v3054 = vadd.f32 %v2125, %v3053
        %v3055 = vpop.f32.mrb[0].mxu0
        %v3056 = vpop.f32.mrb[0].mxu0
        %v3057 = vadd.f32 %v2129, %v3056
        %v3058 = vpop.f32.mrb[0].mxu0
        %3059 = vmatprep.mubr.bf16.mxu0 %v2740
        %3060 = vmatmul.mubr.bf16.gmra.mrb[0].mxu0 %v2739
        %v3061 = vpop.f32.mrb[0].mxu0
        %v3062 = vadd.f32 %v2133, %v3061
        %v3063 = vpop.f32.mrb[0].mxu0
        %v3064 = vpop.f32.mrb[0].mxu0
        %v3065 = vadd.f32 %v2137, %v3064
        %v3066 = vpop.f32.mrb[0].mxu0
        %3067 = vmatprep.mubr.bf16.mxu0 %v2744
        %3068 = vmatmul.mubr.bf16.gmra.mrb[0].mxu0 %v2743
        %v3069 = vpop.f32.mrb[0].mxu0
        %v3070 = vadd.f32 %v2141, %v3069
        %v3071 = vpop.f32.mrb[0].mxu0
        %v3072 = vpop.f32.mrb[0].mxu0
        %v3073 = vadd.f32 %v2145, %v3072
        %v3074 = vpop.f32.mrb[0].mxu0
        %3075 = vmatprep.mubr.bf16.mxu0 %v2748
        %3076 = vmatmul.mubr.bf16.gmra.mrb[0].mxu0 %v2747
        %v3077 = vpop.f32.mrb[0].mxu0
        %v3078 = vadd.f32 %v2149, %v3077
        %v3079 = vpop.f32.mrb[0].mxu0
        %v3080 = vpop.f32.mrb[0].mxu0
        %v3081 = vadd.f32 %v2153, %v3080
        %v3082 = vpop.f32.mrb[0].mxu0
        %3083 = vmatprep.mubr.bf16.mxu0 %v2752
        %3084 = vmatmul.mubr.bf16.gmra.mrb[0].mxu0 %v2751
        %v3085 = vpop.f32.mrb[0].mxu0
        %v3086 = vadd.f32 %v2157, %v3085
        %v3087 = vpop.f32.mrb[0].mxu0
        %v3088 = vpop.f32.mrb[0].mxu0
        %v3089 = vadd.f32 %v2161, %v3088
        %v3090 = vpop.f32.mrb[0].mxu0
        %3091 = vmatprep.mubr.bf16.mxu0 %v2756
        %3092 = vmatmul.mubr.bf16.gmra.mrb[0].mxu0 %v2755
        %v3093 = vpop.f32.mrb[0].mxu0
        %v3094 = vadd.f32 %v2165, %v3093
        %v3095 = vpop.f32.mrb[0].mxu0
        %v3096 = vpop.f32.mrb[0].mxu0
        %v3097 = vadd.f32 %v2169, %v3096
        %v3098 = vpop.f32.mrb[0].mxu0
        %3099 = vmatprep.mubr.bf16.mxu0 %v2760
        %3100 = vmatmul.mubr.bf16.gmra.mrb[0].mxu0 %v2759
        %v3101 = vpop.f32.mrb[0].mxu0
        %v3102 = vadd.f32 %v2173, %v3101
        %v3103 = vpop.f32.mrb[0].mxu0
        %v3104 = vpop.f32.mrb[0].mxu0
        %v3105 = vadd.f32 %v2177, %v3104
        %v3106 = vpop.f32.mrb[0].mxu0
        %3107 = vmatprep.mubr.bf16.mxu0 %v2764
        %3108 = vmatmul.mubr.bf16.gmra.mrb[0].mxu0 %v2763
        %v3109 = vpop.f32.mrb[0].mxu0
        %v3110 = vadd.f32 %v2181, %v3109
        %v3111 = vpop.f32.mrb[0].mxu0
        %v3112 = vpop.f32.mrb[0].mxu0
        %v3113 = vadd.f32 %v2185, %v3112
        %v3114 = vpop.f32.mrb[0].mxu0
        %3115 = vmatprep.mubr.bf16.mxu0 %v2768
        %3116 = vmatmul.mubr.bf16.gmra.mrb[0].mxu0 %v2767
        %v3117 = vpop.f32.mrb[0].mxu0
        %v3118 = vadd.f32 %v2189, %v3117
        %v3119 = vpop.f32.mrb[0].mxu0
        %v3120 = vpop.f32.mrb[0].mxu0
        %v3121 = vadd.f32 %v2193, %v3120
        %v3122 = vpop.f32.mrb[0].mxu0
        %3123 = vmatprep.mubr.bf16.mxu0 %v2772
        %3124 = vmatmul.mubr.bf16.gmra.mrb[0].mxu0 %v2771
        %v3125 = vpop.f32.mrb[0].mxu0
        %v3126 = vadd.f32 %v2197, %v3125
        %v3127 = vpop.f32.mrb[0].mxu0
        %v3128 = vpop.f32.mrb[0].mxu0
        %v3129 = vadd.f32 %v2201, %v3128
        %v3130 = vpop.f32.mrb[0].mxu0
        %3131 = vmatprep.mubr.bf16.mxu0 %v2776
        %3132 = vmatmul.mubr.bf16.gmra.mrb[0].mxu0 %v2775
        %v3133 = vpop.f32.mrb[0].mxu0
        %v3134 = vadd.f32 %v2205, %v3133
        %v3135 = vpop.f32.mrb[0].mxu0
        %v3136 = vpop.f32.mrb[0].mxu0
        %v3137 = vadd.f32 %v2209, %v3136
        %v3138 = vpop.f32.mrb[0].mxu0
        %3139 = vmatprep.mubr.bf16.mxu0 %v2780
        %3140 = vmatmul.mubr.bf16.gmra.mrb[0].mxu0 %v2779
        %v3141 = vpop.f32.mrb[0].mxu0
        %v3142 = vadd.f32 %v2213, %v3141
        %v3143 = vpop.f32.mrb[0].mxu0
        %v3144 = vpop.f32.mrb[0].mxu0
        %v3145 = vadd.f32 %v2217, %v3144
        %v3146 = vpop.f32.mrb[0].mxu0
        %3147 = vmatprep.mubr.bf16.mxu0 %v2784
        %3148 = vmatmul.mubr.bf16.gmra.mrb[0].mxu0 %v2783
        %v3149 = vpop.f32.mrb[0].mxu0
        %v3150 = vadd.f32 %v2221, %v3149
        %v3151 = vpop.f32.mrb[0].mxu0
        %v3152 = vpop.f32.mrb[0].mxu0
        %v3153 = vadd.f32 %v2225, %v3152
        %v3154 = vpop.f32.mrb[0].mxu0
        %3155 = vmatprep.mubr.bf16.mxu0 %v2788
        %3156 = vmatmul.mubr.bf16.gmra.mrb[0].mxu0 %v2787
        %v3157 = vpop.f32.mrb[0].mxu0
        %v3158 = vadd.f32 %v2229, %v3157
        %v3159 = vpop.f32.mrb[0].mxu0
        %v3160 = vpop.f32.mrb[0].mxu0
        %v3161 = vadd.f32 %v2233, %v3160
        %v3162 = vpop.f32.mrb[0].mxu0
        %3163 = vmatprep.mubr.bf16.mxu0 %v2792
        %3164 = vmatmul.mubr.bf16.gmra.mrb[0].mxu0 %v2791
        %v3165 = vpop.f32.mrb[0].mxu0
        %v3166 = vadd.f32 %v2237, %v3165
        %v3167 = vpop.f32.mrb[0].mxu0
        %v3168 = vpop.f32.mrb[0].mxu0
        %v3169 = vadd.f32 %v2241, %v3168
        %v3170 = vpop.f32.mrb[0].mxu0
        %3171 = vmatprep.mubr.bf16.mxu0 %v2796
        %3172 = vmatmul.mubr.bf16.gmra.mrb[0].mxu0 %v2795
        %v3173 = vpop.f32.mrb[0].mxu0
        %v3174 = vadd.f32 %v2245, %v3173
        %v3175 = vpop.f32.mrb[0].mxu0
        %v3176 = vpop.f32.mrb[0].mxu0
        %v3177 = vadd.f32 %v2249, %v3176
        %v3178 = vpop.f32.mrb[0].mxu0
        %3179 = vmatprep.mubr.bf16.mxu0 %v2800
        %3180 = vmatmul.mubr.bf16.gmra.mrb[0].mxu0 %v2799
        %v3181 = vpop.f32.mrb[0].mxu0
        %v3182 = vadd.f32 %v2253, %v3181
        %v3183 = vpop.f32.mrb[0].mxu0
        %v3184 = vpop.f32.mrb[0].mxu0
        %v3185 = vadd.f32 %v2257, %v3184
        %v3186 = vpop.f32.mrb[0].mxu0
        %3187 = vmatprep.mubr.bf16.mxu0 %v2804
        %3188 = vmatmul.mubr.bf16.gmra.mrb[0].mxu0 %v2803
        %v3189 = vpop.f32.mrb[0].mxu0
        %v3190 = vadd.f32 %v2261, %v3189
        %v3191 = vpop.f32.mrb[0].mxu0
        %v3192 = vpop.f32.mrb[0].mxu0
        %v3193 = vadd.f32 %v2265, %v3192
        %v3194 = vpop.f32.mrb[0].mxu0
        %3195 = vmatprep.mubr.bf16.mxu0 %v2808
        %3196 = vmatmul.mubr.bf16.gmra.mrb[0].mxu0 %v2807
        %v3197 = vpop.f32.mrb[0].mxu0
        %v3198 = vadd.f32 %v2269, %v3197
        %v3199 = vpop.f32.mrb[0].mxu0
        %v3200 = vpop.f32.mrb[0].mxu0
        %v3201 = vadd.f32 %v2273, %v3200
        %v3202 = vpop.f32.mrb[0].mxu0
        %3203 = vmatprep.mubr.bf16.mxu0 %v2812
        %3204 = vmatmul.mubr.bf16.gmra.mrb[0].mxu0 %v2811
        %v3205 = vpop.f32.mrb[0].mxu0
        %v3206 = vadd.f32 %v2277, %v3205
        %v3207 = vpop.f32.mrb[0].mxu0
        %v3208 = vpop.f32.mrb[0].mxu0
        %v3209 = vadd.f32 %v2281, %v3208
        %v3210 = vpop.f32.mrb[0].mxu0
        %3211 = vmatprep.mubr.bf16.mxu0 %v2816
        %3212 = vmatmul.mubr.bf16.gmra.mrb[0].mxu0 %v2815
        %v3213 = vpop.f32.mrb[0].mxu0
        %v3214 = vadd.f32 %v2285, %v3213
        %v3215 = vpop.f32.mrb[0].mxu0
        %v3216 = vpop.f32.mrb[0].mxu0
        %v3217 = vadd.f32 %v2289, %v3216
        %v3218 = vpop.f32.mrb[0].mxu0
        %3219 = vmatprep.mubr.bf16.mxu0 %v2820
        %3220 = vmatmul.mubr.bf16.gmra.mrb[0].mxu0 %v2819
        %v3221 = vpop.f32.mrb[0].mxu0
        %v3222 = vadd.f32 %v2293, %v3221
        %v3223 = vpop.f32.mrb[0].mxu0
        %v3224 = vpop.f32.mrb[0].mxu0
        %v3225 = vadd.f32 %v2297, %v3224
        %v3226 = vpop.f32.mrb[0].mxu0
        %3227 = vmatprep.mubr.bf16.mxu0 %v2824
        %3228 = vmatmul.mubr.bf16.gmra.mrb[0].mxu0 %v2823
        %v3229 = vpop.f32.mrb[0].mxu0
        %v3230 = vadd.f32 %v2301, %v3229
        %v3231 = vpop.f32.mrb[0].mxu0
        %v3232 = vpop.f32.mrb[0].mxu0
        %v3233 = vadd.f32 %v2305, %v3232
        %v3234 = vpop.f32.mrb[0].mxu0
        %3235 = vmatprep.mubr.bf16.mxu0 %v2828
        %3236 = vmatmul.mubr.bf16.gmra.mrb[0].mxu0 %v2827
        %v3237 = vpop.f32.mrb[0].mxu0
        %v3238 = vadd.f32 %v2309, %v3237
        %v3239 = vpop.f32.mrb[0].mxu0
        %v3240 = vpop.f32.mrb[0].mxu0
        %v3241 = vadd.f32 %v2313, %v3240
        %v3242 = vpop.f32.mrb[0].mxu0
        %3243 = vmatprep.mubr.bf16.mxu0 %v2832
        %3244 = vmatmul.mubr.bf16.gmra.mrb[0].mxu0 %v2831
        %v3245 = vpop.f32.mrb[0].mxu0
        %v3246 = vadd.f32 %v2317, %v3245
        %v3247 = vpop.f32.mrb[0].mxu0
        %v3248 = vpop.f32.mrb[0].mxu0
        %v3249 = vadd.f32 %v2321, %v3248
        %v3250 = vpop.f32.mrb[0].mxu0
        %3251 = vdwg.mxu0
        %3252 = vmatprep.subr.bf16.mxu0 0
        %3253 = vmatpush1.bf16.msra.mxu0 %v2051
        %3254 = vmatprep.subr.bf16.mxu0 0
        %3255 = vmatpush1.bf16.msra.mxu0 %v2052
        %3256 = vmatprep.subr.bf16.mxu0 0
        %3257 = vmatpush1.bf16.msra.mxu0 %v2053
        %3258 = vmatprep.subr.bf16.mxu0 0
        %3259 = vmatpush1.bf16.msra.mxu0 %v2054
        %3260 = vmatprep.subr.bf16.mxu0 0
        %3261 = vmatpush1.bf16.msra.mxu0 %v2055
        %3262 = vmatprep.subr.bf16.mxu0 0
        %3263 = vmatpush1.bf16.msra.mxu0 %v2056
        %3264 = vmatprep.subr.bf16.mxu0 0
        %3265 = vmatpush1.bf16.msra.mxu0 %v2057
        %3266 = vmatprep.subr.bf16.mxu0 0
        %3267 = vmatpush1.bf16.msra.mxu0 %v2058
        %3268 = vmatprep.subr.bf16.mxu0 0
        %3269 = vmatpush1.bf16.msra.mxu0 %v2059
        %3270 = vmatprep.subr.bf16.mxu0 0
        %3271 = vmatpush1.bf16.msra.mxu0 %v2060
        %3272 = vmatprep.subr.bf16.mxu0 0
        %3273 = vmatpush1.bf16.msra.mxu0 %v2061
        %3274 = vmatprep.subr.bf16.mxu0 0
        %3275 = vmatpush1.bf16.msra.mxu0 %v2062
        %3276 = vmatprep.subr.bf16.mxu0 0
        %3277 = vmatpush1.bf16.msra.mxu0 %v2063
        %3278 = vmatprep.subr.bf16.mxu0 0
        %3279 = vmatpush1.bf16.msra.mxu0 %v2064
        %3280 = vmatprep.subr.bf16.mxu0 0
        %3281 = vmatpush1.bf16.msra.mxu0 %v2065
        %3282 = vmatprep.subr.bf16.mxu0 0
        %3283 = vmatpush1.bf16.msra.mxu0 %v2066
        %3284 = vmatprep.mubr.bf16.mxu0 %v2710
        %3285 = vmatmul.mubr.bf16.gmra.mrb[0].mxu0 %v2709
        %v3286 = vpop.f32.mrb[0].mxu0
        %v3287 = vadd.f32 %v2998, %v3286
        %v3288 = vpop.f32.mrb[0].mxu0
        %v3289 = vpop.f32.mrb[0].mxu0
        %v3290 = vadd.f32 %v3001, %v3289
        %v3291 = vpop.f32.mrb[0].mxu0
        %3292 = vmatprep.mubr.bf16.mxu0 %v2714
        %3293 = vmatmul.mubr.bf16.gmra.mrb[0].mxu0 %v2713
        %v3294 = vpop.f32.mrb[0].mxu0
        %v3295 = vadd.f32 %v3006, %v3294
        %v3296 = vpop.f32.mrb[0].mxu0
        %v3297 = vpop.f32.mrb[0].mxu0
        %v3298 = vadd.f32 %v3009, %v3297
        %v3299 = vpop.f32.mrb[0].mxu0
        %3300 = vmatprep.mubr.bf16.mxu0 %v2718
        %3301 = vmatmul.mubr.bf16.gmra.mrb[0].mxu0 %v2717
        %v3302 = vpop.f32.mrb[0].mxu0
        %v3303 = vadd.f32 %v3014, %v3302
        %v3304 = vpop.f32.mrb[0].mxu0
        %v3305 = vpop.f32.mrb[0].mxu0
        %v3306 = vadd.f32 %v3017, %v3305
        %v3307 = vpop.f32.mrb[0].mxu0
        %3308 = vmatprep.mubr.bf16.mxu0 %v2722
        %3309 = vmatmul.mubr.bf16.gmra.mrb[0].mxu0 %v2721
        %v3310 = vpop.f32.mrb[0].mxu0
        %v3311 = vadd.f32 %v3022, %v3310
        %v3312 = vpop.f32.mrb[0].mxu0
        %v3313 = vpop.f32.mrb[0].mxu0
        %v3314 = vadd.f32 %v3025, %v3313
        %v3315 = vpop.f32.mrb[0].mxu0
        %3316 = vmatprep.mubr.bf16.mxu0 %v2726
        %3317 = vmatmul.mubr.bf16.gmra.mrb[0].mxu0 %v2725
        %v3318 = vpop.f32.mrb[0].mxu0
        %v3319 = vadd.f32 %v3030, %v3318
        %v3320 = vpop.f32.mrb[0].mxu0
        %v3321 = vpop.f32.mrb[0].mxu0
        %v3322 = vadd.f32 %v3033, %v3321
        %v3323 = vpop.f32.mrb[0].mxu0
        %3324 = vmatprep.mubr.bf16.mxu0 %v2730
        %3325 = vmatmul.mubr.bf16.gmra.mrb[0].mxu0 %v2729
        %v3326 = vpop.f32.mrb[0].mxu0
        %v3327 = vadd.f32 %v3038, %v3326
        %v3328 = vpop.f32.mrb[0].mxu0
        %v3329 = vpop.f32.mrb[0].mxu0
        %v3330 = vadd.f32 %v3041, %v3329
        %v3331 = vpop.f32.mrb[0].mxu0
        %3332 = vmatprep.mubr.bf16.mxu0 %v2734
        %3333 = vmatmul.mubr.bf16.gmra.mrb[0].mxu0 %v2733
        %v3334 = vpop.f32.mrb[0].mxu0
        %v3335 = vadd.f32 %v3046, %v3334
        %v3336 = vpop.f32.mrb[0].mxu0
        %v3337 = vpop.f32.mrb[0].mxu0
        %v3338 = vadd.f32 %v3049, %v3337
        %v3339 = vpop.f32.mrb[0].mxu0
        %3340 = vmatprep.mubr.bf16.mxu0 %v2738
        %3341 = vmatmul.mubr.bf16.gmra.mrb[0].mxu0 %v2737
        %v3342 = vpop.f32.mrb[0].mxu0
        %v3343 = vadd.f32 %v3054, %v3342
        %v3344 = vpop.f32.mrb[0].mxu0
        %v3345 = vpop.f32.mrb[0].mxu0
        %v3346 = vadd.f32 %v3057, %v3345
        %v3347 = vpop.f32.mrb[0].mxu0
        %3348 = vmatprep.mubr.bf16.mxu0 %v2742
        %3349 = vmatmul.mubr.bf16.gmra.mrb[0].mxu0 %v2741
        %v3350 = vpop.f32.mrb[0].mxu0
        %v3351 = vadd.f32 %v3062, %v3350
        %v3352 = vpop.f32.mrb[0].mxu0
        %v3353 = vpop.f32.mrb[0].mxu0
        %v3354 = vadd.f32 %v3065, %v3353
        %v3355 = vpop.f32.mrb[0].mxu0
        %3356 = vmatprep.mubr.bf16.mxu0 %v2746
        %3357 = vmatmul.mubr.bf16.gmra.mrb[0].mxu0 %v2745
        %v3358 = vpop.f32.mrb[0].mxu0
        %v3359 = vadd.f32 %v3070, %v3358
        %v3360 = vpop.f32.mrb[0].mxu0
        %v3361 = vpop.f32.mrb[0].mxu0
        %v3362 = vadd.f32 %v3073, %v3361
        %v3363 = vpop.f32.mrb[0].mxu0
        %3364 = vmatprep.mubr.bf16.mxu0 %v2750
        %3365 = vmatmul.mubr.bf16.gmra.mrb[0].mxu0 %v2749
        %v3366 = vpop.f32.mrb[0].mxu0
        %v3367 = vadd.f32 %v3078, %v3366
        %v3368 = vpop.f32.mrb[0].mxu0
        %v3369 = vpop.f32.mrb[0].mxu0
        %v3370 = vadd.f32 %v3081, %v3369
        %v3371 = vpop.f32.mrb[0].mxu0
        %3372 = vmatprep.mubr.bf16.mxu0 %v2754
        %3373 = vmatmul.mubr.bf16.gmra.mrb[0].mxu0 %v2753
        %v3374 = vpop.f32.mrb[0].mxu0
        %v3375 = vadd.f32 %v3086, %v3374
        %v3376 = vpop.f32.mrb[0].mxu0
        %v3377 = vpop.f32.mrb[0].mxu0
        %v3378 = vadd.f32 %v3089, %v3377
        %v3379 = vpop.f32.mrb[0].mxu0
        %3380 = vmatprep.mubr.bf16.mxu0 %v2758
        %3381 = vmatmul.mubr.bf16.gmra.mrb[0].mxu0 %v2757
        %v3382 = vpop.f32.mrb[0].mxu0
        %v3383 = vadd.f32 %v3094, %v3382
        %v3384 = vpop.f32.mrb[0].mxu0
        %v3385 = vpop.f32.mrb[0].mxu0
        %v3386 = vadd.f32 %v3097, %v3385
        %v3387 = vpop.f32.mrb[0].mxu0
        %3388 = vmatprep.mubr.bf16.mxu0 %v2762
        %3389 = vmatmul.mubr.bf16.gmra.mrb[0].mxu0 %v2761
        %v3390 = vpop.f32.mrb[0].mxu0
        %v3391 = vadd.f32 %v3102, %v3390
        %v3392 = vpop.f32.mrb[0].mxu0
        %v3393 = vpop.f32.mrb[0].mxu0
        %v3394 = vadd.f32 %v3105, %v3393
        %v3395 = vpop.f32.mrb[0].mxu0
        %3396 = vmatprep.mubr.bf16.mxu0 %v2766
        %3397 = vmatmul.mubr.bf16.gmra.mrb[0].mxu0 %v2765
        %v3398 = vpop.f32.mrb[0].mxu0
        %v3399 = vadd.f32 %v3110, %v3398
        %v3400 = vpop.f32.mrb[0].mxu0
        %v3401 = vpop.f32.mrb[0].mxu0
        %v3402 = vadd.f32 %v3113, %v3401
        %v3403 = vpop.f32.mrb[0].mxu0
        %3404 = vmatprep.mubr.bf16.mxu0 %v2770
        %3405 = vmatmul.mubr.bf16.gmra.mrb[0].mxu0 %v2769
        %v3406 = vpop.f32.mrb[0].mxu0
        %v3407 = vadd.f32 %v3118, %v3406
        %v3408 = vpop.f32.mrb[0].mxu0
        %v3409 = vpop.f32.mrb[0].mxu0
        %v3410 = vadd.f32 %v3121, %v3409
        %v3411 = vpop.f32.mrb[0].mxu0
        %3412 = vmatprep.mubr.bf16.mxu0 %v2774
        %3413 = vmatmul.mubr.bf16.gmra.mrb[0].mxu0 %v2773
        %v3414 = vpop.f32.mrb[0].mxu0
        %v3415 = vadd.f32 %v3126, %v3414
        %v3416 = vpop.f32.mrb[0].mxu0
        %v3417 = vpop.f32.mrb[0].mxu0
        %v3418 = vadd.f32 %v3129, %v3417
        %v3419 = vpop.f32.mrb[0].mxu0
        %3420 = vmatprep.mubr.bf16.mxu0 %v2778
        %3421 = vmatmul.mubr.bf16.gmra.mrb[0].mxu0 %v2777
        %v3422 = vpop.f32.mrb[0].mxu0
        %v3423 = vadd.f32 %v3134, %v3422
        %v3424 = vpop.f32.mrb[0].mxu0
        %v3425 = vpop.f32.mrb[0].mxu0
        %v3426 = vadd.f32 %v3137, %v3425
        %v3427 = vpop.f32.mrb[0].mxu0
        %3428 = vmatprep.mubr.bf16.mxu0 %v2782
        %3429 = vmatmul.mubr.bf16.gmra.mrb[0].mxu0 %v2781
        %v3430 = vpop.f32.mrb[0].mxu0
        %v3431 = vadd.f32 %v3142, %v3430
        %v3432 = vpop.f32.mrb[0].mxu0
        %v3433 = vpop.f32.mrb[0].mxu0
        %v3434 = vadd.f32 %v3145, %v3433
        %v3435 = vpop.f32.mrb[0].mxu0
        %3436 = vmatprep.mubr.bf16.mxu0 %v2786
        %3437 = vmatmul.mubr.bf16.gmra.mrb[0].mxu0 %v2785
        %v3438 = vpop.f32.mrb[0].mxu0
        %v3439 = vadd.f32 %v3150, %v3438
        %v3440 = vpop.f32.mrb[0].mxu0
        %v3441 = vpop.f32.mrb[0].mxu0
        %v3442 = vadd.f32 %v3153, %v3441
        %v3443 = vpop.f32.mrb[0].mxu0
        %3444 = vmatprep.mubr.bf16.mxu0 %v2790
        %3445 = vmatmul.mubr.bf16.gmra.mrb[0].mxu0 %v2789
        %v3446 = vpop.f32.mrb[0].mxu0
        %v3447 = vadd.f32 %v3158, %v3446
        %v3448 = vpop.f32.mrb[0].mxu0
        %v3449 = vpop.f32.mrb[0].mxu0
        %v3450 = vadd.f32 %v3161, %v3449
        %v3451 = vpop.f32.mrb[0].mxu0
        %3452 = vmatprep.mubr.bf16.mxu0 %v2794
        %3453 = vmatmul.mubr.bf16.gmra.mrb[0].mxu0 %v2793
        %v3454 = vpop.f32.mrb[0].mxu0
        %v3455 = vadd.f32 %v3166, %v3454
        %v3456 = vpop.f32.mrb[0].mxu0
        %v3457 = vpop.f32.mrb[0].mxu0
        %v3458 = vadd.f32 %v3169, %v3457
        %v3459 = vpop.f32.mrb[0].mxu0
        %3460 = vmatprep.mubr.bf16.mxu0 %v2798
        %3461 = vmatmul.mubr.bf16.gmra.mrb[0].mxu0 %v2797
        %v3462 = vpop.f32.mrb[0].mxu0
        %v3463 = vadd.f32 %v3174, %v3462
        %v3464 = vpop.f32.mrb[0].mxu0
        %v3465 = vpop.f32.mrb[0].mxu0
        %v3466 = vadd.f32 %v3177, %v3465
        %v3467 = vpop.f32.mrb[0].mxu0
        %3468 = vmatprep.mubr.bf16.mxu0 %v2802
        %3469 = vmatmul.mubr.bf16.gmra.mrb[0].mxu0 %v2801
        %v3470 = vpop.f32.mrb[0].mxu0
        %v3471 = vadd.f32 %v3182, %v3470
        %v3472 = vpop.f32.mrb[0].mxu0
        %v3473 = vpop.f32.mrb[0].mxu0
        %v3474 = vadd.f32 %v3185, %v3473
        %v3475 = vpop.f32.mrb[0].mxu0
        %3476 = vmatprep.mubr.bf16.mxu0 %v2806
        %3477 = vmatmul.mubr.bf16.gmra.mrb[0].mxu0 %v2805
        %v3478 = vpop.f32.mrb[0].mxu0
        %v3479 = vadd.f32 %v3190, %v3478
        %v3480 = vpop.f32.mrb[0].mxu0
        %v3481 = vpop.f32.mrb[0].mxu0
        %v3482 = vadd.f32 %v3193, %v3481
        %v3483 = vpop.f32.mrb[0].mxu0
        %3484 = vmatprep.mubr.bf16.mxu0 %v2810
        %3485 = vmatmul.mubr.bf16.gmra.mrb[0].mxu0 %v2809
        %v3486 = vpop.f32.mrb[0].mxu0
        %v3487 = vadd.f32 %v3198, %v3486
        %v3488 = vpop.f32.mrb[0].mxu0
        %v3489 = vpop.f32.mrb[0].mxu0
        %v3490 = vadd.f32 %v3201, %v3489
        %v3491 = vpop.f32.mrb[0].mxu0
        %3492 = vmatprep.mubr.bf16.mxu0 %v2814
        %3493 = vmatmul.mubr.bf16.gmra.mrb[0].mxu0 %v2813
        %v3494 = vpop.f32.mrb[0].mxu0
        %v3495 = vadd.f32 %v3206, %v3494
        %v3496 = vpop.f32.mrb[0].mxu0
        %v3497 = vpop.f32.mrb[0].mxu0
        %v3498 = vadd.f32 %v3209, %v3497
        %v3499 = vpop.f32.mrb[0].mxu0
        %3500 = vmatprep.mubr.bf16.mxu0 %v2818
        %3501 = vmatmul.mubr.bf16.gmra.mrb[0].mxu0 %v2817
        %v3502 = vpop.f32.mrb[0].mxu0
        %v3503 = vadd.f32 %v3214, %v3502
        %v3504 = vpop.f32.mrb[0].mxu0
        %v3505 = vpop.f32.mrb[0].mxu0
        %v3506 = vadd.f32 %v3217, %v3505
        %v3507 = vpop.f32.mrb[0].mxu0
        %3508 = vmatprep.mubr.bf16.mxu0 %v2822
        %3509 = vmatmul.mubr.bf16.gmra.mrb[0].mxu0 %v2821
        %v3510 = vpop.f32.mrb[0].mxu0
        %v3511 = vadd.f32 %v3222, %v3510
        %v3512 = vpop.f32.mrb[0].mxu0
        %v3513 = vpop.f32.mrb[0].mxu0
        %v3514 = vadd.f32 %v3225, %v3513
        %v3515 = vpop.f32.mrb[0].mxu0
        %3516 = vmatprep.mubr.bf16.mxu0 %v2826
        %3517 = vmatmul.mubr.bf16.gmra.mrb[0].mxu0 %v2825
        %v3518 = vpop.f32.mrb[0].mxu0
        %v3519 = vadd.f32 %v3230, %v3518
        %v3520 = vpop.f32.mrb[0].mxu0
        %v3521 = vpop.f32.mrb[0].mxu0
        %v3522 = vadd.f32 %v3233, %v3521
        %v3523 = vpop.f32.mrb[0].mxu0
        %3524 = vmatprep.mubr.bf16.mxu0 %v2830
        %3525 = vmatmul.mubr.bf16.gmra.mrb[0].mxu0 %v2829
        %v3526 = vpop.f32.mrb[0].mxu0
        %v3527 = vadd.f32 %v3238, %v3526
        %v3528 = vpop.f32.mrb[0].mxu0
        %v3529 = vpop.f32.mrb[0].mxu0
        %v3530 = vadd.f32 %v3241, %v3529
        %v3531 = vpop.f32.mrb[0].mxu0
        %3532 = vmatprep.mubr.bf16.mxu0 %v2834
        %3533 = vmatmul.mubr.bf16.gmra.mrb[0].mxu0 %v2833
        %v3534 = vpop.f32.mrb[0].mxu0
        %v3535 = vadd.f32 %v3246, %v3534
        %v3536 = vpop.f32.mrb[0].mxu0
        %v3537 = vpop.f32.mrb[0].mxu0
        %v3538 = vadd.f32 %v3249, %v3537
        %v3539 = vpop.f32.mrb[0].mxu0
        %3540 = vdwg.mxu0
        %v3541 = vmax.f32 %v3287, 0.0
        %v3542 = vmax.f32 %v3290, 0.0
        %v3543 = vmax.f32 %v3295, 0.0
        %v3544 = vmax.f32 %v3298, 0.0
        %v3545 = vmax.f32 %v3303, 0.0
        %v3546 = vmax.f32 %v3306, 0.0
        %v3547 = vmax.f32 %v3311, 0.0
        %v3548 = vmax.f32 %v3314, 0.0
        %v3549 = vmax.f32 %v3319, 0.0
        %v3550 = vmax.f32 %v3322, 0.0
        %v3551 = vmax.f32 %v3327, 0.0
        %v3552 = vmax.f32 %v3330, 0.0
        %v3553 = vmax.f32 %v3335, 0.0
        %v3554 = vmax.f32 %v3338, 0.0
        %v3555 = vmax.f32 %v3343, 0.0
        %v3556 = vmax.f32 %v3346, 0.0
        %v3557 = vmax.f32 %v3351, 0.0
        %v3558 = vmax.f32 %v3354, 0.0
        %v3559 = vmax.f32 %v3359, 0.0
        %v3560 = vmax.f32 %v3362, 0.0
        %v3561 = vmax.f32 %v3367, 0.0
        %v3562 = vmax.f32 %v3370, 0.0
        %v3563 = vmax.f32 %v3375, 0.0
        %v3564 = vmax.f32 %v3378, 0.0
        %v3565 = vmax.f32 %v3383, 0.0
        %v3566 = vmax.f32 %v3386, 0.0
        %v3567 = vmax.f32 %v3391, 0.0
        %v3568 = vmax.f32 %v3394, 0.0
        %v3569 = vmax.f32 %v3399, 0.0
        %v3570 = vmax.f32 %v3402, 0.0
        %v3571 = vmax.f32 %v3407, 0.0
        %v3572 = vmax.f32 %v3410, 0.0
        %v3573 = vmax.f32 %v3415, 0.0
        %v3574 = vmax.f32 %v3418, 0.0
        %v3575 = vmax.f32 %v3423, 0.0
        %v3576 = vmax.f32 %v3426, 0.0
        %v3577 = vmax.f32 %v3431, 0.0
        %v3578 = vmax.f32 %v3434, 0.0
        %v3579 = vmax.f32 %v3439, 0.0
        %v3580 = vmax.f32 %v3442, 0.0
        %v3581 = vmax.f32 %v3447, 0.0
        %v3582 = vmax.f32 %v3450, 0.0
        %v3583 = vmax.f32 %v3455, 0.0
        %v3584 = vmax.f32 %v3458, 0.0
        %v3585 = vmax.f32 %v3463, 0.0
        %v3586 = vmax.f32 %v3466, 0.0
        %v3587 = vmax.f32 %v3471, 0.0
        %v3588 = vmax.f32 %v3474, 0.0
        %v3589 = vmax.f32 %v3479, 0.0
        %v3590 = vmax.f32 %v3482, 0.0
        %v3591 = vmax.f32 %v3487, 0.0
        %v3592 = vmax.f32 %v3490, 0.0
        %v3593 = vmax.f32 %v3495, 0.0
        %v3594 = vmax.f32 %v3498, 0.0
        %v3595 = vmax.f32 %v3503, 0.0
        %v3596 = vmax.f32 %v3506, 0.0
        %v3597 = vmax.f32 %v3511, 0.0
        %v3598 = vmax.f32 %v3514, 0.0
        %v3599 = vmax.f32 %v3519, 0.0
        %v3600 = vmax.f32 %v3522, 0.0
        %v3601 = vmax.f32 %v3527, 0.0
        %v3602 = vmax.f32 %v3530, 0.0
        %v3603 = vmax.f32 %v3535, 0.0
        %v3604 = vmax.f32 %v3538, 0.0
        %v3605 = vpack.c.bf16 %v1844, %v1843
        %v3606 = vpack.c.bf16 %v1846, %v1845
        %v3607 = vpack.c.bf16 %v1848, %v1847
        %v3608 = vpack.c.bf16 %v1850, %v1849
        %v3609 = vpack.c.bf16 %v1852, %v1851
        %v3610 = vpack.c.bf16 %v1854, %v1853
        %v3611 = vpack.c.bf16 %v1856, %v1855
        %v3612 = vpack.c.bf16 %v1858, %v1857
        %v3613 = vpack.c.bf16 %v1860, %v1859
        %v3614 = vpack.c.bf16 %v1862, %v1861
        %v3615 = vpack.c.bf16 %v1864, %v1863
        %v3616 = vpack.c.bf16 %v1866, %v1865
        %v3617 = vpack.c.bf16 %v1868, %v1867
        %v3618 = vpack.c.bf16 %v1870, %v1869
        %v3619 = vpack.c.bf16 %v1872, %v1871
        %v3620 = vpack.c.bf16 %v1874, %v1873
        %v3621 = vpack.c.bf16 %v1876, %v1875
        %v3622 = vpack.c.bf16 %v1878, %v1877
        %v3623 = vpack.c.bf16 %v1880, %v1879
        %v3624 = vpack.c.bf16 %v1882, %v1881
        %v3625 = vpack.c.bf16 %v1884, %v1883
        %v3626 = vpack.c.bf16 %v1886, %v1885
        %v3627 = vpack.c.bf16 %v1888, %v1887
        %v3628 = vpack.c.bf16 %v1890, %v1889
        %v3629 = vpack.c.bf16 %v1892, %v1891
        %v3630 = vpack.c.bf16 %v1894, %v1893
        %v3631 = vpack.c.bf16 %v1896, %v1895
        %v3632 = vpack.c.bf16 %v1898, %v1897
        %v3633 = vpack.c.bf16 %v1900, %v1899
        %v3634 = vpack.c.bf16 %v1902, %v1901
        %v3635 = vpack.c.bf16 %v1904, %v1903
        %v3636 = vpack.c.bf16 %v1906, %v1905
        %3637 = vmatprep.subr.bf16.mxu0 0
        %3638 = vmatpush1.bf16.msra.mxu0 %v3605
        %3639 = vmatprep.subr.bf16.mxu0 0
        %3640 = vmatpush1.bf16.msra.mxu0 %v3606
        %3641 = vmatprep.subr.bf16.mxu0 0
        %3642 = vmatpush1.bf16.msra.mxu0 %v3607
        %3643 = vmatprep.subr.bf16.mxu0 0
        %3644 = vmatpush1.bf16.msra.mxu0 %v3608
        %3645 = vmatprep.subr.bf16.mxu0 0
        %3646 = vmatpush1.bf16.msra.mxu0 %v3609
        %3647 = vmatprep.subr.bf16.mxu0 0
        %3648 = vmatpush1.bf16.msra.mxu0 %v3610
        %3649 = vmatprep.subr.bf16.mxu0 0
        %3650 = vmatpush1.bf16.msra.mxu0 %v3611
        %3651 = vmatprep.subr.bf16.mxu0 0
        %3652 = vmatpush1.bf16.msra.mxu0 %v3612
        %3653 = vmatprep.subr.bf16.mxu0 0
        %3654 = vmatpush1.bf16.msra.mxu0 %v3613
        %3655 = vmatprep.subr.bf16.mxu0 0
        %3656 = vmatpush1.bf16.msra.mxu0 %v3614
        %3657 = vmatprep.subr.bf16.mxu0 0
        %3658 = vmatpush1.bf16.msra.mxu0 %v3615
        %3659 = vmatprep.subr.bf16.mxu0 0
        %3660 = vmatpush1.bf16.msra.mxu0 %v3616
        %3661 = vmatprep.subr.bf16.mxu0 0
        %3662 = vmatpush1.bf16.msra.mxu0 %v3617
        %3663 = vmatprep.subr.bf16.mxu0 0
        %3664 = vmatpush1.bf16.msra.mxu0 %v3618
        %3665 = vmatprep.subr.bf16.mxu0 0
        %3666 = vmatpush1.bf16.msra.mxu0 %v3619
        %3667 = vmatprep.subr.bf16.mxu0 0
        %3668 = vmatpush1.bf16.msra.mxu0 %v3620
        %3669 = vmatprep.mubr.bf16.mxu0 %v2708
        %3670 = vmatmul.mubr.bf16.gmra.mrb[0].mxu0 %v2707
        %v3671 = vpop.f32.mrb[0].mxu0
        %v3672 = vadd.f32 %v2069, %v3671
        %v3673 = vpop.f32.mrb[0].mxu0
        %v3674 = vpop.f32.mrb[0].mxu0
        %v3675 = vadd.f32 %v2073, %v3674
        %v3676 = vpop.f32.mrb[0].mxu0
        %3677 = vmatprep.mubr.bf16.mxu0 %v2712
        %3678 = vmatmul.mubr.bf16.gmra.mrb[0].mxu0 %v2711
        %v3679 = vpop.f32.mrb[0].mxu0
        %v3680 = vadd.f32 %v2077, %v3679
        %v3681 = vpop.f32.mrb[0].mxu0
        %v3682 = vpop.f32.mrb[0].mxu0
        %v3683 = vadd.f32 %v2081, %v3682
        %v3684 = vpop.f32.mrb[0].mxu0
        %3685 = vmatprep.mubr.bf16.mxu0 %v2716
        %3686 = vmatmul.mubr.bf16.gmra.mrb[0].mxu0 %v2715
        %v3687 = vpop.f32.mrb[0].mxu0
        %v3688 = vadd.f32 %v2085, %v3687
        %v3689 = vpop.f32.mrb[0].mxu0
        %v3690 = vpop.f32.mrb[0].mxu0
        %v3691 = vadd.f32 %v2089, %v3690
        %v3692 = vpop.f32.mrb[0].mxu0
        %3693 = vmatprep.mubr.bf16.mxu0 %v2720
        %3694 = vmatmul.mubr.bf16.gmra.mrb[0].mxu0 %v2719
        %v3695 = vpop.f32.mrb[0].mxu0
        %v3696 = vadd.f32 %v2093, %v3695
        %v3697 = vpop.f32.mrb[0].mxu0
        %v3698 = vpop.f32.mrb[0].mxu0
        %v3699 = vadd.f32 %v2097, %v3698
        %v3700 = vpop.f32.mrb[0].mxu0
        %3701 = vmatprep.mubr.bf16.mxu0 %v2724
        %3702 = vmatmul.mubr.bf16.gmra.mrb[0].mxu0 %v2723
        %v3703 = vpop.f32.mrb[0].mxu0
        %v3704 = vadd.f32 %v2101, %v3703
        %v3705 = vpop.f32.mrb[0].mxu0
        %v3706 = vpop.f32.mrb[0].mxu0
        %v3707 = vadd.f32 %v2105, %v3706
        %v3708 = vpop.f32.mrb[0].mxu0
        %3709 = vmatprep.mubr.bf16.mxu0 %v2728
        %3710 = vmatmul.mubr.bf16.gmra.mrb[0].mxu0 %v2727
        %v3711 = vpop.f32.mrb[0].mxu0
        %v3712 = vadd.f32 %v2109, %v3711
        %v3713 = vpop.f32.mrb[0].mxu0
        %v3714 = vpop.f32.mrb[0].mxu0
        %v3715 = vadd.f32 %v2113, %v3714
        %v3716 = vpop.f32.mrb[0].mxu0
        %3717 = vmatprep.mubr.bf16.mxu0 %v2732
        %3718 = vmatmul.mubr.bf16.gmra.mrb[0].mxu0 %v2731
        %v3719 = vpop.f32.mrb[0].mxu0
        %v3720 = vadd.f32 %v2117, %v3719
        %v3721 = vpop.f32.mrb[0].mxu0
        %v3722 = vpop.f32.mrb[0].mxu0
        %v3723 = vadd.f32 %v2121, %v3722
        %v3724 = vpop.f32.mrb[0].mxu0
        %3725 = vmatprep.mubr.bf16.mxu0 %v2736
        %3726 = vmatmul.mubr.bf16.gmra.mrb[0].mxu0 %v2735
        %v3727 = vpop.f32.mrb[0].mxu0
        %v3728 = vadd.f32 %v2125, %v3727
        %v3729 = vpop.f32.mrb[0].mxu0
        %v3730 = vpop.f32.mrb[0].mxu0
        %v3731 = vadd.f32 %v2129, %v3730
        %v3732 = vpop.f32.mrb[0].mxu0
        %3733 = vmatprep.mubr.bf16.mxu0 %v2740
        %3734 = vmatmul.mubr.bf16.gmra.mrb[0].mxu0 %v2739
        %v3735 = vpop.f32.mrb[0].mxu0
        %v3736 = vadd.f32 %v2133, %v3735
        %v3737 = vpop.f32.mrb[0].mxu0
        %v3738 = vpop.f32.mrb[0].mxu0
        %v3739 = vadd.f32 %v2137, %v3738
        %v3740 = vpop.f32.mrb[0].mxu0
        %3741 = vmatprep.mubr.bf16.mxu0 %v2744
        %3742 = vmatmul.mubr.bf16.gmra.mrb[0].mxu0 %v2743
        %v3743 = vpop.f32.mrb[0].mxu0
        %v3744 = vadd.f32 %v2141, %v3743
        %v3745 = vpop.f32.mrb[0].mxu0
        %v3746 = vpop.f32.mrb[0].mxu0
        %v3747 = vadd.f32 %v2145, %v3746
        %v3748 = vpop.f32.mrb[0].mxu0
        %3749 = vmatprep.mubr.bf16.mxu0 %v2748
        %3750 = vmatmul.mubr.bf16.gmra.mrb[0].mxu0 %v2747
        %v3751 = vpop.f32.mrb[0].mxu0
        %v3752 = vadd.f32 %v2149, %v3751
        %v3753 = vpop.f32.mrb[0].mxu0
        %v3754 = vpop.f32.mrb[0].mxu0
        %v3755 = vadd.f32 %v2153, %v3754
        %v3756 = vpop.f32.mrb[0].mxu0
        %3757 = vmatprep.mubr.bf16.mxu0 %v2752
        %3758 = vmatmul.mubr.bf16.gmra.mrb[0].mxu0 %v2751
        %v3759 = vpop.f32.mrb[0].mxu0
        %v3760 = vadd.f32 %v2157, %v3759
        %v3761 = vpop.f32.mrb[0].mxu0
        %v3762 = vpop.f32.mrb[0].mxu0
        %v3763 = vadd.f32 %v2161, %v3762
        %v3764 = vpop.f32.mrb[0].mxu0
        %3765 = vmatprep.mubr.bf16.mxu0 %v2756
        %3766 = vmatmul.mubr.bf16.gmra.mrb[0].mxu0 %v2755
        %v3767 = vpop.f32.mrb[0].mxu0
        %v3768 = vadd.f32 %v2165, %v3767
        %v3769 = vpop.f32.mrb[0].mxu0
        %v3770 = vpop.f32.mrb[0].mxu0
        %v3771 = vadd.f32 %v2169, %v3770
        %v3772 = vpop.f32.mrb[0].mxu0
        %3773 = vmatprep.mubr.bf16.mxu0 %v2760
        %3774 = vmatmul.mubr.bf16.gmra.mrb[0].mxu0 %v2759
        %v3775 = vpop.f32.mrb[0].mxu0
        %v3776 = vadd.f32 %v2173, %v3775
        %v3777 = vpop.f32.mrb[0].mxu0
        %v3778 = vpop.f32.mrb[0].mxu0
        %v3779 = vadd.f32 %v2177, %v3778
        %v3780 = vpop.f32.mrb[0].mxu0
        %3781 = vmatprep.mubr.bf16.mxu0 %v2764
        %3782 = vmatmul.mubr.bf16.gmra.mrb[0].mxu0 %v2763
        %v3783 = vpop.f32.mrb[0].mxu0
        %v3784 = vadd.f32 %v2181, %v3783
        %v3785 = vpop.f32.mrb[0].mxu0
        %v3786 = vpop.f32.mrb[0].mxu0
        %v3787 = vadd.f32 %v2185, %v3786
        %v3788 = vpop.f32.mrb[0].mxu0
        %3789 = vmatprep.mubr.bf16.mxu0 %v2768
        %3790 = vmatmul.mubr.bf16.gmra.mrb[0].mxu0 %v2767
        %v3791 = vpop.f32.mrb[0].mxu0
        %v3792 = vadd.f32 %v2189, %v3791
        %v3793 = vpop.f32.mrb[0].mxu0
        %v3794 = vpop.f32.mrb[0].mxu0
        %v3795 = vadd.f32 %v2193, %v3794
        %v3796 = vpop.f32.mrb[0].mxu0
        %3797 = vmatprep.mubr.bf16.mxu0 %v2772
        %3798 = vmatmul.mubr.bf16.gmra.mrb[0].mxu0 %v2771
        %v3799 = vpop.f32.mrb[0].mxu0
        %v3800 = vadd.f32 %v2197, %v3799
        %v3801 = vpop.f32.mrb[0].mxu0
        %v3802 = vpop.f32.mrb[0].mxu0
        %v3803 = vadd.f32 %v2201, %v3802
        %v3804 = vpop.f32.mrb[0].mxu0
        %3805 = vmatprep.mubr.bf16.mxu0 %v2776
        %3806 = vmatmul.mubr.bf16.gmra.mrb[0].mxu0 %v2775
        %v3807 = vpop.f32.mrb[0].mxu0
        %v3808 = vadd.f32 %v2205, %v3807
        %v3809 = vpop.f32.mrb[0].mxu0
        %v3810 = vpop.f32.mrb[0].mxu0
        %v3811 = vadd.f32 %v2209, %v3810
        %v3812 = vpop.f32.mrb[0].mxu0
        %3813 = vmatprep.mubr.bf16.mxu0 %v2780
        %3814 = vmatmul.mubr.bf16.gmra.mrb[0].mxu0 %v2779
        %v3815 = vpop.f32.mrb[0].mxu0
        %v3816 = vadd.f32 %v2213, %v3815
        %v3817 = vpop.f32.mrb[0].mxu0
        %v3818 = vpop.f32.mrb[0].mxu0
        %v3819 = vadd.f32 %v2217, %v3818
        %v3820 = vpop.f32.mrb[0].mxu0
        %3821 = vmatprep.mubr.bf16.mxu0 %v2784
        %3822 = vmatmul.mubr.bf16.gmra.mrb[0].mxu0 %v2783
        %v3823 = vpop.f32.mrb[0].mxu0
        %v3824 = vadd.f32 %v2221, %v3823
        %v3825 = vpop.f32.mrb[0].mxu0
        %v3826 = vpop.f32.mrb[0].mxu0
        %v3827 = vadd.f32 %v2225, %v3826
        %v3828 = vpop.f32.mrb[0].mxu0
        %3829 = vmatprep.mubr.bf16.mxu0 %v2788
        %3830 = vmatmul.mubr.bf16.gmra.mrb[0].mxu0 %v2787
        %v3831 = vpop.f32.mrb[0].mxu0
        %v3832 = vadd.f32 %v2229, %v3831
        %v3833 = vpop.f32.mrb[0].mxu0
        %v3834 = vpop.f32.mrb[0].mxu0
        %v3835 = vadd.f32 %v2233, %v3834
        %v3836 = vpop.f32.mrb[0].mxu0
        %3837 = vmatprep.mubr.bf16.mxu0 %v2792
        %3838 = vmatmul.mubr.bf16.gmra.mrb[0].mxu0 %v2791
        %v3839 = vpop.f32.mrb[0].mxu0
        %v3840 = vadd.f32 %v2237, %v3839
        %v3841 = vpop.f32.mrb[0].mxu0
        %v3842 = vpop.f32.mrb[0].mxu0
        %v3843 = vadd.f32 %v2241, %v3842
        %v3844 = vpop.f32.mrb[0].mxu0
        %3845 = vmatprep.mubr.bf16.mxu0 %v2796
        %3846 = vmatmul.mubr.bf16.gmra.mrb[0].mxu0 %v2795
        %v3847 = vpop.f32.mrb[0].mxu0
        %v3848 = vadd.f32 %v2245, %v3847
        %v3849 = vpop.f32.mrb[0].mxu0
        %v3850 = vpop.f32.mrb[0].mxu0
        %v3851 = vadd.f32 %v2249, %v3850
        %v3852 = vpop.f32.mrb[0].mxu0
        %3853 = vmatprep.mubr.bf16.mxu0 %v2800
        %3854 = vmatmul.mubr.bf16.gmra.mrb[0].mxu0 %v2799
        %v3855 = vpop.f32.mrb[0].mxu0
        %v3856 = vadd.f32 %v2253, %v3855
        %v3857 = vpop.f32.mrb[0].mxu0
        %v3858 = vpop.f32.mrb[0].mxu0
        %v3859 = vadd.f32 %v2257, %v3858
        %v3860 = vpop.f32.mrb[0].mxu0
        %3861 = vmatprep.mubr.bf16.mxu0 %v2804
        %3862 = vmatmul.mubr.bf16.gmra.mrb[0].mxu0 %v2803
        %v3863 = vpop.f32.mrb[0].mxu0
        %v3864 = vadd.f32 %v2261, %v3863
        %v3865 = vpop.f32.mrb[0].mxu0
        %v3866 = vpop.f32.mrb[0].mxu0
        %v3867 = vadd.f32 %v2265, %v3866
        %v3868 = vpop.f32.mrb[0].mxu0
        %3869 = vmatprep.mubr.bf16.mxu0 %v2808
        %3870 = vmatmul.mubr.bf16.gmra.mrb[0].mxu0 %v2807
        %v3871 = vpop.f32.mrb[0].mxu0
        %v3872 = vadd.f32 %v2269, %v3871
        %v3873 = vpop.f32.mrb[0].mxu0
        %v3874 = vpop.f32.mrb[0].mxu0
        %v3875 = vadd.f32 %v2273, %v3874
        %v3876 = vpop.f32.mrb[0].mxu0
        %3877 = vmatprep.mubr.bf16.mxu0 %v2812
        %3878 = vmatmul.mubr.bf16.gmra.mrb[0].mxu0 %v2811
        %v3879 = vpop.f32.mrb[0].mxu0
        %v3880 = vadd.f32 %v2277, %v3879
        %v3881 = vpop.f32.mrb[0].mxu0
        %v3882 = vpop.f32.mrb[0].mxu0
        %v3883 = vadd.f32 %v2281, %v3882
        %v3884 = vpop.f32.mrb[0].mxu0
        %3885 = vmatprep.mubr.bf16.mxu0 %v2816
        %3886 = vmatmul.mubr.bf16.gmra.mrb[0].mxu0 %v2815
        %v3887 = vpop.f32.mrb[0].mxu0
        %v3888 = vadd.f32 %v2285, %v3887
        %v3889 = vpop.f32.mrb[0].mxu0
        %v3890 = vpop.f32.mrb[0].mxu0
        %v3891 = vadd.f32 %v2289, %v3890
        %v3892 = vpop.f32.mrb[0].mxu0
        %3893 = vmatprep.mubr.bf16.mxu0 %v2820
        %3894 = vmatmul.mubr.bf16.gmra.mrb[0].mxu0 %v2819
        %v3895 = vpop.f32.mrb[0].mxu0
        %v3896 = vadd.f32 %v2293, %v3895
        %v3897 = vpop.f32.mrb[0].mxu0
        %v3898 = vpop.f32.mrb[0].mxu0
        %v3899 = vadd.f32 %v2297, %v3898
        %v3900 = vpop.f32.mrb[0].mxu0
        %3901 = vmatprep.mubr.bf16.mxu0 %v2824
        %3902 = vmatmul.mubr.bf16.gmra.mrb[0].mxu0 %v2823
        %v3903 = vpop.f32.mrb[0].mxu0
        %v3904 = vadd.f32 %v2301, %v3903
        %v3905 = vpop.f32.mrb[0].mxu0
        %v3906 = vpop.f32.mrb[0].mxu0
        %v3907 = vadd.f32 %v2305, %v3906
        %v3908 = vpop.f32.mrb[0].mxu0
        %3909 = vmatprep.mubr.bf16.mxu0 %v2828
        %3910 = vmatmul.mubr.bf16.gmra.mrb[0].mxu0 %v2827
        %v3911 = vpop.f32.mrb[0].mxu0
        %v3912 = vadd.f32 %v2309, %v3911
        %v3913 = vpop.f32.mrb[0].mxu0
        %v3914 = vpop.f32.mrb[0].mxu0
        %v3915 = vadd.f32 %v2313, %v3914
        %v3916 = vpop.f32.mrb[0].mxu0
        %3917 = vmatprep.mubr.bf16.mxu0 %v2832
        %3918 = vmatmul.mubr.bf16.gmra.mrb[0].mxu0 %v2831
        %v3919 = vpop.f32.mrb[0].mxu0
        %v3920 = vadd.f32 %v2317, %v3919
        %v3921 = vpop.f32.mrb[0].mxu0
        %v3922 = vpop.f32.mrb[0].mxu0
        %v3923 = vadd.f32 %v2321, %v3922
        %v3924 = vpop.f32.mrb[0].mxu0
        %3925 = vdwg.mxu0
        %3926 = vmatprep.subr.bf16.mxu0 0
        %3927 = vmatpush1.bf16.msra.mxu0 %v3621
        %3928 = vmatprep.subr.bf16.mxu0 0
        %3929 = vmatpush1.bf16.msra.mxu0 %v3622
        %3930 = vmatprep.subr.bf16.mxu0 0
        %3931 = vmatpush1.bf16.msra.mxu0 %v3623
        %3932 = vmatprep.subr.bf16.mxu0 0
        %3933 = vmatpush1.bf16.msra.mxu0 %v3624
        %3934 = vmatprep.subr.bf16.mxu0 0
        %3935 = vmatpush1.bf16.msra.mxu0 %v3625
        %3936 = vmatprep.subr.bf16.mxu0 0
        %3937 = vmatpush1.bf16.msra.mxu0 %v3626
        %3938 = vmatprep.subr.bf16.mxu0 0
        %3939 = vmatpush1.bf16.msra.mxu0 %v3627
        %3940 = vmatprep.subr.bf16.mxu0 0
        %3941 = vmatpush1.bf16.msra.mxu0 %v3628
        %3942 = vmatprep.subr.bf16.mxu0 0
        %3943 = vmatpush1.bf16.msra.mxu0 %v3629
        %3944 = vmatprep.subr.bf16.mxu0 0
        %3945 = vmatpush1.bf16.msra.mxu0 %v3630
        %3946 = vmatprep.subr.bf16.mxu0 0
        %3947 = vmatpush1.bf16.msra.mxu0 %v3631
        %3948 = vmatprep.subr.bf16.mxu0 0
        %3949 = vmatpush1.bf16.msra.mxu0 %v3632
        %3950 = vmatprep.subr.bf16.mxu0 0
        %3951 = vmatpush1.bf16.msra.mxu0 %v3633
        %3952 = vmatprep.subr.bf16.mxu0 0
        %3953 = vmatpush1.bf16.msra.mxu0 %v3634
        %3954 = vmatprep.subr.bf16.mxu0 0
        %3955 = vmatpush1.bf16.msra.mxu0 %v3635
        %3956 = vmatprep.subr.bf16.mxu0 0
        %3957 = vmatpush1.bf16.msra.mxu0 %v3636
        %3958 = vmatprep.mubr.bf16.mxu0 %v2710
        %3959 = vmatmul.mubr.bf16.gmra.mrb[0].mxu0 %v2709
        %v3960 = vpop.f32.mrb[0].mxu0
        %v3961 = vadd.f32 %v3672, %v3960
        %v3962 = vpop.f32.mrb[0].mxu0
        %v3963 = vpop.f32.mrb[0].mxu0
        %v3964 = vadd.f32 %v3675, %v3963
        %v3965 = vpop.f32.mrb[0].mxu0
        %3966 = vmatprep.mubr.bf16.mxu0 %v2714
        %3967 = vmatmul.mubr.bf16.gmra.mrb[0].mxu0 %v2713
        %v3968 = vpop.f32.mrb[0].mxu0
        %v3969 = vadd.f32 %v3680, %v3968
        %v3970 = vpop.f32.mrb[0].mxu0
        %v3971 = vpop.f32.mrb[0].mxu0
        %v3972 = vadd.f32 %v3683, %v3971
        %v3973 = vpop.f32.mrb[0].mxu0
        %3974 = vmatprep.mubr.bf16.mxu0 %v2718
        %3975 = vmatmul.mubr.bf16.gmra.mrb[0].mxu0 %v2717
        %v3976 = vpop.f32.mrb[0].mxu0
        %v3977 = vadd.f32 %v3688, %v3976
        %v3978 = vpop.f32.mrb[0].mxu0
        %v3979 = vpop.f32.mrb[0].mxu0
        %v3980 = vadd.f32 %v3691, %v3979
        %v3981 = vpop.f32.mrb[0].mxu0
        %3982 = vmatprep.mubr.bf16.mxu0 %v2722
        %3983 = vmatmul.mubr.bf16.gmra.mrb[0].mxu0 %v2721
        %v3984 = vpop.f32.mrb[0].mxu0
        %v3985 = vadd.f32 %v3696, %v3984
        %v3986 = vpop.f32.mrb[0].mxu0
        %v3987 = vpop.f32.mrb[0].mxu0
        %v3988 = vadd.f32 %v3699, %v3987
        %v3989 = vpop.f32.mrb[0].mxu0
        %3990 = vmatprep.mubr.bf16.mxu0 %v2726
        %3991 = vmatmul.mubr.bf16.gmra.mrb[0].mxu0 %v2725
        %v3992 = vpop.f32.mrb[0].mxu0
        %v3993 = vadd.f32 %v3704, %v3992
        %v3994 = vpop.f32.mrb[0].mxu0
        %v3995 = vpop.f32.mrb[0].mxu0
        %v3996 = vadd.f32 %v3707, %v3995
        %v3997 = vpop.f32.mrb[0].mxu0
        %3998 = vmatprep.mubr.bf16.mxu0 %v2730
        %3999 = vmatmul.mubr.bf16.gmra.mrb[0].mxu0 %v2729
        %v4000 = vpop.f32.mrb[0].mxu0
        %v4001 = vadd.f32 %v3712, %v4000
        %v4002 = vpop.f32.mrb[0].mxu0
        %v4003 = vpop.f32.mrb[0].mxu0
        %v4004 = vadd.f32 %v3715, %v4003
        %v4005 = vpop.f32.mrb[0].mxu0
        %4006 = vmatprep.mubr.bf16.mxu0 %v2734
        %4007 = vmatmul.mubr.bf16.gmra.mrb[0].mxu0 %v2733
        %v4008 = vpop.f32.mrb[0].mxu0
        %v4009 = vadd.f32 %v3720, %v4008
        %v4010 = vpop.f32.mrb[0].mxu0
        %v4011 = vpop.f32.mrb[0].mxu0
        %v4012 = vadd.f32 %v3723, %v4011
        %v4013 = vpop.f32.mrb[0].mxu0
        %4014 = vmatprep.mubr.bf16.mxu0 %v2738
        %4015 = vmatmul.mubr.bf16.gmra.mrb[0].mxu0 %v2737
        %v4016 = vpop.f32.mrb[0].mxu0
        %v4017 = vadd.f32 %v3728, %v4016
        %v4018 = vpop.f32.mrb[0].mxu0
        %v4019 = vpop.f32.mrb[0].mxu0
        %v4020 = vadd.f32 %v3731, %v4019
        %v4021 = vpop.f32.mrb[0].mxu0
        %4022 = vmatprep.mubr.bf16.mxu0 %v2742
        %4023 = vmatmul.mubr.bf16.gmra.mrb[0].mxu0 %v2741
        %v4024 = vpop.f32.mrb[0].mxu0
        %v4025 = vadd.f32 %v3736, %v4024
        %v4026 = vpop.f32.mrb[0].mxu0
        %v4027 = vpop.f32.mrb[0].mxu0
        %v4028 = vadd.f32 %v3739, %v4027
        %v4029 = vpop.f32.mrb[0].mxu0
        %4030 = vmatprep.mubr.bf16.mxu0 %v2746
        %4031 = vmatmul.mubr.bf16.gmra.mrb[0].mxu0 %v2745
        %v4032 = vpop.f32.mrb[0].mxu0
        %v4033 = vadd.f32 %v3744, %v4032
        %v4034 = vpop.f32.mrb[0].mxu0
        %v4035 = vpop.f32.mrb[0].mxu0
        %v4036 = vadd.f32 %v3747, %v4035
        %v4037 = vpop.f32.mrb[0].mxu0
        %4038 = vmatprep.mubr.bf16.mxu0 %v2750
        %4039 = vmatmul.mubr.bf16.gmra.mrb[0].mxu0 %v2749
        %v4040 = vpop.f32.mrb[0].mxu0
        %v4041 = vadd.f32 %v3752, %v4040
        %v4042 = vpop.f32.mrb[0].mxu0
        %v4043 = vpop.f32.mrb[0].mxu0
        %v4044 = vadd.f32 %v3755, %v4043
        %v4045 = vpop.f32.mrb[0].mxu0
        %4046 = vmatprep.mubr.bf16.mxu0 %v2754
        %4047 = vmatmul.mubr.bf16.gmra.mrb[0].mxu0 %v2753
        %v4048 = vpop.f32.mrb[0].mxu0
        %v4049 = vadd.f32 %v3760, %v4048
        %v4050 = vpop.f32.mrb[0].mxu0
        %v4051 = vpop.f32.mrb[0].mxu0
        %v4052 = vadd.f32 %v3763, %v4051
        %v4053 = vpop.f32.mrb[0].mxu0
        %4054 = vmatprep.mubr.bf16.mxu0 %v2758
        %4055 = vmatmul.mubr.bf16.gmra.mrb[0].mxu0 %v2757
        %v4056 = vpop.f32.mrb[0].mxu0
        %v4057 = vadd.f32 %v3768, %v4056
        %v4058 = vpop.f32.mrb[0].mxu0
        %v4059 = vpop.f32.mrb[0].mxu0
        %v4060 = vadd.f32 %v3771, %v4059
        %v4061 = vpop.f32.mrb[0].mxu0
        %4062 = vmatprep.mubr.bf16.mxu0 %v2762
        %4063 = vmatmul.mubr.bf16.gmra.mrb[0].mxu0 %v2761
        %v4064 = vpop.f32.mrb[0].mxu0
        %v4065 = vadd.f32 %v3776, %v4064
        %v4066 = vpop.f32.mrb[0].mxu0
        %v4067 = vpop.f32.mrb[0].mxu0
        %v4068 = vadd.f32 %v3779, %v4067
        %v4069 = vpop.f32.mrb[0].mxu0
        %4070 = vmatprep.mubr.bf16.mxu0 %v2766
        %4071 = vmatmul.mubr.bf16.gmra.mrb[0].mxu0 %v2765
        %v4072 = vpop.f32.mrb[0].mxu0
        %v4073 = vadd.f32 %v3784, %v4072
        %v4074 = vpop.f32.mrb[0].mxu0
        %v4075 = vpop.f32.mrb[0].mxu0
        %v4076 = vadd.f32 %v3787, %v4075
        %v4077 = vpop.f32.mrb[0].mxu0
        %4078 = vmatprep.mubr.bf16.mxu0 %v2770
        %4079 = vmatmul.mubr.bf16.gmra.mrb[0].mxu0 %v2769
        %v4080 = vpop.f32.mrb[0].mxu0
        %v4081 = vadd.f32 %v3792, %v4080
        %v4082 = vpop.f32.mrb[0].mxu0
        %v4083 = vpop.f32.mrb[0].mxu0
        %v4084 = vadd.f32 %v3795, %v4083
        %v4085 = vpop.f32.mrb[0].mxu0
        %4086 = vmatprep.mubr.bf16.mxu0 %v2774
        %4087 = vmatmul.mubr.bf16.gmra.mrb[0].mxu0 %v2773
        %v4088 = vpop.f32.mrb[0].mxu0
        %v4089 = vadd.f32 %v3800, %v4088
        %v4090 = vpop.f32.mrb[0].mxu0
        %v4091 = vpop.f32.mrb[0].mxu0
        %v4092 = vadd.f32 %v3803, %v4091
        %v4093 = vpop.f32.mrb[0].mxu0
        %4094 = vmatprep.mubr.bf16.mxu0 %v2778
        %4095 = vmatmul.mubr.bf16.gmra.mrb[0].mxu0 %v2777
        %v4096 = vpop.f32.mrb[0].mxu0
        %v4097 = vadd.f32 %v3808, %v4096
        %v4098 = vpop.f32.mrb[0].mxu0
        %v4099 = vpop.f32.mrb[0].mxu0
        %v4100 = vadd.f32 %v3811, %v4099
        %v4101 = vpop.f32.mrb[0].mxu0
        %4102 = vmatprep.mubr.bf16.mxu0 %v2782
        %4103 = vmatmul.mubr.bf16.gmra.mrb[0].mxu0 %v2781
        %v4104 = vpop.f32.mrb[0].mxu0
        %v4105 = vadd.f32 %v3816, %v4104
        %v4106 = vpop.f32.mrb[0].mxu0
        %v4107 = vpop.f32.mrb[0].mxu0
        %v4108 = vadd.f32 %v3819, %v4107
        %v4109 = vpop.f32.mrb[0].mxu0
        %4110 = vmatprep.mubr.bf16.mxu0 %v2786
        %4111 = vmatmul.mubr.bf16.gmra.mrb[0].mxu0 %v2785
        %v4112 = vpop.f32.mrb[0].mxu0
        %v4113 = vadd.f32 %v3824, %v4112
        %v4114 = vpop.f32.mrb[0].mxu0
        %v4115 = vpop.f32.mrb[0].mxu0
        %v4116 = vadd.f32 %v3827, %v4115
        %v4117 = vpop.f32.mrb[0].mxu0
        %4118 = vmatprep.mubr.bf16.mxu0 %v2790
        %4119 = vmatmul.mubr.bf16.gmra.mrb[0].mxu0 %v2789
        %v4120 = vpop.f32.mrb[0].mxu0
        %v4121 = vadd.f32 %v3832, %v4120
        %v4122 = vpop.f32.mrb[0].mxu0
        %v4123 = vpop.f32.mrb[0].mxu0
        %v4124 = vadd.f32 %v3835, %v4123
        %v4125 = vpop.f32.mrb[0].mxu0
        %4126 = vmatprep.mubr.bf16.mxu0 %v2794
        %4127 = vmatmul.mubr.bf16.gmra.mrb[0].mxu0 %v2793
        %v4128 = vpop.f32.mrb[0].mxu0
        %v4129 = vadd.f32 %v3840, %v4128
        %v4130 = vpop.f32.mrb[0].mxu0
        %v4131 = vpop.f32.mrb[0].mxu0
        %v4132 = vadd.f32 %v3843, %v4131
        %v4133 = vpop.f32.mrb[0].mxu0
        %4134 = vmatprep.mubr.bf16.mxu0 %v2798
        %4135 = vmatmul.mubr.bf16.gmra.mrb[0].mxu0 %v2797
        %v4136 = vpop.f32.mrb[0].mxu0
        %v4137 = vadd.f32 %v3848, %v4136
        %v4138 = vpop.f32.mrb[0].mxu0
        %v4139 = vpop.f32.mrb[0].mxu0
        %v4140 = vadd.f32 %v3851, %v4139
        %v4141 = vpop.f32.mrb[0].mxu0
        %4142 = vmatprep.mubr.bf16.mxu0 %v2802
        %4143 = vmatmul.mubr.bf16.gmra.mrb[0].mxu0 %v2801
        %v4144 = vpop.f32.mrb[0].mxu0
        %v4145 = vadd.f32 %v3856, %v4144
        %v4146 = vpop.f32.mrb[0].mxu0
        %v4147 = vpop.f32.mrb[0].mxu0
        %v4148 = vadd.f32 %v3859, %v4147
        %v4149 = vpop.f32.mrb[0].mxu0
        %4150 = vmatprep.mubr.bf16.mxu0 %v2806
        %4151 = vmatmul.mubr.bf16.gmra.mrb[0].mxu0 %v2805
        %v4152 = vpop.f32.mrb[0].mxu0
        %v4153 = vadd.f32 %v3864, %v4152
        %v4154 = vpop.f32.mrb[0].mxu0
        %v4155 = vpop.f32.mrb[0].mxu0
        %v4156 = vadd.f32 %v3867, %v4155
        %v4157 = vpop.f32.mrb[0].mxu0
        %4158 = vmatprep.mubr.bf16.mxu0 %v2810
        %4159 = vmatmul.mubr.bf16.gmra.mrb[0].mxu0 %v2809
        %v4160 = vpop.f32.mrb[0].mxu0
        %v4161 = vadd.f32 %v3872, %v4160
        %v4162 = vpop.f32.mrb[0].mxu0
        %v4163 = vpop.f32.mrb[0].mxu0
        %v4164 = vadd.f32 %v3875, %v4163
        %v4165 = vpop.f32.mrb[0].mxu0
        %4166 = vmatprep.mubr.bf16.mxu0 %v2814
        %4167 = vmatmul.mubr.bf16.gmra.mrb[0].mxu0 %v2813
        %v4168 = vpop.f32.mrb[0].mxu0
        %v4169 = vadd.f32 %v3880, %v4168
        %v4170 = vpop.f32.mrb[0].mxu0
        %v4171 = vpop.f32.mrb[0].mxu0
        %v4172 = vadd.f32 %v3883, %v4171
        %v4173 = vpop.f32.mrb[0].mxu0
        %4174 = vmatprep.mubr.bf16.mxu0 %v2818
        %4175 = vmatmul.mubr.bf16.gmra.mrb[0].mxu0 %v2817
        %v4176 = vpop.f32.mrb[0].mxu0
        %v4177 = vadd.f32 %v3888, %v4176
        %v4178 = vpop.f32.mrb[0].mxu0
        %v4179 = vpop.f32.mrb[0].mxu0
        %v4180 = vadd.f32 %v3891, %v4179
        %v4181 = vpop.f32.mrb[0].mxu0
        %4182 = vmatprep.mubr.bf16.mxu0 %v2822
        %4183 = vmatmul.mubr.bf16.gmra.mrb[0].mxu0 %v2821
        %v4184 = vpop.f32.mrb[0].mxu0
        %v4185 = vadd.f32 %v3896, %v4184
        %v4186 = vpop.f32.mrb[0].mxu0
        %v4187 = vpop.f32.mrb[0].mxu0
        %v4188 = vadd.f32 %v3899, %v4187
        %v4189 = vpop.f32.mrb[0].mxu0
        %4190 = vmatprep.mubr.bf16.mxu0 %v2826
        %4191 = vmatmul.mubr.bf16.gmra.mrb[0].mxu0 %v2825
        %v4192 = vpop.f32.mrb[0].mxu0
        %v4193 = vadd.f32 %v3904, %v4192
        %v4194 = vpop.f32.mrb[0].mxu0
        %v4195 = vpop.f32.mrb[0].mxu0
        %v4196 = vadd.f32 %v3907, %v4195
        %v4197 = vpop.f32.mrb[0].mxu0
        %4198 = vmatprep.mubr.bf16.mxu0 %v2830
        %4199 = vmatmul.mubr.bf16.gmra.mrb[0].mxu0 %v2829
        %v4200 = vpop.f32.mrb[0].mxu0
        %v4201 = vadd.f32 %v3912, %v4200
        %v4202 = vpop.f32.mrb[0].mxu0
        %v4203 = vpop.f32.mrb[0].mxu0
        %v4204 = vadd.f32 %v3915, %v4203
        %v4205 = vpop.f32.mrb[0].mxu0
        %4206 = vmatprep.mubr.bf16.mxu0 %v2834
        %4207 = vmatmul.mubr.bf16.gmra.mrb[0].mxu0 %v2833
        %v4208 = vpop.f32.mrb[0].mxu0
        %v4209 = vadd.f32 %v3920, %v4208
        %v4210 = vpop.f32.mrb[0].mxu0
        %v4211 = vpop.f32.mrb[0].mxu0
        %v4212 = vadd.f32 %v3923, %v4211
        %v4213 = vpop.f32.mrb[0].mxu0
        %4214 = vdwg.mxu0
        %v4215 = vmax.f32 %v3961, 0.0
        %v4216 = vmax.f32 %v3964, 0.0
        %v4217 = vmax.f32 %v3969, 0.0
        %v4218 = vmax.f32 %v3972, 0.0
        %v4219 = vmax.f32 %v3977, 0.0
        %v4220 = vmax.f32 %v3980, 0.0
        %v4221 = vmax.f32 %v3985, 0.0
        %v4222 = vmax.f32 %v3988, 0.0
        %v4223 = vmax.f32 %v3993, 0.0
        %v4224 = vmax.f32 %v3996, 0.0
        %v4225 = vmax.f32 %v4001, 0.0
        %v4226 = vmax.f32 %v4004, 0.0
        %v4227 = vmax.f32 %v4009, 0.0
        %v4228 = vmax.f32 %v4012, 0.0
        %v4229 = vmax.f32 %v4017, 0.0
        %v4230 = vmax.f32 %v4020, 0.0
        %v4231 = vmax.f32 %v4025, 0.0
        %v4232 = vmax.f32 %v4028, 0.0
        %v4233 = vmax.f32 %v4033, 0.0
        %v4234 = vmax.f32 %v4036, 0.0
        %v4235 = vmax.f32 %v4041, 0.0
        %v4236 = vmax.f32 %v4044, 0.0
        %v4237 = vmax.f32 %v4049, 0.0
        %v4238 = vmax.f32 %v4052, 0.0
        %v4239 = vmax.f32 %v4057, 0.0
        %v4240 = vmax.f32 %v4060, 0.0
        %v4241 = vmax.f32 %v4065, 0.0
        %v4242 = vmax.f32 %v4068, 0.0
        %v4243 = vmax.f32 %v4073, 0.0
        %v4244 = vmax.f32 %v4076, 0.0
        %v4245 = vmax.f32 %v4081, 0.0
        %v4246 = vmax.f32 %v4084, 0.0
        %v4247 = vmax.f32 %v4089, 0.0
        %v4248 = vmax.f32 %v4092, 0.0
        %v4249 = vmax.f32 %v4097, 0.0
        %v4250 = vmax.f32 %v4100, 0.0
        %v4251 = vmax.f32 %v4105, 0.0
        %v4252 = vmax.f32 %v4108, 0.0
        %v4253 = vmax.f32 %v4113, 0.0
        %v4254 = vmax.f32 %v4116, 0.0
        %v4255 = vmax.f32 %v4121, 0.0
        %v4256 = vmax.f32 %v4124, 0.0
        %v4257 = vmax.f32 %v4129, 0.0
        %v4258 = vmax.f32 %v4132, 0.0
        %v4259 = vmax.f32 %v4137, 0.0
        %v4260 = vmax.f32 %v4140, 0.0
        %v4261 = vmax.f32 %v4145, 0.0
        %v4262 = vmax.f32 %v4148, 0.0
        %v4263 = vmax.f32 %v4153, 0.0
        %v4264 = vmax.f32 %v4156, 0.0
        %v4265 = vmax.f32 %v4161, 0.0
        %v4266 = vmax.f32 %v4164, 0.0
        %v4267 = vmax.f32 %v4169, 0.0
        %v4268 = vmax.f32 %v4172, 0.0
        %v4269 = vmax.f32 %v4177, 0.0
        %v4270 = vmax.f32 %v4180, 0.0
        %v4271 = vmax.f32 %v4185, 0.0
        %v4272 = vmax.f32 %v4188, 0.0
        %v4273 = vmax.f32 %v4193, 0.0
        %v4274 = vmax.f32 %v4196, 0.0
        %v4275 = vmax.f32 %v4201, 0.0
        %v4276 = vmax.f32 %v4204, 0.0
        %v4277 = vmax.f32 %v4209, 0.0
        %v4278 = vmax.f32 %v4212, 0.0
        %v4279 = vld [vmem:[#allocation5] sm:$0xff]
        %v4280 = vld [vmem:[#allocation5 + $0x8] sm:$0xff]
        %v4281 = vld [vmem:[#allocation5 + $0x10] sm:$0xff]
        %v4282 = vld [vmem:[#allocation5 + $0x18] sm:$0xff]
        %v4283 = vld [vmem:[#allocation5 + $0x20] sm:$0xff]
        %v4284 = vld [vmem:[#allocation5 + $0x28] sm:$0xff]
        %v4285 = vld [vmem:[#allocation5 + $0x30] sm:$0xff]
        %v4286 = vld [vmem:[#allocation5 + $0x38] sm:$0xff]
        %v4287 = vld [vmem:[#allocation5 + $0x40] sm:$0xff]
        %v4288 = vld [vmem:[#allocation5 + $0x48] sm:$0xff]
        %v4289 = vld [vmem:[#allocation5 + $0x50] sm:$0xff]
        %v4290 = vld [vmem:[#allocation5 + $0x58] sm:$0xff]
        %v4291 = vld [vmem:[#allocation5 + $0x60] sm:$0xff]
        %v4292 = vld [vmem:[#allocation5 + $0x68] sm:$0xff]
        %v4293 = vld [vmem:[#allocation5 + $0x70] sm:$0xff]
        %v4294 = vld [vmem:[#allocation5 + $0x78] sm:$0xff]
        %v4295 = vld [vmem:[#allocation5 + $0x80] sm:$0xff]
        %v4296 = vld [vmem:[#allocation5 + $0x88] sm:$0xff]
        %v4297 = vld [vmem:[#allocation5 + $0x90] sm:$0xff]
        %v4298 = vld [vmem:[#allocation5 + $0x98] sm:$0xff]
        %v4299 = vld [vmem:[#allocation5 + $0xa0] sm:$0xff]
        %v4300 = vld [vmem:[#allocation5 + $0xa8] sm:$0xff]
        %v4301 = vld [vmem:[#allocation5 + $0xb0] sm:$0xff]
        %v4302 = vld [vmem:[#allocation5 + $0xb8] sm:$0xff]
        %v4303 = vld [vmem:[#allocation5 + $0xc0] sm:$0xff]
        %v4304 = vld [vmem:[#allocation5 + $0xc8] sm:$0xff]
        %v4305 = vld [vmem:[#allocation5 + $0xd0] sm:$0xff]
        %v4306 = vld [vmem:[#allocation5 + $0xd8] sm:$0xff]
        %v4307 = vld [vmem:[#allocation5 + $0xe0] sm:$0xff]
        %v4308 = vld [vmem:[#allocation5 + $0xe8] sm:$0xff]
        %v4309 = vld [vmem:[#allocation5 + $0xf0] sm:$0xff]
        %v4310 = vld [vmem:[#allocation5 + $0xf8] sm:$0xff]
        %v4311 = vld [vmem:[#allocation5 + $0x100] sm:$0xff]
        %v4312 = vld [vmem:[#allocation5 + $0x108] sm:$0xff]
        %v4313 = vld [vmem:[#allocation5 + $0x110] sm:$0xff]
        %v4314 = vld [vmem:[#allocation5 + $0x118] sm:$0xff]
        %v4315 = vld [vmem:[#allocation5 + $0x120] sm:$0xff]
        %v4316 = vld [vmem:[#allocation5 + $0x128] sm:$0xff]
        %v4317 = vld [vmem:[#allocation5 + $0x130] sm:$0xff]
        %v4318 = vld [vmem:[#allocation5 + $0x138] sm:$0xff]
        %v4319 = vld [vmem:[#allocation5 + $0x140] sm:$0xff]
        %v4320 = vld [vmem:[#allocation5 + $0x148] sm:$0xff]
        %v4321 = vld [vmem:[#allocation5 + $0x150] sm:$0xff]
        %v4322 = vld [vmem:[#allocation5 + $0x158] sm:$0xff]
        %v4323 = vld [vmem:[#allocation5 + $0x160] sm:$0xff]
        %v4324 = vld [vmem:[#allocation5 + $0x168] sm:$0xff]
        %v4325 = vld [vmem:[#allocation5 + $0x170] sm:$0xff]
        %v4326 = vld [vmem:[#allocation5 + $0x178] sm:$0xff]
        %v4327 = vld [vmem:[#allocation5 + $0x180] sm:$0xff]
        %v4328 = vld [vmem:[#allocation5 + $0x188] sm:$0xff]
        %v4329 = vld [vmem:[#allocation5 + $0x190] sm:$0xff]
        %v4330 = vld [vmem:[#allocation5 + $0x198] sm:$0xff]
        %v4331 = vld [vmem:[#allocation5 + $0x1a0] sm:$0xff]
        %v4332 = vld [vmem:[#allocation5 + $0x1a8] sm:$0xff]
        %v4333 = vld [vmem:[#allocation5 + $0x1b0] sm:$0xff]
        %v4334 = vld [vmem:[#allocation5 + $0x1b8] sm:$0xff]
        %v4335 = vld [vmem:[#allocation5 + $0x1c0] sm:$0xff]
        %v4336 = vld [vmem:[#allocation5 + $0x1c8] sm:$0xff]
        %v4337 = vld [vmem:[#allocation5 + $0x1d0] sm:$0xff]
        %v4338 = vld [vmem:[#allocation5 + $0x1d8] sm:$0xff]
        %v4339 = vld [vmem:[#allocation5 + $0x1e0] sm:$0xff]
        %v4340 = vld [vmem:[#allocation5 + $0x1e8] sm:$0xff]
        %v4341 = vld [vmem:[#allocation5 + $0x1f0] sm:$0xff]
        %v4342 = vld [vmem:[#allocation5 + $0x1f8] sm:$0xff]
        %v4343 = vld [vmem:[#allocation5 + $0x200] sm:$0xff]
        %v4344 = vld [vmem:[#allocation5 + $0x208] sm:$0xff]
        %v4345 = vld [vmem:[#allocation5 + $0x210] sm:$0xff]
        %v4346 = vld [vmem:[#allocation5 + $0x218] sm:$0xff]
        %v4347 = vld [vmem:[#allocation5 + $0x220] sm:$0xff]
        %v4348 = vld [vmem:[#allocation5 + $0x228] sm:$0xff]
        %v4349 = vld [vmem:[#allocation5 + $0x230] sm:$0xff]
        %v4350 = vld [vmem:[#allocation5 + $0x238] sm:$0xff]
        %v4351 = vld [vmem:[#allocation5 + $0x240] sm:$0xff]
        %v4352 = vld [vmem:[#allocation5 + $0x248] sm:$0xff]
        %v4353 = vld [vmem:[#allocation5 + $0x250] sm:$0xff]
        %v4354 = vld [vmem:[#allocation5 + $0x258] sm:$0xff]
        %v4355 = vld [vmem:[#allocation5 + $0x260] sm:$0xff]
        %v4356 = vld [vmem:[#allocation5 + $0x268] sm:$0xff]
        %v4357 = vld [vmem:[#allocation5 + $0x270] sm:$0xff]
        %v4358 = vld [vmem:[#allocation5 + $0x278] sm:$0xff]
        %v4359 = vld [vmem:[#allocation5 + $0x280] sm:$0xff]
        %v4360 = vld [vmem:[#allocation5 + $0x288] sm:$0xff]
        %v4361 = vld [vmem:[#allocation5 + $0x290] sm:$0xff]
        %v4362 = vld [vmem:[#allocation5 + $0x298] sm:$0xff]
        %v4363 = vld [vmem:[#allocation5 + $0x2a0] sm:$0xff]
        %v4364 = vld [vmem:[#allocation5 + $0x2a8] sm:$0xff]
        %v4365 = vld [vmem:[#allocation5 + $0x2b0] sm:$0xff]
        %v4366 = vld [vmem:[#allocation5 + $0x2b8] sm:$0xff]
        %v4367 = vld [vmem:[#allocation5 + $0x2c0] sm:$0xff]
        %v4368 = vld [vmem:[#allocation5 + $0x2c8] sm:$0xff]
        %v4369 = vld [vmem:[#allocation5 + $0x2d0] sm:$0xff]
        %v4370 = vld [vmem:[#allocation5 + $0x2d8] sm:$0xff]
        %v4371 = vld [vmem:[#allocation5 + $0x2e0] sm:$0xff]
        %v4372 = vld [vmem:[#allocation5 + $0x2e8] sm:$0xff]
        %v4373 = vld [vmem:[#allocation5 + $0x2f0] sm:$0xff]
        %v4374 = vld [vmem:[#allocation5 + $0x2f8] sm:$0xff]
        %v4375 = vld [vmem:[#allocation5 + $0x300] sm:$0xff]
        %v4376 = vld [vmem:[#allocation5 + $0x308] sm:$0xff]
        %v4377 = vld [vmem:[#allocation5 + $0x310] sm:$0xff]
        %v4378 = vld [vmem:[#allocation5 + $0x318] sm:$0xff]
        %v4379 = vld [vmem:[#allocation5 + $0x320] sm:$0xff]
        %v4380 = vld [vmem:[#allocation5 + $0x328] sm:$0xff]
        %v4381 = vld [vmem:[#allocation5 + $0x330] sm:$0xff]
        %v4382 = vld [vmem:[#allocation5 + $0x338] sm:$0xff]
        %v4383 = vld [vmem:[#allocation5 + $0x340] sm:$0xff]
        %v4384 = vld [vmem:[#allocation5 + $0x348] sm:$0xff]
        %v4385 = vld [vmem:[#allocation5 + $0x350] sm:$0xff]
        %v4386 = vld [vmem:[#allocation5 + $0x358] sm:$0xff]
        %v4387 = vld [vmem:[#allocation5 + $0x360] sm:$0xff]
        %v4388 = vld [vmem:[#allocation5 + $0x368] sm:$0xff]
        %v4389 = vld [vmem:[#allocation5 + $0x370] sm:$0xff]
        %v4390 = vld [vmem:[#allocation5 + $0x378] sm:$0xff]
        %v4391 = vld [vmem:[#allocation5 + $0x380] sm:$0xff]
        %v4392 = vld [vmem:[#allocation5 + $0x388] sm:$0xff]
        %v4393 = vld [vmem:[#allocation5 + $0x390] sm:$0xff]
        %v4394 = vld [vmem:[#allocation5 + $0x398] sm:$0xff]
        %v4395 = vld [vmem:[#allocation5 + $0x3a0] sm:$0xff]
        %v4396 = vld [vmem:[#allocation5 + $0x3a8] sm:$0xff]
        %v4397 = vld [vmem:[#allocation5 + $0x3b0] sm:$0xff]
        %v4398 = vld [vmem:[#allocation5 + $0x3b8] sm:$0xff]
        %v4399 = vld [vmem:[#allocation5 + $0x3c0] sm:$0xff]
        %v4400 = vld [vmem:[#allocation5 + $0x3c8] sm:$0xff]
        %v4401 = vld [vmem:[#allocation5 + $0x3d0] sm:$0xff]
        %v4402 = vld [vmem:[#allocation5 + $0x3d8] sm:$0xff]
        %v4403 = vld [vmem:[#allocation5 + $0x3e0] sm:$0xff]
        %v4404 = vld [vmem:[#allocation5 + $0x3e8] sm:$0xff]
        %v4405 = vld [vmem:[#allocation5 + $0x3f0] sm:$0xff]
        %v4406 = vld [vmem:[#allocation5 + $0x3f8] sm:$0xff]
        %v4407 = vpack.c.bf16 %v3542, %v3541
        %v4408 = vpack.c.bf16 %v3544, %v3543
        %v4409 = vpack.c.bf16 %v3546, %v3545
        %v4410 = vpack.c.bf16 %v3548, %v3547
        %v4411 = vpack.c.bf16 %v3550, %v3549
        %v4412 = vpack.c.bf16 %v3552, %v3551
        %v4413 = vpack.c.bf16 %v3554, %v3553
        %v4414 = vpack.c.bf16 %v3556, %v3555
        %v4415 = vpack.c.bf16 %v3558, %v3557
        %v4416 = vpack.c.bf16 %v3560, %v3559
        %v4417 = vpack.c.bf16 %v3562, %v3561
        %v4418 = vpack.c.bf16 %v3564, %v3563
        %v4419 = vpack.c.bf16 %v3566, %v3565
        %v4420 = vpack.c.bf16 %v3568, %v3567
        %v4421 = vpack.c.bf16 %v3570, %v3569
        %v4422 = vpack.c.bf16 %v3572, %v3571
        %v4423 = vpack.c.bf16 %v3574, %v3573
        %v4424 = vpack.c.bf16 %v3576, %v3575
        %v4425 = vpack.c.bf16 %v3578, %v3577
        %v4426 = vpack.c.bf16 %v3580, %v3579
        %v4427 = vpack.c.bf16 %v3582, %v3581
        %v4428 = vpack.c.bf16 %v3584, %v3583
        %v4429 = vpack.c.bf16 %v3586, %v3585
        %v4430 = vpack.c.bf16 %v3588, %v3587
        %v4431 = vpack.c.bf16 %v3590, %v3589
        %v4432 = vpack.c.bf16 %v3592, %v3591
        %v4433 = vpack.c.bf16 %v3594, %v3593
        %v4434 = vpack.c.bf16 %v3596, %v3595
        %v4435 = vpack.c.bf16 %v3598, %v3597
        %v4436 = vpack.c.bf16 %v3600, %v3599
        %v4437 = vpack.c.bf16 %v3602, %v3601
        %v4438 = vpack.c.bf16 %v3604, %v3603
        %4439 = vset.pattern.permute.xlu0 4
        %4440 = vperm.xlu0 %4439, %v342
        %v4441 = vpop.permute.xlu0 %4440
        %4443 = vset.pattern.permute.xlu0 4
        %4444 = vperm.xlu0 %4443, %v343
        %v4445 = vpop.permute.xlu0 %4444
        %4447 = vset.pattern.permute.xlu0 4
        %4448 = vperm.xlu0 %4447, %v344
        %v4449 = vpop.permute.xlu0 %4448
        %4451 = vset.pattern.permute.xlu0 4
        %4452 = vperm.xlu0 %4451, %v345
        %v4453 = vpop.permute.xlu0 %4452
        %4455 = vset.pattern.permute.xlu0 4
        %4456 = vperm.xlu0 %4455, %v346
        %v4457 = vpop.permute.xlu0 %4456
        %4459 = vset.pattern.permute.xlu0 4
        %4460 = vperm.xlu0 %4459, %v347
        %v4461 = vpop.permute.xlu0 %4460
        %4463 = vset.pattern.permute.xlu0 4
        %4464 = vperm.xlu0 %4463, %v348
        %v4465 = vpop.permute.xlu0 %4464
        %4467 = vset.pattern.permute.xlu0 4
        %4468 = vperm.xlu0 %4467, %v349
        %v4469 = vpop.permute.xlu0 %4468
        %4471 = vset.pattern.permute.xlu0 4
        %4472 = vperm.xlu0 %4471, %v350
        %v4473 = vpop.permute.xlu0 %4472
        %4475 = vset.pattern.permute.xlu0 4
        %4476 = vperm.xlu0 %4475, %v351
        %v4477 = vpop.permute.xlu0 %4476
        %4479 = vset.pattern.permute.xlu0 4
        %4480 = vperm.xlu0 %4479, %v352
        %v4481 = vpop.permute.xlu0 %4480
        %4483 = vset.pattern.permute.xlu0 4
        %4484 = vperm.xlu0 %4483, %v353
        %v4485 = vpop.permute.xlu0 %4484
        %4487 = vset.pattern.permute.xlu0 4
        %4488 = vperm.xlu0 %4487, %v354
        %v4489 = vpop.permute.xlu0 %4488
        %4491 = vset.pattern.permute.xlu0 4
        %4492 = vperm.xlu0 %4491, %v355
        %v4493 = vpop.permute.xlu0 %4492
        %4495 = vset.pattern.permute.xlu0 4
        %4496 = vperm.xlu0 %4495, %v356
        %v4497 = vpop.permute.xlu0 %4496
        %4499 = vset.pattern.permute.xlu0 4
        %4500 = vperm.xlu0 %4499, %v357
        %v4501 = vpop.permute.xlu0 %4500
        %4503 = vset.pattern.permute.xlu0 4
        %4504 = vperm.xlu0 %4503, %v358
        %v4505 = vpop.permute.xlu0 %4504
        %4507 = vset.pattern.permute.xlu0 4
        %4508 = vperm.xlu0 %4507, %v359
        %v4509 = vpop.permute.xlu0 %4508
        %4511 = vset.pattern.permute.xlu0 4
        %4512 = vperm.xlu0 %4511, %v360
        %v4513 = vpop.permute.xlu0 %4512
        %4515 = vset.pattern.permute.xlu0 4
        %4516 = vperm.xlu0 %4515, %v361
        %v4517 = vpop.permute.xlu0 %4516
        %4519 = vset.pattern.permute.xlu0 4
        %4520 = vperm.xlu0 %4519, %v362
        %v4521 = vpop.permute.xlu0 %4520
        %4523 = vset.pattern.permute.xlu0 4
        %4524 = vperm.xlu0 %4523, %v363
        %v4525 = vpop.permute.xlu0 %4524
        %4527 = vset.pattern.permute.xlu0 4
        %4528 = vperm.xlu0 %4527, %v364
        %v4529 = vpop.permute.xlu0 %4528
        %4531 = vset.pattern.permute.xlu0 4
        %4532 = vperm.xlu0 %4531, %v365
        %v4533 = vpop.permute.xlu0 %4532
        %4535 = vset.pattern.permute.xlu0 4
        %4536 = vperm.xlu0 %4535, %v366
        %v4537 = vpop.permute.xlu0 %4536
        %4539 = vset.pattern.permute.xlu0 4
        %4540 = vperm.xlu0 %4539, %v367
        %v4541 = vpop.permute.xlu0 %4540
        %4543 = vset.pattern.permute.xlu0 4
        %4544 = vperm.xlu0 %4543, %v368
        %v4545 = vpop.permute.xlu0 %4544
        %4547 = vset.pattern.permute.xlu0 4
        %4548 = vperm.xlu0 %4547, %v369
        %v4549 = vpop.permute.xlu0 %4548
        %4551 = vset.pattern.permute.xlu0 4
        %4552 = vperm.xlu0 %4551, %v370
        %v4553 = vpop.permute.xlu0 %4552
        %4555 = vset.pattern.permute.xlu0 4
        %4556 = vperm.xlu0 %4555, %v371
        %v4557 = vpop.permute.xlu0 %4556
        %4559 = vset.pattern.permute.xlu0 4
        %4560 = vperm.xlu0 %4559, %v372
        %v4561 = vpop.permute.xlu0 %4560
        %4563 = vset.pattern.permute.xlu0 4
        %4564 = vperm.xlu0 %4563, %v373
        %v4565 = vpop.permute.xlu0 %4564
        %4567 = vset.pattern.permute.xlu0 4
        %4568 = vperm.xlu0 %4567, %v374
        %v4569 = vpop.permute.xlu0 %4568
        %4571 = vset.pattern.permute.xlu0 4
        %4572 = vperm.xlu0 %4571, %v375
        %v4573 = vpop.permute.xlu0 %4572
        %4575 = vset.pattern.permute.xlu0 4
        %4576 = vperm.xlu0 %4575, %v376
        %v4577 = vpop.permute.xlu0 %4576
        %4579 = vset.pattern.permute.xlu0 4
        %4580 = vperm.xlu0 %4579, %v377
        %v4581 = vpop.permute.xlu0 %4580
        %4583 = vset.pattern.permute.xlu0 4
        %4584 = vperm.xlu0 %4583, %v378
        %v4585 = vpop.permute.xlu0 %4584
        %4587 = vset.pattern.permute.xlu0 4
        %4588 = vperm.xlu0 %4587, %v379
        %v4589 = vpop.permute.xlu0 %4588
        %4591 = vset.pattern.permute.xlu0 4
        %4592 = vperm.xlu0 %4591, %v380
        %v4593 = vpop.permute.xlu0 %4592
        %4595 = vset.pattern.permute.xlu0 4
        %4596 = vperm.xlu0 %4595, %v381
        %v4597 = vpop.permute.xlu0 %4596
        %4599 = vset.pattern.permute.xlu0 4
        %4600 = vperm.xlu0 %4599, %v382
        %v4601 = vpop.permute.xlu0 %4600
        %4603 = vset.pattern.permute.xlu0 4
        %4604 = vperm.xlu0 %4603, %v383
        %v4605 = vpop.permute.xlu0 %4604
        %4607 = vset.pattern.permute.xlu0 4
        %4608 = vperm.xlu0 %4607, %v384
        %v4609 = vpop.permute.xlu0 %4608
        %4611 = vset.pattern.permute.xlu0 4
        %4612 = vperm.xlu0 %4611, %v385
        %v4613 = vpop.permute.xlu0 %4612
        %4615 = vset.pattern.permute.xlu0 4
        %4616 = vperm.xlu0 %4615, %v386
        %v4617 = vpop.permute.xlu0 %4616
        %4619 = vset.pattern.permute.xlu0 4
        %4620 = vperm.xlu0 %4619, %v387
        %v4621 = vpop.permute.xlu0 %4620
        %4623 = vset.pattern.permute.xlu0 4
        %4624 = vperm.xlu0 %4623, %v388
        %v4625 = vpop.permute.xlu0 %4624
        %4627 = vset.pattern.permute.xlu0 4
        %4628 = vperm.xlu0 %4627, %v389
        %v4629 = vpop.permute.xlu0 %4628
        %4631 = vset.pattern.permute.xlu0 4
        %4632 = vperm.xlu0 %4631, %v390
        %v4633 = vpop.permute.xlu0 %4632
        %4635 = vset.pattern.permute.xlu0 4
        %4636 = vperm.xlu0 %4635, %v391
        %v4637 = vpop.permute.xlu0 %4636
        %4639 = vset.pattern.permute.xlu0 4
        %4640 = vperm.xlu0 %4639, %v392
        %v4641 = vpop.permute.xlu0 %4640
        %4643 = vset.pattern.permute.xlu0 4
        %4644 = vperm.xlu0 %4643, %v393
        %v4645 = vpop.permute.xlu0 %4644
        %4647 = vset.pattern.permute.xlu0 4
        %4648 = vperm.xlu0 %4647, %v394
        %v4649 = vpop.permute.xlu0 %4648
        %4651 = vset.pattern.permute.xlu0 4
        %4652 = vperm.xlu0 %4651, %v395
        %v4653 = vpop.permute.xlu0 %4652
        %4655 = vset.pattern.permute.xlu0 4
        %4656 = vperm.xlu0 %4655, %v396
        %v4657 = vpop.permute.xlu0 %4656
        %4659 = vset.pattern.permute.xlu0 4
        %4660 = vperm.xlu0 %4659, %v397
        %v4661 = vpop.permute.xlu0 %4660
        %4663 = vset.pattern.permute.xlu0 4
        %4664 = vperm.xlu0 %4663, %v398
        %v4665 = vpop.permute.xlu0 %4664
        %4667 = vset.pattern.permute.xlu0 4
        %4668 = vperm.xlu0 %4667, %v399
        %v4669 = vpop.permute.xlu0 %4668
        %4671 = vset.pattern.permute.xlu0 4
        %4672 = vperm.xlu0 %4671, %v400
        %v4673 = vpop.permute.xlu0 %4672
        %4675 = vset.pattern.permute.xlu0 4
        %4676 = vperm.xlu0 %4675, %v401
        %v4677 = vpop.permute.xlu0 %4676
        %4679 = vset.pattern.permute.xlu0 4
        %4680 = vperm.xlu0 %4679, %v402
        %v4681 = vpop.permute.xlu0 %4680
        %4683 = vset.pattern.permute.xlu0 4
        %4684 = vperm.xlu0 %4683, %v403
        %v4685 = vpop.permute.xlu0 %4684
        %4687 = vset.pattern.permute.xlu0 4
        %4688 = vperm.xlu0 %4687, %v404
        %v4689 = vpop.permute.xlu0 %4688
        %4691 = vset.pattern.permute.xlu0 4
        %4692 = vperm.xlu0 %4691, %v405
        %v4693 = vpop.permute.xlu0 %4692
        %v4823 = vunpack.c.l.b16 %v4279
        %v4824 = vunpack.c.h.b16 %v4279
        %v4825 = vunpack.c.l.b16 %v4280
        %v4826 = vunpack.c.h.b16 %v4280
        %v4827 = vunpack.c.l.b16 %v4281
        %v4828 = vunpack.c.h.b16 %v4281
        %v4829 = vunpack.c.l.b16 %v4282
        %v4830 = vunpack.c.h.b16 %v4282
        %v4831 = vunpack.c.l.b16 %v4283
        %v4832 = vunpack.c.h.b16 %v4283
        %v4833 = vunpack.c.l.b16 %v4284
        %v4834 = vunpack.c.h.b16 %v4284
        %v4835 = vunpack.c.l.b16 %v4285
        %v4836 = vunpack.c.h.b16 %v4285
        %v4837 = vunpack.c.l.b16 %v4286
        %v4838 = vunpack.c.h.b16 %v4286
        %v4839 = vunpack.c.l.b16 %v4287
        %v4840 = vunpack.c.h.b16 %v4287
        %v4841 = vunpack.c.l.b16 %v4288
        %v4842 = vunpack.c.h.b16 %v4288
        %v4843 = vunpack.c.l.b16 %v4289
        %v4844 = vunpack.c.h.b16 %v4289
        %v4845 = vunpack.c.l.b16 %v4290
        %v4846 = vunpack.c.h.b16 %v4290
        %v4847 = vunpack.c.l.b16 %v4291
        %v4848 = vunpack.c.h.b16 %v4291
        %v4849 = vunpack.c.l.b16 %v4292
        %v4850 = vunpack.c.h.b16 %v4292
        %v4851 = vunpack.c.l.b16 %v4293
        %v4852 = vunpack.c.h.b16 %v4293
        %v4853 = vunpack.c.l.b16 %v4294
        %v4854 = vunpack.c.h.b16 %v4294
        %v4855 = vunpack.c.l.b16 %v4295
        %v4856 = vunpack.c.h.b16 %v4295
        %v4857 = vunpack.c.l.b16 %v4296
        %v4858 = vunpack.c.h.b16 %v4296
        %v4859 = vunpack.c.l.b16 %v4297
        %v4860 = vunpack.c.h.b16 %v4297
        %v4861 = vunpack.c.l.b16 %v4298
        %v4862 = vunpack.c.h.b16 %v4298
        %v4863 = vunpack.c.l.b16 %v4299
        %v4864 = vunpack.c.h.b16 %v4299
        %v4865 = vunpack.c.l.b16 %v4300
        %v4866 = vunpack.c.h.b16 %v4300
        %v4867 = vunpack.c.l.b16 %v4301
        %v4868 = vunpack.c.h.b16 %v4301
        %v4869 = vunpack.c.l.b16 %v4302
        %v4870 = vunpack.c.h.b16 %v4302
        %v4871 = vunpack.c.l.b16 %v4303
        %v4872 = vunpack.c.h.b16 %v4303
        %v4873 = vunpack.c.l.b16 %v4304
        %v4874 = vunpack.c.h.b16 %v4304
        %v4875 = vunpack.c.l.b16 %v4305
        %v4876 = vunpack.c.h.b16 %v4305
        %v4877 = vunpack.c.l.b16 %v4306
        %v4878 = vunpack.c.h.b16 %v4306
        %v4879 = vunpack.c.l.b16 %v4307
        %v4880 = vunpack.c.h.b16 %v4307
        %v4881 = vunpack.c.l.b16 %v4308
        %v4882 = vunpack.c.h.b16 %v4308
        %v4883 = vunpack.c.l.b16 %v4309
        %v4884 = vunpack.c.h.b16 %v4309
        %v4885 = vunpack.c.l.b16 %v4310
        %v4886 = vunpack.c.h.b16 %v4310
        %v4887 = vunpack.c.l.b16 %v4311
        %v4888 = vunpack.c.h.b16 %v4311
        %v4889 = vunpack.c.l.b16 %v4312
        %v4890 = vunpack.c.h.b16 %v4312
        %v4891 = vunpack.c.l.b16 %v4313
        %v4892 = vunpack.c.h.b16 %v4313
        %v4893 = vunpack.c.l.b16 %v4314
        %v4894 = vunpack.c.h.b16 %v4314
        %v4895 = vunpack.c.l.b16 %v4315
        %v4896 = vunpack.c.h.b16 %v4315
        %v4897 = vunpack.c.l.b16 %v4316
        %v4898 = vunpack.c.h.b16 %v4316
        %v4899 = vunpack.c.l.b16 %v4317
        %v4900 = vunpack.c.h.b16 %v4317
        %v4901 = vunpack.c.l.b16 %v4318
        %v4902 = vunpack.c.h.b16 %v4318
        %v4903 = vunpack.c.l.b16 %v4319
        %v4904 = vunpack.c.h.b16 %v4319
        %v4905 = vunpack.c.l.b16 %v4320
        %v4906 = vunpack.c.h.b16 %v4320
        %v4907 = vunpack.c.l.b16 %v4321
        %v4908 = vunpack.c.h.b16 %v4321
        %v4909 = vunpack.c.l.b16 %v4322
        %v4910 = vunpack.c.h.b16 %v4322
        %v4911 = vunpack.c.l.b16 %v4323
        %v4912 = vunpack.c.h.b16 %v4323
        %v4913 = vunpack.c.l.b16 %v4324
        %v4914 = vunpack.c.h.b16 %v4324
        %v4915 = vunpack.c.l.b16 %v4325
        %v4916 = vunpack.c.h.b16 %v4325
        %v4917 = vunpack.c.l.b16 %v4326
        %v4918 = vunpack.c.h.b16 %v4326
        %v4919 = vunpack.c.l.b16 %v4327
        %v4920 = vunpack.c.h.b16 %v4327
        %v4921 = vunpack.c.l.b16 %v4328
        %v4922 = vunpack.c.h.b16 %v4328
        %v4923 = vunpack.c.l.b16 %v4329
        %v4924 = vunpack.c.h.b16 %v4329
        %v4925 = vunpack.c.l.b16 %v4330
        %v4926 = vunpack.c.h.b16 %v4330
        %v4927 = vunpack.c.l.b16 %v4331
        %v4928 = vunpack.c.h.b16 %v4331
        %v4929 = vunpack.c.l.b16 %v4332
        %v4930 = vunpack.c.h.b16 %v4332
        %v4931 = vunpack.c.l.b16 %v4333
        %v4932 = vunpack.c.h.b16 %v4333
        %v4933 = vunpack.c.l.b16 %v4334
        %v4934 = vunpack.c.h.b16 %v4334
        %v4935 = vunpack.c.l.b16 %v4335
        %v4936 = vunpack.c.h.b16 %v4335
        %v4937 = vunpack.c.l.b16 %v4336
        %v4938 = vunpack.c.h.b16 %v4336
        %v4939 = vunpack.c.l.b16 %v4337
        %v4940 = vunpack.c.h.b16 %v4337
        %v4941 = vunpack.c.l.b16 %v4338
        %v4942 = vunpack.c.h.b16 %v4338
        %v4943 = vunpack.c.l.b16 %v4339
        %v4944 = vunpack.c.h.b16 %v4339
        %v4945 = vunpack.c.l.b16 %v4340
        %v4946 = vunpack.c.h.b16 %v4340
        %v4947 = vunpack.c.l.b16 %v4341
        %v4948 = vunpack.c.h.b16 %v4341
        %v4949 = vunpack.c.l.b16 %v4342
        %v4950 = vunpack.c.h.b16 %v4342
        %v4951 = vunpack.c.l.b16 %v4343
        %v4952 = vunpack.c.h.b16 %v4343
        %v4953 = vunpack.c.l.b16 %v4344
        %v4954 = vunpack.c.h.b16 %v4344
        %v4955 = vunpack.c.l.b16 %v4345
        %v4956 = vunpack.c.h.b16 %v4345
        %v4957 = vunpack.c.l.b16 %v4346
        %v4958 = vunpack.c.h.b16 %v4346
        %v4959 = vunpack.c.l.b16 %v4347
        %v4960 = vunpack.c.h.b16 %v4347
        %v4961 = vunpack.c.l.b16 %v4348
        %v4962 = vunpack.c.h.b16 %v4348
        %v4963 = vunpack.c.l.b16 %v4349
        %v4964 = vunpack.c.h.b16 %v4349
        %v4965 = vunpack.c.l.b16 %v4350
        %v4966 = vunpack.c.h.b16 %v4350
        %v4967 = vunpack.c.l.b16 %v4351
        %v4968 = vunpack.c.h.b16 %v4351
        %v4969 = vunpack.c.l.b16 %v4352
        %v4970 = vunpack.c.h.b16 %v4352
        %v4971 = vunpack.c.l.b16 %v4353
        %v4972 = vunpack.c.h.b16 %v4353
        %v4973 = vunpack.c.l.b16 %v4354
        %v4974 = vunpack.c.h.b16 %v4354
        %v4975 = vunpack.c.l.b16 %v4355
        %v4976 = vunpack.c.h.b16 %v4355
        %v4977 = vunpack.c.l.b16 %v4356
        %v4978 = vunpack.c.h.b16 %v4356
        %v4979 = vunpack.c.l.b16 %v4357
        %v4980 = vunpack.c.h.b16 %v4357
        %v4981 = vunpack.c.l.b16 %v4358
        %v4982 = vunpack.c.h.b16 %v4358
        %v4983 = vunpack.c.l.b16 %v4359
        %v4984 = vunpack.c.h.b16 %v4359
        %v4985 = vunpack.c.l.b16 %v4360
        %v4986 = vunpack.c.h.b16 %v4360
        %v4987 = vunpack.c.l.b16 %v4361
        %v4988 = vunpack.c.h.b16 %v4361
        %v4989 = vunpack.c.l.b16 %v4362
        %v4990 = vunpack.c.h.b16 %v4362
        %v4991 = vunpack.c.l.b16 %v4363
        %v4992 = vunpack.c.h.b16 %v4363
        %v4993 = vunpack.c.l.b16 %v4364
        %v4994 = vunpack.c.h.b16 %v4364
        %v4995 = vunpack.c.l.b16 %v4365
        %v4996 = vunpack.c.h.b16 %v4365
        %v4997 = vunpack.c.l.b16 %v4366
        %v4998 = vunpack.c.h.b16 %v4366
        %v4999 = vunpack.c.l.b16 %v4367
        %v5000 = vunpack.c.h.b16 %v4367
        %v5001 = vunpack.c.l.b16 %v4368
        %v5002 = vunpack.c.h.b16 %v4368
        %v5003 = vunpack.c.l.b16 %v4369
        %v5004 = vunpack.c.h.b16 %v4369
        %v5005 = vunpack.c.l.b16 %v4370
        %v5006 = vunpack.c.h.b16 %v4370
        %v5007 = vunpack.c.l.b16 %v4371
        %v5008 = vunpack.c.h.b16 %v4371
        %v5009 = vunpack.c.l.b16 %v4372
        %v5010 = vunpack.c.h.b16 %v4372
        %v5011 = vunpack.c.l.b16 %v4373
        %v5012 = vunpack.c.h.b16 %v4373
        %v5013 = vunpack.c.l.b16 %v4374
        %v5014 = vunpack.c.h.b16 %v4374
        %v5015 = vunpack.c.l.b16 %v4375
        %v5016 = vunpack.c.h.b16 %v4375
        %v5017 = vunpack.c.l.b16 %v4376
        %v5018 = vunpack.c.h.b16 %v4376
        %v5019 = vunpack.c.l.b16 %v4377
        %v5020 = vunpack.c.h.b16 %v4377
        %v5021 = vunpack.c.l.b16 %v4378
        %v5022 = vunpack.c.h.b16 %v4378
        %v5023 = vunpack.c.l.b16 %v4379
        %v5024 = vunpack.c.h.b16 %v4379
        %v5025 = vunpack.c.l.b16 %v4380
        %v5026 = vunpack.c.h.b16 %v4380
        %v5027 = vunpack.c.l.b16 %v4381
        %v5028 = vunpack.c.h.b16 %v4381
        %v5029 = vunpack.c.l.b16 %v4382
        %v5030 = vunpack.c.h.b16 %v4382
        %v5031 = vunpack.c.l.b16 %v4383
        %v5032 = vunpack.c.h.b16 %v4383
        %v5033 = vunpack.c.l.b16 %v4384
        %v5034 = vunpack.c.h.b16 %v4384
        %v5035 = vunpack.c.l.b16 %v4385
        %v5036 = vunpack.c.h.b16 %v4385
        %v5037 = vunpack.c.l.b16 %v4386
        %v5038 = vunpack.c.h.b16 %v4386
        %v5039 = vunpack.c.l.b16 %v4387
        %v5040 = vunpack.c.h.b16 %v4387
        %v5041 = vunpack.c.l.b16 %v4388
        %v5042 = vunpack.c.h.b16 %v4388
        %v5043 = vunpack.c.l.b16 %v4389
        %v5044 = vunpack.c.h.b16 %v4389
        %v5045 = vunpack.c.l.b16 %v4390
        %v5046 = vunpack.c.h.b16 %v4390
        %v5047 = vunpack.c.l.b16 %v4391
        %v5048 = vunpack.c.h.b16 %v4391
        %v5049 = vunpack.c.l.b16 %v4392
        %v5050 = vunpack.c.h.b16 %v4392
        %v5051 = vunpack.c.l.b16 %v4393
        %v5052 = vunpack.c.h.b16 %v4393
        %v5053 = vunpack.c.l.b16 %v4394
        %v5054 = vunpack.c.h.b16 %v4394
        %v5055 = vunpack.c.l.b16 %v4395
        %v5056 = vunpack.c.h.b16 %v4395
        %v5057 = vunpack.c.l.b16 %v4396
        %v5058 = vunpack.c.h.b16 %v4396
        %v5059 = vunpack.c.l.b16 %v4397
        %v5060 = vunpack.c.h.b16 %v4397
        %v5061 = vunpack.c.l.b16 %v4398
        %v5062 = vunpack.c.h.b16 %v4398
        %v5063 = vunpack.c.l.b16 %v4399
        %v5064 = vunpack.c.h.b16 %v4399
        %v5065 = vunpack.c.l.b16 %v4400
        %v5066 = vunpack.c.h.b16 %v4400
        %v5067 = vunpack.c.l.b16 %v4401
        %v5068 = vunpack.c.h.b16 %v4401
        %v5069 = vunpack.c.l.b16 %v4402
        %v5070 = vunpack.c.h.b16 %v4402
        %v5071 = vunpack.c.l.b16 %v4403
        %v5072 = vunpack.c.h.b16 %v4403
        %v5073 = vunpack.c.l.b16 %v4404
        %v5074 = vunpack.c.h.b16 %v4404
        %v5075 = vunpack.c.l.b16 %v4405
        %v5076 = vunpack.c.h.b16 %v4405
        %v5077 = vunpack.c.l.b16 %v4406
        %v5078 = vunpack.c.h.b16 %v4406
        %v5079 = vpack.c.b16 %v4827, %v4823
        %v5080 = vpack.c.b16 %v4828, %v4824
        %v5081 = vpack.c.b16 %v4829, %v4825
        %v5082 = vpack.c.b16 %v4830, %v4826
        %v5083 = vpack.c.b16 %v4835, %v4831
        %v5084 = vpack.c.b16 %v4836, %v4832
        %v5085 = vpack.c.b16 %v4837, %v4833
        %v5086 = vpack.c.b16 %v4838, %v4834
        %v5087 = vpack.c.b16 %v4843, %v4839
        %v5088 = vpack.c.b16 %v4844, %v4840
        %v5089 = vpack.c.b16 %v4845, %v4841
        %v5090 = vpack.c.b16 %v4846, %v4842
        %v5091 = vpack.c.b16 %v4851, %v4847
        %v5092 = vpack.c.b16 %v4852, %v4848
        %v5093 = vpack.c.b16 %v4853, %v4849
        %v5094 = vpack.c.b16 %v4854, %v4850
        %v5095 = vpack.c.b16 %v4859, %v4855
        %v5096 = vpack.c.b16 %v4860, %v4856
        %v5097 = vpack.c.b16 %v4861, %v4857
        %v5098 = vpack.c.b16 %v4862, %v4858
        %v5099 = vpack.c.b16 %v4867, %v4863
        %v5100 = vpack.c.b16 %v4868, %v4864
        %v5101 = vpack.c.b16 %v4869, %v4865
        %v5102 = vpack.c.b16 %v4870, %v4866
        %v5103 = vpack.c.b16 %v4875, %v4871
        %v5104 = vpack.c.b16 %v4876, %v4872
        %v5105 = vpack.c.b16 %v4877, %v4873
        %v5106 = vpack.c.b16 %v4878, %v4874
        %v5107 = vpack.c.b16 %v4883, %v4879
        %v5108 = vpack.c.b16 %v4884, %v4880
        %v5109 = vpack.c.b16 %v4885, %v4881
        %v5110 = vpack.c.b16 %v4886, %v4882
        %v5111 = vpack.c.b16 %v4891, %v4887
        %v5112 = vpack.c.b16 %v4892, %v4888
        %v5113 = vpack.c.b16 %v4893, %v4889
        %v5114 = vpack.c.b16 %v4894, %v4890
        %v5115 = vpack.c.b16 %v4899, %v4895
        %v5116 = vpack.c.b16 %v4900, %v4896
        %v5117 = vpack.c.b16 %v4901, %v4897
        %v5118 = vpack.c.b16 %v4902, %v4898
        %v5119 = vpack.c.b16 %v4907, %v4903
        %v5120 = vpack.c.b16 %v4908, %v4904
        %v5121 = vpack.c.b16 %v4909, %v4905
        %v5122 = vpack.c.b16 %v4910, %v4906
        %v5123 = vpack.c.b16 %v4915, %v4911
        %v5124 = vpack.c.b16 %v4916, %v4912
        %v5125 = vpack.c.b16 %v4917, %v4913
        %v5126 = vpack.c.b16 %v4918, %v4914
        %v5127 = vpack.c.b16 %v4923, %v4919
        %v5128 = vpack.c.b16 %v4924, %v4920
        %v5129 = vpack.c.b16 %v4925, %v4921
        %v5130 = vpack.c.b16 %v4926, %v4922
        %v5131 = vpack.c.b16 %v4931, %v4927
        %v5132 = vpack.c.b16 %v4932, %v4928
        %v5133 = vpack.c.b16 %v4933, %v4929
        %v5134 = vpack.c.b16 %v4934, %v4930
        %v5135 = vpack.c.b16 %v4939, %v4935
        %v5136 = vpack.c.b16 %v4940, %v4936
        %v5137 = vpack.c.b16 %v4941, %v4937
        %v5138 = vpack.c.b16 %v4942, %v4938
        %v5139 = vpack.c.b16 %v4947, %v4943
        %v5140 = vpack.c.b16 %v4948, %v4944
        %v5141 = vpack.c.b16 %v4949, %v4945
        %v5142 = vpack.c.b16 %v4950, %v4946
        %v5143 = vpack.c.b16 %v4955, %v4951
        %v5144 = vpack.c.b16 %v4956, %v4952
        %v5145 = vpack.c.b16 %v4957, %v4953
        %v5146 = vpack.c.b16 %v4958, %v4954
        %v5147 = vpack.c.b16 %v4963, %v4959
        %v5148 = vpack.c.b16 %v4964, %v4960
        %v5149 = vpack.c.b16 %v4965, %v4961
        %v5150 = vpack.c.b16 %v4966, %v4962
        %v5151 = vpack.c.b16 %v4971, %v4967
        %v5152 = vpack.c.b16 %v4972, %v4968
        %v5153 = vpack.c.b16 %v4973, %v4969
        %v5154 = vpack.c.b16 %v4974, %v4970
        %v5155 = vpack.c.b16 %v4979, %v4975
        %v5156 = vpack.c.b16 %v4980, %v4976
        %v5157 = vpack.c.b16 %v4981, %v4977
        %v5158 = vpack.c.b16 %v4982, %v4978
        %v5159 = vpack.c.b16 %v4987, %v4983
        %v5160 = vpack.c.b16 %v4988, %v4984
        %v5161 = vpack.c.b16 %v4989, %v4985
        %v5162 = vpack.c.b16 %v4990, %v4986
        %v5163 = vpack.c.b16 %v4995, %v4991
        %v5164 = vpack.c.b16 %v4996, %v4992
        %v5165 = vpack.c.b16 %v4997, %v4993
        %v5166 = vpack.c.b16 %v4998, %v4994
        %v5167 = vpack.c.b16 %v5003, %v4999
        %v5168 = vpack.c.b16 %v5004, %v5000
        %v5169 = vpack.c.b16 %v5005, %v5001
        %v5170 = vpack.c.b16 %v5006, %v5002
        %v5171 = vpack.c.b16 %v5011, %v5007
        %v5172 = vpack.c.b16 %v5012, %v5008
        %v5173 = vpack.c.b16 %v5013, %v5009
        %v5174 = vpack.c.b16 %v5014, %v5010
        %v5175 = vpack.c.b16 %v5019, %v5015
        %v5176 = vpack.c.b16 %v5020, %v5016
        %v5177 = vpack.c.b16 %v5021, %v5017
        %v5178 = vpack.c.b16 %v5022, %v5018
        %v5179 = vpack.c.b16 %v5027, %v5023
        %v5180 = vpack.c.b16 %v5028, %v5024
        %v5181 = vpack.c.b16 %v5029, %v5025
        %v5182 = vpack.c.b16 %v5030, %v5026
        %v5183 = vpack.c.b16 %v5035, %v5031
        %v5184 = vpack.c.b16 %v5036, %v5032
        %v5185 = vpack.c.b16 %v5037, %v5033
        %v5186 = vpack.c.b16 %v5038, %v5034
        %v5187 = vpack.c.b16 %v5043, %v5039
        %v5188 = vpack.c.b16 %v5044, %v5040
        %v5189 = vpack.c.b16 %v5045, %v5041
        %v5190 = vpack.c.b16 %v5046, %v5042
        %v5191 = vpack.c.b16 %v5051, %v5047
        %v5192 = vpack.c.b16 %v5052, %v5048
        %v5193 = vpack.c.b16 %v5053, %v5049
        %v5194 = vpack.c.b16 %v5054, %v5050
        %v5195 = vpack.c.b16 %v5059, %v5055
        %v5196 = vpack.c.b16 %v5060, %v5056
        %v5197 = vpack.c.b16 %v5061, %v5057
        %v5198 = vpack.c.b16 %v5062, %v5058
        %v5199 = vpack.c.b16 %v5067, %v5063
        %v5200 = vpack.c.b16 %v5068, %v5064
        %v5201 = vpack.c.b16 %v5069, %v5065
        %v5202 = vpack.c.b16 %v5070, %v5066
        %v5203 = vpack.c.b16 %v5075, %v5071
        %v5204 = vpack.c.b16 %v5076, %v5072
        %v5205 = vpack.c.b16 %v5077, %v5073
        %v5206 = vpack.c.b16 %v5078, %v5074
        %5335 = vmatprep.subr.bf16.mxu0 0
        %5336 = vmatpush1.bf16.msra.mxu0 %v4407
        %5337 = vmatprep.subr.bf16.mxu0 0
        %5338 = vmatpush1.bf16.msra.mxu0 %v4408
        %5339 = vmatprep.subr.bf16.mxu0 0
        %5340 = vmatpush1.bf16.msra.mxu0 %v4409
        %5341 = vmatprep.subr.bf16.mxu0 0
        %5342 = vmatpush1.bf16.msra.mxu0 %v4410
        %5343 = vmatprep.subr.bf16.mxu0 0
        %5344 = vmatpush1.bf16.msra.mxu0 %v4411
        %5345 = vmatprep.subr.bf16.mxu0 0
        %5346 = vmatpush1.bf16.msra.mxu0 %v4412
        %5347 = vmatprep.subr.bf16.mxu0 0
        %5348 = vmatpush1.bf16.msra.mxu0 %v4413
        %5349 = vmatprep.subr.bf16.mxu0 0
        %5350 = vmatpush1.bf16.msra.mxu0 %v4414
        %5351 = vmatprep.subr.bf16.mxu0 0
        %5352 = vmatpush1.bf16.msra.mxu0 %v4415
        %5353 = vmatprep.subr.bf16.mxu0 0
        %5354 = vmatpush1.bf16.msra.mxu0 %v4416
        %5355 = vmatprep.subr.bf16.mxu0 0
        %5356 = vmatpush1.bf16.msra.mxu0 %v4417
        %5357 = vmatprep.subr.bf16.mxu0 0
        %5358 = vmatpush1.bf16.msra.mxu0 %v4418
        %5359 = vmatprep.subr.bf16.mxu0 0
        %5360 = vmatpush1.bf16.msra.mxu0 %v4419
        %5361 = vmatprep.subr.bf16.mxu0 0
        %5362 = vmatpush1.bf16.msra.mxu0 %v4420
        %5363 = vmatprep.subr.bf16.mxu0 0
        %5364 = vmatpush1.bf16.msra.mxu0 %v4421
        %5365 = vmatprep.subr.bf16.mxu0 0
        %5366 = vmatpush1.bf16.msra.mxu0 %v4422
        %5367 = vmatprep.mubr.bf16.mxu0 %v5080
        %5368 = vmatmul.mubr.bf16.gmra.mrb[0].mxu0 %v5079
        %v5369 = vpop.f32.mrb[0].mxu0
        %v5370 = vadd.f32 %v4441, %v5369
        %v5371 = vpop.f32.mrb[0].mxu0
        %v5372 = vpop.f32.mrb[0].mxu0
        %v5373 = vadd.f32 %v4445, %v5372
        %v5374 = vpop.f32.mrb[0].mxu0
        %5375 = vmatprep.mubr.bf16.mxu0 %v5084
        %5376 = vmatmul.mubr.bf16.gmra.mrb[0].mxu0 %v5083
        %v5377 = vpop.f32.mrb[0].mxu0
        %v5378 = vadd.f32 %v4449, %v5377
        %v5379 = vpop.f32.mrb[0].mxu0
        %v5380 = vpop.f32.mrb[0].mxu0
        %v5381 = vadd.f32 %v4453, %v5380
        %v5382 = vpop.f32.mrb[0].mxu0
        %5383 = vmatprep.mubr.bf16.mxu0 %v5088
        %5384 = vmatmul.mubr.bf16.gmra.mrb[0].mxu0 %v5087
        %v5385 = vpop.f32.mrb[0].mxu0
        %v5386 = vadd.f32 %v4457, %v5385
        %v5387 = vpop.f32.mrb[0].mxu0
        %v5388 = vpop.f32.mrb[0].mxu0
        %v5389 = vadd.f32 %v4461, %v5388
        %v5390 = vpop.f32.mrb[0].mxu0
        %5391 = vmatprep.mubr.bf16.mxu0 %v5092
        %5392 = vmatmul.mubr.bf16.gmra.mrb[0].mxu0 %v5091
        %v5393 = vpop.f32.mrb[0].mxu0
        %v5394 = vadd.f32 %v4465, %v5393
        %v5395 = vpop.f32.mrb[0].mxu0
        %v5396 = vpop.f32.mrb[0].mxu0
        %v5397 = vadd.f32 %v4469, %v5396
        %v5398 = vpop.f32.mrb[0].mxu0
        %5399 = vmatprep.mubr.bf16.mxu0 %v5096
        %5400 = vmatmul.mubr.bf16.gmra.mrb[0].mxu0 %v5095
        %v5401 = vpop.f32.mrb[0].mxu0
        %v5402 = vadd.f32 %v4473, %v5401
        %v5403 = vpop.f32.mrb[0].mxu0
        %v5404 = vpop.f32.mrb[0].mxu0
        %v5405 = vadd.f32 %v4477, %v5404
        %v5406 = vpop.f32.mrb[0].mxu0
        %5407 = vmatprep.mubr.bf16.mxu0 %v5100
        %5408 = vmatmul.mubr.bf16.gmra.mrb[0].mxu0 %v5099
        %v5409 = vpop.f32.mrb[0].mxu0
        %v5410 = vadd.f32 %v4481, %v5409
        %v5411 = vpop.f32.mrb[0].mxu0
        %v5412 = vpop.f32.mrb[0].mxu0
        %v5413 = vadd.f32 %v4485, %v5412
        %v5414 = vpop.f32.mrb[0].mxu0
        %5415 = vmatprep.mubr.bf16.mxu0 %v5104
        %5416 = vmatmul.mubr.bf16.gmra.mrb[0].mxu0 %v5103
        %v5417 = vpop.f32.mrb[0].mxu0
        %v5418 = vadd.f32 %v4489, %v5417
        %v5419 = vpop.f32.mrb[0].mxu0
        %v5420 = vpop.f32.mrb[0].mxu0
        %v5421 = vadd.f32 %v4493, %v5420
        %v5422 = vpop.f32.mrb[0].mxu0
        %5423 = vmatprep.mubr.bf16.mxu0 %v5108
        %5424 = vmatmul.mubr.bf16.gmra.mrb[0].mxu0 %v5107
        %v5425 = vpop.f32.mrb[0].mxu0
        %v5426 = vadd.f32 %v4497, %v5425
        %v5427 = vpop.f32.mrb[0].mxu0
        %v5428 = vpop.f32.mrb[0].mxu0
        %v5429 = vadd.f32 %v4501, %v5428
        %v5430 = vpop.f32.mrb[0].mxu0
        %5431 = vmatprep.mubr.bf16.mxu0 %v5112
        %5432 = vmatmul.mubr.bf16.gmra.mrb[0].mxu0 %v5111
        %v5433 = vpop.f32.mrb[0].mxu0
        %v5434 = vadd.f32 %v4505, %v5433
        %v5435 = vpop.f32.mrb[0].mxu0
        %v5436 = vpop.f32.mrb[0].mxu0
        %v5437 = vadd.f32 %v4509, %v5436
        %v5438 = vpop.f32.mrb[0].mxu0
        %5439 = vmatprep.mubr.bf16.mxu0 %v5116
        %5440 = vmatmul.mubr.bf16.gmra.mrb[0].mxu0 %v5115
        %v5441 = vpop.f32.mrb[0].mxu0
        %v5442 = vadd.f32 %v4513, %v5441
        %v5443 = vpop.f32.mrb[0].mxu0
        %v5444 = vpop.f32.mrb[0].mxu0
        %v5445 = vadd.f32 %v4517, %v5444
        %v5446 = vpop.f32.mrb[0].mxu0
        %5447 = vmatprep.mubr.bf16.mxu0 %v5120
        %5448 = vmatmul.mubr.bf16.gmra.mrb[0].mxu0 %v5119
        %v5449 = vpop.f32.mrb[0].mxu0
        %v5450 = vadd.f32 %v4521, %v5449
        %v5451 = vpop.f32.mrb[0].mxu0
        %v5452 = vpop.f32.mrb[0].mxu0
        %v5453 = vadd.f32 %v4525, %v5452
        %v5454 = vpop.f32.mrb[0].mxu0
        %5455 = vmatprep.mubr.bf16.mxu0 %v5124
        %5456 = vmatmul.mubr.bf16.gmra.mrb[0].mxu0 %v5123
        %v5457 = vpop.f32.mrb[0].mxu0
        %v5458 = vadd.f32 %v4529, %v5457
        %v5459 = vpop.f32.mrb[0].mxu0
        %v5460 = vpop.f32.mrb[0].mxu0
        %v5461 = vadd.f32 %v4533, %v5460
        %v5462 = vpop.f32.mrb[0].mxu0
        %5463 = vmatprep.mubr.bf16.mxu0 %v5128
        %5464 = vmatmul.mubr.bf16.gmra.mrb[0].mxu0 %v5127
        %v5465 = vpop.f32.mrb[0].mxu0
        %v5466 = vadd.f32 %v4537, %v5465
        %v5467 = vpop.f32.mrb[0].mxu0
        %v5468 = vpop.f32.mrb[0].mxu0
        %v5469 = vadd.f32 %v4541, %v5468
        %v5470 = vpop.f32.mrb[0].mxu0
        %5471 = vmatprep.mubr.bf16.mxu0 %v5132
        %5472 = vmatmul.mubr.bf16.gmra.mrb[0].mxu0 %v5131
        %v5473 = vpop.f32.mrb[0].mxu0
        %v5474 = vadd.f32 %v4545, %v5473
        %v5475 = vpop.f32.mrb[0].mxu0
        %v5476 = vpop.f32.mrb[0].mxu0
        %v5477 = vadd.f32 %v4549, %v5476
        %v5478 = vpop.f32.mrb[0].mxu0
        %5479 = vmatprep.mubr.bf16.mxu0 %v5136
        %5480 = vmatmul.mubr.bf16.gmra.mrb[0].mxu0 %v5135
        %v5481 = vpop.f32.mrb[0].mxu0
        %v5482 = vadd.f32 %v4553, %v5481
        %v5483 = vpop.f32.mrb[0].mxu0
        %v5484 = vpop.f32.mrb[0].mxu0
        %v5485 = vadd.f32 %v4557, %v5484
        %v5486 = vpop.f32.mrb[0].mxu0
        %5487 = vmatprep.mubr.bf16.mxu0 %v5140
        %5488 = vmatmul.mubr.bf16.gmra.mrb[0].mxu0 %v5139
        %v5489 = vpop.f32.mrb[0].mxu0
        %v5490 = vadd.f32 %v4561, %v5489
        %v5491 = vpop.f32.mrb[0].mxu0
        %v5492 = vpop.f32.mrb[0].mxu0
        %v5493 = vadd.f32 %v4565, %v5492
        %v5494 = vpop.f32.mrb[0].mxu0
        %5495 = vmatprep.mubr.bf16.mxu0 %v5144
        %5496 = vmatmul.mubr.bf16.gmra.mrb[0].mxu0 %v5143
        %v5497 = vpop.f32.mrb[0].mxu0
        %v5498 = vadd.f32 %v4569, %v5497
        %v5499 = vpop.f32.mrb[0].mxu0
        %v5500 = vpop.f32.mrb[0].mxu0
        %v5501 = vadd.f32 %v4573, %v5500
        %v5502 = vpop.f32.mrb[0].mxu0
        %5503 = vmatprep.mubr.bf16.mxu0 %v5148
        %5504 = vmatmul.mubr.bf16.gmra.mrb[0].mxu0 %v5147
        %v5505 = vpop.f32.mrb[0].mxu0
        %v5506 = vadd.f32 %v4577, %v5505
        %v5507 = vpop.f32.mrb[0].mxu0
        %v5508 = vpop.f32.mrb[0].mxu0
        %v5509 = vadd.f32 %v4581, %v5508
        %v5510 = vpop.f32.mrb[0].mxu0
        %5511 = vmatprep.mubr.bf16.mxu0 %v5152
        %5512 = vmatmul.mubr.bf16.gmra.mrb[0].mxu0 %v5151
        %v5513 = vpop.f32.mrb[0].mxu0
        %v5514 = vadd.f32 %v4585, %v5513
        %v5515 = vpop.f32.mrb[0].mxu0
        %v5516 = vpop.f32.mrb[0].mxu0
        %v5517 = vadd.f32 %v4589, %v5516
        %v5518 = vpop.f32.mrb[0].mxu0
        %5519 = vmatprep.mubr.bf16.mxu0 %v5156
        %5520 = vmatmul.mubr.bf16.gmra.mrb[0].mxu0 %v5155
        %v5521 = vpop.f32.mrb[0].mxu0
        %v5522 = vadd.f32 %v4593, %v5521
        %v5523 = vpop.f32.mrb[0].mxu0
        %v5524 = vpop.f32.mrb[0].mxu0
        %v5525 = vadd.f32 %v4597, %v5524
        %v5526 = vpop.f32.mrb[0].mxu0
        %5527 = vmatprep.mubr.bf16.mxu0 %v5160
        %5528 = vmatmul.mubr.bf16.gmra.mrb[0].mxu0 %v5159
        %v5529 = vpop.f32.mrb[0].mxu0
        %v5530 = vadd.f32 %v4601, %v5529
        %v5531 = vpop.f32.mrb[0].mxu0
        %v5532 = vpop.f32.mrb[0].mxu0
        %v5533 = vadd.f32 %v4605, %v5532
        %v5534 = vpop.f32.mrb[0].mxu0
        %5535 = vmatprep.mubr.bf16.mxu0 %v5164
        %5536 = vmatmul.mubr.bf16.gmra.mrb[0].mxu0 %v5163
        %v5537 = vpop.f32.mrb[0].mxu0
        %v5538 = vadd.f32 %v4609, %v5537
        %v5539 = vpop.f32.mrb[0].mxu0
        %v5540 = vpop.f32.mrb[0].mxu0
        %v5541 = vadd.f32 %v4613, %v5540
        %v5542 = vpop.f32.mrb[0].mxu0
        %5543 = vmatprep.mubr.bf16.mxu0 %v5168
        %5544 = vmatmul.mubr.bf16.gmra.mrb[0].mxu0 %v5167
        %v5545 = vpop.f32.mrb[0].mxu0
        %v5546 = vadd.f32 %v4617, %v5545
        %v5547 = vpop.f32.mrb[0].mxu0
        %v5548 = vpop.f32.mrb[0].mxu0
        %v5549 = vadd.f32 %v4621, %v5548
        %v5550 = vpop.f32.mrb[0].mxu0
        %5551 = vmatprep.mubr.bf16.mxu0 %v5172
        %5552 = vmatmul.mubr.bf16.gmra.mrb[0].mxu0 %v5171
        %v5553 = vpop.f32.mrb[0].mxu0
        %v5554 = vadd.f32 %v4625, %v5553
        %v5555 = vpop.f32.mrb[0].mxu0
        %v5556 = vpop.f32.mrb[0].mxu0
        %v5557 = vadd.f32 %v4629, %v5556
        %v5558 = vpop.f32.mrb[0].mxu0
        %5559 = vmatprep.mubr.bf16.mxu0 %v5176
        %5560 = vmatmul.mubr.bf16.gmra.mrb[0].mxu0 %v5175
        %v5561 = vpop.f32.mrb[0].mxu0
        %v5562 = vadd.f32 %v4633, %v5561
        %v5563 = vpop.f32.mrb[0].mxu0
        %v5564 = vpop.f32.mrb[0].mxu0
        %v5565 = vadd.f32 %v4637, %v5564
        %v5566 = vpop.f32.mrb[0].mxu0
        %5567 = vmatprep.mubr.bf16.mxu0 %v5180
        %5568 = vmatmul.mubr.bf16.gmra.mrb[0].mxu0 %v5179
        %v5569 = vpop.f32.mrb[0].mxu0
        %v5570 = vadd.f32 %v4641, %v5569
        %v5571 = vpop.f32.mrb[0].mxu0
        %v5572 = vpop.f32.mrb[0].mxu0
        %v5573 = vadd.f32 %v4645, %v5572
        %v5574 = vpop.f32.mrb[0].mxu0
        %5575 = vmatprep.mubr.bf16.mxu0 %v5184
        %5576 = vmatmul.mubr.bf16.gmra.mrb[0].mxu0 %v5183
        %v5577 = vpop.f32.mrb[0].mxu0
        %v5578 = vadd.f32 %v4649, %v5577
        %v5579 = vpop.f32.mrb[0].mxu0
        %v5580 = vpop.f32.mrb[0].mxu0
        %v5581 = vadd.f32 %v4653, %v5580
        %v5582 = vpop.f32.mrb[0].mxu0
        %5583 = vmatprep.mubr.bf16.mxu0 %v5188
        %5584 = vmatmul.mubr.bf16.gmra.mrb[0].mxu0 %v5187
        %v5585 = vpop.f32.mrb[0].mxu0
        %v5586 = vadd.f32 %v4657, %v5585
        %v5587 = vpop.f32.mrb[0].mxu0
        %v5588 = vpop.f32.mrb[0].mxu0
        %v5589 = vadd.f32 %v4661, %v5588
        %v5590 = vpop.f32.mrb[0].mxu0
        %5591 = vmatprep.mubr.bf16.mxu0 %v5192
        %5592 = vmatmul.mubr.bf16.gmra.mrb[0].mxu0 %v5191
        %v5593 = vpop.f32.mrb[0].mxu0
        %v5594 = vadd.f32 %v4665, %v5593
        %v5595 = vpop.f32.mrb[0].mxu0
        %v5596 = vpop.f32.mrb[0].mxu0
        %v5597 = vadd.f32 %v4669, %v5596
        %v5598 = vpop.f32.mrb[0].mxu0
        %5599 = vmatprep.mubr.bf16.mxu0 %v5196
        %5600 = vmatmul.mubr.bf16.gmra.mrb[0].mxu0 %v5195
        %v5601 = vpop.f32.mrb[0].mxu0
        %v5602 = vadd.f32 %v4673, %v5601
        %v5603 = vpop.f32.mrb[0].mxu0
        %v5604 = vpop.f32.mrb[0].mxu0
        %v5605 = vadd.f32 %v4677, %v5604
        %v5606 = vpop.f32.mrb[0].mxu0
        %5607 = vmatprep.mubr.bf16.mxu0 %v5200
        %5608 = vmatmul.mubr.bf16.gmra.mrb[0].mxu0 %v5199
        %v5609 = vpop.f32.mrb[0].mxu0
        %v5610 = vadd.f32 %v4681, %v5609
        %v5611 = vpop.f32.mrb[0].mxu0
        %v5612 = vpop.f32.mrb[0].mxu0
        %v5613 = vadd.f32 %v4685, %v5612
        %v5614 = vpop.f32.mrb[0].mxu0
        %5615 = vmatprep.mubr.bf16.mxu0 %v5204
        %5616 = vmatmul.mubr.bf16.gmra.mrb[0].mxu0 %v5203
        %v5617 = vpop.f32.mrb[0].mxu0
        %v5618 = vadd.f32 %v4689, %v5617
        %v5619 = vpop.f32.mrb[0].mxu0
        %v5620 = vpop.f32.mrb[0].mxu0
        %v5621 = vadd.f32 %v4693, %v5620
        %v5622 = vpop.f32.mrb[0].mxu0
        %5623 = vdwg.mxu0
        %5624 = vmatprep.subr.bf16.mxu0 0
        %5625 = vmatpush1.bf16.msra.mxu0 %v4423
        %5626 = vmatprep.subr.bf16.mxu0 0
        %5627 = vmatpush1.bf16.msra.mxu0 %v4424
        %5628 = vmatprep.subr.bf16.mxu0 0
        %5629 = vmatpush1.bf16.msra.mxu0 %v4425
        %5630 = vmatprep.subr.bf16.mxu0 0
        %5631 = vmatpush1.bf16.msra.mxu0 %v4426
        %5632 = vmatprep.subr.bf16.mxu0 0
        %5633 = vmatpush1.bf16.msra.mxu0 %v4427
        %5634 = vmatprep.subr.bf16.mxu0 0
        %5635 = vmatpush1.bf16.msra.mxu0 %v4428
        %5636 = vmatprep.subr.bf16.mxu0 0
        %5637 = vmatpush1.bf16.msra.mxu0 %v4429
        %5638 = vmatprep.subr.bf16.mxu0 0
        %5639 = vmatpush1.bf16.msra.mxu0 %v4430
        %5640 = vmatprep.subr.bf16.mxu0 0
        %5641 = vmatpush1.bf16.msra.mxu0 %v4431
        %5642 = vmatprep.subr.bf16.mxu0 0
        %5643 = vmatpush1.bf16.msra.mxu0 %v4432
        %5644 = vmatprep.subr.bf16.mxu0 0
        %5645 = vmatpush1.bf16.msra.mxu0 %v4433
        %5646 = vmatprep.subr.bf16.mxu0 0
        %5647 = vmatpush1.bf16.msra.mxu0 %v4434
        %5648 = vmatprep.subr.bf16.mxu0 0
        %5649 = vmatpush1.bf16.msra.mxu0 %v4435
        %5650 = vmatprep.subr.bf16.mxu0 0
        %5651 = vmatpush1.bf16.msra.mxu0 %v4436
        %5652 = vmatprep.subr.bf16.mxu0 0
        %5653 = vmatpush1.bf16.msra.mxu0 %v4437
        %5654 = vmatprep.subr.bf16.mxu0 0
        %5655 = vmatpush1.bf16.msra.mxu0 %v4438
        %5656 = vmatprep.mubr.bf16.mxu0 %v5082
        %5657 = vmatmul.mubr.bf16.gmra.mrb[0].mxu0 %v5081
        %v5658 = vpop.f32.mrb[0].mxu0
        %v5659 = vadd.f32 %v5370, %v5658
        %v5660 = vpop.f32.mrb[0].mxu0
        %v5661 = vpop.f32.mrb[0].mxu0
        %v5662 = vadd.f32 %v5373, %v5661
        %v5663 = vpop.f32.mrb[0].mxu0
        %5664 = vmatprep.mubr.bf16.mxu0 %v5086
        %5665 = vmatmul.mubr.bf16.gmra.mrb[0].mxu0 %v5085
        %v5666 = vpop.f32.mrb[0].mxu0
        %v5667 = vadd.f32 %v5378, %v5666
        %v5668 = vpop.f32.mrb[0].mxu0
        %v5669 = vpop.f32.mrb[0].mxu0
        %v5670 = vadd.f32 %v5381, %v5669
        %v5671 = vpop.f32.mrb[0].mxu0
        %5672 = vmatprep.mubr.bf16.mxu0 %v5090
        %5673 = vmatmul.mubr.bf16.gmra.mrb[0].mxu0 %v5089
        %v5674 = vpop.f32.mrb[0].mxu0
        %v5675 = vadd.f32 %v5386, %v5674
        %v5676 = vpop.f32.mrb[0].mxu0
        %v5677 = vpop.f32.mrb[0].mxu0
        %v5678 = vadd.f32 %v5389, %v5677
        %v5679 = vpop.f32.mrb[0].mxu0
        %5680 = vmatprep.mubr.bf16.mxu0 %v5094
        %5681 = vmatmul.mubr.bf16.gmra.mrb[0].mxu0 %v5093
        %v5682 = vpop.f32.mrb[0].mxu0
        %v5683 = vadd.f32 %v5394, %v5682
        %v5684 = vpop.f32.mrb[0].mxu0
        %v5685 = vpop.f32.mrb[0].mxu0
        %v5686 = vadd.f32 %v5397, %v5685
        %v5687 = vpop.f32.mrb[0].mxu0
        %5688 = vmatprep.mubr.bf16.mxu0 %v5098
        %5689 = vmatmul.mubr.bf16.gmra.mrb[0].mxu0 %v5097
        %v5690 = vpop.f32.mrb[0].mxu0
        %v5691 = vadd.f32 %v5402, %v5690
        %v5692 = vpop.f32.mrb[0].mxu0
        %v5693 = vpop.f32.mrb[0].mxu0
        %v5694 = vadd.f32 %v5405, %v5693
        %v5695 = vpop.f32.mrb[0].mxu0
        %5696 = vmatprep.mubr.bf16.mxu0 %v5102
        %5697 = vmatmul.mubr.bf16.gmra.mrb[0].mxu0 %v5101
        %v5698 = vpop.f32.mrb[0].mxu0
        %v5699 = vadd.f32 %v5410, %v5698
        %v5700 = vpop.f32.mrb[0].mxu0
        %v5701 = vpop.f32.mrb[0].mxu0
        %v5702 = vadd.f32 %v5413, %v5701
        %v5703 = vpop.f32.mrb[0].mxu0
        %5704 = vmatprep.mubr.bf16.mxu0 %v5106
        %5705 = vmatmul.mubr.bf16.gmra.mrb[0].mxu0 %v5105
        %v5706 = vpop.f32.mrb[0].mxu0
        %v5707 = vadd.f32 %v5418, %v5706
        %v5708 = vpop.f32.mrb[0].mxu0
        %v5709 = vpop.f32.mrb[0].mxu0
        %v5710 = vadd.f32 %v5421, %v5709
        %v5711 = vpop.f32.mrb[0].mxu0
        %5712 = vmatprep.mubr.bf16.mxu0 %v5110
        %5713 = vmatmul.mubr.bf16.gmra.mrb[0].mxu0 %v5109
        %v5714 = vpop.f32.mrb[0].mxu0
        %v5715 = vadd.f32 %v5426, %v5714
        %v5716 = vpop.f32.mrb[0].mxu0
        %v5717 = vpop.f32.mrb[0].mxu0
        %v5718 = vadd.f32 %v5429, %v5717
        %v5719 = vpop.f32.mrb[0].mxu0
        %5720 = vmatprep.mubr.bf16.mxu0 %v5114
        %5721 = vmatmul.mubr.bf16.gmra.mrb[0].mxu0 %v5113
        %v5722 = vpop.f32.mrb[0].mxu0
        %v5723 = vadd.f32 %v5434, %v5722
        %v5724 = vpop.f32.mrb[0].mxu0
        %v5725 = vpop.f32.mrb[0].mxu0
        %v5726 = vadd.f32 %v5437, %v5725
        %v5727 = vpop.f32.mrb[0].mxu0
        %5728 = vmatprep.mubr.bf16.mxu0 %v5118
        %5729 = vmatmul.mubr.bf16.gmra.mrb[0].mxu0 %v5117
        %v5730 = vpop.f32.mrb[0].mxu0
        %v5731 = vadd.f32 %v5442, %v5730
        %v5732 = vpop.f32.mrb[0].mxu0
        %v5733 = vpop.f32.mrb[0].mxu0
        %v5734 = vadd.f32 %v5445, %v5733
        %v5735 = vpop.f32.mrb[0].mxu0
        %5736 = vmatprep.mubr.bf16.mxu0 %v5122
        %5737 = vmatmul.mubr.bf16.gmra.mrb[0].mxu0 %v5121
        %v5738 = vpop.f32.mrb[0].mxu0
        %v5739 = vadd.f32 %v5450, %v5738
        %v5740 = vpop.f32.mrb[0].mxu0
        %v5741 = vpop.f32.mrb[0].mxu0
        %v5742 = vadd.f32 %v5453, %v5741
        %v5743 = vpop.f32.mrb[0].mxu0
        %5744 = vmatprep.mubr.bf16.mxu0 %v5126
        %5745 = vmatmul.mubr.bf16.gmra.mrb[0].mxu0 %v5125
        %v5746 = vpop.f32.mrb[0].mxu0
        %v5747 = vadd.f32 %v5458, %v5746
        %v5748 = vpop.f32.mrb[0].mxu0
        %v5749 = vpop.f32.mrb[0].mxu0
        %v5750 = vadd.f32 %v5461, %v5749
        %v5751 = vpop.f32.mrb[0].mxu0
        %5752 = vmatprep.mubr.bf16.mxu0 %v5130
        %5753 = vmatmul.mubr.bf16.gmra.mrb[0].mxu0 %v5129
        %v5754 = vpop.f32.mrb[0].mxu0
        %v5755 = vadd.f32 %v5466, %v5754
        %v5756 = vpop.f32.mrb[0].mxu0
        %v5757 = vpop.f32.mrb[0].mxu0
        %v5758 = vadd.f32 %v5469, %v5757
        %v5759 = vpop.f32.mrb[0].mxu0
        %5760 = vmatprep.mubr.bf16.mxu0 %v5134
        %5761 = vmatmul.mubr.bf16.gmra.mrb[0].mxu0 %v5133
        %v5762 = vpop.f32.mrb[0].mxu0
        %v5763 = vadd.f32 %v5474, %v5762
        %v5764 = vpop.f32.mrb[0].mxu0
        %v5765 = vpop.f32.mrb[0].mxu0
        %v5766 = vadd.f32 %v5477, %v5765
        %v5767 = vpop.f32.mrb[0].mxu0
        %5768 = vmatprep.mubr.bf16.mxu0 %v5138
        %5769 = vmatmul.mubr.bf16.gmra.mrb[0].mxu0 %v5137
        %v5770 = vpop.f32.mrb[0].mxu0
        %v5771 = vadd.f32 %v5482, %v5770
        %v5772 = vpop.f32.mrb[0].mxu0
        %v5773 = vpop.f32.mrb[0].mxu0
        %v5774 = vadd.f32 %v5485, %v5773
        %v5775 = vpop.f32.mrb[0].mxu0
        %5776 = vmatprep.mubr.bf16.mxu0 %v5142
        %5777 = vmatmul.mubr.bf16.gmra.mrb[0].mxu0 %v5141
        %v5778 = vpop.f32.mrb[0].mxu0
        %v5779 = vadd.f32 %v5490, %v5778
        %v5780 = vpop.f32.mrb[0].mxu0
        %v5781 = vpop.f32.mrb[0].mxu0
        %v5782 = vadd.f32 %v5493, %v5781
        %v5783 = vpop.f32.mrb[0].mxu0
        %5784 = vmatprep.mubr.bf16.mxu0 %v5146
        %5785 = vmatmul.mubr.bf16.gmra.mrb[0].mxu0 %v5145
        %v5786 = vpop.f32.mrb[0].mxu0
        %v5787 = vadd.f32 %v5498, %v5786
        %v5788 = vpop.f32.mrb[0].mxu0
        %v5789 = vpop.f32.mrb[0].mxu0
        %v5790 = vadd.f32 %v5501, %v5789
        %v5791 = vpop.f32.mrb[0].mxu0
        %5792 = vmatprep.mubr.bf16.mxu0 %v5150
        %5793 = vmatmul.mubr.bf16.gmra.mrb[0].mxu0 %v5149
        %v5794 = vpop.f32.mrb[0].mxu0
        %v5795 = vadd.f32 %v5506, %v5794
        %v5796 = vpop.f32.mrb[0].mxu0
        %v5797 = vpop.f32.mrb[0].mxu0
        %v5798 = vadd.f32 %v5509, %v5797
        %v5799 = vpop.f32.mrb[0].mxu0
        %5800 = vmatprep.mubr.bf16.mxu0 %v5154
        %5801 = vmatmul.mubr.bf16.gmra.mrb[0].mxu0 %v5153
        %v5802 = vpop.f32.mrb[0].mxu0
        %v5803 = vadd.f32 %v5514, %v5802
        %v5804 = vpop.f32.mrb[0].mxu0
        %v5805 = vpop.f32.mrb[0].mxu0
        %v5806 = vadd.f32 %v5517, %v5805
        %v5807 = vpop.f32.mrb[0].mxu0
        %5808 = vmatprep.mubr.bf16.mxu0 %v5158
        %5809 = vmatmul.mubr.bf16.gmra.mrb[0].mxu0 %v5157
        %v5810 = vpop.f32.mrb[0].mxu0
        %v5811 = vadd.f32 %v5522, %v5810
        %v5812 = vpop.f32.mrb[0].mxu0
        %v5813 = vpop.f32.mrb[0].mxu0
        %v5814 = vadd.f32 %v5525, %v5813
        %v5815 = vpop.f32.mrb[0].mxu0
        %5816 = vmatprep.mubr.bf16.mxu0 %v5162
        %5817 = vmatmul.mubr.bf16.gmra.mrb[0].mxu0 %v5161
        %v5818 = vpop.f32.mrb[0].mxu0
        %v5819 = vadd.f32 %v5530, %v5818
        %v5820 = vpop.f32.mrb[0].mxu0
        %v5821 = vpop.f32.mrb[0].mxu0
        %v5822 = vadd.f32 %v5533, %v5821
        %v5823 = vpop.f32.mrb[0].mxu0
        %5824 = vmatprep.mubr.bf16.mxu0 %v5166
        %5825 = vmatmul.mubr.bf16.gmra.mrb[0].mxu0 %v5165
        %v5826 = vpop.f32.mrb[0].mxu0
        %v5827 = vadd.f32 %v5538, %v5826
        %v5828 = vpop.f32.mrb[0].mxu0
        %v5829 = vpop.f32.mrb[0].mxu0
        %v5830 = vadd.f32 %v5541, %v5829
        %v5831 = vpop.f32.mrb[0].mxu0
        %5832 = vmatprep.mubr.bf16.mxu0 %v5170
        %5833 = vmatmul.mubr.bf16.gmra.mrb[0].mxu0 %v5169
        %v5834 = vpop.f32.mrb[0].mxu0
        %v5835 = vadd.f32 %v5546, %v5834
        %v5836 = vpop.f32.mrb[0].mxu0
        %v5837 = vpop.f32.mrb[0].mxu0
        %v5838 = vadd.f32 %v5549, %v5837
        %v5839 = vpop.f32.mrb[0].mxu0
        %5840 = vmatprep.mubr.bf16.mxu0 %v5174
        %5841 = vmatmul.mubr.bf16.gmra.mrb[0].mxu0 %v5173
        %v5842 = vpop.f32.mrb[0].mxu0
        %v5843 = vadd.f32 %v5554, %v5842
        %v5844 = vpop.f32.mrb[0].mxu0
        %v5845 = vpop.f32.mrb[0].mxu0
        %v5846 = vadd.f32 %v5557, %v5845
        %v5847 = vpop.f32.mrb[0].mxu0
        %5848 = vmatprep.mubr.bf16.mxu0 %v5178
        %5849 = vmatmul.mubr.bf16.gmra.mrb[0].mxu0 %v5177
        %v5850 = vpop.f32.mrb[0].mxu0
        %v5851 = vadd.f32 %v5562, %v5850
        %v5852 = vpop.f32.mrb[0].mxu0
        %v5853 = vpop.f32.mrb[0].mxu0
        %v5854 = vadd.f32 %v5565, %v5853
        %v5855 = vpop.f32.mrb[0].mxu0
        %5856 = vmatprep.mubr.bf16.mxu0 %v5182
        %5857 = vmatmul.mubr.bf16.gmra.mrb[0].mxu0 %v5181
        %v5858 = vpop.f32.mrb[0].mxu0
        %v5859 = vadd.f32 %v5570, %v5858
        %v5860 = vpop.f32.mrb[0].mxu0
        %v5861 = vpop.f32.mrb[0].mxu0
        %v5862 = vadd.f32 %v5573, %v5861
        %v5863 = vpop.f32.mrb[0].mxu0
        %5864 = vmatprep.mubr.bf16.mxu0 %v5186
        %5865 = vmatmul.mubr.bf16.gmra.mrb[0].mxu0 %v5185
        %v5866 = vpop.f32.mrb[0].mxu0
        %v5867 = vadd.f32 %v5578, %v5866
        %v5868 = vpop.f32.mrb[0].mxu0
        %v5869 = vpop.f32.mrb[0].mxu0
        %v5870 = vadd.f32 %v5581, %v5869
        %v5871 = vpop.f32.mrb[0].mxu0
        %5872 = vmatprep.mubr.bf16.mxu0 %v5190
        %5873 = vmatmul.mubr.bf16.gmra.mrb[0].mxu0 %v5189
        %v5874 = vpop.f32.mrb[0].mxu0
        %v5875 = vadd.f32 %v5586, %v5874
        %v5876 = vpop.f32.mrb[0].mxu0
        %v5877 = vpop.f32.mrb[0].mxu0
        %v5878 = vadd.f32 %v5589, %v5877
        %v5879 = vpop.f32.mrb[0].mxu0
        %5880 = vmatprep.mubr.bf16.mxu0 %v5194
        %5881 = vmatmul.mubr.bf16.gmra.mrb[0].mxu0 %v5193
        %v5882 = vpop.f32.mrb[0].mxu0
        %v5883 = vadd.f32 %v5594, %v5882
        %v5884 = vpop.f32.mrb[0].mxu0
        %v5885 = vpop.f32.mrb[0].mxu0
        %v5886 = vadd.f32 %v5597, %v5885
        %v5887 = vpop.f32.mrb[0].mxu0
        %5888 = vmatprep.mubr.bf16.mxu0 %v5198
        %5889 = vmatmul.mubr.bf16.gmra.mrb[0].mxu0 %v5197
        %v5890 = vpop.f32.mrb[0].mxu0
        %v5891 = vadd.f32 %v5602, %v5890
        %v5892 = vpop.f32.mrb[0].mxu0
        %v5893 = vpop.f32.mrb[0].mxu0
        %v5894 = vadd.f32 %v5605, %v5893
        %v5895 = vpop.f32.mrb[0].mxu0
        %5896 = vmatprep.mubr.bf16.mxu0 %v5202
        %5897 = vmatmul.mubr.bf16.gmra.mrb[0].mxu0 %v5201
        %v5898 = vpop.f32.mrb[0].mxu0
        %v5899 = vadd.f32 %v5610, %v5898
        %v5900 = vpop.f32.mrb[0].mxu0
        %v5901 = vpop.f32.mrb[0].mxu0
        %v5902 = vadd.f32 %v5613, %v5901
        %v5903 = vpop.f32.mrb[0].mxu0
        %5904 = vmatprep.mubr.bf16.mxu0 %v5206
        %5905 = vmatmul.mubr.bf16.gmra.mrb[0].mxu0 %v5205
        %v5906 = vpop.f32.mrb[0].mxu0
        %v5907 = vadd.f32 %v5618, %v5906
        %v5908 = vpop.f32.mrb[0].mxu0
        %v5909 = vpop.f32.mrb[0].mxu0
        %v5910 = vadd.f32 %v5621, %v5909
        %v5911 = vpop.f32.mrb[0].mxu0
        %5912 = vdwg.mxu0
        %v5913 = vmax.f32 %v5659, 0.0
        %v5914 = vmax.f32 %v5662, 0.0
        %v5915 = vmax.f32 %v5667, 0.0
        %v5916 = vmax.f32 %v5670, 0.0
        %v5917 = vmax.f32 %v5675, 0.0
        %v5918 = vmax.f32 %v5678, 0.0
        %v5919 = vmax.f32 %v5683, 0.0
        %v5920 = vmax.f32 %v5686, 0.0
        %v5921 = vmax.f32 %v5691, 0.0
        %v5922 = vmax.f32 %v5694, 0.0
        %v5923 = vmax.f32 %v5699, 0.0
        %v5924 = vmax.f32 %v5702, 0.0
        %v5925 = vmax.f32 %v5707, 0.0
        %v5926 = vmax.f32 %v5710, 0.0
        %v5927 = vmax.f32 %v5715, 0.0
        %v5928 = vmax.f32 %v5718, 0.0
        %v5929 = vmax.f32 %v5723, 0.0
        %v5930 = vmax.f32 %v5726, 0.0
        %v5931 = vmax.f32 %v5731, 0.0
        %v5932 = vmax.f32 %v5734, 0.0
        %v5933 = vmax.f32 %v5739, 0.0
        %v5934 = vmax.f32 %v5742, 0.0
        %v5935 = vmax.f32 %v5747, 0.0
        %v5936 = vmax.f32 %v5750, 0.0
        %v5937 = vmax.f32 %v5755, 0.0
        %v5938 = vmax.f32 %v5758, 0.0
        %v5939 = vmax.f32 %v5763, 0.0
        %v5940 = vmax.f32 %v5766, 0.0
        %v5941 = vmax.f32 %v5771, 0.0
        %v5942 = vmax.f32 %v5774, 0.0
        %v5943 = vmax.f32 %v5779, 0.0
        %v5944 = vmax.f32 %v5782, 0.0
        %v5945 = vmax.f32 %v5787, 0.0
        %v5946 = vmax.f32 %v5790, 0.0
        %v5947 = vmax.f32 %v5795, 0.0
        %v5948 = vmax.f32 %v5798, 0.0
        %v5949 = vmax.f32 %v5803, 0.0
        %v5950 = vmax.f32 %v5806, 0.0
        %v5951 = vmax.f32 %v5811, 0.0
        %v5952 = vmax.f32 %v5814, 0.0
        %v5953 = vmax.f32 %v5819, 0.0
        %v5954 = vmax.f32 %v5822, 0.0
        %v5955 = vmax.f32 %v5827, 0.0
        %v5956 = vmax.f32 %v5830, 0.0
        %v5957 = vmax.f32 %v5835, 0.0
        %v5958 = vmax.f32 %v5838, 0.0
        %v5959 = vmax.f32 %v5843, 0.0
        %v5960 = vmax.f32 %v5846, 0.0
        %v5961 = vmax.f32 %v5851, 0.0
        %v5962 = vmax.f32 %v5854, 0.0
        %v5963 = vmax.f32 %v5859, 0.0
        %v5964 = vmax.f32 %v5862, 0.0
        %v5965 = vmax.f32 %v5867, 0.0
        %v5966 = vmax.f32 %v5870, 0.0
        %v5967 = vmax.f32 %v5875, 0.0
        %v5968 = vmax.f32 %v5878, 0.0
        %v5969 = vmax.f32 %v5883, 0.0
        %v5970 = vmax.f32 %v5886, 0.0
        %v5971 = vmax.f32 %v5891, 0.0
        %v5972 = vmax.f32 %v5894, 0.0
        %v5973 = vmax.f32 %v5899, 0.0
        %v5974 = vmax.f32 %v5902, 0.0
        %v5975 = vmax.f32 %v5907, 0.0
        %v5976 = vmax.f32 %v5910, 0.0
        %v5977 = vpack.c.bf16 %v4216, %v4215
        %v5978 = vpack.c.bf16 %v4218, %v4217
        %v5979 = vpack.c.bf16 %v4220, %v4219
        %v5980 = vpack.c.bf16 %v4222, %v4221
        %v5981 = vpack.c.bf16 %v4224, %v4223
        %v5982 = vpack.c.bf16 %v4226, %v4225
        %v5983 = vpack.c.bf16 %v4228, %v4227
        %v5984 = vpack.c.bf16 %v4230, %v4229
        %v5985 = vpack.c.bf16 %v4232, %v4231
        %v5986 = vpack.c.bf16 %v4234, %v4233
        %v5987 = vpack.c.bf16 %v4236, %v4235
        %v5988 = vpack.c.bf16 %v4238, %v4237
        %v5989 = vpack.c.bf16 %v4240, %v4239
        %v5990 = vpack.c.bf16 %v4242, %v4241
        %v5991 = vpack.c.bf16 %v4244, %v4243
        %v5992 = vpack.c.bf16 %v4246, %v4245
        %v5993 = vpack.c.bf16 %v4248, %v4247
        %v5994 = vpack.c.bf16 %v4250, %v4249
        %v5995 = vpack.c.bf16 %v4252, %v4251
        %v5996 = vpack.c.bf16 %v4254, %v4253
        %v5997 = vpack.c.bf16 %v4256, %v4255
        %v5998 = vpack.c.bf16 %v4258, %v4257
        %v5999 = vpack.c.bf16 %v4260, %v4259
        %v6000 = vpack.c.bf16 %v4262, %v4261
        %v6001 = vpack.c.bf16 %v4264, %v4263
        %v6002 = vpack.c.bf16 %v4266, %v4265
        %v6003 = vpack.c.bf16 %v4268, %v4267
        %v6004 = vpack.c.bf16 %v4270, %v4269
        %v6005 = vpack.c.bf16 %v4272, %v4271
        %v6006 = vpack.c.bf16 %v4274, %v4273
        %v6007 = vpack.c.bf16 %v4276, %v4275
        %v6008 = vpack.c.bf16 %v4278, %v4277
        %6009 = vmatprep.subr.bf16.mxu0 0
        %6010 = vmatpush1.bf16.msra.mxu0 %v5977
        %6011 = vmatprep.subr.bf16.mxu0 0
        %6012 = vmatpush1.bf16.msra.mxu0 %v5978
        %6013 = vmatprep.subr.bf16.mxu0 0
        %6014 = vmatpush1.bf16.msra.mxu0 %v5979
        %6015 = vmatprep.subr.bf16.mxu0 0
        %6016 = vmatpush1.bf16.msra.mxu0 %v5980
        %6017 = vmatprep.subr.bf16.mxu0 0
        %6018 = vmatpush1.bf16.msra.mxu0 %v5981
        %6019 = vmatprep.subr.bf16.mxu0 0
        %6020 = vmatpush1.bf16.msra.mxu0 %v5982
        %6021 = vmatprep.subr.bf16.mxu0 0
        %6022 = vmatpush1.bf16.msra.mxu0 %v5983
        %6023 = vmatprep.subr.bf16.mxu0 0
        %6024 = vmatpush1.bf16.msra.mxu0 %v5984
        %6025 = vmatprep.subr.bf16.mxu0 0
        %6026 = vmatpush1.bf16.msra.mxu0 %v5985
        %6027 = vmatprep.subr.bf16.mxu0 0
        %6028 = vmatpush1.bf16.msra.mxu0 %v5986
        %6029 = vmatprep.subr.bf16.mxu0 0
        %6030 = vmatpush1.bf16.msra.mxu0 %v5987
        %6031 = vmatprep.subr.bf16.mxu0 0
        %6032 = vmatpush1.bf16.msra.mxu0 %v5988
        %6033 = vmatprep.subr.bf16.mxu0 0
        %6034 = vmatpush1.bf16.msra.mxu0 %v5989
        %6035 = vmatprep.subr.bf16.mxu0 0
        %6036 = vmatpush1.bf16.msra.mxu0 %v5990
        %6037 = vmatprep.subr.bf16.mxu0 0
        %6038 = vmatpush1.bf16.msra.mxu0 %v5991
        %6039 = vmatprep.subr.bf16.mxu0 0
        %6040 = vmatpush1.bf16.msra.mxu0 %v5992
        %6041 = vmatprep.mubr.bf16.mxu0 %v5080
        %6042 = vmatmul.mubr.bf16.gmra.mrb[0].mxu0 %v5079
        %v6043 = vpop.f32.mrb[0].mxu0
        %v6044 = vadd.f32 %v4441, %v6043
        %v6045 = vpop.f32.mrb[0].mxu0
        %v6046 = vpop.f32.mrb[0].mxu0
        %v6047 = vadd.f32 %v4445, %v6046
        %v6048 = vpop.f32.mrb[0].mxu0
        %6049 = vmatprep.mubr.bf16.mxu0 %v5084
        %6050 = vmatmul.mubr.bf16.gmra.mrb[0].mxu0 %v5083
        %v6051 = vpop.f32.mrb[0].mxu0
        %v6052 = vadd.f32 %v4449, %v6051
        %v6053 = vpop.f32.mrb[0].mxu0
        %v6054 = vpop.f32.mrb[0].mxu0
        %v6055 = vadd.f32 %v4453, %v6054
        %v6056 = vpop.f32.mrb[0].mxu0
        %6057 = vmatprep.mubr.bf16.mxu0 %v5088
        %6058 = vmatmul.mubr.bf16.gmra.mrb[0].mxu0 %v5087
        %v6059 = vpop.f32.mrb[0].mxu0
        %v6060 = vadd.f32 %v4457, %v6059
        %v6061 = vpop.f32.mrb[0].mxu0
        %v6062 = vpop.f32.mrb[0].mxu0
        %v6063 = vadd.f32 %v4461, %v6062
        %v6064 = vpop.f32.mrb[0].mxu0
        %6065 = vmatprep.mubr.bf16.mxu0 %v5092
        %6066 = vmatmul.mubr.bf16.gmra.mrb[0].mxu0 %v5091
        %v6067 = vpop.f32.mrb[0].mxu0
        %v6068 = vadd.f32 %v4465, %v6067
        %v6069 = vpop.f32.mrb[0].mxu0
        %v6070 = vpop.f32.mrb[0].mxu0
        %v6071 = vadd.f32 %v4469, %v6070
        %v6072 = vpop.f32.mrb[0].mxu0
        %6073 = vmatprep.mubr.bf16.mxu0 %v5096
        %6074 = vmatmul.mubr.bf16.gmra.mrb[0].mxu0 %v5095
        %v6075 = vpop.f32.mrb[0].mxu0
        %v6076 = vadd.f32 %v4473, %v6075
        %v6077 = vpop.f32.mrb[0].mxu0
        %v6078 = vpop.f32.mrb[0].mxu0
        %v6079 = vadd.f32 %v4477, %v6078
        %v6080 = vpop.f32.mrb[0].mxu0
        %6081 = vmatprep.mubr.bf16.mxu0 %v5100
        %6082 = vmatmul.mubr.bf16.gmra.mrb[0].mxu0 %v5099
        %v6083 = vpop.f32.mrb[0].mxu0
        %v6084 = vadd.f32 %v4481, %v6083
        %v6085 = vpop.f32.mrb[0].mxu0
        %v6086 = vpop.f32.mrb[0].mxu0
        %v6087 = vadd.f32 %v4485, %v6086
        %v6088 = vpop.f32.mrb[0].mxu0
        %6089 = vmatprep.mubr.bf16.mxu0 %v5104
        %6090 = vmatmul.mubr.bf16.gmra.mrb[0].mxu0 %v5103
        %v6091 = vpop.f32.mrb[0].mxu0
        %v6092 = vadd.f32 %v4489, %v6091
        %v6093 = vpop.f32.mrb[0].mxu0
        %v6094 = vpop.f32.mrb[0].mxu0
        %v6095 = vadd.f32 %v4493, %v6094
        %v6096 = vpop.f32.mrb[0].mxu0
        %6097 = vmatprep.mubr.bf16.mxu0 %v5108
        %6098 = vmatmul.mubr.bf16.gmra.mrb[0].mxu0 %v5107
        %v6099 = vpop.f32.mrb[0].mxu0
        %v6100 = vadd.f32 %v4497, %v6099
        %v6101 = vpop.f32.mrb[0].mxu0
        %v6102 = vpop.f32.mrb[0].mxu0
        %v6103 = vadd.f32 %v4501, %v6102
        %v6104 = vpop.f32.mrb[0].mxu0
        %6105 = vmatprep.mubr.bf16.mxu0 %v5112
        %6106 = vmatmul.mubr.bf16.gmra.mrb[0].mxu0 %v5111
        %v6107 = vpop.f32.mrb[0].mxu0
        %v6108 = vadd.f32 %v4505, %v6107
        %v6109 = vpop.f32.mrb[0].mxu0
        %v6110 = vpop.f32.mrb[0].mxu0
        %v6111 = vadd.f32 %v4509, %v6110
        %v6112 = vpop.f32.mrb[0].mxu0
        %6113 = vmatprep.mubr.bf16.mxu0 %v5116
        %6114 = vmatmul.mubr.bf16.gmra.mrb[0].mxu0 %v5115
        %v6115 = vpop.f32.mrb[0].mxu0
        %v6116 = vadd.f32 %v4513, %v6115
        %v6117 = vpop.f32.mrb[0].mxu0
        %v6118 = vpop.f32.mrb[0].mxu0
        %v6119 = vadd.f32 %v4517, %v6118
        %v6120 = vpop.f32.mrb[0].mxu0
        %6121 = vmatprep.mubr.bf16.mxu0 %v5120
        %6122 = vmatmul.mubr.bf16.gmra.mrb[0].mxu0 %v5119
        %v6123 = vpop.f32.mrb[0].mxu0
        %v6124 = vadd.f32 %v4521, %v6123
        %v6125 = vpop.f32.mrb[0].mxu0
        %v6126 = vpop.f32.mrb[0].mxu0
        %v6127 = vadd.f32 %v4525, %v6126
        %v6128 = vpop.f32.mrb[0].mxu0
        %6129 = vmatprep.mubr.bf16.mxu0 %v5124
        %6130 = vmatmul.mubr.bf16.gmra.mrb[0].mxu0 %v5123
        %v6131 = vpop.f32.mrb[0].mxu0
        %v6132 = vadd.f32 %v4529, %v6131
        %v6133 = vpop.f32.mrb[0].mxu0
        %v6134 = vpop.f32.mrb[0].mxu0
        %v6135 = vadd.f32 %v4533, %v6134
        %v6136 = vpop.f32.mrb[0].mxu0
        %6137 = vmatprep.mubr.bf16.mxu0 %v5128
        %6138 = vmatmul.mubr.bf16.gmra.mrb[0].mxu0 %v5127
        %v6139 = vpop.f32.mrb[0].mxu0
        %v6140 = vadd.f32 %v4537, %v6139
        %v6141 = vpop.f32.mrb[0].mxu0
        %v6142 = vpop.f32.mrb[0].mxu0
        %v6143 = vadd.f32 %v4541, %v6142
        %v6144 = vpop.f32.mrb[0].mxu0
        %6145 = vmatprep.mubr.bf16.mxu0 %v5132
        %6146 = vmatmul.mubr.bf16.gmra.mrb[0].mxu0 %v5131
        %v6147 = vpop.f32.mrb[0].mxu0
        %v6148 = vadd.f32 %v4545, %v6147
        %v6149 = vpop.f32.mrb[0].mxu0
        %v6150 = vpop.f32.mrb[0].mxu0
        %v6151 = vadd.f32 %v4549, %v6150
        %v6152 = vpop.f32.mrb[0].mxu0
        %6153 = vmatprep.mubr.bf16.mxu0 %v5136
        %6154 = vmatmul.mubr.bf16.gmra.mrb[0].mxu0 %v5135
        %v6155 = vpop.f32.mrb[0].mxu0
        %v6156 = vadd.f32 %v4553, %v6155
        %v6157 = vpop.f32.mrb[0].mxu0
        %v6158 = vpop.f32.mrb[0].mxu0
        %v6159 = vadd.f32 %v4557, %v6158
        %v6160 = vpop.f32.mrb[0].mxu0
        %6161 = vmatprep.mubr.bf16.mxu0 %v5140
        %6162 = vmatmul.mubr.bf16.gmra.mrb[0].mxu0 %v5139
        %v6163 = vpop.f32.mrb[0].mxu0
        %v6164 = vadd.f32 %v4561, %v6163
        %v6165 = vpop.f32.mrb[0].mxu0
        %v6166 = vpop.f32.mrb[0].mxu0
        %v6167 = vadd.f32 %v4565, %v6166
        %v6168 = vpop.f32.mrb[0].mxu0
        %6169 = vmatprep.mubr.bf16.mxu0 %v5144
        %6170 = vmatmul.mubr.bf16.gmra.mrb[0].mxu0 %v5143
        %v6171 = vpop.f32.mrb[0].mxu0
        %v6172 = vadd.f32 %v4569, %v6171
        %v6173 = vpop.f32.mrb[0].mxu0
        %v6174 = vpop.f32.mrb[0].mxu0
        %v6175 = vadd.f32 %v4573, %v6174
        %v6176 = vpop.f32.mrb[0].mxu0
        %6177 = vmatprep.mubr.bf16.mxu0 %v5148
        %6178 = vmatmul.mubr.bf16.gmra.mrb[0].mxu0 %v5147
        %v6179 = vpop.f32.mrb[0].mxu0
        %v6180 = vadd.f32 %v4577, %v6179
        %v6181 = vpop.f32.mrb[0].mxu0
        %v6182 = vpop.f32.mrb[0].mxu0
        %v6183 = vadd.f32 %v4581, %v6182
        %v6184 = vpop.f32.mrb[0].mxu0
        %6185 = vmatprep.mubr.bf16.mxu0 %v5152
        %6186 = vmatmul.mubr.bf16.gmra.mrb[0].mxu0 %v5151
        %v6187 = vpop.f32.mrb[0].mxu0
        %v6188 = vadd.f32 %v4585, %v6187
        %v6189 = vpop.f32.mrb[0].mxu0
        %v6190 = vpop.f32.mrb[0].mxu0
        %v6191 = vadd.f32 %v4589, %v6190
        %v6192 = vpop.f32.mrb[0].mxu0
        %6193 = vmatprep.mubr.bf16.mxu0 %v5156
        %6194 = vmatmul.mubr.bf16.gmra.mrb[0].mxu0 %v5155
        %v6195 = vpop.f32.mrb[0].mxu0
        %v6196 = vadd.f32 %v4593, %v6195
        %v6197 = vpop.f32.mrb[0].mxu0
        %v6198 = vpop.f32.mrb[0].mxu0
        %v6199 = vadd.f32 %v4597, %v6198
        %v6200 = vpop.f32.mrb[0].mxu0
        %6201 = vmatprep.mubr.bf16.mxu0 %v5160
        %6202 = vmatmul.mubr.bf16.gmra.mrb[0].mxu0 %v5159
        %v6203 = vpop.f32.mrb[0].mxu0
        %v6204 = vadd.f32 %v4601, %v6203
        %v6205 = vpop.f32.mrb[0].mxu0
        %v6206 = vpop.f32.mrb[0].mxu0
        %v6207 = vadd.f32 %v4605, %v6206
        %v6208 = vpop.f32.mrb[0].mxu0
        %6209 = vmatprep.mubr.bf16.mxu0 %v5164
        %6210 = vmatmul.mubr.bf16.gmra.mrb[0].mxu0 %v5163
        %v6211 = vpop.f32.mrb[0].mxu0
        %v6212 = vadd.f32 %v4609, %v6211
        %v6213 = vpop.f32.mrb[0].mxu0
        %v6214 = vpop.f32.mrb[0].mxu0
        %v6215 = vadd.f32 %v4613, %v6214
        %v6216 = vpop.f32.mrb[0].mxu0
        %6217 = vmatprep.mubr.bf16.mxu0 %v5168
        %6218 = vmatmul.mubr.bf16.gmra.mrb[0].mxu0 %v5167
        %v6219 = vpop.f32.mrb[0].mxu0
        %v6220 = vadd.f32 %v4617, %v6219
        %v6221 = vpop.f32.mrb[0].mxu0
        %v6222 = vpop.f32.mrb[0].mxu0
        %v6223 = vadd.f32 %v4621, %v6222
        %v6224 = vpop.f32.mrb[0].mxu0
        %6225 = vmatprep.mubr.bf16.mxu0 %v5172
        %6226 = vmatmul.mubr.bf16.gmra.mrb[0].mxu0 %v5171
        %v6227 = vpop.f32.mrb[0].mxu0
        %v6228 = vadd.f32 %v4625, %v6227
        %v6229 = vpop.f32.mrb[0].mxu0
        %v6230 = vpop.f32.mrb[0].mxu0
        %v6231 = vadd.f32 %v4629, %v6230
        %v6232 = vpop.f32.mrb[0].mxu0
        %6233 = vmatprep.mubr.bf16.mxu0 %v5176
        %6234 = vmatmul.mubr.bf16.gmra.mrb[0].mxu0 %v5175
        %v6235 = vpop.f32.mrb[0].mxu0
        %v6236 = vadd.f32 %v4633, %v6235
        %v6237 = vpop.f32.mrb[0].mxu0
        %v6238 = vpop.f32.mrb[0].mxu0
        %v6239 = vadd.f32 %v4637, %v6238
        %v6240 = vpop.f32.mrb[0].mxu0
        %6241 = vmatprep.mubr.bf16.mxu0 %v5180
        %6242 = vmatmul.mubr.bf16.gmra.mrb[0].mxu0 %v5179
        %v6243 = vpop.f32.mrb[0].mxu0
        %v6244 = vadd.f32 %v4641, %v6243
        %v6245 = vpop.f32.mrb[0].mxu0
        %v6246 = vpop.f32.mrb[0].mxu0
        %v6247 = vadd.f32 %v4645, %v6246
        %v6248 = vpop.f32.mrb[0].mxu0
        %6249 = vmatprep.mubr.bf16.mxu0 %v5184
        %6250 = vmatmul.mubr.bf16.gmra.mrb[0].mxu0 %v5183
        %v6251 = vpop.f32.mrb[0].mxu0
        %v6252 = vadd.f32 %v4649, %v6251
        %v6253 = vpop.f32.mrb[0].mxu0
        %v6254 = vpop.f32.mrb[0].mxu0
        %v6255 = vadd.f32 %v4653, %v6254
        %v6256 = vpop.f32.mrb[0].mxu0
        %6257 = vmatprep.mubr.bf16.mxu0 %v5188
        %6258 = vmatmul.mubr.bf16.gmra.mrb[0].mxu0 %v5187
        %v6259 = vpop.f32.mrb[0].mxu0
        %v6260 = vadd.f32 %v4657, %v6259
        %v6261 = vpop.f32.mrb[0].mxu0
        %v6262 = vpop.f32.mrb[0].mxu0
        %v6263 = vadd.f32 %v4661, %v6262
        %v6264 = vpop.f32.mrb[0].mxu0
        %6265 = vmatprep.mubr.bf16.mxu0 %v5192
        %6266 = vmatmul.mubr.bf16.gmra.mrb[0].mxu0 %v5191
        %v6267 = vpop.f32.mrb[0].mxu0
        %v6268 = vadd.f32 %v4665, %v6267
        %v6269 = vpop.f32.mrb[0].mxu0
        %v6270 = vpop.f32.mrb[0].mxu0
        %v6271 = vadd.f32 %v4669, %v6270
        %v6272 = vpop.f32.mrb[0].mxu0
        %6273 = vmatprep.mubr.bf16.mxu0 %v5196
        %6274 = vmatmul.mubr.bf16.gmra.mrb[0].mxu0 %v5195
        %v6275 = vpop.f32.mrb[0].mxu0
        %v6276 = vadd.f32 %v4673, %v6275
        %v6277 = vpop.f32.mrb[0].mxu0
        %v6278 = vpop.f32.mrb[0].mxu0
        %v6279 = vadd.f32 %v4677, %v6278
        %v6280 = vpop.f32.mrb[0].mxu0
        %6281 = vmatprep.mubr.bf16.mxu0 %v5200
        %6282 = vmatmul.mubr.bf16.gmra.mrb[0].mxu0 %v5199
        %v6283 = vpop.f32.mrb[0].mxu0
        %v6284 = vadd.f32 %v4681, %v6283
        %v6285 = vpop.f32.mrb[0].mxu0
        %v6286 = vpop.f32.mrb[0].mxu0
        %v6287 = vadd.f32 %v4685, %v6286
        %v6288 = vpop.f32.mrb[0].mxu0
        %6289 = vmatprep.mubr.bf16.mxu0 %v5204
        %6290 = vmatmul.mubr.bf16.gmra.mrb[0].mxu0 %v5203
        %v6291 = vpop.f32.mrb[0].mxu0
        %v6292 = vadd.f32 %v4689, %v6291
        %v6293 = vpop.f32.mrb[0].mxu0
        %v6294 = vpop.f32.mrb[0].mxu0
        %v6295 = vadd.f32 %v4693, %v6294
        %v6296 = vpop.f32.mrb[0].mxu0
        %6297 = vdwg.mxu0
        %6298 = vmatprep.subr.bf16.mxu0 0
        %6299 = vmatpush1.bf16.msra.mxu0 %v5993
        %6300 = vmatprep.subr.bf16.mxu0 0
        %6301 = vmatpush1.bf16.msra.mxu0 %v5994
        %6302 = vmatprep.subr.bf16.mxu0 0
        %6303 = vmatpush1.bf16.msra.mxu0 %v5995
        %6304 = vmatprep.subr.bf16.mxu0 0
        %6305 = vmatpush1.bf16.msra.mxu0 %v5996
        %6306 = vmatprep.subr.bf16.mxu0 0
        %6307 = vmatpush1.bf16.msra.mxu0 %v5997
        %6308 = vmatprep.subr.bf16.mxu0 0
        %6309 = vmatpush1.bf16.msra.mxu0 %v5998
        %6310 = vmatprep.subr.bf16.mxu0 0
        %6311 = vmatpush1.bf16.msra.mxu0 %v5999
        %6312 = vmatprep.subr.bf16.mxu0 0
        %6313 = vmatpush1.bf16.msra.mxu0 %v6000
        %6314 = vmatprep.subr.bf16.mxu0 0
        %6315 = vmatpush1.bf16.msra.mxu0 %v6001
        %6316 = vmatprep.subr.bf16.mxu0 0
        %6317 = vmatpush1.bf16.msra.mxu0 %v6002
        %6318 = vmatprep.subr.bf16.mxu0 0
        %6319 = vmatpush1.bf16.msra.mxu0 %v6003
        %6320 = vmatprep.subr.bf16.mxu0 0
        %6321 = vmatpush1.bf16.msra.mxu0 %v6004
        %6322 = vmatprep.subr.bf16.mxu0 0
        %6323 = vmatpush1.bf16.msra.mxu0 %v6005
        %6324 = vmatprep.subr.bf16.mxu0 0
        %6325 = vmatpush1.bf16.msra.mxu0 %v6006
        %6326 = vmatprep.subr.bf16.mxu0 0
        %6327 = vmatpush1.bf16.msra.mxu0 %v6007
        %6328 = vmatprep.subr.bf16.mxu0 0
        %6329 = vmatpush1.bf16.msra.mxu0 %v6008
        %6330 = vmatprep.mubr.bf16.mxu0 %v5082
        %6331 = vmatmul.mubr.bf16.gmra.mrb[0].mxu0 %v5081
        %v6332 = vpop.f32.mrb[0].mxu0
        %v6333 = vadd.f32 %v6044, %v6332
        %v6334 = vpop.f32.mrb[0].mxu0
        %v6335 = vpop.f32.mrb[0].mxu0
        %v6336 = vadd.f32 %v6047, %v6335
        %v6337 = vpop.f32.mrb[0].mxu0
        %6338 = vmatprep.mubr.bf16.mxu0 %v5086
        %6339 = vmatmul.mubr.bf16.gmra.mrb[0].mxu0 %v5085
        %v6340 = vpop.f32.mrb[0].mxu0
        %v6341 = vadd.f32 %v6052, %v6340
        %v6342 = vpop.f32.mrb[0].mxu0
        %v6343 = vpop.f32.mrb[0].mxu0
        %v6344 = vadd.f32 %v6055, %v6343
        %v6345 = vpop.f32.mrb[0].mxu0
        %6346 = vmatprep.mubr.bf16.mxu0 %v5090
        %6347 = vmatmul.mubr.bf16.gmra.mrb[0].mxu0 %v5089
        %v6348 = vpop.f32.mrb[0].mxu0
        %v6349 = vadd.f32 %v6060, %v6348
        %v6350 = vpop.f32.mrb[0].mxu0
        %v6351 = vpop.f32.mrb[0].mxu0
        %v6352 = vadd.f32 %v6063, %v6351
        %v6353 = vpop.f32.mrb[0].mxu0
        %6354 = vmatprep.mubr.bf16.mxu0 %v5094
        %6355 = vmatmul.mubr.bf16.gmra.mrb[0].mxu0 %v5093
        %v6356 = vpop.f32.mrb[0].mxu0
        %v6357 = vadd.f32 %v6068, %v6356
        %v6358 = vpop.f32.mrb[0].mxu0
        %v6359 = vpop.f32.mrb[0].mxu0
        %v6360 = vadd.f32 %v6071, %v6359
        %v6361 = vpop.f32.mrb[0].mxu0
        %6362 = vmatprep.mubr.bf16.mxu0 %v5098
        %6363 = vmatmul.mubr.bf16.gmra.mrb[0].mxu0 %v5097
        %v6364 = vpop.f32.mrb[0].mxu0
        %v6365 = vadd.f32 %v6076, %v6364
        %v6366 = vpop.f32.mrb[0].mxu0
        %v6367 = vpop.f32.mrb[0].mxu0
        %v6368 = vadd.f32 %v6079, %v6367
        %v6369 = vpop.f32.mrb[0].mxu0
        %6370 = vmatprep.mubr.bf16.mxu0 %v5102
        %6371 = vmatmul.mubr.bf16.gmra.mrb[0].mxu0 %v5101
        %v6372 = vpop.f32.mrb[0].mxu0
        %v6373 = vadd.f32 %v6084, %v6372
        %v6374 = vpop.f32.mrb[0].mxu0
        %v6375 = vpop.f32.mrb[0].mxu0
        %v6376 = vadd.f32 %v6087, %v6375
        %v6377 = vpop.f32.mrb[0].mxu0
        %6378 = vmatprep.mubr.bf16.mxu0 %v5106
        %6379 = vmatmul.mubr.bf16.gmra.mrb[0].mxu0 %v5105
        %v6380 = vpop.f32.mrb[0].mxu0
        %v6381 = vadd.f32 %v6092, %v6380
        %v6382 = vpop.f32.mrb[0].mxu0
        %v6383 = vpop.f32.mrb[0].mxu0
        %v6384 = vadd.f32 %v6095, %v6383
        %v6385 = vpop.f32.mrb[0].mxu0
        %6386 = vmatprep.mubr.bf16.mxu0 %v5110
        %6387 = vmatmul.mubr.bf16.gmra.mrb[0].mxu0 %v5109
        %v6388 = vpop.f32.mrb[0].mxu0
        %v6389 = vadd.f32 %v6100, %v6388
        %v6390 = vpop.f32.mrb[0].mxu0
        %v6391 = vpop.f32.mrb[0].mxu0
        %v6392 = vadd.f32 %v6103, %v6391
        %v6393 = vpop.f32.mrb[0].mxu0
        %6394 = vmatprep.mubr.bf16.mxu0 %v5114
        %6395 = vmatmul.mubr.bf16.gmra.mrb[0].mxu0 %v5113
        %v6396 = vpop.f32.mrb[0].mxu0
        %v6397 = vadd.f32 %v6108, %v6396
        %v6398 = vpop.f32.mrb[0].mxu0
        %v6399 = vpop.f32.mrb[0].mxu0
        %v6400 = vadd.f32 %v6111, %v6399
        %v6401 = vpop.f32.mrb[0].mxu0
        %6402 = vmatprep.mubr.bf16.mxu0 %v5118
        %6403 = vmatmul.mubr.bf16.gmra.mrb[0].mxu0 %v5117
        %v6404 = vpop.f32.mrb[0].mxu0
        %v6405 = vadd.f32 %v6116, %v6404
        %v6406 = vpop.f32.mrb[0].mxu0
        %v6407 = vpop.f32.mrb[0].mxu0
        %v6408 = vadd.f32 %v6119, %v6407
        %v6409 = vpop.f32.mrb[0].mxu0
        %6410 = vmatprep.mubr.bf16.mxu0 %v5122
        %6411 = vmatmul.mubr.bf16.gmra.mrb[0].mxu0 %v5121
        %v6412 = vpop.f32.mrb[0].mxu0
        %v6413 = vadd.f32 %v6124, %v6412
        %v6414 = vpop.f32.mrb[0].mxu0
        %v6415 = vpop.f32.mrb[0].mxu0
        %v6416 = vadd.f32 %v6127, %v6415
        %v6417 = vpop.f32.mrb[0].mxu0
        %6418 = vmatprep.mubr.bf16.mxu0 %v5126
        %6419 = vmatmul.mubr.bf16.gmra.mrb[0].mxu0 %v5125
        %v6420 = vpop.f32.mrb[0].mxu0
        %v6421 = vadd.f32 %v6132, %v6420
        %v6422 = vpop.f32.mrb[0].mxu0
        %v6423 = vpop.f32.mrb[0].mxu0
        %v6424 = vadd.f32 %v6135, %v6423
        %v6425 = vpop.f32.mrb[0].mxu0
        %6426 = vmatprep.mubr.bf16.mxu0 %v5130
        %6427 = vmatmul.mubr.bf16.gmra.mrb[0].mxu0 %v5129
        %v6428 = vpop.f32.mrb[0].mxu0
        %v6429 = vadd.f32 %v6140, %v6428
        %v6430 = vpop.f32.mrb[0].mxu0
        %v6431 = vpop.f32.mrb[0].mxu0
        %v6432 = vadd.f32 %v6143, %v6431
        %v6433 = vpop.f32.mrb[0].mxu0
        %6434 = vmatprep.mubr.bf16.mxu0 %v5134
        %6435 = vmatmul.mubr.bf16.gmra.mrb[0].mxu0 %v5133
        %v6436 = vpop.f32.mrb[0].mxu0
        %v6437 = vadd.f32 %v6148, %v6436
        %v6438 = vpop.f32.mrb[0].mxu0
        %v6439 = vpop.f32.mrb[0].mxu0
        %v6440 = vadd.f32 %v6151, %v6439
        %v6441 = vpop.f32.mrb[0].mxu0
        %6442 = vmatprep.mubr.bf16.mxu0 %v5138
        %6443 = vmatmul.mubr.bf16.gmra.mrb[0].mxu0 %v5137
        %v6444 = vpop.f32.mrb[0].mxu0
        %v6445 = vadd.f32 %v6156, %v6444
        %v6446 = vpop.f32.mrb[0].mxu0
        %v6447 = vpop.f32.mrb[0].mxu0
        %v6448 = vadd.f32 %v6159, %v6447
        %v6449 = vpop.f32.mrb[0].mxu0
        %6450 = vmatprep.mubr.bf16.mxu0 %v5142
        %6451 = vmatmul.mubr.bf16.gmra.mrb[0].mxu0 %v5141
        %v6452 = vpop.f32.mrb[0].mxu0
        %v6453 = vadd.f32 %v6164, %v6452
        %v6454 = vpop.f32.mrb[0].mxu0
        %v6455 = vpop.f32.mrb[0].mxu0
        %v6456 = vadd.f32 %v6167, %v6455
        %v6457 = vpop.f32.mrb[0].mxu0
        %6458 = vmatprep.mubr.bf16.mxu0 %v5146
        %6459 = vmatmul.mubr.bf16.gmra.mrb[0].mxu0 %v5145
        %v6460 = vpop.f32.mrb[0].mxu0
        %v6461 = vadd.f32 %v6172, %v6460
        %v6462 = vpop.f32.mrb[0].mxu0
        %v6463 = vpop.f32.mrb[0].mxu0
        %v6464 = vadd.f32 %v6175, %v6463
        %v6465 = vpop.f32.mrb[0].mxu0
        %6466 = vmatprep.mubr.bf16.mxu0 %v5150
        %6467 = vmatmul.mubr.bf16.gmra.mrb[0].mxu0 %v5149
        %v6468 = vpop.f32.mrb[0].mxu0
        %v6469 = vadd.f32 %v6180, %v6468
        %v6470 = vpop.f32.mrb[0].mxu0
        %v6471 = vpop.f32.mrb[0].mxu0
        %v6472 = vadd.f32 %v6183, %v6471
        %v6473 = vpop.f32.mrb[0].mxu0
        %6474 = vmatprep.mubr.bf16.mxu0 %v5154
        %6475 = vmatmul.mubr.bf16.gmra.mrb[0].mxu0 %v5153
        %v6476 = vpop.f32.mrb[0].mxu0
        %v6477 = vadd.f32 %v6188, %v6476
        %v6478 = vpop.f32.mrb[0].mxu0
        %v6479 = vpop.f32.mrb[0].mxu0
        %v6480 = vadd.f32 %v6191, %v6479
        %v6481 = vpop.f32.mrb[0].mxu0
        %6482 = vmatprep.mubr.bf16.mxu0 %v5158
        %6483 = vmatmul.mubr.bf16.gmra.mrb[0].mxu0 %v5157
        %v6484 = vpop.f32.mrb[0].mxu0
        %v6485 = vadd.f32 %v6196, %v6484
        %v6486 = vpop.f32.mrb[0].mxu0
        %v6487 = vpop.f32.mrb[0].mxu0
        %v6488 = vadd.f32 %v6199, %v6487
        %v6489 = vpop.f32.mrb[0].mxu0
        %6490 = vmatprep.mubr.bf16.mxu0 %v5162
        %6491 = vmatmul.mubr.bf16.gmra.mrb[0].mxu0 %v5161
        %v6492 = vpop.f32.mrb[0].mxu0
        %v6493 = vadd.f32 %v6204, %v6492
        %v6494 = vpop.f32.mrb[0].mxu0
        %v6495 = vpop.f32.mrb[0].mxu0
        %v6496 = vadd.f32 %v6207, %v6495
        %v6497 = vpop.f32.mrb[0].mxu0
        %6498 = vmatprep.mubr.bf16.mxu0 %v5166
        %6499 = vmatmul.mubr.bf16.gmra.mrb[0].mxu0 %v5165
        %v6500 = vpop.f32.mrb[0].mxu0
        %v6501 = vadd.f32 %v6212, %v6500
        %v6502 = vpop.f32.mrb[0].mxu0
        %v6503 = vpop.f32.mrb[0].mxu0
        %v6504 = vadd.f32 %v6215, %v6503
        %v6505 = vpop.f32.mrb[0].mxu0
        %6506 = vmatprep.mubr.bf16.mxu0 %v5170
        %6507 = vmatmul.mubr.bf16.gmra.mrb[0].mxu0 %v5169
        %v6508 = vpop.f32.mrb[0].mxu0
        %v6509 = vadd.f32 %v6220, %v6508
        %v6510 = vpop.f32.mrb[0].mxu0
        %v6511 = vpop.f32.mrb[0].mxu0
        %v6512 = vadd.f32 %v6223, %v6511
        %v6513 = vpop.f32.mrb[0].mxu0
        %6514 = vmatprep.mubr.bf16.mxu0 %v5174
        %6515 = vmatmul.mubr.bf16.gmra.mrb[0].mxu0 %v5173
        %v6516 = vpop.f32.mrb[0].mxu0
        %v6517 = vadd.f32 %v6228, %v6516
        %v6518 = vpop.f32.mrb[0].mxu0
        %v6519 = vpop.f32.mrb[0].mxu0
        %v6520 = vadd.f32 %v6231, %v6519
        %v6521 = vpop.f32.mrb[0].mxu0
        %6522 = vmatprep.mubr.bf16.mxu0 %v5178
        %6523 = vmatmul.mubr.bf16.gmra.mrb[0].mxu0 %v5177
        %v6524 = vpop.f32.mrb[0].mxu0
        %v6525 = vadd.f32 %v6236, %v6524
        %v6526 = vpop.f32.mrb[0].mxu0
        %v6527 = vpop.f32.mrb[0].mxu0
        %v6528 = vadd.f32 %v6239, %v6527
        %v6529 = vpop.f32.mrb[0].mxu0
        %6530 = vmatprep.mubr.bf16.mxu0 %v5182
        %6531 = vmatmul.mubr.bf16.gmra.mrb[0].mxu0 %v5181
        %v6532 = vpop.f32.mrb[0].mxu0
        %v6533 = vadd.f32 %v6244, %v6532
        %v6534 = vpop.f32.mrb[0].mxu0
        %v6535 = vpop.f32.mrb[0].mxu0
        %v6536 = vadd.f32 %v6247, %v6535
        %v6537 = vpop.f32.mrb[0].mxu0
        %6538 = vmatprep.mubr.bf16.mxu0 %v5186
        %6539 = vmatmul.mubr.bf16.gmra.mrb[0].mxu0 %v5185
        %v6540 = vpop.f32.mrb[0].mxu0
        %v6541 = vadd.f32 %v6252, %v6540
        %v6542 = vpop.f32.mrb[0].mxu0
        %v6543 = vpop.f32.mrb[0].mxu0
        %v6544 = vadd.f32 %v6255, %v6543
        %v6545 = vpop.f32.mrb[0].mxu0
        %6546 = vmatprep.mubr.bf16.mxu0 %v5190
        %6547 = vmatmul.mubr.bf16.gmra.mrb[0].mxu0 %v5189
        %v6548 = vpop.f32.mrb[0].mxu0
        %v6549 = vadd.f32 %v6260, %v6548
        %v6550 = vpop.f32.mrb[0].mxu0
        %v6551 = vpop.f32.mrb[0].mxu0
        %v6552 = vadd.f32 %v6263, %v6551
        %v6553 = vpop.f32.mrb[0].mxu0
        %6554 = vmatprep.mubr.bf16.mxu0 %v5194
        %6555 = vmatmul.mubr.bf16.gmra.mrb[0].mxu0 %v5193
        %v6556 = vpop.f32.mrb[0].mxu0
        %v6557 = vadd.f32 %v6268, %v6556
        %v6558 = vpop.f32.mrb[0].mxu0
        %v6559 = vpop.f32.mrb[0].mxu0
        %v6560 = vadd.f32 %v6271, %v6559
        %v6561 = vpop.f32.mrb[0].mxu0
        %6562 = vmatprep.mubr.bf16.mxu0 %v5198
        %6563 = vmatmul.mubr.bf16.gmra.mrb[0].mxu0 %v5197
        %v6564 = vpop.f32.mrb[0].mxu0
        %v6565 = vadd.f32 %v6276, %v6564
        %v6566 = vpop.f32.mrb[0].mxu0
        %v6567 = vpop.f32.mrb[0].mxu0
        %v6568 = vadd.f32 %v6279, %v6567
        %v6569 = vpop.f32.mrb[0].mxu0
        %6570 = vmatprep.mubr.bf16.mxu0 %v5202
        %6571 = vmatmul.mubr.bf16.gmra.mrb[0].mxu0 %v5201
        %v6572 = vpop.f32.mrb[0].mxu0
        %v6573 = vadd.f32 %v6284, %v6572
        %v6574 = vpop.f32.mrb[0].mxu0
        %v6575 = vpop.f32.mrb[0].mxu0
        %v6576 = vadd.f32 %v6287, %v6575
        %v6577 = vpop.f32.mrb[0].mxu0
        %6578 = vmatprep.mubr.bf16.mxu0 %v5206
        %6579 = vmatmul.mubr.bf16.gmra.mrb[0].mxu0 %v5205
        %v6580 = vpop.f32.mrb[0].mxu0
        %v6581 = vadd.f32 %v6292, %v6580
        %v6582 = vpop.f32.mrb[0].mxu0
        %v6583 = vpop.f32.mrb[0].mxu0
        %v6584 = vadd.f32 %v6295, %v6583
        %v6585 = vpop.f32.mrb[0].mxu0
        %6586 = vdwg.mxu0
        %v6587 = vmax.f32 %v6333, 0.0
        %v6588 = vmax.f32 %v6336, 0.0
        %v6589 = vmax.f32 %v6341, 0.0
        %v6590 = vmax.f32 %v6344, 0.0
        %v6591 = vmax.f32 %v6349, 0.0
        %v6592 = vmax.f32 %v6352, 0.0
        %v6593 = vmax.f32 %v6357, 0.0
        %v6594 = vmax.f32 %v6360, 0.0
        %v6595 = vmax.f32 %v6365, 0.0
        %v6596 = vmax.f32 %v6368, 0.0
        %v6597 = vmax.f32 %v6373, 0.0
        %v6598 = vmax.f32 %v6376, 0.0
        %v6599 = vmax.f32 %v6381, 0.0
        %v6600 = vmax.f32 %v6384, 0.0
        %v6601 = vmax.f32 %v6389, 0.0
        %v6602 = vmax.f32 %v6392, 0.0
        %v6603 = vmax.f32 %v6397, 0.0
        %v6604 = vmax.f32 %v6400, 0.0
        %v6605 = vmax.f32 %v6405, 0.0
        %v6606 = vmax.f32 %v6408, 0.0
        %v6607 = vmax.f32 %v6413, 0.0
        %v6608 = vmax.f32 %v6416, 0.0
        %v6609 = vmax.f32 %v6421, 0.0
        %v6610 = vmax.f32 %v6424, 0.0
        %v6611 = vmax.f32 %v6429, 0.0
        %v6612 = vmax.f32 %v6432, 0.0
        %v6613 = vmax.f32 %v6437, 0.0
        %v6614 = vmax.f32 %v6440, 0.0
        %v6615 = vmax.f32 %v6445, 0.0
        %v6616 = vmax.f32 %v6448, 0.0
        %v6617 = vmax.f32 %v6453, 0.0
        %v6618 = vmax.f32 %v6456, 0.0
        %v6619 = vmax.f32 %v6461, 0.0
        %v6620 = vmax.f32 %v6464, 0.0
        %v6621 = vmax.f32 %v6469, 0.0
        %v6622 = vmax.f32 %v6472, 0.0
        %v6623 = vmax.f32 %v6477, 0.0
        %v6624 = vmax.f32 %v6480, 0.0
        %v6625 = vmax.f32 %v6485, 0.0
        %v6626 = vmax.f32 %v6488, 0.0
        %v6627 = vmax.f32 %v6493, 0.0
        %v6628 = vmax.f32 %v6496, 0.0
        %v6629 = vmax.f32 %v6501, 0.0
        %v6630 = vmax.f32 %v6504, 0.0
        %v6631 = vmax.f32 %v6509, 0.0
        %v6632 = vmax.f32 %v6512, 0.0
        %v6633 = vmax.f32 %v6517, 0.0
        %v6634 = vmax.f32 %v6520, 0.0
        %v6635 = vmax.f32 %v6525, 0.0
        %v6636 = vmax.f32 %v6528, 0.0
        %v6637 = vmax.f32 %v6533, 0.0
        %v6638 = vmax.f32 %v6536, 0.0
        %v6639 = vmax.f32 %v6541, 0.0
        %v6640 = vmax.f32 %v6544, 0.0
        %v6641 = vmax.f32 %v6549, 0.0
        %v6642 = vmax.f32 %v6552, 0.0
        %v6643 = vmax.f32 %v6557, 0.0
        %v6644 = vmax.f32 %v6560, 0.0
        %v6645 = vmax.f32 %v6565, 0.0
        %v6646 = vmax.f32 %v6568, 0.0
        %v6647 = vmax.f32 %v6573, 0.0
        %v6648 = vmax.f32 %v6576, 0.0
        %v6649 = vmax.f32 %v6581, 0.0
        %v6650 = vmax.f32 %v6584, 0.0
        %v6651 = vld [vmem:[#allocation7] sm:$0xff]
        %v6652 = vld [vmem:[#allocation7 + $0x8] sm:$0xff]
        %v6653 = vld [vmem:[#allocation7 + $0x10] sm:$0xff]
        %v6654 = vld [vmem:[#allocation7 + $0x18] sm:$0xff]
        %v6655 = vld [vmem:[#allocation7 + $0x20] sm:$0xff]
        %v6656 = vld [vmem:[#allocation7 + $0x28] sm:$0xff]
        %v6657 = vld [vmem:[#allocation7 + $0x30] sm:$0xff]
        %v6658 = vld [vmem:[#allocation7 + $0x38] sm:$0xff]
        %v6659 = vld [vmem:[#allocation7 + $0x40] sm:$0xff]
        %v6660 = vld [vmem:[#allocation7 + $0x48] sm:$0xff]
        %v6661 = vld [vmem:[#allocation7 + $0x50] sm:$0xff]
        %v6662 = vld [vmem:[#allocation7 + $0x58] sm:$0xff]
        %v6663 = vld [vmem:[#allocation7 + $0x60] sm:$0xff]
        %v6664 = vld [vmem:[#allocation7 + $0x68] sm:$0xff]
        %v6665 = vld [vmem:[#allocation7 + $0x70] sm:$0xff]
        %v6666 = vld [vmem:[#allocation7 + $0x78] sm:$0xff]
        %v6667 = vld [vmem:[#allocation7 + $0x80] sm:$0xff]
        %v6668 = vld [vmem:[#allocation7 + $0x88] sm:$0xff]
        %v6669 = vld [vmem:[#allocation7 + $0x90] sm:$0xff]
        %v6670 = vld [vmem:[#allocation7 + $0x98] sm:$0xff]
        %v6671 = vld [vmem:[#allocation7 + $0xa0] sm:$0xff]
        %v6672 = vld [vmem:[#allocation7 + $0xa8] sm:$0xff]
        %v6673 = vld [vmem:[#allocation7 + $0xb0] sm:$0xff]
        %v6674 = vld [vmem:[#allocation7 + $0xb8] sm:$0xff]
        %v6675 = vld [vmem:[#allocation7 + $0xc0] sm:$0xff]
        %v6676 = vld [vmem:[#allocation7 + $0xc8] sm:$0xff]
        %v6677 = vld [vmem:[#allocation7 + $0xd0] sm:$0xff]
        %v6678 = vld [vmem:[#allocation7 + $0xd8] sm:$0xff]
        %v6679 = vld [vmem:[#allocation7 + $0xe0] sm:$0xff]
        %v6680 = vld [vmem:[#allocation7 + $0xe8] sm:$0xff]
        %v6681 = vld [vmem:[#allocation7 + $0xf0] sm:$0xff]
        %v6682 = vld [vmem:[#allocation7 + $0xf8] sm:$0xff]
        %v6683 = vld [vmem:[#allocation7 + $0x100] sm:$0xff]
        %v6684 = vld [vmem:[#allocation7 + $0x108] sm:$0xff]
        %v6685 = vld [vmem:[#allocation7 + $0x110] sm:$0xff]
        %v6686 = vld [vmem:[#allocation7 + $0x118] sm:$0xff]
        %v6687 = vld [vmem:[#allocation7 + $0x120] sm:$0xff]
        %v6688 = vld [vmem:[#allocation7 + $0x128] sm:$0xff]
        %v6689 = vld [vmem:[#allocation7 + $0x130] sm:$0xff]
        %v6690 = vld [vmem:[#allocation7 + $0x138] sm:$0xff]
        %v6691 = vld [vmem:[#allocation7 + $0x140] sm:$0xff]
        %v6692 = vld [vmem:[#allocation7 + $0x148] sm:$0xff]
        %v6693 = vld [vmem:[#allocation7 + $0x150] sm:$0xff]
        %v6694 = vld [vmem:[#allocation7 + $0x158] sm:$0xff]
        %v6695 = vld [vmem:[#allocation7 + $0x160] sm:$0xff]
        %v6696 = vld [vmem:[#allocation7 + $0x168] sm:$0xff]
        %v6697 = vld [vmem:[#allocation7 + $0x170] sm:$0xff]
        %v6698 = vld [vmem:[#allocation7 + $0x178] sm:$0xff]
        %v6699 = vld [vmem:[#allocation7 + $0x180] sm:$0xff]
        %v6700 = vld [vmem:[#allocation7 + $0x188] sm:$0xff]
        %v6701 = vld [vmem:[#allocation7 + $0x190] sm:$0xff]
        %v6702 = vld [vmem:[#allocation7 + $0x198] sm:$0xff]
        %v6703 = vld [vmem:[#allocation7 + $0x1a0] sm:$0xff]
        %v6704 = vld [vmem:[#allocation7 + $0x1a8] sm:$0xff]
        %v6705 = vld [vmem:[#allocation7 + $0x1b0] sm:$0xff]
        %v6706 = vld [vmem:[#allocation7 + $0x1b8] sm:$0xff]
        %v6707 = vld [vmem:[#allocation7 + $0x1c0] sm:$0xff]
        %v6708 = vld [vmem:[#allocation7 + $0x1c8] sm:$0xff]
        %v6709 = vld [vmem:[#allocation7 + $0x1d0] sm:$0xff]
        %v6710 = vld [vmem:[#allocation7 + $0x1d8] sm:$0xff]
        %v6711 = vld [vmem:[#allocation7 + $0x1e0] sm:$0xff]
        %v6712 = vld [vmem:[#allocation7 + $0x1e8] sm:$0xff]
        %v6713 = vld [vmem:[#allocation7 + $0x1f0] sm:$0xff]
        %v6714 = vld [vmem:[#allocation7 + $0x1f8] sm:$0xff]
        %v6715 = vld [vmem:[#allocation7 + $0x200] sm:$0xff]
        %v6716 = vld [vmem:[#allocation7 + $0x208] sm:$0xff]
        %v6717 = vld [vmem:[#allocation7 + $0x210] sm:$0xff]
        %v6718 = vld [vmem:[#allocation7 + $0x218] sm:$0xff]
        %v6719 = vld [vmem:[#allocation7 + $0x220] sm:$0xff]
        %v6720 = vld [vmem:[#allocation7 + $0x228] sm:$0xff]
        %v6721 = vld [vmem:[#allocation7 + $0x230] sm:$0xff]
        %v6722 = vld [vmem:[#allocation7 + $0x238] sm:$0xff]
        %v6723 = vld [vmem:[#allocation7 + $0x240] sm:$0xff]
        %v6724 = vld [vmem:[#allocation7 + $0x248] sm:$0xff]
        %v6725 = vld [vmem:[#allocation7 + $0x250] sm:$0xff]
        %v6726 = vld [vmem:[#allocation7 + $0x258] sm:$0xff]
        %v6727 = vld [vmem:[#allocation7 + $0x260] sm:$0xff]
        %v6728 = vld [vmem:[#allocation7 + $0x268] sm:$0xff]
        %v6729 = vld [vmem:[#allocation7 + $0x270] sm:$0xff]
        %v6730 = vld [vmem:[#allocation7 + $0x278] sm:$0xff]
        %v6731 = vld [vmem:[#allocation7 + $0x280] sm:$0xff]
        %v6732 = vld [vmem:[#allocation7 + $0x288] sm:$0xff]
        %v6733 = vld [vmem:[#allocation7 + $0x290] sm:$0xff]
        %v6734 = vld [vmem:[#allocation7 + $0x298] sm:$0xff]
        %v6735 = vld [vmem:[#allocation7 + $0x2a0] sm:$0xff]
        %v6736 = vld [vmem:[#allocation7 + $0x2a8] sm:$0xff]
        %v6737 = vld [vmem:[#allocation7 + $0x2b0] sm:$0xff]
        %v6738 = vld [vmem:[#allocation7 + $0x2b8] sm:$0xff]
        %v6739 = vld [vmem:[#allocation7 + $0x2c0] sm:$0xff]
        %v6740 = vld [vmem:[#allocation7 + $0x2c8] sm:$0xff]
        %v6741 = vld [vmem:[#allocation7 + $0x2d0] sm:$0xff]
        %v6742 = vld [vmem:[#allocation7 + $0x2d8] sm:$0xff]
        %v6743 = vld [vmem:[#allocation7 + $0x2e0] sm:$0xff]
        %v6744 = vld [vmem:[#allocation7 + $0x2e8] sm:$0xff]
        %v6745 = vld [vmem:[#allocation7 + $0x2f0] sm:$0xff]
        %v6746 = vld [vmem:[#allocation7 + $0x2f8] sm:$0xff]
        %v6747 = vld [vmem:[#allocation7 + $0x300] sm:$0xff]
        %v6748 = vld [vmem:[#allocation7 + $0x308] sm:$0xff]
        %v6749 = vld [vmem:[#allocation7 + $0x310] sm:$0xff]
        %v6750 = vld [vmem:[#allocation7 + $0x318] sm:$0xff]
        %v6751 = vld [vmem:[#allocation7 + $0x320] sm:$0xff]
        %v6752 = vld [vmem:[#allocation7 + $0x328] sm:$0xff]
        %v6753 = vld [vmem:[#allocation7 + $0x330] sm:$0xff]
        %v6754 = vld [vmem:[#allocation7 + $0x338] sm:$0xff]
        %v6755 = vld [vmem:[#allocation7 + $0x340] sm:$0xff]
        %v6756 = vld [vmem:[#allocation7 + $0x348] sm:$0xff]
        %v6757 = vld [vmem:[#allocation7 + $0x350] sm:$0xff]
        %v6758 = vld [vmem:[#allocation7 + $0x358] sm:$0xff]
        %v6759 = vld [vmem:[#allocation7 + $0x360] sm:$0xff]
        %v6760 = vld [vmem:[#allocation7 + $0x368] sm:$0xff]
        %v6761 = vld [vmem:[#allocation7 + $0x370] sm:$0xff]
        %v6762 = vld [vmem:[#allocation7 + $0x378] sm:$0xff]
        %v6763 = vld [vmem:[#allocation7 + $0x380] sm:$0xff]
        %v6764 = vld [vmem:[#allocation7 + $0x388] sm:$0xff]
        %v6765 = vld [vmem:[#allocation7 + $0x390] sm:$0xff]
        %v6766 = vld [vmem:[#allocation7 + $0x398] sm:$0xff]
        %v6767 = vld [vmem:[#allocation7 + $0x3a0] sm:$0xff]
        %v6768 = vld [vmem:[#allocation7 + $0x3a8] sm:$0xff]
        %v6769 = vld [vmem:[#allocation7 + $0x3b0] sm:$0xff]
        %v6770 = vld [vmem:[#allocation7 + $0x3b8] sm:$0xff]
        %v6771 = vld [vmem:[#allocation7 + $0x3c0] sm:$0xff]
        %v6772 = vld [vmem:[#allocation7 + $0x3c8] sm:$0xff]
        %v6773 = vld [vmem:[#allocation7 + $0x3d0] sm:$0xff]
        %v6774 = vld [vmem:[#allocation7 + $0x3d8] sm:$0xff]
        %v6775 = vld [vmem:[#allocation7 + $0x3e0] sm:$0xff]
        %v6776 = vld [vmem:[#allocation7 + $0x3e8] sm:$0xff]
        %v6777 = vld [vmem:[#allocation7 + $0x3f0] sm:$0xff]
        %v6778 = vld [vmem:[#allocation7 + $0x3f8] sm:$0xff]
        %v6779 = vpack.c.bf16 %v5914, %v5913
        %v6780 = vpack.c.bf16 %v5916, %v5915
        %v6781 = vpack.c.bf16 %v5918, %v5917
        %v6782 = vpack.c.bf16 %v5920, %v5919
        %v6783 = vpack.c.bf16 %v5922, %v5921
        %v6784 = vpack.c.bf16 %v5924, %v5923
        %v6785 = vpack.c.bf16 %v5926, %v5925
        %v6786 = vpack.c.bf16 %v5928, %v5927
        %v6787 = vpack.c.bf16 %v5930, %v5929
        %v6788 = vpack.c.bf16 %v5932, %v5931
        %v6789 = vpack.c.bf16 %v5934, %v5933
        %v6790 = vpack.c.bf16 %v5936, %v5935
        %v6791 = vpack.c.bf16 %v5938, %v5937
        %v6792 = vpack.c.bf16 %v5940, %v5939
        %v6793 = vpack.c.bf16 %v5942, %v5941
        %v6794 = vpack.c.bf16 %v5944, %v5943
        %v6795 = vpack.c.bf16 %v5946, %v5945
        %v6796 = vpack.c.bf16 %v5948, %v5947
        %v6797 = vpack.c.bf16 %v5950, %v5949
        %v6798 = vpack.c.bf16 %v5952, %v5951
        %v6799 = vpack.c.bf16 %v5954, %v5953
        %v6800 = vpack.c.bf16 %v5956, %v5955
        %v6801 = vpack.c.bf16 %v5958, %v5957
        %v6802 = vpack.c.bf16 %v5960, %v5959
        %v6803 = vpack.c.bf16 %v5962, %v5961
        %v6804 = vpack.c.bf16 %v5964, %v5963
        %v6805 = vpack.c.bf16 %v5966, %v5965
        %v6806 = vpack.c.bf16 %v5968, %v5967
        %v6807 = vpack.c.bf16 %v5970, %v5969
        %v6808 = vpack.c.bf16 %v5972, %v5971
        %v6809 = vpack.c.bf16 %v5974, %v5973
        %v6810 = vpack.c.bf16 %v5976, %v5975
        %6811 = vset.pattern.permute.xlu0 5
        %6812 = vperm.xlu0 %6811, %v342
        %v6813 = vpop.permute.xlu0 %6812
        %6815 = vset.pattern.permute.xlu0 5
        %6816 = vperm.xlu0 %6815, %v343
        %v6817 = vpop.permute.xlu0 %6816
        %6819 = vset.pattern.permute.xlu0 5
        %6820 = vperm.xlu0 %6819, %v344
        %v6821 = vpop.permute.xlu0 %6820
        %6823 = vset.pattern.permute.xlu0 5
        %6824 = vperm.xlu0 %6823, %v345
        %v6825 = vpop.permute.xlu0 %6824
        %6827 = vset.pattern.permute.xlu0 5
        %6828 = vperm.xlu0 %6827, %v346
        %v6829 = vpop.permute.xlu0 %6828
        %6831 = vset.pattern.permute.xlu0 5
        %6832 = vperm.xlu0 %6831, %v347
        %v6833 = vpop.permute.xlu0 %6832
        %6835 = vset.pattern.permute.xlu0 5
        %6836 = vperm.xlu0 %6835, %v348
        %v6837 = vpop.permute.xlu0 %6836
        %6839 = vset.pattern.permute.xlu0 5
        %6840 = vperm.xlu0 %6839, %v349
        %v6841 = vpop.permute.xlu0 %6840
        %6843 = vset.pattern.permute.xlu0 5
        %6844 = vperm.xlu0 %6843, %v350
        %v6845 = vpop.permute.xlu0 %6844
        %6847 = vset.pattern.permute.xlu0 5
        %6848 = vperm.xlu0 %6847, %v351
        %v6849 = vpop.permute.xlu0 %6848
        %6851 = vset.pattern.permute.xlu0 5
        %6852 = vperm.xlu0 %6851, %v352
        %v6853 = vpop.permute.xlu0 %6852
        %6855 = vset.pattern.permute.xlu0 5
        %6856 = vperm.xlu0 %6855, %v353
        %v6857 = vpop.permute.xlu0 %6856
        %6859 = vset.pattern.permute.xlu0 5
        %6860 = vperm.xlu0 %6859, %v354
        %v6861 = vpop.permute.xlu0 %6860
        %6863 = vset.pattern.permute.xlu0 5
        %6864 = vperm.xlu0 %6863, %v355
        %v6865 = vpop.permute.xlu0 %6864
        %6867 = vset.pattern.permute.xlu0 5
        %6868 = vperm.xlu0 %6867, %v356
        %v6869 = vpop.permute.xlu0 %6868
        %6871 = vset.pattern.permute.xlu0 5
        %6872 = vperm.xlu0 %6871, %v357
        %v6873 = vpop.permute.xlu0 %6872
        %6875 = vset.pattern.permute.xlu0 5
        %6876 = vperm.xlu0 %6875, %v358
        %v6877 = vpop.permute.xlu0 %6876
        %6879 = vset.pattern.permute.xlu0 5
        %6880 = vperm.xlu0 %6879, %v359
        %v6881 = vpop.permute.xlu0 %6880
        %6883 = vset.pattern.permute.xlu0 5
        %6884 = vperm.xlu0 %6883, %v360
        %v6885 = vpop.permute.xlu0 %6884
        %6887 = vset.pattern.permute.xlu0 5
        %6888 = vperm.xlu0 %6887, %v361
        %v6889 = vpop.permute.xlu0 %6888
        %6891 = vset.pattern.permute.xlu0 5
        %6892 = vperm.xlu0 %6891, %v362
        %v6893 = vpop.permute.xlu0 %6892
        %6895 = vset.pattern.permute.xlu0 5
        %6896 = vperm.xlu0 %6895, %v363
        %v6897 = vpop.permute.xlu0 %6896
        %6899 = vset.pattern.permute.xlu0 5
        %6900 = vperm.xlu0 %6899, %v364
        %v6901 = vpop.permute.xlu0 %6900
        %6903 = vset.pattern.permute.xlu0 5
        %6904 = vperm.xlu0 %6903, %v365
        %v6905 = vpop.permute.xlu0 %6904
        %6907 = vset.pattern.permute.xlu0 5
        %6908 = vperm.xlu0 %6907, %v366
        %v6909 = vpop.permute.xlu0 %6908
        %6911 = vset.pattern.permute.xlu0 5
        %6912 = vperm.xlu0 %6911, %v367
        %v6913 = vpop.permute.xlu0 %6912
        %6915 = vset.pattern.permute.xlu0 5
        %6916 = vperm.xlu0 %6915, %v368
        %v6917 = vpop.permute.xlu0 %6916
        %6919 = vset.pattern.permute.xlu0 5
        %6920 = vperm.xlu0 %6919, %v369
        %v6921 = vpop.permute.xlu0 %6920
        %6923 = vset.pattern.permute.xlu0 5
        %6924 = vperm.xlu0 %6923, %v370
        %v6925 = vpop.permute.xlu0 %6924
        %6927 = vset.pattern.permute.xlu0 5
        %6928 = vperm.xlu0 %6927, %v371
        %v6929 = vpop.permute.xlu0 %6928
        %6931 = vset.pattern.permute.xlu0 5
        %6932 = vperm.xlu0 %6931, %v372
        %v6933 = vpop.permute.xlu0 %6932
        %6935 = vset.pattern.permute.xlu0 5
        %6936 = vperm.xlu0 %6935, %v373
        %v6937 = vpop.permute.xlu0 %6936
        %6939 = vset.pattern.permute.xlu0 5
        %6940 = vperm.xlu0 %6939, %v374
        %v6941 = vpop.permute.xlu0 %6940
        %6943 = vset.pattern.permute.xlu0 5
        %6944 = vperm.xlu0 %6943, %v375
        %v6945 = vpop.permute.xlu0 %6944
        %6947 = vset.pattern.permute.xlu0 5
        %6948 = vperm.xlu0 %6947, %v376
        %v6949 = vpop.permute.xlu0 %6948
        %6951 = vset.pattern.permute.xlu0 5
        %6952 = vperm.xlu0 %6951, %v377
        %v6953 = vpop.permute.xlu0 %6952
        %6955 = vset.pattern.permute.xlu0 5
        %6956 = vperm.xlu0 %6955, %v378
        %v6957 = vpop.permute.xlu0 %6956
        %6959 = vset.pattern.permute.xlu0 5
        %6960 = vperm.xlu0 %6959, %v379
        %v6961 = vpop.permute.xlu0 %6960
        %6963 = vset.pattern.permute.xlu0 5
        %6964 = vperm.xlu0 %6963, %v380
        %v6965 = vpop.permute.xlu0 %6964
        %6967 = vset.pattern.permute.xlu0 5
        %6968 = vperm.xlu0 %6967, %v381
        %v6969 = vpop.permute.xlu0 %6968
        %6971 = vset.pattern.permute.xlu0 5
        %6972 = vperm.xlu0 %6971, %v382
        %v6973 = vpop.permute.xlu0 %6972
        %6975 = vset.pattern.permute.xlu0 5
        %6976 = vperm.xlu0 %6975, %v383
        %v6977 = vpop.permute.xlu0 %6976
        %6979 = vset.pattern.permute.xlu0 5
        %6980 = vperm.xlu0 %6979, %v384
        %v6981 = vpop.permute.xlu0 %6980
        %6983 = vset.pattern.permute.xlu0 5
        %6984 = vperm.xlu0 %6983, %v385
        %v6985 = vpop.permute.xlu0 %6984
        %6987 = vset.pattern.permute.xlu0 5
        %6988 = vperm.xlu0 %6987, %v386
        %v6989 = vpop.permute.xlu0 %6988
        %6991 = vset.pattern.permute.xlu0 5
        %6992 = vperm.xlu0 %6991, %v387
        %v6993 = vpop.permute.xlu0 %6992
        %6995 = vset.pattern.permute.xlu0 5
        %6996 = vperm.xlu0 %6995, %v388
        %v6997 = vpop.permute.xlu0 %6996
        %6999 = vset.pattern.permute.xlu0 5
        %7000 = vperm.xlu0 %6999, %v389
        %v7001 = vpop.permute.xlu0 %7000
        %7003 = vset.pattern.permute.xlu0 5
        %7004 = vperm.xlu0 %7003, %v390
        %v7005 = vpop.permute.xlu0 %7004
        %7007 = vset.pattern.permute.xlu0 5
        %7008 = vperm.xlu0 %7007, %v391
        %v7009 = vpop.permute.xlu0 %7008
        %7011 = vset.pattern.permute.xlu0 5
        %7012 = vperm.xlu0 %7011, %v392
        %v7013 = vpop.permute.xlu0 %7012
        %7015 = vset.pattern.permute.xlu0 5
        %7016 = vperm.xlu0 %7015, %v393
        %v7017 = vpop.permute.xlu0 %7016
        %7019 = vset.pattern.permute.xlu0 5
        %7020 = vperm.xlu0 %7019, %v394
        %v7021 = vpop.permute.xlu0 %7020
        %7023 = vset.pattern.permute.xlu0 5
        %7024 = vperm.xlu0 %7023, %v395
        %v7025 = vpop.permute.xlu0 %7024
        %7027 = vset.pattern.permute.xlu0 5
        %7028 = vperm.xlu0 %7027, %v396
        %v7029 = vpop.permute.xlu0 %7028
        %7031 = vset.pattern.permute.xlu0 5
        %7032 = vperm.xlu0 %7031, %v397
        %v7033 = vpop.permute.xlu0 %7032
        %7035 = vset.pattern.permute.xlu0 5
        %7036 = vperm.xlu0 %7035, %v398
        %v7037 = vpop.permute.xlu0 %7036
        %7039 = vset.pattern.permute.xlu0 5
        %7040 = vperm.xlu0 %7039, %v399
        %v7041 = vpop.permute.xlu0 %7040
        %7043 = vset.pattern.permute.xlu0 5
        %7044 = vperm.xlu0 %7043, %v400
        %v7045 = vpop.permute.xlu0 %7044
        %7047 = vset.pattern.permute.xlu0 5
        %7048 = vperm.xlu0 %7047, %v401
        %v7049 = vpop.permute.xlu0 %7048
        %7051 = vset.pattern.permute.xlu0 5
        %7052 = vperm.xlu0 %7051, %v402
        %v7053 = vpop.permute.xlu0 %7052
        %7055 = vset.pattern.permute.xlu0 5
        %7056 = vperm.xlu0 %7055, %v403
        %v7057 = vpop.permute.xlu0 %7056
        %7059 = vset.pattern.permute.xlu0 5
        %7060 = vperm.xlu0 %7059, %v404
        %v7061 = vpop.permute.xlu0 %7060
        %7063 = vset.pattern.permute.xlu0 5
        %7064 = vperm.xlu0 %7063, %v405
        %v7065 = vpop.permute.xlu0 %7064
        %v7195 = vunpack.c.l.b16 %v6651
        %v7196 = vunpack.c.h.b16 %v6651
        %v7197 = vunpack.c.l.b16 %v6652
        %v7198 = vunpack.c.h.b16 %v6652
        %v7199 = vunpack.c.l.b16 %v6653
        %v7200 = vunpack.c.h.b16 %v6653
        %v7201 = vunpack.c.l.b16 %v6654
        %v7202 = vunpack.c.h.b16 %v6654
        %v7203 = vunpack.c.l.b16 %v6655
        %v7204 = vunpack.c.h.b16 %v6655
        %v7205 = vunpack.c.l.b16 %v6656
        %v7206 = vunpack.c.h.b16 %v6656
        %v7207 = vunpack.c.l.b16 %v6657
        %v7208 = vunpack.c.h.b16 %v6657
        %v7209 = vunpack.c.l.b16 %v6658
        %v7210 = vunpack.c.h.b16 %v6658
        %v7211 = vunpack.c.l.b16 %v6659
        %v7212 = vunpack.c.h.b16 %v6659
        %v7213 = vunpack.c.l.b16 %v6660
        %v7214 = vunpack.c.h.b16 %v6660
        %v7215 = vunpack.c.l.b16 %v6661
        %v7216 = vunpack.c.h.b16 %v6661
        %v7217 = vunpack.c.l.b16 %v6662
        %v7218 = vunpack.c.h.b16 %v6662
        %v7219 = vunpack.c.l.b16 %v6663
        %v7220 = vunpack.c.h.b16 %v6663
        %v7221 = vunpack.c.l.b16 %v6664
        %v7222 = vunpack.c.h.b16 %v6664
        %v7223 = vunpack.c.l.b16 %v6665
        %v7224 = vunpack.c.h.b16 %v6665
        %v7225 = vunpack.c.l.b16 %v6666
        %v7226 = vunpack.c.h.b16 %v6666
        %v7227 = vunpack.c.l.b16 %v6667
        %v7228 = vunpack.c.h.b16 %v6667
        %v7229 = vunpack.c.l.b16 %v6668
        %v7230 = vunpack.c.h.b16 %v6668
        %v7231 = vunpack.c.l.b16 %v6669
        %v7232 = vunpack.c.h.b16 %v6669
        %v7233 = vunpack.c.l.b16 %v6670
        %v7234 = vunpack.c.h.b16 %v6670
        %v7235 = vunpack.c.l.b16 %v6671
        %v7236 = vunpack.c.h.b16 %v6671
        %v7237 = vunpack.c.l.b16 %v6672
        %v7238 = vunpack.c.h.b16 %v6672
        %v7239 = vunpack.c.l.b16 %v6673
        %v7240 = vunpack.c.h.b16 %v6673
        %v7241 = vunpack.c.l.b16 %v6674
        %v7242 = vunpack.c.h.b16 %v6674
        %v7243 = vunpack.c.l.b16 %v6675
        %v7244 = vunpack.c.h.b16 %v6675
        %v7245 = vunpack.c.l.b16 %v6676
        %v7246 = vunpack.c.h.b16 %v6676
        %v7247 = vunpack.c.l.b16 %v6677
        %v7248 = vunpack.c.h.b16 %v6677
        %v7249 = vunpack.c.l.b16 %v6678
        %v7250 = vunpack.c.h.b16 %v6678
        %v7251 = vunpack.c.l.b16 %v6679
        %v7252 = vunpack.c.h.b16 %v6679
        %v7253 = vunpack.c.l.b16 %v6680
        %v7254 = vunpack.c.h.b16 %v6680
        %v7255 = vunpack.c.l.b16 %v6681
        %v7256 = vunpack.c.h.b16 %v6681
        %v7257 = vunpack.c.l.b16 %v6682
        %v7258 = vunpack.c.h.b16 %v6682
        %v7259 = vunpack.c.l.b16 %v6683
        %v7260 = vunpack.c.h.b16 %v6683
        %v7261 = vunpack.c.l.b16 %v6684
        %v7262 = vunpack.c.h.b16 %v6684
        %v7263 = vunpack.c.l.b16 %v6685
        %v7264 = vunpack.c.h.b16 %v6685
        %v7265 = vunpack.c.l.b16 %v6686
        %v7266 = vunpack.c.h.b16 %v6686
        %v7267 = vunpack.c.l.b16 %v6687
        %v7268 = vunpack.c.h.b16 %v6687
        %v7269 = vunpack.c.l.b16 %v6688
        %v7270 = vunpack.c.h.b16 %v6688
        %v7271 = vunpack.c.l.b16 %v6689
        %v7272 = vunpack.c.h.b16 %v6689
        %v7273 = vunpack.c.l.b16 %v6690
        %v7274 = vunpack.c.h.b16 %v6690
        %v7275 = vunpack.c.l.b16 %v6691
        %v7276 = vunpack.c.h.b16 %v6691
        %v7277 = vunpack.c.l.b16 %v6692
        %v7278 = vunpack.c.h.b16 %v6692
        %v7279 = vunpack.c.l.b16 %v6693
        %v7280 = vunpack.c.h.b16 %v6693
        %v7281 = vunpack.c.l.b16 %v6694
        %v7282 = vunpack.c.h.b16 %v6694
        %v7283 = vunpack.c.l.b16 %v6695
        %v7284 = vunpack.c.h.b16 %v6695
        %v7285 = vunpack.c.l.b16 %v6696
        %v7286 = vunpack.c.h.b16 %v6696
        %v7287 = vunpack.c.l.b16 %v6697
        %v7288 = vunpack.c.h.b16 %v6697
        %v7289 = vunpack.c.l.b16 %v6698
        %v7290 = vunpack.c.h.b16 %v6698
        %v7291 = vunpack.c.l.b16 %v6699
        %v7292 = vunpack.c.h.b16 %v6699
        %v7293 = vunpack.c.l.b16 %v6700
        %v7294 = vunpack.c.h.b16 %v6700
        %v7295 = vunpack.c.l.b16 %v6701
        %v7296 = vunpack.c.h.b16 %v6701
        %v7297 = vunpack.c.l.b16 %v6702
        %v7298 = vunpack.c.h.b16 %v6702
        %v7299 = vunpack.c.l.b16 %v6703
        %v7300 = vunpack.c.h.b16 %v6703
        %v7301 = vunpack.c.l.b16 %v6704
        %v7302 = vunpack.c.h.b16 %v6704
        %v7303 = vunpack.c.l.b16 %v6705
        %v7304 = vunpack.c.h.b16 %v6705
        %v7305 = vunpack.c.l.b16 %v6706
        %v7306 = vunpack.c.h.b16 %v6706
        %v7307 = vunpack.c.l.b16 %v6707
        %v7308 = vunpack.c.h.b16 %v6707
        %v7309 = vunpack.c.l.b16 %v6708
        %v7310 = vunpack.c.h.b16 %v6708
        %v7311 = vunpack.c.l.b16 %v6709
        %v7312 = vunpack.c.h.b16 %v6709
        %v7313 = vunpack.c.l.b16 %v6710
        %v7314 = vunpack.c.h.b16 %v6710
        %v7315 = vunpack.c.l.b16 %v6711
        %v7316 = vunpack.c.h.b16 %v6711
        %v7317 = vunpack.c.l.b16 %v6712
        %v7318 = vunpack.c.h.b16 %v6712
        %v7319 = vunpack.c.l.b16 %v6713
        %v7320 = vunpack.c.h.b16 %v6713
        %v7321 = vunpack.c.l.b16 %v6714
        %v7322 = vunpack.c.h.b16 %v6714
        %v7323 = vunpack.c.l.b16 %v6715
        %v7324 = vunpack.c.h.b16 %v6715
        %v7325 = vunpack.c.l.b16 %v6716
        %v7326 = vunpack.c.h.b16 %v6716
        %v7327 = vunpack.c.l.b16 %v6717
        %v7328 = vunpack.c.h.b16 %v6717
        %v7329 = vunpack.c.l.b16 %v6718
        %v7330 = vunpack.c.h.b16 %v6718
        %v7331 = vunpack.c.l.b16 %v6719
        %v7332 = vunpack.c.h.b16 %v6719
        %v7333 = vunpack.c.l.b16 %v6720
        %v7334 = vunpack.c.h.b16 %v6720
        %v7335 = vunpack.c.l.b16 %v6721
        %v7336 = vunpack.c.h.b16 %v6721
        %v7337 = vunpack.c.l.b16 %v6722
        %v7338 = vunpack.c.h.b16 %v6722
        %v7339 = vunpack.c.l.b16 %v6723
        %v7340 = vunpack.c.h.b16 %v6723
        %v7341 = vunpack.c.l.b16 %v6724
        %v7342 = vunpack.c.h.b16 %v6724
        %v7343 = vunpack.c.l.b16 %v6725
        %v7344 = vunpack.c.h.b16 %v6725
        %v7345 = vunpack.c.l.b16 %v6726
        %v7346 = vunpack.c.h.b16 %v6726
        %v7347 = vunpack.c.l.b16 %v6727
        %v7348 = vunpack.c.h.b16 %v6727
        %v7349 = vunpack.c.l.b16 %v6728
        %v7350 = vunpack.c.h.b16 %v6728
        %v7351 = vunpack.c.l.b16 %v6729
        %v7352 = vunpack.c.h.b16 %v6729
        %v7353 = vunpack.c.l.b16 %v6730
        %v7354 = vunpack.c.h.b16 %v6730
        %v7355 = vunpack.c.l.b16 %v6731
        %v7356 = vunpack.c.h.b16 %v6731
        %v7357 = vunpack.c.l.b16 %v6732
        %v7358 = vunpack.c.h.b16 %v6732
        %v7359 = vunpack.c.l.b16 %v6733
        %v7360 = vunpack.c.h.b16 %v6733
        %v7361 = vunpack.c.l.b16 %v6734
        %v7362 = vunpack.c.h.b16 %v6734
        %v7363 = vunpack.c.l.b16 %v6735
        %v7364 = vunpack.c.h.b16 %v6735
        %v7365 = vunpack.c.l.b16 %v6736
        %v7366 = vunpack.c.h.b16 %v6736
        %v7367 = vunpack.c.l.b16 %v6737
        %v7368 = vunpack.c.h.b16 %v6737
        %v7369 = vunpack.c.l.b16 %v6738
        %v7370 = vunpack.c.h.b16 %v6738
        %v7371 = vunpack.c.l.b16 %v6739
        %v7372 = vunpack.c.h.b16 %v6739
        %v7373 = vunpack.c.l.b16 %v6740
        %v7374 = vunpack.c.h.b16 %v6740
        %v7375 = vunpack.c.l.b16 %v6741
        %v7376 = vunpack.c.h.b16 %v6741
        %v7377 = vunpack.c.l.b16 %v6742
        %v7378 = vunpack.c.h.b16 %v6742
        %v7379 = vunpack.c.l.b16 %v6743
        %v7380 = vunpack.c.h.b16 %v6743
        %v7381 = vunpack.c.l.b16 %v6744
        %v7382 = vunpack.c.h.b16 %v6744
        %v7383 = vunpack.c.l.b16 %v6745
        %v7384 = vunpack.c.h.b16 %v6745
        %v7385 = vunpack.c.l.b16 %v6746
        %v7386 = vunpack.c.h.b16 %v6746
        %v7387 = vunpack.c.l.b16 %v6747
        %v7388 = vunpack.c.h.b16 %v6747
        %v7389 = vunpack.c.l.b16 %v6748
        %v7390 = vunpack.c.h.b16 %v6748
        %v7391 = vunpack.c.l.b16 %v6749
        %v7392 = vunpack.c.h.b16 %v6749
        %v7393 = vunpack.c.l.b16 %v6750
        %v7394 = vunpack.c.h.b16 %v6750
        %v7395 = vunpack.c.l.b16 %v6751
        %v7396 = vunpack.c.h.b16 %v6751
        %v7397 = vunpack.c.l.b16 %v6752
        %v7398 = vunpack.c.h.b16 %v6752
        %v7399 = vunpack.c.l.b16 %v6753
        %v7400 = vunpack.c.h.b16 %v6753
        %v7401 = vunpack.c.l.b16 %v6754
        %v7402 = vunpack.c.h.b16 %v6754
        %v7403 = vunpack.c.l.b16 %v6755
        %v7404 = vunpack.c.h.b16 %v6755
        %v7405 = vunpack.c.l.b16 %v6756
        %v7406 = vunpack.c.h.b16 %v6756
        %v7407 = vunpack.c.l.b16 %v6757
        %v7408 = vunpack.c.h.b16 %v6757
        %v7409 = vunpack.c.l.b16 %v6758
        %v7410 = vunpack.c.h.b16 %v6758
        %v7411 = vunpack.c.l.b16 %v6759
        %v7412 = vunpack.c.h.b16 %v6759
        %v7413 = vunpack.c.l.b16 %v6760
        %v7414 = vunpack.c.h.b16 %v6760
        %v7415 = vunpack.c.l.b16 %v6761
        %v7416 = vunpack.c.h.b16 %v6761
        %v7417 = vunpack.c.l.b16 %v6762
        %v7418 = vunpack.c.h.b16 %v6762
        %v7419 = vunpack.c.l.b16 %v6763
        %v7420 = vunpack.c.h.b16 %v6763
        %v7421 = vunpack.c.l.b16 %v6764
        %v7422 = vunpack.c.h.b16 %v6764
        %v7423 = vunpack.c.l.b16 %v6765
        %v7424 = vunpack.c.h.b16 %v6765
        %v7425 = vunpack.c.l.b16 %v6766
        %v7426 = vunpack.c.h.b16 %v6766
        %v7427 = vunpack.c.l.b16 %v6767
        %v7428 = vunpack.c.h.b16 %v6767
        %v7429 = vunpack.c.l.b16 %v6768
        %v7430 = vunpack.c.h.b16 %v6768
        %v7431 = vunpack.c.l.b16 %v6769
        %v7432 = vunpack.c.h.b16 %v6769
        %v7433 = vunpack.c.l.b16 %v6770
        %v7434 = vunpack.c.h.b16 %v6770
        %v7435 = vunpack.c.l.b16 %v6771
        %v7436 = vunpack.c.h.b16 %v6771
        %v7437 = vunpack.c.l.b16 %v6772
        %v7438 = vunpack.c.h.b16 %v6772
        %v7439 = vunpack.c.l.b16 %v6773
        %v7440 = vunpack.c.h.b16 %v6773
        %v7441 = vunpack.c.l.b16 %v6774
        %v7442 = vunpack.c.h.b16 %v6774
        %v7443 = vunpack.c.l.b16 %v6775
        %v7444 = vunpack.c.h.b16 %v6775
        %v7445 = vunpack.c.l.b16 %v6776
        %v7446 = vunpack.c.h.b16 %v6776
        %v7447 = vunpack.c.l.b16 %v6777
        %v7448 = vunpack.c.h.b16 %v6777
        %v7449 = vunpack.c.l.b16 %v6778
        %v7450 = vunpack.c.h.b16 %v6778
        %v7451 = vpack.c.b16 %v7199, %v7195
        %v7452 = vpack.c.b16 %v7200, %v7196
        %v7453 = vpack.c.b16 %v7201, %v7197
        %v7454 = vpack.c.b16 %v7202, %v7198
        %v7455 = vpack.c.b16 %v7207, %v7203
        %v7456 = vpack.c.b16 %v7208, %v7204
        %v7457 = vpack.c.b16 %v7209, %v7205
        %v7458 = vpack.c.b16 %v7210, %v7206
        %v7459 = vpack.c.b16 %v7215, %v7211
        %v7460 = vpack.c.b16 %v7216, %v7212
        %v7461 = vpack.c.b16 %v7217, %v7213
        %v7462 = vpack.c.b16 %v7218, %v7214
        %v7463 = vpack.c.b16 %v7223, %v7219
        %v7464 = vpack.c.b16 %v7224, %v7220
        %v7465 = vpack.c.b16 %v7225, %v7221
        %v7466 = vpack.c.b16 %v7226, %v7222
        %v7467 = vpack.c.b16 %v7231, %v7227
        %v7468 = vpack.c.b16 %v7232, %v7228
        %v7469 = vpack.c.b16 %v7233, %v7229
        %v7470 = vpack.c.b16 %v7234, %v7230
        %v7471 = vpack.c.b16 %v7239, %v7235
        %v7472 = vpack.c.b16 %v7240, %v7236
        %v7473 = vpack.c.b16 %v7241, %v7237
        %v7474 = vpack.c.b16 %v7242, %v7238
        %v7475 = vpack.c.b16 %v7247, %v7243
        %v7476 = vpack.c.b16 %v7248, %v7244
        %v7477 = vpack.c.b16 %v7249, %v7245
        %v7478 = vpack.c.b16 %v7250, %v7246
        %v7479 = vpack.c.b16 %v7255, %v7251
        %v7480 = vpack.c.b16 %v7256, %v7252
        %v7481 = vpack.c.b16 %v7257, %v7253
        %v7482 = vpack.c.b16 %v7258, %v7254
        %v7483 = vpack.c.b16 %v7263, %v7259
        %v7484 = vpack.c.b16 %v7264, %v7260
        %v7485 = vpack.c.b16 %v7265, %v7261
        %v7486 = vpack.c.b16 %v7266, %v7262
        %v7487 = vpack.c.b16 %v7271, %v7267
        %v7488 = vpack.c.b16 %v7272, %v7268
        %v7489 = vpack.c.b16 %v7273, %v7269
        %v7490 = vpack.c.b16 %v7274, %v7270
        %v7491 = vpack.c.b16 %v7279, %v7275
        %v7492 = vpack.c.b16 %v7280, %v7276
        %v7493 = vpack.c.b16 %v7281, %v7277
        %v7494 = vpack.c.b16 %v7282, %v7278
        %v7495 = vpack.c.b16 %v7287, %v7283
        %v7496 = vpack.c.b16 %v7288, %v7284
        %v7497 = vpack.c.b16 %v7289, %v7285
        %v7498 = vpack.c.b16 %v7290, %v7286
        %v7499 = vpack.c.b16 %v7295, %v7291
        %v7500 = vpack.c.b16 %v7296, %v7292
        %v7501 = vpack.c.b16 %v7297, %v7293
        %v7502 = vpack.c.b16 %v7298, %v7294
        %v7503 = vpack.c.b16 %v7303, %v7299
        %v7504 = vpack.c.b16 %v7304, %v7300
        %v7505 = vpack.c.b16 %v7305, %v7301
        %v7506 = vpack.c.b16 %v7306, %v7302
        %v7507 = vpack.c.b16 %v7311, %v7307
        %v7508 = vpack.c.b16 %v7312, %v7308
        %v7509 = vpack.c.b16 %v7313, %v7309
        %v7510 = vpack.c.b16 %v7314, %v7310
        %v7511 = vpack.c.b16 %v7319, %v7315
        %v7512 = vpack.c.b16 %v7320, %v7316
        %v7513 = vpack.c.b16 %v7321, %v7317
        %v7514 = vpack.c.b16 %v7322, %v7318
        %v7515 = vpack.c.b16 %v7327, %v7323
        %v7516 = vpack.c.b16 %v7328, %v7324
        %v7517 = vpack.c.b16 %v7329, %v7325
        %v7518 = vpack.c.b16 %v7330, %v7326
        %v7519 = vpack.c.b16 %v7335, %v7331
        %v7520 = vpack.c.b16 %v7336, %v7332
        %v7521 = vpack.c.b16 %v7337, %v7333
        %v7522 = vpack.c.b16 %v7338, %v7334
        %v7523 = vpack.c.b16 %v7343, %v7339
        %v7524 = vpack.c.b16 %v7344, %v7340
        %v7525 = vpack.c.b16 %v7345, %v7341
        %v7526 = vpack.c.b16 %v7346, %v7342
        %v7527 = vpack.c.b16 %v7351, %v7347
        %v7528 = vpack.c.b16 %v7352, %v7348
        %v7529 = vpack.c.b16 %v7353, %v7349
        %v7530 = vpack.c.b16 %v7354, %v7350
        %v7531 = vpack.c.b16 %v7359, %v7355
        %v7532 = vpack.c.b16 %v7360, %v7356
        %v7533 = vpack.c.b16 %v7361, %v7357
        %v7534 = vpack.c.b16 %v7362, %v7358
        %v7535 = vpack.c.b16 %v7367, %v7363
        %v7536 = vpack.c.b16 %v7368, %v7364
        %v7537 = vpack.c.b16 %v7369, %v7365
        %v7538 = vpack.c.b16 %v7370, %v7366
        %v7539 = vpack.c.b16 %v7375, %v7371
        %v7540 = vpack.c.b16 %v7376, %v7372
        %v7541 = vpack.c.b16 %v7377, %v7373
        %v7542 = vpack.c.b16 %v7378, %v7374
        %v7543 = vpack.c.b16 %v7383, %v7379
        %v7544 = vpack.c.b16 %v7384, %v7380
        %v7545 = vpack.c.b16 %v7385, %v7381
        %v7546 = vpack.c.b16 %v7386, %v7382
        %v7547 = vpack.c.b16 %v7391, %v7387
        %v7548 = vpack.c.b16 %v7392, %v7388
        %v7549 = vpack.c.b16 %v7393, %v7389
        %v7550 = vpack.c.b16 %v7394, %v7390
        %v7551 = vpack.c.b16 %v7399, %v7395
        %v7552 = vpack.c.b16 %v7400, %v7396
        %v7553 = vpack.c.b16 %v7401, %v7397
        %v7554 = vpack.c.b16 %v7402, %v7398
        %v7555 = vpack.c.b16 %v7407, %v7403
        %v7556 = vpack.c.b16 %v7408, %v7404
        %v7557 = vpack.c.b16 %v7409, %v7405
        %v7558 = vpack.c.b16 %v7410, %v7406
        %v7559 = vpack.c.b16 %v7415, %v7411
        %v7560 = vpack.c.b16 %v7416, %v7412
        %v7561 = vpack.c.b16 %v7417, %v7413
        %v7562 = vpack.c.b16 %v7418, %v7414
        %v7563 = vpack.c.b16 %v7423, %v7419
        %v7564 = vpack.c.b16 %v7424, %v7420
        %v7565 = vpack.c.b16 %v7425, %v7421
        %v7566 = vpack.c.b16 %v7426, %v7422
        %v7567 = vpack.c.b16 %v7431, %v7427
        %v7568 = vpack.c.b16 %v7432, %v7428
        %v7569 = vpack.c.b16 %v7433, %v7429
        %v7570 = vpack.c.b16 %v7434, %v7430
        %v7571 = vpack.c.b16 %v7439, %v7435
        %v7572 = vpack.c.b16 %v7440, %v7436
        %v7573 = vpack.c.b16 %v7441, %v7437
        %v7574 = vpack.c.b16 %v7442, %v7438
        %v7575 = vpack.c.b16 %v7447, %v7443
        %v7576 = vpack.c.b16 %v7448, %v7444
        %v7577 = vpack.c.b16 %v7449, %v7445
        %v7578 = vpack.c.b16 %v7450, %v7446
        %7707 = vmatprep.subr.bf16.mxu0 0
        %7708 = vmatpush1.bf16.msra.mxu0 %v6779
        %7709 = vmatprep.subr.bf16.mxu0 0
        %7710 = vmatpush1.bf16.msra.mxu0 %v6780
        %7711 = vmatprep.subr.bf16.mxu0 0
        %7712 = vmatpush1.bf16.msra.mxu0 %v6781
        %7713 = vmatprep.subr.bf16.mxu0 0
        %7714 = vmatpush1.bf16.msra.mxu0 %v6782
        %7715 = vmatprep.subr.bf16.mxu0 0
        %7716 = vmatpush1.bf16.msra.mxu0 %v6783
        %7717 = vmatprep.subr.bf16.mxu0 0
        %7718 = vmatpush1.bf16.msra.mxu0 %v6784
        %7719 = vmatprep.subr.bf16.mxu0 0
        %7720 = vmatpush1.bf16.msra.mxu0 %v6785
        %7721 = vmatprep.subr.bf16.mxu0 0
        %7722 = vmatpush1.bf16.msra.mxu0 %v6786
        %7723 = vmatprep.subr.bf16.mxu0 0
        %7724 = vmatpush1.bf16.msra.mxu0 %v6787
        %7725 = vmatprep.subr.bf16.mxu0 0
        %7726 = vmatpush1.bf16.msra.mxu0 %v6788
        %7727 = vmatprep.subr.bf16.mxu0 0
        %7728 = vmatpush1.bf16.msra.mxu0 %v6789
        %7729 = vmatprep.subr.bf16.mxu0 0
        %7730 = vmatpush1.bf16.msra.mxu0 %v6790
        %7731 = vmatprep.subr.bf16.mxu0 0
        %7732 = vmatpush1.bf16.msra.mxu0 %v6791
        %7733 = vmatprep.subr.bf16.mxu0 0
        %7734 = vmatpush1.bf16.msra.mxu0 %v6792
        %7735 = vmatprep.subr.bf16.mxu0 0
        %7736 = vmatpush1.bf16.msra.mxu0 %v6793
        %7737 = vmatprep.subr.bf16.mxu0 0
        %7738 = vmatpush1.bf16.msra.mxu0 %v6794
        %7739 = vmatprep.mubr.bf16.mxu0 %v7452
        %7740 = vmatmul.mubr.bf16.gmra.mrb[0].mxu0 %v7451
        %v7741 = vpop.f32.mrb[0].mxu0
        %v7742 = vadd.f32 %v6813, %v7741
        %v7743 = vpop.f32.mrb[0].mxu0
        %v7744 = vpop.f32.mrb[0].mxu0
        %v7745 = vadd.f32 %v6817, %v7744
        %v7746 = vpop.f32.mrb[0].mxu0
        %7747 = vmatprep.mubr.bf16.mxu0 %v7456
        %7748 = vmatmul.mubr.bf16.gmra.mrb[0].mxu0 %v7455
        %v7749 = vpop.f32.mrb[0].mxu0
        %v7750 = vadd.f32 %v6821, %v7749
        %v7751 = vpop.f32.mrb[0].mxu0
        %v7752 = vpop.f32.mrb[0].mxu0
        %v7753 = vadd.f32 %v6825, %v7752
        %v7754 = vpop.f32.mrb[0].mxu0
        %7755 = vmatprep.mubr.bf16.mxu0 %v7460
        %7756 = vmatmul.mubr.bf16.gmra.mrb[0].mxu0 %v7459
        %v7757 = vpop.f32.mrb[0].mxu0
        %v7758 = vadd.f32 %v6829, %v7757
        %v7759 = vpop.f32.mrb[0].mxu0
        %v7760 = vpop.f32.mrb[0].mxu0
        %v7761 = vadd.f32 %v6833, %v7760
        %v7762 = vpop.f32.mrb[0].mxu0
        %7763 = vmatprep.mubr.bf16.mxu0 %v7464
        %7764 = vmatmul.mubr.bf16.gmra.mrb[0].mxu0 %v7463
        %v7765 = vpop.f32.mrb[0].mxu0
        %v7766 = vadd.f32 %v6837, %v7765
        %v7767 = vpop.f32.mrb[0].mxu0
        %v7768 = vpop.f32.mrb[0].mxu0
        %v7769 = vadd.f32 %v6841, %v7768
        %v7770 = vpop.f32.mrb[0].mxu0
        %7771 = vmatprep.mubr.bf16.mxu0 %v7468
        %7772 = vmatmul.mubr.bf16.gmra.mrb[0].mxu0 %v7467
        %v7773 = vpop.f32.mrb[0].mxu0
        %v7774 = vadd.f32 %v6845, %v7773
        %v7775 = vpop.f32.mrb[0].mxu0
        %v7776 = vpop.f32.mrb[0].mxu0
        %v7777 = vadd.f32 %v6849, %v7776
        %v7778 = vpop.f32.mrb[0].mxu0
        %7779 = vmatprep.mubr.bf16.mxu0 %v7472
        %7780 = vmatmul.mubr.bf16.gmra.mrb[0].mxu0 %v7471
        %v7781 = vpop.f32.mrb[0].mxu0
        %v7782 = vadd.f32 %v6853, %v7781
        %v7783 = vpop.f32.mrb[0].mxu0
        %v7784 = vpop.f32.mrb[0].mxu0
        %v7785 = vadd.f32 %v6857, %v7784
        %v7786 = vpop.f32.mrb[0].mxu0
        %7787 = vmatprep.mubr.bf16.mxu0 %v7476
        %7788 = vmatmul.mubr.bf16.gmra.mrb[0].mxu0 %v7475
        %v7789 = vpop.f32.mrb[0].mxu0
        %v7790 = vadd.f32 %v6861, %v7789
        %v7791 = vpop.f32.mrb[0].mxu0
        %v7792 = vpop.f32.mrb[0].mxu0
        %v7793 = vadd.f32 %v6865, %v7792
        %v7794 = vpop.f32.mrb[0].mxu0
        %7795 = vmatprep.mubr.bf16.mxu0 %v7480
        %7796 = vmatmul.mubr.bf16.gmra.mrb[0].mxu0 %v7479
        %v7797 = vpop.f32.mrb[0].mxu0
        %v7798 = vadd.f32 %v6869, %v7797
        %v7799 = vpop.f32.mrb[0].mxu0
        %v7800 = vpop.f32.mrb[0].mxu0
        %v7801 = vadd.f32 %v6873, %v7800
        %v7802 = vpop.f32.mrb[0].mxu0
        %7803 = vmatprep.mubr.bf16.mxu0 %v7484
        %7804 = vmatmul.mubr.bf16.gmra.mrb[0].mxu0 %v7483
        %v7805 = vpop.f32.mrb[0].mxu0
        %v7806 = vadd.f32 %v6877, %v7805
        %v7807 = vpop.f32.mrb[0].mxu0
        %v7808 = vpop.f32.mrb[0].mxu0
        %v7809 = vadd.f32 %v6881, %v7808
        %v7810 = vpop.f32.mrb[0].mxu0
        %7811 = vmatprep.mubr.bf16.mxu0 %v7488
        %7812 = vmatmul.mubr.bf16.gmra.mrb[0].mxu0 %v7487
        %v7813 = vpop.f32.mrb[0].mxu0
        %v7814 = vadd.f32 %v6885, %v7813
        %v7815 = vpop.f32.mrb[0].mxu0
        %v7816 = vpop.f32.mrb[0].mxu0
        %v7817 = vadd.f32 %v6889, %v7816
        %v7818 = vpop.f32.mrb[0].mxu0
        %7819 = vmatprep.mubr.bf16.mxu0 %v7492
        %7820 = vmatmul.mubr.bf16.gmra.mrb[0].mxu0 %v7491
        %v7821 = vpop.f32.mrb[0].mxu0
        %v7822 = vadd.f32 %v6893, %v7821
        %v7823 = vpop.f32.mrb[0].mxu0
        %v7824 = vpop.f32.mrb[0].mxu0
        %v7825 = vadd.f32 %v6897, %v7824
        %v7826 = vpop.f32.mrb[0].mxu0
        %7827 = vmatprep.mubr.bf16.mxu0 %v7496
        %7828 = vmatmul.mubr.bf16.gmra.mrb[0].mxu0 %v7495
        %v7829 = vpop.f32.mrb[0].mxu0
        %v7830 = vadd.f32 %v6901, %v7829
        %v7831 = vpop.f32.mrb[0].mxu0
        %v7832 = vpop.f32.mrb[0].mxu0
        %v7833 = vadd.f32 %v6905, %v7832
        %v7834 = vpop.f32.mrb[0].mxu0
        %7835 = vmatprep.mubr.bf16.mxu0 %v7500
        %7836 = vmatmul.mubr.bf16.gmra.mrb[0].mxu0 %v7499
        %v7837 = vpop.f32.mrb[0].mxu0
        %v7838 = vadd.f32 %v6909, %v7837
        %v7839 = vpop.f32.mrb[0].mxu0
        %v7840 = vpop.f32.mrb[0].mxu0
        %v7841 = vadd.f32 %v6913, %v7840
        %v7842 = vpop.f32.mrb[0].mxu0
        %7843 = vmatprep.mubr.bf16.mxu0 %v7504
        %7844 = vmatmul.mubr.bf16.gmra.mrb[0].mxu0 %v7503
        %v7845 = vpop.f32.mrb[0].mxu0
        %v7846 = vadd.f32 %v6917, %v7845
        %v7847 = vpop.f32.mrb[0].mxu0
        %v7848 = vpop.f32.mrb[0].mxu0
        %v7849 = vadd.f32 %v6921, %v7848
        %v7850 = vpop.f32.mrb[0].mxu0
        %7851 = vmatprep.mubr.bf16.mxu0 %v7508
        %7852 = vmatmul.mubr.bf16.gmra.mrb[0].mxu0 %v7507
        %v7853 = vpop.f32.mrb[0].mxu0
        %v7854 = vadd.f32 %v6925, %v7853
        %v7855 = vpop.f32.mrb[0].mxu0
        %v7856 = vpop.f32.mrb[0].mxu0
        %v7857 = vadd.f32 %v6929, %v7856
        %v7858 = vpop.f32.mrb[0].mxu0
        %7859 = vmatprep.mubr.bf16.mxu0 %v7512
        %7860 = vmatmul.mubr.bf16.gmra.mrb[0].mxu0 %v7511
        %v7861 = vpop.f32.mrb[0].mxu0
        %v7862 = vadd.f32 %v6933, %v7861
        %v7863 = vpop.f32.mrb[0].mxu0
        %v7864 = vpop.f32.mrb[0].mxu0
        %v7865 = vadd.f32 %v6937, %v7864
        %v7866 = vpop.f32.mrb[0].mxu0
        %7867 = vmatprep.mubr.bf16.mxu0 %v7516
        %7868 = vmatmul.mubr.bf16.gmra.mrb[0].mxu0 %v7515
        %v7869 = vpop.f32.mrb[0].mxu0
        %v7870 = vadd.f32 %v6941, %v7869
        %v7871 = vpop.f32.mrb[0].mxu0
        %v7872 = vpop.f32.mrb[0].mxu0
        %v7873 = vadd.f32 %v6945, %v7872
        %v7874 = vpop.f32.mrb[0].mxu0
        %7875 = vmatprep.mubr.bf16.mxu0 %v7520
        %7876 = vmatmul.mubr.bf16.gmra.mrb[0].mxu0 %v7519
        %v7877 = vpop.f32.mrb[0].mxu0
        %v7878 = vadd.f32 %v6949, %v7877
        %v7879 = vpop.f32.mrb[0].mxu0
        %v7880 = vpop.f32.mrb[0].mxu0
        %v7881 = vadd.f32 %v6953, %v7880
        %v7882 = vpop.f32.mrb[0].mxu0
        %7883 = vmatprep.mubr.bf16.mxu0 %v7524
        %7884 = vmatmul.mubr.bf16.gmra.mrb[0].mxu0 %v7523
        %v7885 = vpop.f32.mrb[0].mxu0
        %v7886 = vadd.f32 %v6957, %v7885
        %v7887 = vpop.f32.mrb[0].mxu0
        %v7888 = vpop.f32.mrb[0].mxu0
        %v7889 = vadd.f32 %v6961, %v7888
        %v7890 = vpop.f32.mrb[0].mxu0
        %7891 = vmatprep.mubr.bf16.mxu0 %v7528
        %7892 = vmatmul.mubr.bf16.gmra.mrb[0].mxu0 %v7527
        %v7893 = vpop.f32.mrb[0].mxu0
        %v7894 = vadd.f32 %v6965, %v7893
        %v7895 = vpop.f32.mrb[0].mxu0
        %v7896 = vpop.f32.mrb[0].mxu0
        %v7897 = vadd.f32 %v6969, %v7896
        %v7898 = vpop.f32.mrb[0].mxu0
        %7899 = vmatprep.mubr.bf16.mxu0 %v7532
        %7900 = vmatmul.mubr.bf16.gmra.mrb[0].mxu0 %v7531
        %v7901 = vpop.f32.mrb[0].mxu0
        %v7902 = vadd.f32 %v6973, %v7901
        %v7903 = vpop.f32.mrb[0].mxu0
        %v7904 = vpop.f32.mrb[0].mxu0
        %v7905 = vadd.f32 %v6977, %v7904
        %v7906 = vpop.f32.mrb[0].mxu0
        %7907 = vmatprep.mubr.bf16.mxu0 %v7536
        %7908 = vmatmul.mubr.bf16.gmra.mrb[0].mxu0 %v7535
        %v7909 = vpop.f32.mrb[0].mxu0
        %v7910 = vadd.f32 %v6981, %v7909
        %v7911 = vpop.f32.mrb[0].mxu0
        %v7912 = vpop.f32.mrb[0].mxu0
        %v7913 = vadd.f32 %v6985, %v7912
        %v7914 = vpop.f32.mrb[0].mxu0
        %7915 = vmatprep.mubr.bf16.mxu0 %v7540
        %7916 = vmatmul.mubr.bf16.gmra.mrb[0].mxu0 %v7539
        %v7917 = vpop.f32.mrb[0].mxu0
        %v7918 = vadd.f32 %v6989, %v7917
        %v7919 = vpop.f32.mrb[0].mxu0
        %v7920 = vpop.f32.mrb[0].mxu0
        %v7921 = vadd.f32 %v6993, %v7920
        %v7922 = vpop.f32.mrb[0].mxu0
        %7923 = vmatprep.mubr.bf16.mxu0 %v7544
        %7924 = vmatmul.mubr.bf16.gmra.mrb[0].mxu0 %v7543
        %v7925 = vpop.f32.mrb[0].mxu0
        %v7926 = vadd.f32 %v6997, %v7925
        %v7927 = vpop.f32.mrb[0].mxu0
        %v7928 = vpop.f32.mrb[0].mxu0
        %v7929 = vadd.f32 %v7001, %v7928
        %v7930 = vpop.f32.mrb[0].mxu0
        %7931 = vmatprep.mubr.bf16.mxu0 %v7548
        %7932 = vmatmul.mubr.bf16.gmra.mrb[0].mxu0 %v7547
        %v7933 = vpop.f32.mrb[0].mxu0
        %v7934 = vadd.f32 %v7005, %v7933
        %v7935 = vpop.f32.mrb[0].mxu0
        %v7936 = vpop.f32.mrb[0].mxu0
        %v7937 = vadd.f32 %v7009, %v7936
        %v7938 = vpop.f32.mrb[0].mxu0
        %7939 = vmatprep.mubr.bf16.mxu0 %v7552
        %7940 = vmatmul.mubr.bf16.gmra.mrb[0].mxu0 %v7551
        %v7941 = vpop.f32.mrb[0].mxu0
        %v7942 = vadd.f32 %v7013, %v7941
        %v7943 = vpop.f32.mrb[0].mxu0
        %v7944 = vpop.f32.mrb[0].mxu0
        %v7945 = vadd.f32 %v7017, %v7944
        %v7946 = vpop.f32.mrb[0].mxu0
        %7947 = vmatprep.mubr.bf16.mxu0 %v7556
        %7948 = vmatmul.mubr.bf16.gmra.mrb[0].mxu0 %v7555
        %v7949 = vpop.f32.mrb[0].mxu0
        %v7950 = vadd.f32 %v7021, %v7949
        %v7951 = vpop.f32.mrb[0].mxu0
        %v7952 = vpop.f32.mrb[0].mxu0
        %v7953 = vadd.f32 %v7025, %v7952
        %v7954 = vpop.f32.mrb[0].mxu0
        %7955 = vmatprep.mubr.bf16.mxu0 %v7560
        %7956 = vmatmul.mubr.bf16.gmra.mrb[0].mxu0 %v7559
        %v7957 = vpop.f32.mrb[0].mxu0
        %v7958 = vadd.f32 %v7029, %v7957
        %v7959 = vpop.f32.mrb[0].mxu0
        %v7960 = vpop.f32.mrb[0].mxu0
        %v7961 = vadd.f32 %v7033, %v7960
        %v7962 = vpop.f32.mrb[0].mxu0
        %7963 = vmatprep.mubr.bf16.mxu0 %v7564
        %7964 = vmatmul.mubr.bf16.gmra.mrb[0].mxu0 %v7563
        %v7965 = vpop.f32.mrb[0].mxu0
        %v7966 = vadd.f32 %v7037, %v7965
        %v7967 = vpop.f32.mrb[0].mxu0
        %v7968 = vpop.f32.mrb[0].mxu0
        %v7969 = vadd.f32 %v7041, %v7968
        %v7970 = vpop.f32.mrb[0].mxu0
        %7971 = vmatprep.mubr.bf16.mxu0 %v7568
        %7972 = vmatmul.mubr.bf16.gmra.mrb[0].mxu0 %v7567
        %v7973 = vpop.f32.mrb[0].mxu0
        %v7974 = vadd.f32 %v7045, %v7973
        %v7975 = vpop.f32.mrb[0].mxu0
        %v7976 = vpop.f32.mrb[0].mxu0
        %v7977 = vadd.f32 %v7049, %v7976
        %v7978 = vpop.f32.mrb[0].mxu0
        %7979 = vmatprep.mubr.bf16.mxu0 %v7572
        %7980 = vmatmul.mubr.bf16.gmra.mrb[0].mxu0 %v7571
        %v7981 = vpop.f32.mrb[0].mxu0
        %v7982 = vadd.f32 %v7053, %v7981
        %v7983 = vpop.f32.mrb[0].mxu0
        %v7984 = vpop.f32.mrb[0].mxu0
        %v7985 = vadd.f32 %v7057, %v7984
        %v7986 = vpop.f32.mrb[0].mxu0
        %7987 = vmatprep.mubr.bf16.mxu0 %v7576
        %7988 = vmatmul.mubr.bf16.gmra.mrb[0].mxu0 %v7575
        %v7989 = vpop.f32.mrb[0].mxu0
        %v7990 = vadd.f32 %v7061, %v7989
        %v7991 = vpop.f32.mrb[0].mxu0
        %v7992 = vpop.f32.mrb[0].mxu0
        %v7993 = vadd.f32 %v7065, %v7992
        %v7994 = vpop.f32.mrb[0].mxu0
        %7995 = vdwg.mxu0
        %7996 = vmatprep.subr.bf16.mxu0 0
        %7997 = vmatpush1.bf16.msra.mxu0 %v6795
        %7998 = vmatprep.subr.bf16.mxu0 0
        %7999 = vmatpush1.bf16.msra.mxu0 %v6796
        %8000 = vmatprep.subr.bf16.mxu0 0
        %8001 = vmatpush1.bf16.msra.mxu0 %v6797
        %8002 = vmatprep.subr.bf16.mxu0 0
        %8003 = vmatpush1.bf16.msra.mxu0 %v6798
        %8004 = vmatprep.subr.bf16.mxu0 0
        %8005 = vmatpush1.bf16.msra.mxu0 %v6799
        %8006 = vmatprep.subr.bf16.mxu0 0
        %8007 = vmatpush1.bf16.msra.mxu0 %v6800
        %8008 = vmatprep.subr.bf16.mxu0 0
        %8009 = vmatpush1.bf16.msra.mxu0 %v6801
        %8010 = vmatprep.subr.bf16.mxu0 0
        %8011 = vmatpush1.bf16.msra.mxu0 %v6802
        %8012 = vmatprep.subr.bf16.mxu0 0
        %8013 = vmatpush1.bf16.msra.mxu0 %v6803
        %8014 = vmatprep.subr.bf16.mxu0 0
        %8015 = vmatpush1.bf16.msra.mxu0 %v6804
        %8016 = vmatprep.subr.bf16.mxu0 0
        %8017 = vmatpush1.bf16.msra.mxu0 %v6805
        %8018 = vmatprep.subr.bf16.mxu0 0
        %8019 = vmatpush1.bf16.msra.mxu0 %v6806
        %8020 = vmatprep.subr.bf16.mxu0 0
        %8021 = vmatpush1.bf16.msra.mxu0 %v6807
        %8022 = vmatprep.subr.bf16.mxu0 0
        %8023 = vmatpush1.bf16.msra.mxu0 %v6808
        %8024 = vmatprep.subr.bf16.mxu0 0
        %8025 = vmatpush1.bf16.msra.mxu0 %v6809
        %8026 = vmatprep.subr.bf16.mxu0 0
        %8027 = vmatpush1.bf16.msra.mxu0 %v6810
        %8028 = vmatprep.mubr.bf16.mxu0 %v7454
        %8029 = vmatmul.mubr.bf16.gmra.mrb[0].mxu0 %v7453
        %v8030 = vpop.f32.mrb[0].mxu0
        %v8031 = vadd.f32 %v7742, %v8030
        %v8032 = vpop.f32.mrb[0].mxu0
        %v8033 = vpop.f32.mrb[0].mxu0
        %v8034 = vadd.f32 %v7745, %v8033
        %v8035 = vpop.f32.mrb[0].mxu0
        %8036 = vmatprep.mubr.bf16.mxu0 %v7458
        %8037 = vmatmul.mubr.bf16.gmra.mrb[0].mxu0 %v7457
        %v8038 = vpop.f32.mrb[0].mxu0
        %v8039 = vadd.f32 %v7750, %v8038
        %v8040 = vpop.f32.mrb[0].mxu0
        %v8041 = vpop.f32.mrb[0].mxu0
        %v8042 = vadd.f32 %v7753, %v8041
        %v8043 = vpop.f32.mrb[0].mxu0
        %8044 = vmatprep.mubr.bf16.mxu0 %v7462
        %8045 = vmatmul.mubr.bf16.gmra.mrb[0].mxu0 %v7461
        %v8046 = vpop.f32.mrb[0].mxu0
        %v8047 = vadd.f32 %v7758, %v8046
        %v8048 = vpop.f32.mrb[0].mxu0
        %v8049 = vpop.f32.mrb[0].mxu0
        %v8050 = vadd.f32 %v7761, %v8049
        %v8051 = vpop.f32.mrb[0].mxu0
        %8052 = vmatprep.mubr.bf16.mxu0 %v7466
        %8053 = vmatmul.mubr.bf16.gmra.mrb[0].mxu0 %v7465
        %v8054 = vpop.f32.mrb[0].mxu0
        %v8055 = vadd.f32 %v7766, %v8054
        %v8056 = vpop.f32.mrb[0].mxu0
        %v8057 = vpop.f32.mrb[0].mxu0
        %v8058 = vadd.f32 %v7769, %v8057
        %v8059 = vpop.f32.mrb[0].mxu0
        %8060 = vmatprep.mubr.bf16.mxu0 %v7470
        %8061 = vmatmul.mubr.bf16.gmra.mrb[0].mxu0 %v7469
        %v8062 = vpop.f32.mrb[0].mxu0
        %v8063 = vadd.f32 %v7774, %v8062
        %v8064 = vpop.f32.mrb[0].mxu0
        %v8065 = vpop.f32.mrb[0].mxu0
        %v8066 = vadd.f32 %v7777, %v8065
        %v8067 = vpop.f32.mrb[0].mxu0
        %8068 = vmatprep.mubr.bf16.mxu0 %v7474
        %8069 = vmatmul.mubr.bf16.gmra.mrb[0].mxu0 %v7473
        %v8070 = vpop.f32.mrb[0].mxu0
        %v8071 = vadd.f32 %v7782, %v8070
        %v8072 = vpop.f32.mrb[0].mxu0
        %v8073 = vpop.f32.mrb[0].mxu0
        %v8074 = vadd.f32 %v7785, %v8073
        %v8075 = vpop.f32.mrb[0].mxu0
        %8076 = vmatprep.mubr.bf16.mxu0 %v7478
        %8077 = vmatmul.mubr.bf16.gmra.mrb[0].mxu0 %v7477
        %v8078 = vpop.f32.mrb[0].mxu0
        %v8079 = vadd.f32 %v7790, %v8078
        %v8080 = vpop.f32.mrb[0].mxu0
        %v8081 = vpop.f32.mrb[0].mxu0
        %v8082 = vadd.f32 %v7793, %v8081
        %v8083 = vpop.f32.mrb[0].mxu0
        %8084 = vmatprep.mubr.bf16.mxu0 %v7482
        %8085 = vmatmul.mubr.bf16.gmra.mrb[0].mxu0 %v7481
        %v8086 = vpop.f32.mrb[0].mxu0
        %v8087 = vadd.f32 %v7798, %v8086
        %v8088 = vpop.f32.mrb[0].mxu0
        %v8089 = vpop.f32.mrb[0].mxu0
        %v8090 = vadd.f32 %v7801, %v8089
        %v8091 = vpop.f32.mrb[0].mxu0
        %8092 = vmatprep.mubr.bf16.mxu0 %v7486
        %8093 = vmatmul.mubr.bf16.gmra.mrb[0].mxu0 %v7485
        %v8094 = vpop.f32.mrb[0].mxu0
        %v8095 = vadd.f32 %v7806, %v8094
        %v8096 = vpop.f32.mrb[0].mxu0
        %v8097 = vpop.f32.mrb[0].mxu0
        %v8098 = vadd.f32 %v7809, %v8097
        %v8099 = vpop.f32.mrb[0].mxu0
        %8100 = vmatprep.mubr.bf16.mxu0 %v7490
        %8101 = vmatmul.mubr.bf16.gmra.mrb[0].mxu0 %v7489
        %v8102 = vpop.f32.mrb[0].mxu0
        %v8103 = vadd.f32 %v7814, %v8102
        %v8104 = vpop.f32.mrb[0].mxu0
        %v8105 = vpop.f32.mrb[0].mxu0
        %v8106 = vadd.f32 %v7817, %v8105
        %v8107 = vpop.f32.mrb[0].mxu0
        %8108 = vmatprep.mubr.bf16.mxu0 %v7494
        %8109 = vmatmul.mubr.bf16.gmra.mrb[0].mxu0 %v7493
        %v8110 = vpop.f32.mrb[0].mxu0
        %v8111 = vadd.f32 %v7822, %v8110
        %v8112 = vpop.f32.mrb[0].mxu0
        %v8113 = vpop.f32.mrb[0].mxu0
        %v8114 = vadd.f32 %v7825, %v8113
        %v8115 = vpop.f32.mrb[0].mxu0
        %8116 = vmatprep.mubr.bf16.mxu0 %v7498
        %8117 = vmatmul.mubr.bf16.gmra.mrb[0].mxu0 %v7497
        %v8118 = vpop.f32.mrb[0].mxu0
        %v8119 = vadd.f32 %v7830, %v8118
        %v8120 = vpop.f32.mrb[0].mxu0
        %v8121 = vpop.f32.mrb[0].mxu0
        %v8122 = vadd.f32 %v7833, %v8121
        %v8123 = vpop.f32.mrb[0].mxu0
        %8124 = vmatprep.mubr.bf16.mxu0 %v7502
        %8125 = vmatmul.mubr.bf16.gmra.mrb[0].mxu0 %v7501
        %v8126 = vpop.f32.mrb[0].mxu0
        %v8127 = vadd.f32 %v7838, %v8126
        %v8128 = vpop.f32.mrb[0].mxu0
        %v8129 = vpop.f32.mrb[0].mxu0
        %v8130 = vadd.f32 %v7841, %v8129
        %v8131 = vpop.f32.mrb[0].mxu0
        %8132 = vmatprep.mubr.bf16.mxu0 %v7506
        %8133 = vmatmul.mubr.bf16.gmra.mrb[0].mxu0 %v7505
        %v8134 = vpop.f32.mrb[0].mxu0
        %v8135 = vadd.f32 %v7846, %v8134
        %v8136 = vpop.f32.mrb[0].mxu0
        %v8137 = vpop.f32.mrb[0].mxu0
        %v8138 = vadd.f32 %v7849, %v8137
        %v8139 = vpop.f32.mrb[0].mxu0
        %8140 = vmatprep.mubr.bf16.mxu0 %v7510
        %8141 = vmatmul.mubr.bf16.gmra.mrb[0].mxu0 %v7509
        %v8142 = vpop.f32.mrb[0].mxu0
        %v8143 = vadd.f32 %v7854, %v8142
        %v8144 = vpop.f32.mrb[0].mxu0
        %v8145 = vpop.f32.mrb[0].mxu0
        %v8146 = vadd.f32 %v7857, %v8145
        %v8147 = vpop.f32.mrb[0].mxu0
        %8148 = vmatprep.mubr.bf16.mxu0 %v7514
        %8149 = vmatmul.mubr.bf16.gmra.mrb[0].mxu0 %v7513
        %v8150 = vpop.f32.mrb[0].mxu0
        %v8151 = vadd.f32 %v7862, %v8150
        %v8152 = vpop.f32.mrb[0].mxu0
        %v8153 = vpop.f32.mrb[0].mxu0
        %v8154 = vadd.f32 %v7865, %v8153
        %v8155 = vpop.f32.mrb[0].mxu0
        %8156 = vmatprep.mubr.bf16.mxu0 %v7518
        %8157 = vmatmul.mubr.bf16.gmra.mrb[0].mxu0 %v7517
        %v8158 = vpop.f32.mrb[0].mxu0
        %v8159 = vadd.f32 %v7870, %v8158
        %v8160 = vpop.f32.mrb[0].mxu0
        %v8161 = vpop.f32.mrb[0].mxu0
        %v8162 = vadd.f32 %v7873, %v8161
        %v8163 = vpop.f32.mrb[0].mxu0
        %8164 = vmatprep.mubr.bf16.mxu0 %v7522
        %8165 = vmatmul.mubr.bf16.gmra.mrb[0].mxu0 %v7521
        %v8166 = vpop.f32.mrb[0].mxu0
        %v8167 = vadd.f32 %v7878, %v8166
        %v8168 = vpop.f32.mrb[0].mxu0
        %v8169 = vpop.f32.mrb[0].mxu0
        %v8170 = vadd.f32 %v7881, %v8169
        %v8171 = vpop.f32.mrb[0].mxu0
        %8172 = vmatprep.mubr.bf16.mxu0 %v7526
        %8173 = vmatmul.mubr.bf16.gmra.mrb[0].mxu0 %v7525
        %v8174 = vpop.f32.mrb[0].mxu0
        %v8175 = vadd.f32 %v7886, %v8174
        %v8176 = vpop.f32.mrb[0].mxu0
        %v8177 = vpop.f32.mrb[0].mxu0
        %v8178 = vadd.f32 %v7889, %v8177
        %v8179 = vpop.f32.mrb[0].mxu0
        %8180 = vmatprep.mubr.bf16.mxu0 %v7530
        %8181 = vmatmul.mubr.bf16.gmra.mrb[0].mxu0 %v7529
        %v8182 = vpop.f32.mrb[0].mxu0
        %v8183 = vadd.f32 %v7894, %v8182
        %v8184 = vpop.f32.mrb[0].mxu0
        %v8185 = vpop.f32.mrb[0].mxu0
        %v8186 = vadd.f32 %v7897, %v8185
        %v8187 = vpop.f32.mrb[0].mxu0
        %8188 = vmatprep.mubr.bf16.mxu0 %v7534
        %8189 = vmatmul.mubr.bf16.gmra.mrb[0].mxu0 %v7533
        %v8190 = vpop.f32.mrb[0].mxu0
        %v8191 = vadd.f32 %v7902, %v8190
        %v8192 = vpop.f32.mrb[0].mxu0
        %v8193 = vpop.f32.mrb[0].mxu0
        %v8194 = vadd.f32 %v7905, %v8193
        %v8195 = vpop.f32.mrb[0].mxu0
        %8196 = vmatprep.mubr.bf16.mxu0 %v7538
        %8197 = vmatmul.mubr.bf16.gmra.mrb[0].mxu0 %v7537
        %v8198 = vpop.f32.mrb[0].mxu0
        %v8199 = vadd.f32 %v7910, %v8198
        %v8200 = vpop.f32.mrb[0].mxu0
        %v8201 = vpop.f32.mrb[0].mxu0
        %v8202 = vadd.f32 %v7913, %v8201
        %v8203 = vpop.f32.mrb[0].mxu0
        %8204 = vmatprep.mubr.bf16.mxu0 %v7542
        %8205 = vmatmul.mubr.bf16.gmra.mrb[0].mxu0 %v7541
        %v8206 = vpop.f32.mrb[0].mxu0
        %v8207 = vadd.f32 %v7918, %v8206
        %v8208 = vpop.f32.mrb[0].mxu0
        %v8209 = vpop.f32.mrb[0].mxu0
        %v8210 = vadd.f32 %v7921, %v8209
        %v8211 = vpop.f32.mrb[0].mxu0
        %8212 = vmatprep.mubr.bf16.mxu0 %v7546
        %8213 = vmatmul.mubr.bf16.gmra.mrb[0].mxu0 %v7545
        %v8214 = vpop.f32.mrb[0].mxu0
        %v8215 = vadd.f32 %v7926, %v8214
        %v8216 = vpop.f32.mrb[0].mxu0
        %v8217 = vpop.f32.mrb[0].mxu0
        %v8218 = vadd.f32 %v7929, %v8217
        %v8219 = vpop.f32.mrb[0].mxu0
        %8220 = vmatprep.mubr.bf16.mxu0 %v7550
        %8221 = vmatmul.mubr.bf16.gmra.mrb[0].mxu0 %v7549
        %v8222 = vpop.f32.mrb[0].mxu0
        %v8223 = vadd.f32 %v7934, %v8222
        %v8224 = vpop.f32.mrb[0].mxu0
        %v8225 = vpop.f32.mrb[0].mxu0
        %v8226 = vadd.f32 %v7937, %v8225
        %v8227 = vpop.f32.mrb[0].mxu0
        %8228 = vmatprep.mubr.bf16.mxu0 %v7554
        %8229 = vmatmul.mubr.bf16.gmra.mrb[0].mxu0 %v7553
        %v8230 = vpop.f32.mrb[0].mxu0
        %v8231 = vadd.f32 %v7942, %v8230
        %v8232 = vpop.f32.mrb[0].mxu0
        %v8233 = vpop.f32.mrb[0].mxu0
        %v8234 = vadd.f32 %v7945, %v8233
        %v8235 = vpop.f32.mrb[0].mxu0
        %8236 = vmatprep.mubr.bf16.mxu0 %v7558
        %8237 = vmatmul.mubr.bf16.gmra.mrb[0].mxu0 %v7557
        %v8238 = vpop.f32.mrb[0].mxu0
        %v8239 = vadd.f32 %v7950, %v8238
        %v8240 = vpop.f32.mrb[0].mxu0
        %v8241 = vpop.f32.mrb[0].mxu0
        %v8242 = vadd.f32 %v7953, %v8241
        %v8243 = vpop.f32.mrb[0].mxu0
        %8244 = vmatprep.mubr.bf16.mxu0 %v7562
        %8245 = vmatmul.mubr.bf16.gmra.mrb[0].mxu0 %v7561
        %v8246 = vpop.f32.mrb[0].mxu0
        %v8247 = vadd.f32 %v7958, %v8246
        %v8248 = vpop.f32.mrb[0].mxu0
        %v8249 = vpop.f32.mrb[0].mxu0
        %v8250 = vadd.f32 %v7961, %v8249
        %v8251 = vpop.f32.mrb[0].mxu0
        %8252 = vmatprep.mubr.bf16.mxu0 %v7566
        %8253 = vmatmul.mubr.bf16.gmra.mrb[0].mxu0 %v7565
        %v8254 = vpop.f32.mrb[0].mxu0
        %v8255 = vadd.f32 %v7966, %v8254
        %v8256 = vpop.f32.mrb[0].mxu0
        %v8257 = vpop.f32.mrb[0].mxu0
        %v8258 = vadd.f32 %v7969, %v8257
        %v8259 = vpop.f32.mrb[0].mxu0
        %8260 = vmatprep.mubr.bf16.mxu0 %v7570
        %8261 = vmatmul.mubr.bf16.gmra.mrb[0].mxu0 %v7569
        %v8262 = vpop.f32.mrb[0].mxu0
        %v8263 = vadd.f32 %v7974, %v8262
        %v8264 = vpop.f32.mrb[0].mxu0
        %v8265 = vpop.f32.mrb[0].mxu0
        %v8266 = vadd.f32 %v7977, %v8265
        %v8267 = vpop.f32.mrb[0].mxu0
        %8268 = vmatprep.mubr.bf16.mxu0 %v7574
        %8269 = vmatmul.mubr.bf16.gmra.mrb[0].mxu0 %v7573
        %v8270 = vpop.f32.mrb[0].mxu0
        %v8271 = vadd.f32 %v7982, %v8270
        %v8272 = vpop.f32.mrb[0].mxu0
        %v8273 = vpop.f32.mrb[0].mxu0
        %v8274 = vadd.f32 %v7985, %v8273
        %v8275 = vpop.f32.mrb[0].mxu0
        %8276 = vmatprep.mubr.bf16.mxu0 %v7578
        %8277 = vmatmul.mubr.bf16.gmra.mrb[0].mxu0 %v7577
        %v8278 = vpop.f32.mrb[0].mxu0
        %v8279 = vadd.f32 %v7990, %v8278
        %v8280 = vpop.f32.mrb[0].mxu0
        %v8281 = vpop.f32.mrb[0].mxu0
        %v8282 = vadd.f32 %v7993, %v8281
        %v8283 = vpop.f32.mrb[0].mxu0
        %8284 = vdwg.mxu0
        %v8285 = vmax.f32 %v8031, 0.0
        %v8286 = vmax.f32 %v8034, 0.0
        %v8287 = vmax.f32 %v8039, 0.0
        %v8288 = vmax.f32 %v8042, 0.0
        %v8289 = vmax.f32 %v8047, 0.0
        %v8290 = vmax.f32 %v8050, 0.0
        %v8291 = vmax.f32 %v8055, 0.0
        %v8292 = vmax.f32 %v8058, 0.0
        %v8293 = vmax.f32 %v8063, 0.0
        %v8294 = vmax.f32 %v8066, 0.0
        %v8295 = vmax.f32 %v8071, 0.0
        %v8296 = vmax.f32 %v8074, 0.0
        %v8297 = vmax.f32 %v8079, 0.0
        %v8298 = vmax.f32 %v8082, 0.0
        %v8299 = vmax.f32 %v8087, 0.0
        %v8300 = vmax.f32 %v8090, 0.0
        %v8301 = vmax.f32 %v8095, 0.0
        %v8302 = vmax.f32 %v8098, 0.0
        %v8303 = vmax.f32 %v8103, 0.0
        %v8304 = vmax.f32 %v8106, 0.0
        %v8305 = vmax.f32 %v8111, 0.0
        %v8306 = vmax.f32 %v8114, 0.0
        %v8307 = vmax.f32 %v8119, 0.0
        %v8308 = vmax.f32 %v8122, 0.0
        %v8309 = vmax.f32 %v8127, 0.0
        %v8310 = vmax.f32 %v8130, 0.0
        %v8311 = vmax.f32 %v8135, 0.0
        %v8312 = vmax.f32 %v8138, 0.0
        %v8313 = vmax.f32 %v8143, 0.0
        %v8314 = vmax.f32 %v8146, 0.0
        %v8315 = vmax.f32 %v8151, 0.0
        %v8316 = vmax.f32 %v8154, 0.0
        %v8317 = vmax.f32 %v8159, 0.0
        %v8318 = vmax.f32 %v8162, 0.0
        %v8319 = vmax.f32 %v8167, 0.0
        %v8320 = vmax.f32 %v8170, 0.0
        %v8321 = vmax.f32 %v8175, 0.0
        %v8322 = vmax.f32 %v8178, 0.0
        %v8323 = vmax.f32 %v8183, 0.0
        %v8324 = vmax.f32 %v8186, 0.0
        %v8325 = vmax.f32 %v8191, 0.0
        %v8326 = vmax.f32 %v8194, 0.0
        %v8327 = vmax.f32 %v8199, 0.0
        %v8328 = vmax.f32 %v8202, 0.0
        %v8329 = vmax.f32 %v8207, 0.0
        %v8330 = vmax.f32 %v8210, 0.0
        %v8331 = vmax.f32 %v8215, 0.0
        %v8332 = vmax.f32 %v8218, 0.0
        %v8333 = vmax.f32 %v8223, 0.0
        %v8334 = vmax.f32 %v8226, 0.0
        %v8335 = vmax.f32 %v8231, 0.0
        %v8336 = vmax.f32 %v8234, 0.0
        %v8337 = vmax.f32 %v8239, 0.0
        %v8338 = vmax.f32 %v8242, 0.0
        %v8339 = vmax.f32 %v8247, 0.0
        %v8340 = vmax.f32 %v8250, 0.0
        %v8341 = vmax.f32 %v8255, 0.0
        %v8342 = vmax.f32 %v8258, 0.0
        %v8343 = vmax.f32 %v8263, 0.0
        %v8344 = vmax.f32 %v8266, 0.0
        %v8345 = vmax.f32 %v8271, 0.0
        %v8346 = vmax.f32 %v8274, 0.0
        %v8347 = vmax.f32 %v8279, 0.0
        %v8348 = vmax.f32 %v8282, 0.0
        %v8349 = vpack.c.bf16 %v6588, %v6587
        %v8350 = vpack.c.bf16 %v6590, %v6589
        %v8351 = vpack.c.bf16 %v6592, %v6591
        %v8352 = vpack.c.bf16 %v6594, %v6593
        %v8353 = vpack.c.bf16 %v6596, %v6595
        %v8354 = vpack.c.bf16 %v6598, %v6597
        %v8355 = vpack.c.bf16 %v6600, %v6599
        %v8356 = vpack.c.bf16 %v6602, %v6601
        %v8357 = vpack.c.bf16 %v6604, %v6603
        %v8358 = vpack.c.bf16 %v6606, %v6605
        %v8359 = vpack.c.bf16 %v6608, %v6607
        %v8360 = vpack.c.bf16 %v6610, %v6609
        %v8361 = vpack.c.bf16 %v6612, %v6611
        %v8362 = vpack.c.bf16 %v6614, %v6613
        %v8363 = vpack.c.bf16 %v6616, %v6615
        %v8364 = vpack.c.bf16 %v6618, %v6617
        %v8365 = vpack.c.bf16 %v6620, %v6619
        %v8366 = vpack.c.bf16 %v6622, %v6621
        %v8367 = vpack.c.bf16 %v6624, %v6623
        %v8368 = vpack.c.bf16 %v6626, %v6625
        %v8369 = vpack.c.bf16 %v6628, %v6627
        %v8370 = vpack.c.bf16 %v6630, %v6629
        %v8371 = vpack.c.bf16 %v6632, %v6631
        %v8372 = vpack.c.bf16 %v6634, %v6633
        %v8373 = vpack.c.bf16 %v6636, %v6635
        %v8374 = vpack.c.bf16 %v6638, %v6637
        %v8375 = vpack.c.bf16 %v6640, %v6639
        %v8376 = vpack.c.bf16 %v6642, %v6641
        %v8377 = vpack.c.bf16 %v6644, %v6643
        %v8378 = vpack.c.bf16 %v6646, %v6645
        %v8379 = vpack.c.bf16 %v6648, %v6647
        %v8380 = vpack.c.bf16 %v6650, %v6649
        %8381 = vmatprep.subr.bf16.mxu0 0
        %8382 = vmatpush1.bf16.msra.mxu0 %v8349
        %8383 = vmatprep.subr.bf16.mxu0 0
        %8384 = vmatpush1.bf16.msra.mxu0 %v8350
        %8385 = vmatprep.subr.bf16.mxu0 0
        %8386 = vmatpush1.bf16.msra.mxu0 %v8351
        %8387 = vmatprep.subr.bf16.mxu0 0
        %8388 = vmatpush1.bf16.msra.mxu0 %v8352
        %8389 = vmatprep.subr.bf16.mxu0 0
        %8390 = vmatpush1.bf16.msra.mxu0 %v8353
        %8391 = vmatprep.subr.bf16.mxu0 0
        %8392 = vmatpush1.bf16.msra.mxu0 %v8354
        %8393 = vmatprep.subr.bf16.mxu0 0
        %8394 = vmatpush1.bf16.msra.mxu0 %v8355
        %8395 = vmatprep.subr.bf16.mxu0 0
        %8396 = vmatpush1.bf16.msra.mxu0 %v8356
        %8397 = vmatprep.subr.bf16.mxu0 0
        %8398 = vmatpush1.bf16.msra.mxu0 %v8357
        %8399 = vmatprep.subr.bf16.mxu0 0
        %8400 = vmatpush1.bf16.msra.mxu0 %v8358
        %8401 = vmatprep.subr.bf16.mxu0 0
        %8402 = vmatpush1.bf16.msra.mxu0 %v8359
        %8403 = vmatprep.subr.bf16.mxu0 0
        %8404 = vmatpush1.bf16.msra.mxu0 %v8360
        %8405 = vmatprep.subr.bf16.mxu0 0
        %8406 = vmatpush1.bf16.msra.mxu0 %v8361
        %8407 = vmatprep.subr.bf16.mxu0 0
        %8408 = vmatpush1.bf16.msra.mxu0 %v8362
        %8409 = vmatprep.subr.bf16.mxu0 0
        %8410 = vmatpush1.bf16.msra.mxu0 %v8363
        %8411 = vmatprep.subr.bf16.mxu0 0
        %8412 = vmatpush1.bf16.msra.mxu0 %v8364
        %8413 = vmatprep.mubr.bf16.mxu0 %v7452
        %8414 = vmatmul.mubr.bf16.gmra.mrb[0].mxu0 %v7451
        %v8415 = vpop.f32.mrb[0].mxu0
        %v8416 = vadd.f32 %v6813, %v8415
        %v8417 = vpop.f32.mrb[0].mxu0
        %v8418 = vpop.f32.mrb[0].mxu0
        %v8419 = vadd.f32 %v6817, %v8418
        %v8420 = vpop.f32.mrb[0].mxu0
        %8421 = vmatprep.mubr.bf16.mxu0 %v7456
        %8422 = vmatmul.mubr.bf16.gmra.mrb[0].mxu0 %v7455
        %v8423 = vpop.f32.mrb[0].mxu0
        %v8424 = vadd.f32 %v6821, %v8423
        %v8425 = vpop.f32.mrb[0].mxu0
        %v8426 = vpop.f32.mrb[0].mxu0
        %v8427 = vadd.f32 %v6825, %v8426
        %v8428 = vpop.f32.mrb[0].mxu0
        %8429 = vmatprep.mubr.bf16.mxu0 %v7460
        %8430 = vmatmul.mubr.bf16.gmra.mrb[0].mxu0 %v7459
        %v8431 = vpop.f32.mrb[0].mxu0
        %v8432 = vadd.f32 %v6829, %v8431
        %v8433 = vpop.f32.mrb[0].mxu0
        %v8434 = vpop.f32.mrb[0].mxu0
        %v8435 = vadd.f32 %v6833, %v8434
        %v8436 = vpop.f32.mrb[0].mxu0
        %8437 = vmatprep.mubr.bf16.mxu0 %v7464
        %8438 = vmatmul.mubr.bf16.gmra.mrb[0].mxu0 %v7463
        %v8439 = vpop.f32.mrb[0].mxu0
        %v8440 = vadd.f32 %v6837, %v8439
        %v8441 = vpop.f32.mrb[0].mxu0
        %v8442 = vpop.f32.mrb[0].mxu0
        %v8443 = vadd.f32 %v6841, %v8442
        %v8444 = vpop.f32.mrb[0].mxu0
        %8445 = vmatprep.mubr.bf16.mxu0 %v7468
        %8446 = vmatmul.mubr.bf16.gmra.mrb[0].mxu0 %v7467
        %v8447 = vpop.f32.mrb[0].mxu0
        %v8448 = vadd.f32 %v6845, %v8447
        %v8449 = vpop.f32.mrb[0].mxu0
        %v8450 = vpop.f32.mrb[0].mxu0
        %v8451 = vadd.f32 %v6849, %v8450
        %v8452 = vpop.f32.mrb[0].mxu0
        %8453 = vmatprep.mubr.bf16.mxu0 %v7472
        %8454 = vmatmul.mubr.bf16.gmra.mrb[0].mxu0 %v7471
        %v8455 = vpop.f32.mrb[0].mxu0
        %v8456 = vadd.f32 %v6853, %v8455
        %v8457 = vpop.f32.mrb[0].mxu0
        %v8458 = vpop.f32.mrb[0].mxu0
        %v8459 = vadd.f32 %v6857, %v8458
        %v8460 = vpop.f32.mrb[0].mxu0
        %8461 = vmatprep.mubr.bf16.mxu0 %v7476
        %8462 = vmatmul.mubr.bf16.gmra.mrb[0].mxu0 %v7475
        %v8463 = vpop.f32.mrb[0].mxu0
        %v8464 = vadd.f32 %v6861, %v8463
        %v8465 = vpop.f32.mrb[0].mxu0
        %v8466 = vpop.f32.mrb[0].mxu0
        %v8467 = vadd.f32 %v6865, %v8466
        %v8468 = vpop.f32.mrb[0].mxu0
        %8469 = vmatprep.mubr.bf16.mxu0 %v7480
        %8470 = vmatmul.mubr.bf16.gmra.mrb[0].mxu0 %v7479
        %v8471 = vpop.f32.mrb[0].mxu0
        %v8472 = vadd.f32 %v6869, %v8471
        %v8473 = vpop.f32.mrb[0].mxu0
        %v8474 = vpop.f32.mrb[0].mxu0
        %v8475 = vadd.f32 %v6873, %v8474
        %v8476 = vpop.f32.mrb[0].mxu0
        %8477 = vmatprep.mubr.bf16.mxu0 %v7484
        %8478 = vmatmul.mubr.bf16.gmra.mrb[0].mxu0 %v7483
        %v8479 = vpop.f32.mrb[0].mxu0
        %v8480 = vadd.f32 %v6877, %v8479
        %v8481 = vpop.f32.mrb[0].mxu0
        %v8482 = vpop.f32.mrb[0].mxu0
        %v8483 = vadd.f32 %v6881, %v8482
        %v8484 = vpop.f32.mrb[0].mxu0
        %8485 = vmatprep.mubr.bf16.mxu0 %v7488
        %8486 = vmatmul.mubr.bf16.gmra.mrb[0].mxu0 %v7487
        %v8487 = vpop.f32.mrb[0].mxu0
        %v8488 = vadd.f32 %v6885, %v8487
        %v8489 = vpop.f32.mrb[0].mxu0
        %v8490 = vpop.f32.mrb[0].mxu0
        %v8491 = vadd.f32 %v6889, %v8490
        %v8492 = vpop.f32.mrb[0].mxu0
        %8493 = vmatprep.mubr.bf16.mxu0 %v7492
        %8494 = vmatmul.mubr.bf16.gmra.mrb[0].mxu0 %v7491
        %v8495 = vpop.f32.mrb[0].mxu0
        %v8496 = vadd.f32 %v6893, %v8495
        %v8497 = vpop.f32.mrb[0].mxu0
        %v8498 = vpop.f32.mrb[0].mxu0
        %v8499 = vadd.f32 %v6897, %v8498
        %v8500 = vpop.f32.mrb[0].mxu0
        %8501 = vmatprep.mubr.bf16.mxu0 %v7496
        %8502 = vmatmul.mubr.bf16.gmra.mrb[0].mxu0 %v7495
        %v8503 = vpop.f32.mrb[0].mxu0
        %v8504 = vadd.f32 %v6901, %v8503
        %v8505 = vpop.f32.mrb[0].mxu0
        %v8506 = vpop.f32.mrb[0].mxu0
        %v8507 = vadd.f32 %v6905, %v8506
        %v8508 = vpop.f32.mrb[0].mxu0
        %8509 = vmatprep.mubr.bf16.mxu0 %v7500
        %8510 = vmatmul.mubr.bf16.gmra.mrb[0].mxu0 %v7499
        %v8511 = vpop.f32.mrb[0].mxu0
        %v8512 = vadd.f32 %v6909, %v8511
        %v8513 = vpop.f32.mrb[0].mxu0
        %v8514 = vpop.f32.mrb[0].mxu0
        %v8515 = vadd.f32 %v6913, %v8514
        %v8516 = vpop.f32.mrb[0].mxu0
        %8517 = vmatprep.mubr.bf16.mxu0 %v7504
        %8518 = vmatmul.mubr.bf16.gmra.mrb[0].mxu0 %v7503
        %v8519 = vpop.f32.mrb[0].mxu0
        %v8520 = vadd.f32 %v6917, %v8519
        %v8521 = vpop.f32.mrb[0].mxu0
        %v8522 = vpop.f32.mrb[0].mxu0
        %v8523 = vadd.f32 %v6921, %v8522
        %v8524 = vpop.f32.mrb[0].mxu0
        %8525 = vmatprep.mubr.bf16.mxu0 %v7508
        %8526 = vmatmul.mubr.bf16.gmra.mrb[0].mxu0 %v7507
        %v8527 = vpop.f32.mrb[0].mxu0
        %v8528 = vadd.f32 %v6925, %v8527
        %v8529 = vpop.f32.mrb[0].mxu0
        %v8530 = vpop.f32.mrb[0].mxu0
        %v8531 = vadd.f32 %v6929, %v8530
        %v8532 = vpop.f32.mrb[0].mxu0
        %8533 = vmatprep.mubr.bf16.mxu0 %v7512
        %8534 = vmatmul.mubr.bf16.gmra.mrb[0].mxu0 %v7511
        %v8535 = vpop.f32.mrb[0].mxu0
        %v8536 = vadd.f32 %v6933, %v8535
        %v8537 = vpop.f32.mrb[0].mxu0
        %v8538 = vpop.f32.mrb[0].mxu0
        %v8539 = vadd.f32 %v6937, %v8538
        %v8540 = vpop.f32.mrb[0].mxu0
        %8541 = vmatprep.mubr.bf16.mxu0 %v7516
        %8542 = vmatmul.mubr.bf16.gmra.mrb[0].mxu0 %v7515
        %v8543 = vpop.f32.mrb[0].mxu0
        %v8544 = vadd.f32 %v6941, %v8543
        %v8545 = vpop.f32.mrb[0].mxu0
        %v8546 = vpop.f32.mrb[0].mxu0
        %v8547 = vadd.f32 %v6945, %v8546
        %v8548 = vpop.f32.mrb[0].mxu0
        %8549 = vmatprep.mubr.bf16.mxu0 %v7520
        %8550 = vmatmul.mubr.bf16.gmra.mrb[0].mxu0 %v7519
        %v8551 = vpop.f32.mrb[0].mxu0
        %v8552 = vadd.f32 %v6949, %v8551
        %v8553 = vpop.f32.mrb[0].mxu0
        %v8554 = vpop.f32.mrb[0].mxu0
        %v8555 = vadd.f32 %v6953, %v8554
        %v8556 = vpop.f32.mrb[0].mxu0
        %8557 = vmatprep.mubr.bf16.mxu0 %v7524
        %8558 = vmatmul.mubr.bf16.gmra.mrb[0].mxu0 %v7523
        %v8559 = vpop.f32.mrb[0].mxu0
        %v8560 = vadd.f32 %v6957, %v8559
        %v8561 = vpop.f32.mrb[0].mxu0
        %v8562 = vpop.f32.mrb[0].mxu0
        %v8563 = vadd.f32 %v6961, %v8562
        %v8564 = vpop.f32.mrb[0].mxu0
        %8565 = vmatprep.mubr.bf16.mxu0 %v7528
        %8566 = vmatmul.mubr.bf16.gmra.mrb[0].mxu0 %v7527
        %v8567 = vpop.f32.mrb[0].mxu0
        %v8568 = vadd.f32 %v6965, %v8567
        %v8569 = vpop.f32.mrb[0].mxu0
        %v8570 = vpop.f32.mrb[0].mxu0
        %v8571 = vadd.f32 %v6969, %v8570
        %v8572 = vpop.f32.mrb[0].mxu0
        %8573 = vmatprep.mubr.bf16.mxu0 %v7532
        %8574 = vmatmul.mubr.bf16.gmra.mrb[0].mxu0 %v7531
        %v8575 = vpop.f32.mrb[0].mxu0
        %v8576 = vadd.f32 %v6973, %v8575
        %v8577 = vpop.f32.mrb[0].mxu0
        %v8578 = vpop.f32.mrb[0].mxu0
        %v8579 = vadd.f32 %v6977, %v8578
        %v8580 = vpop.f32.mrb[0].mxu0
        %8581 = vmatprep.mubr.bf16.mxu0 %v7536
        %8582 = vmatmul.mubr.bf16.gmra.mrb[0].mxu0 %v7535
        %v8583 = vpop.f32.mrb[0].mxu0
        %v8584 = vadd.f32 %v6981, %v8583
        %v8585 = vpop.f32.mrb[0].mxu0
        %v8586 = vpop.f32.mrb[0].mxu0
        %v8587 = vadd.f32 %v6985, %v8586
        %v8588 = vpop.f32.mrb[0].mxu0
        %8589 = vmatprep.mubr.bf16.mxu0 %v7540
        %8590 = vmatmul.mubr.bf16.gmra.mrb[0].mxu0 %v7539
        %v8591 = vpop.f32.mrb[0].mxu0
        %v8592 = vadd.f32 %v6989, %v8591
        %v8593 = vpop.f32.mrb[0].mxu0
        %v8594 = vpop.f32.mrb[0].mxu0
        %v8595 = vadd.f32 %v6993, %v8594
        %v8596 = vpop.f32.mrb[0].mxu0
        %8597 = vmatprep.mubr.bf16.mxu0 %v7544
        %8598 = vmatmul.mubr.bf16.gmra.mrb[0].mxu0 %v7543
        %v8599 = vpop.f32.mrb[0].mxu0
        %v8600 = vadd.f32 %v6997, %v8599
        %v8601 = vpop.f32.mrb[0].mxu0
        %v8602 = vpop.f32.mrb[0].mxu0
        %v8603 = vadd.f32 %v7001, %v8602
        %v8604 = vpop.f32.mrb[0].mxu0
        %8605 = vmatprep.mubr.bf16.mxu0 %v7548
        %8606 = vmatmul.mubr.bf16.gmra.mrb[0].mxu0 %v7547
        %v8607 = vpop.f32.mrb[0].mxu0
        %v8608 = vadd.f32 %v7005, %v8607
        %v8609 = vpop.f32.mrb[0].mxu0
        %v8610 = vpop.f32.mrb[0].mxu0
        %v8611 = vadd.f32 %v7009, %v8610
        %v8612 = vpop.f32.mrb[0].mxu0
        %8613 = vmatprep.mubr.bf16.mxu0 %v7552
        %8614 = vmatmul.mubr.bf16.gmra.mrb[0].mxu0 %v7551
        %v8615 = vpop.f32.mrb[0].mxu0
        %v8616 = vadd.f32 %v7013, %v8615
        %v8617 = vpop.f32.mrb[0].mxu0
        %v8618 = vpop.f32.mrb[0].mxu0
        %v8619 = vadd.f32 %v7017, %v8618
        %v8620 = vpop.f32.mrb[0].mxu0
        %8621 = vmatprep.mubr.bf16.mxu0 %v7556
        %8622 = vmatmul.mubr.bf16.gmra.mrb[0].mxu0 %v7555
        %v8623 = vpop.f32.mrb[0].mxu0
        %v8624 = vadd.f32 %v7021, %v8623
        %v8625 = vpop.f32.mrb[0].mxu0
        %v8626 = vpop.f32.mrb[0].mxu0
        %v8627 = vadd.f32 %v7025, %v8626
        %v8628 = vpop.f32.mrb[0].mxu0
        %8629 = vmatprep.mubr.bf16.mxu0 %v7560
        %8630 = vmatmul.mubr.bf16.gmra.mrb[0].mxu0 %v7559
        %v8631 = vpop.f32.mrb[0].mxu0
        %v8632 = vadd.f32 %v7029, %v8631
        %v8633 = vpop.f32.mrb[0].mxu0
        %v8634 = vpop.f32.mrb[0].mxu0
        %v8635 = vadd.f32 %v7033, %v8634
        %v8636 = vpop.f32.mrb[0].mxu0
        %8637 = vmatprep.mubr.bf16.mxu0 %v7564
        %8638 = vmatmul.mubr.bf16.gmra.mrb[0].mxu0 %v7563
        %v8639 = vpop.f32.mrb[0].mxu0
        %v8640 = vadd.f32 %v7037, %v8639
        %v8641 = vpop.f32.mrb[0].mxu0
        %v8642 = vpop.f32.mrb[0].mxu0
        %v8643 = vadd.f32 %v7041, %v8642
        %v8644 = vpop.f32.mrb[0].mxu0
        %8645 = vmatprep.mubr.bf16.mxu0 %v7568
        %8646 = vmatmul.mubr.bf16.gmra.mrb[0].mxu0 %v7567
        %v8647 = vpop.f32.mrb[0].mxu0
        %v8648 = vadd.f32 %v7045, %v8647
        %v8649 = vpop.f32.mrb[0].mxu0
        %v8650 = vpop.f32.mrb[0].mxu0
        %v8651 = vadd.f32 %v7049, %v8650
        %v8652 = vpop.f32.mrb[0].mxu0
        %8653 = vmatprep.mubr.bf16.mxu0 %v7572
        %8654 = vmatmul.mubr.bf16.gmra.mrb[0].mxu0 %v7571
        %v8655 = vpop.f32.mrb[0].mxu0
        %v8656 = vadd.f32 %v7053, %v8655
        %v8657 = vpop.f32.mrb[0].mxu0
        %v8658 = vpop.f32.mrb[0].mxu0
        %v8659 = vadd.f32 %v7057, %v8658
        %v8660 = vpop.f32.mrb[0].mxu0
        %8661 = vmatprep.mubr.bf16.mxu0 %v7576
        %8662 = vmatmul.mubr.bf16.gmra.mrb[0].mxu0 %v7575
        %v8663 = vpop.f32.mrb[0].mxu0
        %v8664 = vadd.f32 %v7061, %v8663
        %v8665 = vpop.f32.mrb[0].mxu0
        %v8666 = vpop.f32.mrb[0].mxu0
        %v8667 = vadd.f32 %v7065, %v8666
        %v8668 = vpop.f32.mrb[0].mxu0
        %8669 = vdwg.mxu0
        %8670 = vmatprep.subr.bf16.mxu0 0
        %8671 = vmatpush1.bf16.msra.mxu0 %v8365
        %8672 = vmatprep.subr.bf16.mxu0 0
        %8673 = vmatpush1.bf16.msra.mxu0 %v8366
        %8674 = vmatprep.subr.bf16.mxu0 0
        %8675 = vmatpush1.bf16.msra.mxu0 %v8367
        %8676 = vmatprep.subr.bf16.mxu0 0
        %8677 = vmatpush1.bf16.msra.mxu0 %v8368
        %8678 = vmatprep.subr.bf16.mxu0 0
        %8679 = vmatpush1.bf16.msra.mxu0 %v8369
        %8680 = vmatprep.subr.bf16.mxu0 0
        %8681 = vmatpush1.bf16.msra.mxu0 %v8370
        %8682 = vmatprep.subr.bf16.mxu0 0
        %8683 = vmatpush1.bf16.msra.mxu0 %v8371
        %8684 = vmatprep.subr.bf16.mxu0 0
        %8685 = vmatpush1.bf16.msra.mxu0 %v8372
        %8686 = vmatprep.subr.bf16.mxu0 0
        %8687 = vmatpush1.bf16.msra.mxu0 %v8373
        %8688 = vmatprep.subr.bf16.mxu0 0
        %8689 = vmatpush1.bf16.msra.mxu0 %v8374
        %8690 = vmatprep.subr.bf16.mxu0 0
        %8691 = vmatpush1.bf16.msra.mxu0 %v8375
        %8692 = vmatprep.subr.bf16.mxu0 0
        %8693 = vmatpush1.bf16.msra.mxu0 %v8376
        %8694 = vmatprep.subr.bf16.mxu0 0
        %8695 = vmatpush1.bf16.msra.mxu0 %v8377
        %8696 = vmatprep.subr.bf16.mxu0 0
        %8697 = vmatpush1.bf16.msra.mxu0 %v8378
        %8698 = vmatprep.subr.bf16.mxu0 0
        %8699 = vmatpush1.bf16.msra.mxu0 %v8379
        %8700 = vmatprep.subr.bf16.mxu0 0
        %8701 = vmatpush1.bf16.msra.mxu0 %v8380
        %8702 = vmatprep.mubr.bf16.mxu0 %v7454
        %8703 = vmatmul.mubr.bf16.gmra.mrb[0].mxu0 %v7453
        %v8704 = vpop.f32.mrb[0].mxu0
        %v8705 = vadd.f32 %v8416, %v8704
        %v8706 = vpop.f32.mrb[0].mxu0
        %v8707 = vpop.f32.mrb[0].mxu0
        %v8708 = vadd.f32 %v8419, %v8707
        %v8709 = vpop.f32.mrb[0].mxu0
        %8710 = vmatprep.mubr.bf16.mxu0 %v7458
        %8711 = vmatmul.mubr.bf16.gmra.mrb[0].mxu0 %v7457
        %v8712 = vpop.f32.mrb[0].mxu0
        %v8713 = vadd.f32 %v8424, %v8712
        %v8714 = vpop.f32.mrb[0].mxu0
        %v8715 = vpop.f32.mrb[0].mxu0
        %v8716 = vadd.f32 %v8427, %v8715
        %v8717 = vpop.f32.mrb[0].mxu0
        %8718 = vmatprep.mubr.bf16.mxu0 %v7462
        %8719 = vmatmul.mubr.bf16.gmra.mrb[0].mxu0 %v7461
        %v8720 = vpop.f32.mrb[0].mxu0
        %v8721 = vadd.f32 %v8432, %v8720
        %v8722 = vpop.f32.mrb[0].mxu0
        %v8723 = vpop.f32.mrb[0].mxu0
        %v8724 = vadd.f32 %v8435, %v8723
        %v8725 = vpop.f32.mrb[0].mxu0
        %8726 = vmatprep.mubr.bf16.mxu0 %v7466
        %8727 = vmatmul.mubr.bf16.gmra.mrb[0].mxu0 %v7465
        %v8728 = vpop.f32.mrb[0].mxu0
        %v8729 = vadd.f32 %v8440, %v8728
        %v8730 = vpop.f32.mrb[0].mxu0
        %v8731 = vpop.f32.mrb[0].mxu0
        %v8732 = vadd.f32 %v8443, %v8731
        %v8733 = vpop.f32.mrb[0].mxu0
        %8734 = vmatprep.mubr.bf16.mxu0 %v7470
        %8735 = vmatmul.mubr.bf16.gmra.mrb[0].mxu0 %v7469
        %v8736 = vpop.f32.mrb[0].mxu0
        %v8737 = vadd.f32 %v8448, %v8736
        %v8738 = vpop.f32.mrb[0].mxu0
        %v8739 = vpop.f32.mrb[0].mxu0
        %v8740 = vadd.f32 %v8451, %v8739
        %v8741 = vpop.f32.mrb[0].mxu0
        %8742 = vmatprep.mubr.bf16.mxu0 %v7474
        %8743 = vmatmul.mubr.bf16.gmra.mrb[0].mxu0 %v7473
        %v8744 = vpop.f32.mrb[0].mxu0
        %v8745 = vadd.f32 %v8456, %v8744
        %v8746 = vpop.f32.mrb[0].mxu0
        %v8747 = vpop.f32.mrb[0].mxu0
        %v8748 = vadd.f32 %v8459, %v8747
        %v8749 = vpop.f32.mrb[0].mxu0
        %8750 = vmatprep.mubr.bf16.mxu0 %v7478
        %8751 = vmatmul.mubr.bf16.gmra.mrb[0].mxu0 %v7477
        %v8752 = vpop.f32.mrb[0].mxu0
        %v8753 = vadd.f32 %v8464, %v8752
        %v8754 = vpop.f32.mrb[0].mxu0
        %v8755 = vpop.f32.mrb[0].mxu0
        %v8756 = vadd.f32 %v8467, %v8755
        %v8757 = vpop.f32.mrb[0].mxu0
        %8758 = vmatprep.mubr.bf16.mxu0 %v7482
        %8759 = vmatmul.mubr.bf16.gmra.mrb[0].mxu0 %v7481
        %v8760 = vpop.f32.mrb[0].mxu0
        %v8761 = vadd.f32 %v8472, %v8760
        %v8762 = vpop.f32.mrb[0].mxu0
        %v8763 = vpop.f32.mrb[0].mxu0
        %v8764 = vadd.f32 %v8475, %v8763
        %v8765 = vpop.f32.mrb[0].mxu0
        %8766 = vmatprep.mubr.bf16.mxu0 %v7486
        %8767 = vmatmul.mubr.bf16.gmra.mrb[0].mxu0 %v7485
        %v8768 = vpop.f32.mrb[0].mxu0
        %v8769 = vadd.f32 %v8480, %v8768
        %v8770 = vpop.f32.mrb[0].mxu0
        %v8771 = vpop.f32.mrb[0].mxu0
        %v8772 = vadd.f32 %v8483, %v8771
        %v8773 = vpop.f32.mrb[0].mxu0
        %8774 = vmatprep.mubr.bf16.mxu0 %v7490
        %8775 = vmatmul.mubr.bf16.gmra.mrb[0].mxu0 %v7489
        %v8776 = vpop.f32.mrb[0].mxu0
        %v8777 = vadd.f32 %v8488, %v8776
        %v8778 = vpop.f32.mrb[0].mxu0
        %v8779 = vpop.f32.mrb[0].mxu0
        %v8780 = vadd.f32 %v8491, %v8779
        %v8781 = vpop.f32.mrb[0].mxu0
        %8782 = vmatprep.mubr.bf16.mxu0 %v7494
        %8783 = vmatmul.mubr.bf16.gmra.mrb[0].mxu0 %v7493
        %v8784 = vpop.f32.mrb[0].mxu0
        %v8785 = vadd.f32 %v8496, %v8784
        %v8786 = vpop.f32.mrb[0].mxu0
        %v8787 = vpop.f32.mrb[0].mxu0
        %v8788 = vadd.f32 %v8499, %v8787
        %v8789 = vpop.f32.mrb[0].mxu0
        %8790 = vmatprep.mubr.bf16.mxu0 %v7498
        %8791 = vmatmul.mubr.bf16.gmra.mrb[0].mxu0 %v7497
        %v8792 = vpop.f32.mrb[0].mxu0
        %v8793 = vadd.f32 %v8504, %v8792
        %v8794 = vpop.f32.mrb[0].mxu0
        %v8795 = vpop.f32.mrb[0].mxu0
        %v8796 = vadd.f32 %v8507, %v8795
        %v8797 = vpop.f32.mrb[0].mxu0
        %8798 = vmatprep.mubr.bf16.mxu0 %v7502
        %8799 = vmatmul.mubr.bf16.gmra.mrb[0].mxu0 %v7501
        %v8800 = vpop.f32.mrb[0].mxu0
        %v8801 = vadd.f32 %v8512, %v8800
        %v8802 = vpop.f32.mrb[0].mxu0
        %v8803 = vpop.f32.mrb[0].mxu0
        %v8804 = vadd.f32 %v8515, %v8803
        %v8805 = vpop.f32.mrb[0].mxu0
        %8806 = vmatprep.mubr.bf16.mxu0 %v7506
        %8807 = vmatmul.mubr.bf16.gmra.mrb[0].mxu0 %v7505
        %v8808 = vpop.f32.mrb[0].mxu0
        %v8809 = vadd.f32 %v8520, %v8808
        %v8810 = vpop.f32.mrb[0].mxu0
        %v8811 = vpop.f32.mrb[0].mxu0
        %v8812 = vadd.f32 %v8523, %v8811
        %v8813 = vpop.f32.mrb[0].mxu0
        %8814 = vmatprep.mubr.bf16.mxu0 %v7510
        %8815 = vmatmul.mubr.bf16.gmra.mrb[0].mxu0 %v7509
        %v8816 = vpop.f32.mrb[0].mxu0
        %v8817 = vadd.f32 %v8528, %v8816
        %v8818 = vpop.f32.mrb[0].mxu0
        %v8819 = vpop.f32.mrb[0].mxu0
        %v8820 = vadd.f32 %v8531, %v8819
        %v8821 = vpop.f32.mrb[0].mxu0
        %8822 = vmatprep.mubr.bf16.mxu0 %v7514
        %8823 = vmatmul.mubr.bf16.gmra.mrb[0].mxu0 %v7513
        %v8824 = vpop.f32.mrb[0].mxu0
        %v8825 = vadd.f32 %v8536, %v8824
        %v8826 = vpop.f32.mrb[0].mxu0
        %v8827 = vpop.f32.mrb[0].mxu0
        %v8828 = vadd.f32 %v8539, %v8827
        %v8829 = vpop.f32.mrb[0].mxu0
        %8830 = vmatprep.mubr.bf16.mxu0 %v7518
        %8831 = vmatmul.mubr.bf16.gmra.mrb[0].mxu0 %v7517
        %v8832 = vpop.f32.mrb[0].mxu0
        %v8833 = vadd.f32 %v8544, %v8832
        %v8834 = vpop.f32.mrb[0].mxu0
        %v8835 = vpop.f32.mrb[0].mxu0
        %v8836 = vadd.f32 %v8547, %v8835
        %v8837 = vpop.f32.mrb[0].mxu0
        %8838 = vmatprep.mubr.bf16.mxu0 %v7522
        %8839 = vmatmul.mubr.bf16.gmra.mrb[0].mxu0 %v7521
        %v8840 = vpop.f32.mrb[0].mxu0
        %v8841 = vadd.f32 %v8552, %v8840
        %v8842 = vpop.f32.mrb[0].mxu0
        %v8843 = vpop.f32.mrb[0].mxu0
        %v8844 = vadd.f32 %v8555, %v8843
        %v8845 = vpop.f32.mrb[0].mxu0
        %8846 = vmatprep.mubr.bf16.mxu0 %v7526
        %8847 = vmatmul.mubr.bf16.gmra.mrb[0].mxu0 %v7525
        %v8848 = vpop.f32.mrb[0].mxu0
        %v8849 = vadd.f32 %v8560, %v8848
        %v8850 = vpop.f32.mrb[0].mxu0
        %v8851 = vpop.f32.mrb[0].mxu0
        %v8852 = vadd.f32 %v8563, %v8851
        %v8853 = vpop.f32.mrb[0].mxu0
        %8854 = vmatprep.mubr.bf16.mxu0 %v7530
        %8855 = vmatmul.mubr.bf16.gmra.mrb[0].mxu0 %v7529
        %v8856 = vpop.f32.mrb[0].mxu0
        %v8857 = vadd.f32 %v8568, %v8856
        %v8858 = vpop.f32.mrb[0].mxu0
        %v8859 = vpop.f32.mrb[0].mxu0
        %v8860 = vadd.f32 %v8571, %v8859
        %v8861 = vpop.f32.mrb[0].mxu0
        %8862 = vmatprep.mubr.bf16.mxu0 %v7534
        %8863 = vmatmul.mubr.bf16.gmra.mrb[0].mxu0 %v7533
        %v8864 = vpop.f32.mrb[0].mxu0
        %v8865 = vadd.f32 %v8576, %v8864
        %v8866 = vpop.f32.mrb[0].mxu0
        %v8867 = vpop.f32.mrb[0].mxu0
        %v8868 = vadd.f32 %v8579, %v8867
        %v8869 = vpop.f32.mrb[0].mxu0
        %8870 = vmatprep.mubr.bf16.mxu0 %v7538
        %8871 = vmatmul.mubr.bf16.gmra.mrb[0].mxu0 %v7537
        %v8872 = vpop.f32.mrb[0].mxu0
        %v8873 = vadd.f32 %v8584, %v8872
        %v8874 = vpop.f32.mrb[0].mxu0
        %v8875 = vpop.f32.mrb[0].mxu0
        %v8876 = vadd.f32 %v8587, %v8875
        %v8877 = vpop.f32.mrb[0].mxu0
        %8878 = vmatprep.mubr.bf16.mxu0 %v7542
        %8879 = vmatmul.mubr.bf16.gmra.mrb[0].mxu0 %v7541
        %v8880 = vpop.f32.mrb[0].mxu0
        %v8881 = vadd.f32 %v8592, %v8880
        %v8882 = vpop.f32.mrb[0].mxu0
        %v8883 = vpop.f32.mrb[0].mxu0
        %v8884 = vadd.f32 %v8595, %v8883
        %v8885 = vpop.f32.mrb[0].mxu0
        %8886 = vmatprep.mubr.bf16.mxu0 %v7546
        %8887 = vmatmul.mubr.bf16.gmra.mrb[0].mxu0 %v7545
        %v8888 = vpop.f32.mrb[0].mxu0
        %v8889 = vadd.f32 %v8600, %v8888
        %v8890 = vpop.f32.mrb[0].mxu0
        %v8891 = vpop.f32.mrb[0].mxu0
        %v8892 = vadd.f32 %v8603, %v8891
        %v8893 = vpop.f32.mrb[0].mxu0
        %8894 = vmatprep.mubr.bf16.mxu0 %v7550
        %8895 = vmatmul.mubr.bf16.gmra.mrb[0].mxu0 %v7549
        %v8896 = vpop.f32.mrb[0].mxu0
        %v8897 = vadd.f32 %v8608, %v8896
        %v8898 = vpop.f32.mrb[0].mxu0
        %v8899 = vpop.f32.mrb[0].mxu0
        %v8900 = vadd.f32 %v8611, %v8899
        %v8901 = vpop.f32.mrb[0].mxu0
        %8902 = vmatprep.mubr.bf16.mxu0 %v7554
        %8903 = vmatmul.mubr.bf16.gmra.mrb[0].mxu0 %v7553
        %v8904 = vpop.f32.mrb[0].mxu0
        %v8905 = vadd.f32 %v8616, %v8904
        %v8906 = vpop.f32.mrb[0].mxu0
        %v8907 = vpop.f32.mrb[0].mxu0
        %v8908 = vadd.f32 %v8619, %v8907
        %v8909 = vpop.f32.mrb[0].mxu0
        %8910 = vmatprep.mubr.bf16.mxu0 %v7558
        %8911 = vmatmul.mubr.bf16.gmra.mrb[0].mxu0 %v7557
        %v8912 = vpop.f32.mrb[0].mxu0
        %v8913 = vadd.f32 %v8624, %v8912
        %v8914 = vpop.f32.mrb[0].mxu0
        %v8915 = vpop.f32.mrb[0].mxu0
        %v8916 = vadd.f32 %v8627, %v8915
        %v8917 = vpop.f32.mrb[0].mxu0
        %8918 = vmatprep.mubr.bf16.mxu0 %v7562
        %8919 = vmatmul.mubr.bf16.gmra.mrb[0].mxu0 %v7561
        %v8920 = vpop.f32.mrb[0].mxu0
        %v8921 = vadd.f32 %v8632, %v8920
        %v8922 = vpop.f32.mrb[0].mxu0
        %v8923 = vpop.f32.mrb[0].mxu0
        %v8924 = vadd.f32 %v8635, %v8923
        %v8925 = vpop.f32.mrb[0].mxu0
        %8926 = vmatprep.mubr.bf16.mxu0 %v7566
        %8927 = vmatmul.mubr.bf16.gmra.mrb[0].mxu0 %v7565
        %v8928 = vpop.f32.mrb[0].mxu0
        %v8929 = vadd.f32 %v8640, %v8928
        %v8930 = vpop.f32.mrb[0].mxu0
        %v8931 = vpop.f32.mrb[0].mxu0
        %v8932 = vadd.f32 %v8643, %v8931
        %v8933 = vpop.f32.mrb[0].mxu0
        %8934 = vmatprep.mubr.bf16.mxu0 %v7570
        %8935 = vmatmul.mubr.bf16.gmra.mrb[0].mxu0 %v7569
        %v8936 = vpop.f32.mrb[0].mxu0
        %v8937 = vadd.f32 %v8648, %v8936
        %v8938 = vpop.f32.mrb[0].mxu0
        %v8939 = vpop.f32.mrb[0].mxu0
        %v8940 = vadd.f32 %v8651, %v8939
        %v8941 = vpop.f32.mrb[0].mxu0
        %8942 = vmatprep.mubr.bf16.mxu0 %v7574
        %8943 = vmatmul.mubr.bf16.gmra.mrb[0].mxu0 %v7573
        %v8944 = vpop.f32.mrb[0].mxu0
        %v8945 = vadd.f32 %v8656, %v8944
        %v8946 = vpop.f32.mrb[0].mxu0
        %v8947 = vpop.f32.mrb[0].mxu0
        %v8948 = vadd.f32 %v8659, %v8947
        %v8949 = vpop.f32.mrb[0].mxu0
        %8950 = vmatprep.mubr.bf16.mxu0 %v7578
        %8951 = vmatmul.mubr.bf16.gmra.mrb[0].mxu0 %v7577
        %v8952 = vpop.f32.mrb[0].mxu0
        %v8953 = vadd.f32 %v8664, %v8952
        %v8954 = vpop.f32.mrb[0].mxu0
        %v8955 = vpop.f32.mrb[0].mxu0
        %v8956 = vadd.f32 %v8667, %v8955
        %v8957 = vpop.f32.mrb[0].mxu0
        %8958 = vdwg.mxu0
        %v8959 = vmax.f32 %v8705, 0.0
        %v8960 = vmax.f32 %v8708, 0.0
        %v8961 = vmax.f32 %v8713, 0.0
        %v8962 = vmax.f32 %v8716, 0.0
        %v8963 = vmax.f32 %v8721, 0.0
        %v8964 = vmax.f32 %v8724, 0.0
        %v8965 = vmax.f32 %v8729, 0.0
        %v8966 = vmax.f32 %v8732, 0.0
        %v8967 = vmax.f32 %v8737, 0.0
        %v8968 = vmax.f32 %v8740, 0.0
        %v8969 = vmax.f32 %v8745, 0.0
        %v8970 = vmax.f32 %v8748, 0.0
        %v8971 = vmax.f32 %v8753, 0.0
        %v8972 = vmax.f32 %v8756, 0.0
        %v8973 = vmax.f32 %v8761, 0.0
        %v8974 = vmax.f32 %v8764, 0.0
        %v8975 = vmax.f32 %v8769, 0.0
        %v8976 = vmax.f32 %v8772, 0.0
        %v8977 = vmax.f32 %v8777, 0.0
        %v8978 = vmax.f32 %v8780, 0.0
        %v8979 = vmax.f32 %v8785, 0.0
        %v8980 = vmax.f32 %v8788, 0.0
        %v8981 = vmax.f32 %v8793, 0.0
        %v8982 = vmax.f32 %v8796, 0.0
        %v8983 = vmax.f32 %v8801, 0.0
        %v8984 = vmax.f32 %v8804, 0.0
        %v8985 = vmax.f32 %v8809, 0.0
        %v8986 = vmax.f32 %v8812, 0.0
        %v8987 = vmax.f32 %v8817, 0.0
        %v8988 = vmax.f32 %v8820, 0.0
        %v8989 = vmax.f32 %v8825, 0.0
        %v8990 = vmax.f32 %v8828, 0.0
        %v8991 = vmax.f32 %v8833, 0.0
        %v8992 = vmax.f32 %v8836, 0.0
        %v8993 = vmax.f32 %v8841, 0.0
        %v8994 = vmax.f32 %v8844, 0.0
        %v8995 = vmax.f32 %v8849, 0.0
        %v8996 = vmax.f32 %v8852, 0.0
        %v8997 = vmax.f32 %v8857, 0.0
        %v8998 = vmax.f32 %v8860, 0.0
        %v8999 = vmax.f32 %v8865, 0.0
        %v9000 = vmax.f32 %v8868, 0.0
        %v9001 = vmax.f32 %v8873, 0.0
        %v9002 = vmax.f32 %v8876, 0.0
        %v9003 = vmax.f32 %v8881, 0.0
        %v9004 = vmax.f32 %v8884, 0.0
        %v9005 = vmax.f32 %v8889, 0.0
        %v9006 = vmax.f32 %v8892, 0.0
        %v9007 = vmax.f32 %v8897, 0.0
        %v9008 = vmax.f32 %v8900, 0.0
        %v9009 = vmax.f32 %v8905, 0.0
        %v9010 = vmax.f32 %v8908, 0.0
        %v9011 = vmax.f32 %v8913, 0.0
        %v9012 = vmax.f32 %v8916, 0.0
        %v9013 = vmax.f32 %v8921, 0.0
        %v9014 = vmax.f32 %v8924, 0.0
        %v9015 = vmax.f32 %v8929, 0.0
        %v9016 = vmax.f32 %v8932, 0.0
        %v9017 = vmax.f32 %v8937, 0.0
        %v9018 = vmax.f32 %v8940, 0.0
        %v9019 = vmax.f32 %v8945, 0.0
        %v9020 = vmax.f32 %v8948, 0.0
        %v9021 = vmax.f32 %v8953, 0.0
        %v9022 = vmax.f32 %v8956, 0.0
        %9023 = vset.pattern.permute.xlu0 6
        %9024 = vperm.xlu0 %9023, %v342
        %v9025 = vpop.permute.xlu0 %9024
        %9027 = vset.pattern.permute.xlu0 6
        %9028 = vperm.xlu0 %9027, %v343
        %v9029 = vpop.permute.xlu0 %9028
        %9031 = vset.pattern.permute.xlu0 6
        %9032 = vperm.xlu0 %9031, %v344
        %v9033 = vpop.permute.xlu0 %9032
        %9035 = vset.pattern.permute.xlu0 6
        %9036 = vperm.xlu0 %9035, %v345
        %v9037 = vpop.permute.xlu0 %9036
        %9039 = vset.pattern.permute.xlu0 6
        %9040 = vperm.xlu0 %9039, %v346
        %v9041 = vpop.permute.xlu0 %9040
        %9043 = vset.pattern.permute.xlu0 6
        %9044 = vperm.xlu0 %9043, %v347
        %v9045 = vpop.permute.xlu0 %9044
        %9047 = vset.pattern.permute.xlu0 6
        %9048 = vperm.xlu0 %9047, %v348
        %v9049 = vpop.permute.xlu0 %9048
        %9051 = vset.pattern.permute.xlu0 6
        %9052 = vperm.xlu0 %9051, %v349
        %v9053 = vpop.permute.xlu0 %9052
        %9055 = vset.pattern.permute.xlu0 6
        %9056 = vperm.xlu0 %9055, %v350
        %v9057 = vpop.permute.xlu0 %9056
        %9059 = vset.pattern.permute.xlu0 6
        %9060 = vperm.xlu0 %9059, %v351
        %v9061 = vpop.permute.xlu0 %9060
        %9063 = vset.pattern.permute.xlu0 6
        %9064 = vperm.xlu0 %9063, %v352
        %v9065 = vpop.permute.xlu0 %9064
        %9067 = vset.pattern.permute.xlu0 6
        %9068 = vperm.xlu0 %9067, %v353
        %v9069 = vpop.permute.xlu0 %9068
        %9071 = vset.pattern.permute.xlu0 6
        %9072 = vperm.xlu0 %9071, %v354
        %v9073 = vpop.permute.xlu0 %9072
        %9075 = vset.pattern.permute.xlu0 6
        %9076 = vperm.xlu0 %9075, %v355
        %v9077 = vpop.permute.xlu0 %9076
        %9079 = vset.pattern.permute.xlu0 6
        %9080 = vperm.xlu0 %9079, %v356
        %v9081 = vpop.permute.xlu0 %9080
        %9083 = vset.pattern.permute.xlu0 6
        %9084 = vperm.xlu0 %9083, %v357
        %v9085 = vpop.permute.xlu0 %9084
        %9087 = vset.pattern.permute.xlu0 6
        %9088 = vperm.xlu0 %9087, %v358
        %v9089 = vpop.permute.xlu0 %9088
        %9091 = vset.pattern.permute.xlu0 6
        %9092 = vperm.xlu0 %9091, %v359
        %v9093 = vpop.permute.xlu0 %9092
        %9095 = vset.pattern.permute.xlu0 6
        %9096 = vperm.xlu0 %9095, %v360
        %v9097 = vpop.permute.xlu0 %9096
        %9099 = vset.pattern.permute.xlu0 6
        %9100 = vperm.xlu0 %9099, %v361
        %v9101 = vpop.permute.xlu0 %9100
        %9103 = vset.pattern.permute.xlu0 6
        %9104 = vperm.xlu0 %9103, %v362
        %v9105 = vpop.permute.xlu0 %9104
        %9107 = vset.pattern.permute.xlu0 6
        %9108 = vperm.xlu0 %9107, %v363
        %v9109 = vpop.permute.xlu0 %9108
        %9111 = vset.pattern.permute.xlu0 6
        %9112 = vperm.xlu0 %9111, %v364
        %v9113 = vpop.permute.xlu0 %9112
        %9115 = vset.pattern.permute.xlu0 6
        %9116 = vperm.xlu0 %9115, %v365
        %v9117 = vpop.permute.xlu0 %9116
        %9119 = vset.pattern.permute.xlu0 6
        %9120 = vperm.xlu0 %9119, %v366
        %v9121 = vpop.permute.xlu0 %9120
        %9123 = vset.pattern.permute.xlu0 6
        %9124 = vperm.xlu0 %9123, %v367
        %v9125 = vpop.permute.xlu0 %9124
        %9127 = vset.pattern.permute.xlu0 6
        %9128 = vperm.xlu0 %9127, %v368
        %v9129 = vpop.permute.xlu0 %9128
        %9131 = vset.pattern.permute.xlu0 6
        %9132 = vperm.xlu0 %9131, %v369
        %v9133 = vpop.permute.xlu0 %9132
        %9135 = vset.pattern.permute.xlu0 6
        %9136 = vperm.xlu0 %9135, %v370
        %v9137 = vpop.permute.xlu0 %9136
        %9139 = vset.pattern.permute.xlu0 6
        %9140 = vperm.xlu0 %9139, %v371
        %v9141 = vpop.permute.xlu0 %9140
        %9143 = vset.pattern.permute.xlu0 6
        %9144 = vperm.xlu0 %9143, %v372
        %v9145 = vpop.permute.xlu0 %9144
        %9147 = vset.pattern.permute.xlu0 6
        %9148 = vperm.xlu0 %9147, %v373
        %v9149 = vpop.permute.xlu0 %9148
        %9151 = vset.pattern.permute.xlu0 6
        %9152 = vperm.xlu0 %9151, %v374
        %v9153 = vpop.permute.xlu0 %9152
        %9155 = vset.pattern.permute.xlu0 6
        %9156 = vperm.xlu0 %9155, %v375
        %v9157 = vpop.permute.xlu0 %9156
        %9159 = vset.pattern.permute.xlu0 6
        %9160 = vperm.xlu0 %9159, %v376
        %v9161 = vpop.permute.xlu0 %9160
        %9163 = vset.pattern.permute.xlu0 6
        %9164 = vperm.xlu0 %9163, %v377
        %v9165 = vpop.permute.xlu0 %9164
        %9167 = vset.pattern.permute.xlu0 6
        %9168 = vperm.xlu0 %9167, %v378
        %v9169 = vpop.permute.xlu0 %9168
        %9171 = vset.pattern.permute.xlu0 6
        %9172 = vperm.xlu0 %9171, %v379
        %v9173 = vpop.permute.xlu0 %9172
        %9175 = vset.pattern.permute.xlu0 6
        %9176 = vperm.xlu0 %9175, %v380
        %v9177 = vpop.permute.xlu0 %9176
        %9179 = vset.pattern.permute.xlu0 6
        %9180 = vperm.xlu0 %9179, %v381
        %v9181 = vpop.permute.xlu0 %9180
        %9183 = vset.pattern.permute.xlu0 6
        %9184 = vperm.xlu0 %9183, %v382
        %v9185 = vpop.permute.xlu0 %9184
        %9187 = vset.pattern.permute.xlu0 6
        %9188 = vperm.xlu0 %9187, %v383
        %v9189 = vpop.permute.xlu0 %9188
        %9191 = vset.pattern.permute.xlu0 6
        %9192 = vperm.xlu0 %9191, %v384
        %v9193 = vpop.permute.xlu0 %9192
        %9195 = vset.pattern.permute.xlu0 6
        %9196 = vperm.xlu0 %9195, %v385
        %v9197 = vpop.permute.xlu0 %9196
        %9199 = vset.pattern.permute.xlu0 6
        %9200 = vperm.xlu0 %9199, %v386
        %v9201 = vpop.permute.xlu0 %9200
        %9203 = vset.pattern.permute.xlu0 6
        %9204 = vperm.xlu0 %9203, %v387
        %v9205 = vpop.permute.xlu0 %9204
        %9207 = vset.pattern.permute.xlu0 6
        %9208 = vperm.xlu0 %9207, %v388
        %v9209 = vpop.permute.xlu0 %9208
        %9211 = vset.pattern.permute.xlu0 6
        %9212 = vperm.xlu0 %9211, %v389
        %v9213 = vpop.permute.xlu0 %9212
        %9215 = vset.pattern.permute.xlu0 6
        %9216 = vperm.xlu0 %9215, %v390
        %v9217 = vpop.permute.xlu0 %9216
        %9219 = vset.pattern.permute.xlu0 6
        %9220 = vperm.xlu0 %9219, %v391
        %v9221 = vpop.permute.xlu0 %9220
        %9223 = vset.pattern.permute.xlu0 6
        %9224 = vperm.xlu0 %9223, %v392
        %v9225 = vpop.permute.xlu0 %9224
        %9227 = vset.pattern.permute.xlu0 6
        %9228 = vperm.xlu0 %9227, %v393
        %v9229 = vpop.permute.xlu0 %9228
        %9231 = vset.pattern.permute.xlu0 6
        %9232 = vperm.xlu0 %9231, %v394
        %v9233 = vpop.permute.xlu0 %9232
        %9235 = vset.pattern.permute.xlu0 6
        %9236 = vperm.xlu0 %9235, %v395
        %v9237 = vpop.permute.xlu0 %9236
        %9239 = vset.pattern.permute.xlu0 6
        %9240 = vperm.xlu0 %9239, %v396
        %v9241 = vpop.permute.xlu0 %9240
        %9243 = vset.pattern.permute.xlu0 6
        %9244 = vperm.xlu0 %9243, %v397
        %v9245 = vpop.permute.xlu0 %9244
        %9247 = vset.pattern.permute.xlu0 6
        %9248 = vperm.xlu0 %9247, %v398
        %v9249 = vpop.permute.xlu0 %9248
        %9251 = vset.pattern.permute.xlu0 6
        %9252 = vperm.xlu0 %9251, %v399
        %v9253 = vpop.permute.xlu0 %9252
        %9255 = vset.pattern.permute.xlu0 6
        %9256 = vperm.xlu0 %9255, %v400
        %v9257 = vpop.permute.xlu0 %9256
        %9259 = vset.pattern.permute.xlu0 6
        %9260 = vperm.xlu0 %9259, %v401
        %v9261 = vpop.permute.xlu0 %9260
        %9263 = vset.pattern.permute.xlu0 6
        %9264 = vperm.xlu0 %9263, %v402
        %v9265 = vpop.permute.xlu0 %9264
        %9267 = vset.pattern.permute.xlu0 6
        %9268 = vperm.xlu0 %9267, %v403
        %v9269 = vpop.permute.xlu0 %9268
        %9271 = vset.pattern.permute.xlu0 6
        %9272 = vperm.xlu0 %9271, %v404
        %v9273 = vpop.permute.xlu0 %9272
        %9275 = vset.pattern.permute.xlu0 6
        %9276 = vperm.xlu0 %9275, %v405
        %v9277 = vpop.permute.xlu0 %9276
        %v9279 = vmul.f32 %v8285, %v9025
        %v9280 = vmul.f32 %v8286, %v9029
        %v9281 = vmul.f32 %v8287, %v9033
        %v9282 = vmul.f32 %v8288, %v9037
        %v9283 = vmul.f32 %v8289, %v9041
        %v9284 = vmul.f32 %v8290, %v9045
        %v9285 = vmul.f32 %v8291, %v9049
        %v9286 = vmul.f32 %v8292, %v9053
        %v9287 = vmul.f32 %v8293, %v9057
        %v9288 = vmul.f32 %v8294, %v9061
        %v9289 = vmul.f32 %v8295, %v9065
        %v9290 = vmul.f32 %v8296, %v9069
        %v9291 = vmul.f32 %v8297, %v9073
        %v9292 = vmul.f32 %v8298, %v9077
        %v9293 = vmul.f32 %v8299, %v9081
        %v9294 = vmul.f32 %v8300, %v9085
        %v9295 = vmul.f32 %v8301, %v9089
        %v9296 = vmul.f32 %v8302, %v9093
        %v9297 = vmul.f32 %v8303, %v9097
        %v9298 = vmul.f32 %v8304, %v9101
        %v9299 = vmul.f32 %v8305, %v9105
        %v9300 = vmul.f32 %v8306, %v9109
        %v9301 = vmul.f32 %v8307, %v9113
        %v9302 = vmul.f32 %v8308, %v9117
        %v9303 = vmul.f32 %v8309, %v9121
        %v9304 = vmul.f32 %v8310, %v9125
        %v9305 = vmul.f32 %v8311, %v9129
        %v9306 = vmul.f32 %v8312, %v9133
        %v9307 = vmul.f32 %v8313, %v9137
        %v9308 = vmul.f32 %v8314, %v9141
        %v9309 = vmul.f32 %v8315, %v9145
        %v9310 = vmul.f32 %v8316, %v9149
        %v9311 = vmul.f32 %v8317, %v9153
        %v9312 = vmul.f32 %v8318, %v9157
        %v9313 = vmul.f32 %v8319, %v9161
        %v9314 = vmul.f32 %v8320, %v9165
        %v9315 = vmul.f32 %v8321, %v9169
        %v9316 = vmul.f32 %v8322, %v9173
        %v9317 = vmul.f32 %v8323, %v9177
        %v9318 = vmul.f32 %v8324, %v9181
        %v9319 = vmul.f32 %v8325, %v9185
        %v9320 = vmul.f32 %v8326, %v9189
        %v9321 = vmul.f32 %v8327, %v9193
        %v9322 = vmul.f32 %v8328, %v9197
        %v9323 = vmul.f32 %v8329, %v9201
        %v9324 = vmul.f32 %v8330, %v9205
        %v9325 = vmul.f32 %v8331, %v9209
        %v9326 = vmul.f32 %v8332, %v9213
        %v9327 = vmul.f32 %v8333, %v9217
        %v9328 = vmul.f32 %v8334, %v9221
        %v9329 = vmul.f32 %v8335, %v9225
        %v9330 = vmul.f32 %v8336, %v9229
        %v9331 = vmul.f32 %v8337, %v9233
        %v9332 = vmul.f32 %v8338, %v9237
        %v9333 = vmul.f32 %v8339, %v9241
        %v9334 = vmul.f32 %v8340, %v9245
        %v9335 = vmul.f32 %v8341, %v9249
        %v9336 = vmul.f32 %v8342, %v9253
        %v9337 = vmul.f32 %v8343, %v9257
        %v9338 = vmul.f32 %v8344, %v9261
        %v9339 = vmul.f32 %v8345, %v9265
        %v9340 = vmul.f32 %v8346, %v9269
        %v9341 = vmul.f32 %v8347, %v9273
        %v9342 = vmul.f32 %v8348, %v9277
        %v9343 = vadd.f32 %v9279, %v9280
        %v9344 = vadd.f32 %v9343, %v9281
        %v9345 = vadd.f32 %v9344, %v9282
        %v9346 = vadd.f32 %v9345, %v9283
        %v9347 = vadd.f32 %v9346, %v9284
        %v9348 = vadd.f32 %v9347, %v9285
        %v9349 = vadd.f32 %v9348, %v9286
        %v9350 = vadd.f32 %v9349, %v9287
        %v9351 = vadd.f32 %v9350, %v9288
        %v9352 = vadd.f32 %v9351, %v9289
        %v9353 = vadd.f32 %v9352, %v9290
        %v9354 = vadd.f32 %v9353, %v9291
        %v9355 = vadd.f32 %v9354, %v9292
        %v9356 = vadd.f32 %v9355, %v9293
        %v9357 = vadd.f32 %v9356, %v9294
        %v9358 = vadd.f32 %v9357, %v9295
        %v9359 = vadd.f32 %v9358, %v9296
        %v9360 = vadd.f32 %v9359, %v9297
        %v9361 = vadd.f32 %v9360, %v9298
        %v9362 = vadd.f32 %v9361, %v9299
        %v9363 = vadd.f32 %v9362, %v9300
        %v9364 = vadd.f32 %v9363, %v9301
        %v9365 = vadd.f32 %v9364, %v9302
        %v9366 = vadd.f32 %v9365, %v9303
        %v9367 = vadd.f32 %v9366, %v9304
        %v9368 = vadd.f32 %v9367, %v9305
        %v9369 = vadd.f32 %v9368, %v9306
        %v9370 = vadd.f32 %v9369, %v9307
        %v9371 = vadd.f32 %v9370, %v9308
        %v9372 = vadd.f32 %v9371, %v9309
        %v9373 = vadd.f32 %v9372, %v9310
        %v9374 = vadd.f32 %v9373, %v9311
        %v9375 = vadd.f32 %v9374, %v9312
        %v9376 = vadd.f32 %v9375, %v9313
        %v9377 = vadd.f32 %v9376, %v9314
        %v9378 = vadd.f32 %v9377, %v9315
        %v9379 = vadd.f32 %v9378, %v9316
        %v9380 = vadd.f32 %v9379, %v9317
        %v9381 = vadd.f32 %v9380, %v9318
        %v9382 = vadd.f32 %v9381, %v9319
        %v9383 = vadd.f32 %v9382, %v9320
        %v9384 = vadd.f32 %v9383, %v9321
        %v9385 = vadd.f32 %v9384, %v9322
        %v9386 = vadd.f32 %v9385, %v9323
        %v9387 = vadd.f32 %v9386, %v9324
        %v9388 = vadd.f32 %v9387, %v9325
        %v9389 = vadd.f32 %v9388, %v9326
        %v9390 = vadd.f32 %v9389, %v9327
        %v9391 = vadd.f32 %v9390, %v9328
        %v9392 = vadd.f32 %v9391, %v9329
        %v9393 = vadd.f32 %v9392, %v9330
        %v9394 = vadd.f32 %v9393, %v9331
        %v9395 = vadd.f32 %v9394, %v9332
        %v9396 = vadd.f32 %v9395, %v9333
        %v9397 = vadd.f32 %v9396, %v9334
        %v9398 = vadd.f32 %v9397, %v9335
        %v9399 = vadd.f32 %v9398, %v9336
        %v9400 = vadd.f32 %v9399, %v9337
        %v9401 = vadd.f32 %v9400, %v9338
        %v9402 = vadd.f32 %v9401, %v9339
        %v9403 = vadd.f32 %v9402, %v9340
        %v9404 = vadd.f32 %v9403, %v9341
        %v9405 = vadd.f32 %v9404, %v9342
        %v9406 = vrot.slane %v9405, 4
        %v9407 = vadd.f32 %v9405, %v9406
        %v9408 = vrot.slane %v9407, 2
        %v9409 = vadd.f32 %v9407, %v9408
        %v9410 = vrot.slane %v9409, 1
        %v9411 = vadd.f32 %v9409, %v9410
        %v9412 = vstv %s406
        %v9413 = vadd.f32 %v9411, %v9412
        %v9414 = vlaneseq
        %vm9415 = vcmp.ge.s32.totalorder %v9414, 0
        %vm9416 = vcmp.lt.s32.totalorder %v9414, 128
        %vm9417 = vmand %vm9415, %vm9416
        %9418 = vst.msk [vmem:[%s339] sm:$0x1] %vm9417, %v9413
        %v9419 = vmul.f32 %v8959, %v9025
        %v9420 = vmul.f32 %v8960, %v9029
        %v9421 = vmul.f32 %v8961, %v9033
        %v9422 = vmul.f32 %v8962, %v9037
        %v9423 = vmul.f32 %v8963, %v9041
        %v9424 = vmul.f32 %v8964, %v9045
        %v9425 = vmul.f32 %v8965, %v9049
        %v9426 = vmul.f32 %v8966, %v9053
        %v9427 = vmul.f32 %v8967, %v9057
        %v9428 = vmul.f32 %v8968, %v9061
        %v9429 = vmul.f32 %v8969, %v9065
        %v9430 = vmul.f32 %v8970, %v9069
        %v9431 = vmul.f32 %v8971, %v9073
        %v9432 = vmul.f32 %v8972, %v9077
        %v9433 = vmul.f32 %v8973, %v9081
        %v9434 = vmul.f32 %v8974, %v9085
        %v9435 = vmul.f32 %v8975, %v9089
        %v9436 = vmul.f32 %v8976, %v9093
        %v9437 = vmul.f32 %v8977, %v9097
        %v9438 = vmul.f32 %v8978, %v9101
        %v9439 = vmul.f32 %v8979, %v9105
        %v9440 = vmul.f32 %v8980, %v9109
        %v9441 = vmul.f32 %v8981, %v9113
        %v9442 = vmul.f32 %v8982, %v9117
        %v9443 = vmul.f32 %v8983, %v9121
        %v9444 = vmul.f32 %v8984, %v9125
        %v9445 = vmul.f32 %v8985, %v9129
        %v9446 = vmul.f32 %v8986, %v9133
        %v9447 = vmul.f32 %v8987, %v9137
        %v9448 = vmul.f32 %v8988, %v9141
        %v9449 = vmul.f32 %v8989, %v9145
        %v9450 = vmul.f32 %v8990, %v9149
        %v9451 = vmul.f32 %v8991, %v9153
        %v9452 = vmul.f32 %v8992, %v9157
        %v9453 = vmul.f32 %v8993, %v9161
        %v9454 = vmul.f32 %v8994, %v9165
        %v9455 = vmul.f32 %v8995, %v9169
        %v9456 = vmul.f32 %v8996, %v9173
        %v9457 = vmul.f32 %v8997, %v9177
        %v9458 = vmul.f32 %v8998, %v9181
        %v9459 = vmul.f32 %v8999, %v9185
        %v9460 = vmul.f32 %v9000, %v9189
        %v9461 = vmul.f32 %v9001, %v9193
        %v9462 = vmul.f32 %v9002, %v9197
        %v9463 = vmul.f32 %v9003, %v9201
        %v9464 = vmul.f32 %v9004, %v9205
        %v9465 = vmul.f32 %v9005, %v9209
        %v9466 = vmul.f32 %v9006, %v9213
        %v9467 = vmul.f32 %v9007, %v9217
        %v9468 = vmul.f32 %v9008, %v9221
        %v9469 = vmul.f32 %v9009, %v9225
        %v9470 = vmul.f32 %v9010, %v9229
        %v9471 = vmul.f32 %v9011, %v9233
        %v9472 = vmul.f32 %v9012, %v9237
        %v9473 = vmul.f32 %v9013, %v9241
        %v9474 = vmul.f32 %v9014, %v9245
        %v9475 = vmul.f32 %v9015, %v9249
        %v9476 = vmul.f32 %v9016, %v9253
        %v9477 = vmul.f32 %v9017, %v9257
        %v9478 = vmul.f32 %v9018, %v9261
        %v9479 = vmul.f32 %v9019, %v9265
        %v9480 = vmul.f32 %v9020, %v9269
        %v9481 = vmul.f32 %v9021, %v9273
        %v9482 = vmul.f32 %v9022, %v9277
        %v9483 = vadd.f32 %v9419, %v9420
        %v9484 = vadd.f32 %v9483, %v9421
        %v9485 = vadd.f32 %v9484, %v9422
        %v9486 = vadd.f32 %v9485, %v9423
        %v9487 = vadd.f32 %v9486, %v9424
        %v9488 = vadd.f32 %v9487, %v9425
        %v9489 = vadd.f32 %v9488, %v9426
        %v9490 = vadd.f32 %v9489, %v9427
        %v9491 = vadd.f32 %v9490, %v9428
        %v9492 = vadd.f32 %v9491, %v9429
        %v9493 = vadd.f32 %v9492, %v9430
        %v9494 = vadd.f32 %v9493, %v9431
        %v9495 = vadd.f32 %v9494, %v9432
        %v9496 = vadd.f32 %v9495, %v9433
        %v9497 = vadd.f32 %v9496, %v9434
        %v9498 = vadd.f32 %v9497, %v9435
        %v9499 = vadd.f32 %v9498, %v9436
        %v9500 = vadd.f32 %v9499, %v9437
        %v9501 = vadd.f32 %v9500, %v9438
        %v9502 = vadd.f32 %v9501, %v9439
        %v9503 = vadd.f32 %v9502, %v9440
        %v9504 = vadd.f32 %v9503, %v9441
        %v9505 = vadd.f32 %v9504, %v9442
        %v9506 = vadd.f32 %v9505, %v9443
        %v9507 = vadd.f32 %v9506, %v9444
        %v9508 = vadd.f32 %v9507, %v9445
        %v9509 = vadd.f32 %v9508, %v9446
        %v9510 = vadd.f32 %v9509, %v9447
        %v9511 = vadd.f32 %v9510, %v9448
        %v9512 = vadd.f32 %v9511, %v9449
        %v9513 = vadd.f32 %v9512, %v9450
        %v9514 = vadd.f32 %v9513, %v9451
        %v9515 = vadd.f32 %v9514, %v9452
        %v9516 = vadd.f32 %v9515, %v9453
        %v9517 = vadd.f32 %v9516, %v9454
        %v9518 = vadd.f32 %v9517, %v9455
        %v9519 = vadd.f32 %v9518, %v9456
        %v9520 = vadd.f32 %v9519, %v9457
        %v9521 = vadd.f32 %v9520, %v9458
        %v9522 = vadd.f32 %v9521, %v9459
        %v9523 = vadd.f32 %v9522, %v9460
        %v9524 = vadd.f32 %v9523, %v9461
        %v9525 = vadd.f32 %v9524, %v9462
        %v9526 = vadd.f32 %v9525, %v9463
        %v9527 = vadd.f32 %v9526, %v9464
        %v9528 = vadd.f32 %v9527, %v9465
        %v9529 = vadd.f32 %v9528, %v9466
        %v9530 = vadd.f32 %v9529, %v9467
        %v9531 = vadd.f32 %v9530, %v9468
        %v9532 = vadd.f32 %v9531, %v9469
        %v9533 = vadd.f32 %v9532, %v9470
        %v9534 = vadd.f32 %v9533, %v9471
        %v9535 = vadd.f32 %v9534, %v9472
        %v9536 = vadd.f32 %v9535, %v9473
        %v9537 = vadd.f32 %v9536, %v9474
        %v9538 = vadd.f32 %v9537, %v9475
        %v9539 = vadd.f32 %v9538, %v9476
        %v9540 = vadd.f32 %v9539, %v9477
        %v9541 = vadd.f32 %v9540, %v9478
        %v9542 = vadd.f32 %v9541, %v9479
        %v9543 = vadd.f32 %v9542, %v9480
        %v9544 = vadd.f32 %v9543, %v9481
        %v9545 = vadd.f32 %v9544, %v9482
        %v9546 = vrot.slane %v9545, 4
        %v9547 = vadd.f32 %v9545, %v9546
        %v9548 = vrot.slane %v9547, 2
        %v9549 = vadd.f32 %v9547, %v9548
        %v9550 = vrot.slane %v9549, 1
        %v9551 = vadd.f32 %v9549, %v9550
        %v9552 = vadd.f32 %v9551, %v9412
        %9553 = vst.msk [vmem:[%s339 + $0x1] sm:$0x1] %vm9417, %v9552
        %s9554 = smul.u32 2, %s21
        %p9555 = scmp.lt.s32.totalorder %s9554, 3
        %s9556 = scalar_select %p9555, %s9554, 3
        %s9557 = scalar_lea.vmem %s7, %s9556
        // Predicated region
        $region61: #{generator_forward.1} parent=47 // pred_check
          %p9558 = pneg %p196
        $region62: #{generator_forward.1} parent=47 // pred_check_branch
          %9560 = sbr.rel (%p9558) target = $region64
        $region63: #{generator_forward.1} parent=47 // pred_region
          %s9561 = smul.u32 2, %s21
        $region64: #{generator_forward.1} parent=47 // pred_fallthru
          _
      $region48: #{generator_forward.1} parent=5 // pred_fallthru
        _
      %p9562 = scmp.le.s32.totalorder 2, %s16
      // Predicated region
      $region65: #{generator_forward.1} parent=5 // pred_check
        %p9563 = pneg %p9562
      $region66: #{generator_forward.1} parent=5 // pred_check_branch
        %9565 = sbr.rel (%p9563) target = $region68
      $region67: #{generator_forward.1} parent=5 // pred_region
        %s9566 = ssub.s32 %s16, 2
        // Predicated region
        $region69: #{generator_forward.1} parent=67 // pred_check
          %p9567 = pneg %p202
        $region70: #{generator_forward.1} parent=67 // pred_check_branch
          %9569 = sbr.rel (%p9567) target = $region72
        $region71: #{generator_forward.1} parent=67 // pred_region
          %s9570 = smul.u32 2, %s22
          %p9571 = scmp.lt.s32.totalorder %s9570, 3
          %s9572 = scalar_select %p9571, %s9570, 3
          %s9573 = scalar_lea.vmem %s7, %s9572
        $region72: #{generator_forward.1} parent=67 // pred_fallthru
          _
      $region68: #{generator_forward.1} parent=5 // pred_fallthru
        _
    $region6: #{generator_forward.1} parent=1 // loop_footer
      %s20 = sadd.s32 1, %s16
    $region7: #{generator_forward.1} parent=1 // loop_footer_branch
      %15 = sbr.rel target = $region3
    $region8: #{generator_forward.1} parent=1 // loop_exit
      _
    %9574 = vsyncpa [#allocation4], 1
    %s9575 = scalar_lea.sflag [#allocation4], 1
    %9576 = vsyncpa %s9575, 1
    %9577 = vsyncpa [#allocation6], 1

</llo_original>
